<compile_context>
chip_gen: v7x
topology: tpu7x:2x2x1
jax: 0.10.0
libtpu: 0.0.40
codegen_flags: <defaults>
</compile_context>

<pallas_src>
import functools

import jax
import jax.numpy as jnp
from jax.experimental import pallas as pl
from jax.experimental.pallas import tpu as pltpu


def _round_up(x, m):
    return (x + m - 1) // m * m


# ----------------------------- Pallas kernel -------------------------------

def cvae_kernel(x_ref, eps_ref,
                w1x_ref, b1_ref, w2_ref, b2_ref,
                w3z_ref, b3_ref, w4_ref, b4_ref,
                recon_ref, ml_ref, *, lat_p):
    # encode: h1 = relu([x | c | 0] @ [W1x; W1c; 0] + b1)
    # (class one-hot lives in x's zero-padding columns; exact)
    h1 = jnp.dot(x_ref[...], w1x_ref[...],
                 preferred_element_type=jnp.float32) + b1_ref[...]
    h1 = jnp.maximum(h1, 0.0)

    # fused latent head: [mu | logvar] in a single lane-dense (2*128) matmul
    ml = jnp.dot(h1.astype(jnp.bfloat16), w2_ref[...],
                 preferred_element_type=jnp.float32) + b2_ref[...]
    ml_ref[...] = ml                      # unmasked vst (width is a 128-multiple)

    mu = ml[:, :lat_p]
    logvar = ml[:, lat_p:]

    # reparameterize: z = mu + eps * exp(0.5 * logvar)   (f32 elementwise, EUP exp)
    # eps pad columns [latent_dim:latent_dim+num_classes] hold c; mu/logvar pads
    # are exactly 0 there, so z_pad = c exactly.
    z = mu + eps_ref[...] * jnp.exp(0.5 * logvar)

    # decode: h3 = relu([z | c | 0] @ [W3z; W3c; 0] + b3); recon = sigmoid(h3 @ W4 + b4)
    h3 = jnp.dot(z.astype(jnp.bfloat16), w3z_ref[...],
                 preferred_element_type=jnp.float32) + b3_ref[...]
    h3 = jnp.maximum(h3, 0.0)
    logits = jnp.dot(h3.astype(jnp.bfloat16), w4_ref[...],
                     preferred_element_type=jnp.float32) + b4_ref[...]
    recon_ref[...] = jax.nn.sigmoid(logits)


# --------------------------- parameter handling ------------------------------

def init_params(key, input_dim, hidden_dim, latent_dim, num_classes):
    """Raw f32 params, nn.Linear-style init, stored transposed [in, out].
    fc1 / fc3 weights are split into the x/z part and the class part."""
    def linear(key, fan_in, fan_out):
        kw, kb = jax.random.split(key)
        bound = 1.0 / jnp.sqrt(fan_in)
        w = jax.random.uniform(kw, (fan_in, fan_out), jnp.float32, -bound, bound)
        b = jax.random.uniform(kb, (1, fan_out), jnp.float32, -bound, bound)
        return w, b

    k1, k21, k22, k3, k4 = jax.random.split(key, 5)
    w1, b1 = linear(k1, input_dim + num_classes, hidden_dim)
    w21, b21 = linear(k21, hidden_dim, latent_dim)
    w22, b22 = linear(k22, hidden_dim, latent_dim)
    w3, b3 = linear(k3, latent_dim + num_classes, hidden_dim)
    w4, b4 = linear(k4, hidden_dim, input_dim)
    return {
        "w1x": w1[:input_dim], "w1c": w1[input_dim:], "b1": b1,
        "w21": w21, "b21": b21, "w22": w22, "b22": b22,
        "w3z": w3[:latent_dim], "w3c": w3[latent_dim:], "b3": b3,
        "w4": w4, "b4": b4,
    }


def prepare_params(p, input_dim, hidden_dim, latent_dim, num_classes):
    """Pad feature dims to MXU-friendly multiples, fold class weights into the
    padding rows of w1x / w3z, fuse mu/logvar head, cast MXU weights to bf16.
    All remaining padding is zero -> numerically exact."""
    IN_P = _round_up(input_dim, 128)        # 896: keep (not 1024) -- fewer bytes
    HID_P = _round_up(hidden_dim, 256)      # 512: 256-aligned K/N for v6e/v7x MXU
    LAT_P = _round_up(latent_dim, 128)      # 128

    assert input_dim + num_classes <= IN_P
    assert latent_dim + num_classes <= LAT_P

    # encoder weight: rows [0:784]=w1x, rows [784:794]=w1c, rest 0
    w1x = jnp.zeros((IN_P, HID_P), jnp.float32)
    w1x = w1x.at[:input_dim, :hidden_dim].set(p["w1x"])
    w1x = w1x.at[input_dim:input_dim + num_classes, :hidden_dim].set(p["w1c"])
    w1x = w1x.astype(jnp.bfloat16)

    # fused latent head [w21 | w22] (pads stay zero -> mu/logvar pads exactly 0)
    w2 = jnp.zeros((HID_P, 2 * LAT_P), jnp.float32)
    w2 = w2.at[:hidden_dim, :latent_dim].set(p["w21"])
    w2 = w2.at[:hidden_dim, LAT_P:LAT_P + latent_dim].set(p["w22"])
    w2 = w2.astype(jnp.bfloat16)

    b2 = jnp.zeros((1, 2 * LAT_P), jnp.float32)
    b2 = b2.at[:, :latent_dim].set(p["b21"])
    b2 = b2.at[:, LAT_P:LAT_P + latent_dim].set(p["b22"])

    # decoder weight: rows [0:20]=w3z, rows [20:30]=w3c, rest 0
    w3z = jnp.zeros((LAT_P, HID_P), jnp.float32)
    w3z = w3z.at[:latent_dim, :hidden_dim].set(p["w3z"])
    w3z = w3z.at[latent_dim:latent_dim + num_classes, :hidden_dim].set(p["w3c"])
    w3z = w3z.astype(jnp.bfloat16)

    def pad2(a, r, c):
        return jnp.pad(a, ((0, r - a.shape[0]), (0, c - a.shape[1])))

    w4 = pad2(p["w4"], HID_P, IN_P).astype(jnp.bfloat16)
    b1 = pad2(p["b1"], 1, HID_P)
    b3 = pad2(p["b3"], 1, HID_P)
    b4 = pad2(p["b4"], 1, IN_P)

    dims = dict(input_dim=input_dim, hidden_dim=hidden_dim,
                latent_dim=latent_dim, num_classes=num_classes,
                IN_P=IN_P, HID_P=HID_P, LAT_P=LAT_P)
    return dict(w1x=w1x, b1=b1, w2=w2, b2=b2,
                w3z=w3z, b3=b3, w4=w4, b4=b4), dims


# ------------------------------- wrapper ------------------------------------

def conditional_vae_forward(x, c, eps, pp, dims):
    """x: [B, input_dim] f32, c: [B, num_classes] f32, eps: [B, latent_dim] f32."""
    B = x.shape[0]
    IN_P, HID_P, LAT_P = dims["IN_P"], dims["HID_P"], dims["LAT_P"]
    input_dim, latent_dim = dims["input_dim"], dims["latent_dim"]
    num_classes = dims["num_classes"]

    # batch tile: 128 rows when the batch allows it so the grid has >=2 steps
    # per TensorCore on v7x (and enough steps to hide DMA on v5e/v6e);
    # otherwise a 16-multiple (bf16 sublane packing).
    TB = 128 if B > 128 else _round_up(B, 16)
    B_pad = _round_up(B, TB)

    # encoder input: [x | c | 0-pad]   (class one-hot folded into padding cols)
    xp = jnp.zeros((B_pad, IN_P), jnp.float32)
    xp = xp.at[:B, :input_dim].set(x)
    xp = xp.at[:B, input_dim:input_dim + num_classes].set(c)
    xp = xp.astype(jnp.bfloat16)            # 0/1 one-hot values are exact in bf16

    # eps input: [eps | c | 0-pad]  -> z_pad = eps_pad * exp(0) = c exactly
    epsp = jnp.zeros((B_pad, LAT_P), jnp.float32)
    epsp = epsp.at[:B, :latent_dim].set(eps)
    epsp = epsp.at[:B, latent_dim:latent_dim + num_classes].set(c)

    grid = (B_pad // TB,)
    row = lambda i: (i, 0)                   # batch-tiled operands
    rep = lambda i: (0, 0)                   # weights/biases stay VMEM-resident

    kernel = functools.partial(cvae_kernel, lat_p=LAT_P)

    recon_p, ml = pl.pallas_call(
        kernel,
        out_shape=(jax.ShapeDtypeStruct((B_pad, IN_P), jnp.float32),
                   jax.ShapeDtypeStruct((B_pad, 2 * LAT_P), jnp.float32)),
        grid=grid,
        in_specs=[
            pl.BlockSpec((TB, IN_P), row),          # x (+ folded c), bf16
            pl.BlockSpec((TB, LAT_P), row),         # eps (+ folded c), f32
            pl.BlockSpec((IN_P, HID_P), rep),       # w1x (+ folded w1c)
            pl.BlockSpec((1, HID_P), rep),          # b1
            pl.BlockSpec((HID_P, 2 * LAT_P), rep),  # fused [w21|w22]
            pl.BlockSpec((1, 2 * LAT_P), rep),      # fused [b21|b22]
            pl.BlockSpec((LAT_P, HID_P), rep),      # w3z (+ folded w3c)
            pl.BlockSpec((1, HID_P), rep),          # b3
            pl.BlockSpec((HID_P, IN_P), rep),       # w4
            pl.BlockSpec((1, IN_P), rep),           # b4
        ],
        out_specs=(pl.BlockSpec((TB, IN_P), row),
                   pl.BlockSpec((TB, 2 * LAT_P), row)),
        compiler_params=pltpu.CompilerParams(
            dimension_semantics=("parallel",),      # megacore split on v7x
            vmem_limit_bytes=16 << 20),
    )(xp, epsp,
      pp["w1x"], pp["b1"], pp["w2"], pp["b2"],
      pp["w3z"], pp["b3"], pp["w4"], pp["b4"])

    recon = recon_p[:B, :input_dim]
    mu = ml[:B, :latent_dim]
    logvar = ml[:B, LAT_P:LAT_P + latent_dim]
    return recon, mu, logvar


# --------------------------- pure-JAX reference ------------------------------

def reference_forward(x, c, eps, p):
    """Same math, same bf16-in / f32-accumulate MXU path, plain XLA."""
    bf = lambda a: a.astype(jnp.bfloat16)
    dot = lambda a, b: jnp.dot(bf(a), bf(b), preferred_element_type=jnp.float32)
    xc = jnp.concatenate([x, c], axis=1)
    w1 = jnp.concatenate([p["w1x"], p["w1c"]], axis=0)
    h1 = jnp.maximum(dot(xc, w1) + p["b1"], 0.0)
    mu = dot(h1, p["w21"]) + p["b21"]
    logvar = dot(h1, p["w22"]) + p["b22"]
    z = mu + eps * jnp.exp(0.5 * logvar)
    zc = jnp.concatenate([z, c], axis=1)
    w3 = jnp.concatenate([p["w3z"], p["w3c"]], axis=0)
    h3 = jnp.maximum(dot(zc, w3) + p["b3"], 0.0)
    recon = jax.nn.sigmoid(dot(h3, p["w4"]) + p["b4"])
    return recon, mu, logvar


# --------------------------------- main --------------------------------------

if __name__ == "__main__":
    # PyTorch-module default dims; batch chosen to exercise 4 grid tiles of 128
    # (>= 2 steps per TensorCore on v7x).
    B = 512
    INPUT_DIM, HIDDEN_DIM, LATENT_DIM, NUM_CLASSES = 784, 400, 20, 10

    key = jax.random.PRNGKey(0)
    k_params, k_x, k_c, k_eps = jax.random.split(key, 4)

    raw = init_params(k_params, INPUT_DIM, HIDDEN_DIM, LATENT_DIM, NUM_CLASSES)
    pp, dims = prepare_params(raw, INPUT_DIM, HIDDEN_DIM, LATENT_DIM, NUM_CLASSES)

    x = jax.random.uniform(k_x, (B, INPUT_DIM), jnp.float32)       # x.view(-1, input_dim)
    labels = jax.random.randint(k_c, (B,), 0, NUM_CLASSES)
    c = jax.nn.one_hot(labels, NUM_CLASSES, dtype=jnp.float32)     # class conditioning
    # TODO(synk): torch.randn_like(std) replaced by explicit eps input (could use
    # pltpu.prng_seed/prng_random_bits in-kernel instead, at the cost of moving
    # c out of the eps padding into its own small bf16 input).
    eps = jax.random.normal(k_eps, (B, LATENT_DIM), jnp.float32)

    recon, mu, logvar = conditional_vae_forward(x, c, eps, pp, dims)
    jax.block_until_ready((recon, mu, logvar))

    # correctness check against a pure-JAX reference using the same bf16 MXU path
    recon_r, mu_r, logvar_r = reference_forward(x, c, eps, raw)
    assert recon.shape == (B, INPUT_DIM)
    assert mu.shape == (B, LATENT_DIM) and logvar.shape == (B, LATENT_DIM)
    assert jnp.allclose(recon, recon_r, atol=2e-3, rtol=2e-3)
    assert jnp.allclose(mu, mu_r, atol=2e-3, rtol=2e-3)
    assert jnp.allclose(logvar, logvar_r, atol=2e-3, rtol=2e-3)

    print("KERNEL_OK")
</pallas_src>

<mosaic_0001>
module attributes {stable_mosaic.version = 11 : i64} {
  func.func @cvae_kernel(%arg0: i32, %arg1: memref<128x896xbf16, #tpu.memory_space<vmem>>, %arg2: memref<128x128xf32, #tpu.memory_space<vmem>>, %arg3: memref<896x512xbf16, #tpu.memory_space<vmem>>, %arg4: memref<1x512xf32, #tpu.memory_space<vmem>>, %arg5: memref<512x256xbf16, #tpu.memory_space<vmem>>, %arg6: memref<1x256xf32, #tpu.memory_space<vmem>>, %arg7: memref<128x512xbf16, #tpu.memory_space<vmem>>, %arg8: memref<1x512xf32, #tpu.memory_space<vmem>>, %arg9: memref<512x896xbf16, #tpu.memory_space<vmem>>, %arg10: memref<1x896xf32, #tpu.memory_space<vmem>>, %arg11: memref<128x896xf32, #tpu.memory_space<vmem>>, %arg12: memref<128x256xf32, #tpu.memory_space<vmem>>) attributes {dimension_semantics = [#tpu.dimension_semantics<parallel>], iteration_bounds = array<i64: 4>, scalar_prefetch = 0 : i64, scratch_operands = 0 : i64, tpu.core_type = #tpu.core_type<tc>, window_params = [{transform_indices = @transform_0, window_bounds = array<i64: 128, 896>}, {transform_indices = @transform_1, window_bounds = array<i64: 128, 128>}, {pipeline_mode = #tpu.pipeline_mode<synchronous>, transform_indices = @transform_2, window_bounds = array<i64: 896, 512>}, {pipeline_mode = #tpu.pipeline_mode<synchronous>, transform_indices = @transform_3, window_bounds = array<i64: 1, 512>}, {pipeline_mode = #tpu.pipeline_mode<synchronous>, transform_indices = @transform_4, window_bounds = array<i64: 512, 256>}, {pipeline_mode = #tpu.pipeline_mode<synchronous>, transform_indices = @transform_5, window_bounds = array<i64: 1, 256>}, {pipeline_mode = #tpu.pipeline_mode<synchronous>, transform_indices = @transform_6, window_bounds = array<i64: 128, 512>}, {pipeline_mode = #tpu.pipeline_mode<synchronous>, transform_indices = @transform_7, window_bounds = array<i64: 1, 512>}, {pipeline_mode = #tpu.pipeline_mode<synchronous>, transform_indices = @transform_8, window_bounds = array<i64: 512, 896>}, {pipeline_mode = #tpu.pipeline_mode<synchronous>, transform_indices = @transform_9, window_bounds = array<i64: 1, 896>}, {transform_indices = @transform_10, window_bounds = array<i64: 128, 896>}, {transform_indices = @transform_11, window_bounds = array<i64: 128, 256>}]} {
    %c0 = arith.constant 0 : index
    %c0_0 = arith.constant 0 : index
    %0 = vector.load %arg1[%c0, %c0_0] : memref<128x896xbf16, #tpu.memory_space<vmem>>, vector<128x896xbf16>
    %c0_1 = arith.constant 0 : index
    %c0_2 = arith.constant 0 : index
    %1 = vector.load %arg3[%c0_1, %c0_2] : memref<896x512xbf16, #tpu.memory_space<vmem>>, vector<896x512xbf16>
    %cst = arith.constant dense<0.000000e+00> : vector<128x512xf32>
    %2 = tpu.matmul %0, %1, %cst {dimension_numbers = #tpu.dot_dimension_numbers<[1], [0], [0], [1], [0, 0, 1, 1], [], []>} : vector<128x896xbf16>, vector<896x512xbf16>, vector<128x512xf32> -> vector<128x512xf32>
    %c0_3 = arith.constant 0 : index
    %c0_4 = arith.constant 0 : index
    %3 = vector.load %arg4[%c0_3, %c0_4] : memref<1x512xf32, #tpu.memory_space<vmem>>, vector<1x512xf32>
    %4 = vector.broadcast %3 : vector<1x512xf32> to vector<128x512xf32>
    %5 = arith.addf %2, %4 : vector<128x512xf32>
    %cst_5 = arith.constant 0.000000e+00 : f32
    %6 = vector.broadcast %cst_5 : f32 to vector<128x512xf32>
    %7 = arith.maximumf %5, %6 : vector<128x512xf32>
    %8 = arith.truncf %7 : vector<128x512xf32> to vector<128x512xbf16>
    %c0_6 = arith.constant 0 : index
    %c0_7 = arith.constant 0 : index
    %9 = vector.load %arg5[%c0_6, %c0_7] : memref<512x256xbf16, #tpu.memory_space<vmem>>, vector<512x256xbf16>
    %cst_8 = arith.constant dense<0.000000e+00> : vector<128x256xf32>
    %10 = tpu.matmul %8, %9, %cst_8 {dimension_numbers = #tpu.dot_dimension_numbers<[1], [0], [0], [1], [0, 0, 1, 1], [], []>} : vector<128x512xbf16>, vector<512x256xbf16>, vector<128x256xf32> -> vector<128x256xf32>
    %c0_9 = arith.constant 0 : index
    %c0_10 = arith.constant 0 : index
    %11 = vector.load %arg6[%c0_9, %c0_10] : memref<1x256xf32, #tpu.memory_space<vmem>>, vector<1x256xf32>
    %12 = vector.broadcast %11 : vector<1x256xf32> to vector<128x256xf32>
    %13 = arith.addf %10, %12 : vector<128x256xf32>
    %c0_11 = arith.constant 0 : index
    %c0_12 = arith.constant 0 : index
    %14 = vector.load %arg12[%c0_11, %c0_12] : memref<128x256xf32, #tpu.memory_space<vmem>>, vector<128x256xf32>
    tpu.vector_store %arg12[%c0_11, %c0_12], %13 {strides = array<i32>} : memref<128x256xf32, #tpu.memory_space<vmem>>, vector<128x256xf32>,
    %15 = vector.extract_strided_slice %13 {offsets = [0, 0], sizes = [128, 128], strides = [1, 1]} : vector<128x256xf32> to vector<128x128xf32>
    %16 = vector.extract_strided_slice %13 {offsets = [0, 128], sizes = [128, 128], strides = [1, 1]} : vector<128x256xf32> to vector<128x128xf32>
    %c0_13 = arith.constant 0 : index
    %c0_14 = arith.constant 0 : index
    %17 = vector.load %arg2[%c0_13, %c0_14] : memref<128x128xf32, #tpu.memory_space<vmem>>, vector<128x128xf32>
    %cst_15 = arith.constant 5.000000e-01 : f32
    %18 = vector.broadcast %cst_15 : f32 to vector<128x128xf32>
    %19 = arith.mulf %18, %16 : vector<128x128xf32>
    %20 = math.exp %19 : vector<128x128xf32>
    %21 = arith.mulf %17, %20 : vector<128x128xf32>
    %22 = arith.addf %15, %21 : vector<128x128xf32>
    %23 = arith.truncf %22 : vector<128x128xf32> to vector<128x128xbf16>
    %c0_16 = arith.constant 0 : index
    %c0_17 = arith.constant 0 : index
    %24 = vector.load %arg7[%c0_16, %c0_17] : memref<128x512xbf16, #tpu.memory_space<vmem>>, vector<128x512xbf16>
    %cst_18 = arith.constant dense<0.000000e+00> : vector<128x512xf32>
    %25 = tpu.matmul %23, %24, %cst_18 {dimension_numbers = #tpu.dot_dimension_numbers<[1], [0], [0], [1], [0, 0, 1, 1], [], []>} : vector<128x128xbf16>, vector<128x512xbf16>, vector<128x512xf32> -> vector<128x512xf32>
    %c0_19 = arith.constant 0 : index
    %c0_20 = arith.constant 0 : index
    %26 = vector.load %arg8[%c0_19, %c0_20] : memref<1x512xf32, #tpu.memory_space<vmem>>, vector<1x512xf32>
    %27 = vector.broadcast %26 : vector<1x512xf32> to vector<128x512xf32>
    %28 = arith.addf %25, %27 : vector<128x512xf32>
    %cst_21 = arith.constant 0.000000e+00 : f32
    %29 = vector.broadcast %cst_21 : f32 to vector<128x512xf32>
    %30 = arith.maximumf %28, %29 : vector<128x512xf32>
    %31 = arith.truncf %30 : vector<128x512xf32> to vector<128x512xbf16>
    %c0_22 = arith.constant 0 : index
    %c0_23 = arith.constant 0 : index
    %32 = vector.load %arg9[%c0_22, %c0_23] : memref<512x896xbf16, #tpu.memory_space<vmem>>, vector<512x896xbf16>
    %cst_24 = arith.constant dense<0.000000e+00> : vector<128x896xf32>
    %33 = tpu.matmul %31, %32, %cst_24 {dimension_numbers = #tpu.dot_dimension_numbers<[1], [0], [0], [1], [0, 0, 1, 1], [], []>} : vector<128x512xbf16>, vector<512x896xbf16>, vector<128x896xf32> -> vector<128x896xf32>
    %c0_25 = arith.constant 0 : index
    %c0_26 = arith.constant 0 : index
    %34 = vector.load %arg10[%c0_25, %c0_26] : memref<1x896xf32, #tpu.memory_space<vmem>>, vector<1x896xf32>
    %35 = vector.broadcast %34 : vector<1x896xf32> to vector<128x896xf32>
    %36 = arith.addf %33, %35 : vector<128x896xf32>
    %37 = arith.negf %36 : vector<128x896xf32>
    %38 = math.exp %37 : vector<128x896xf32>
    %cst_27 = arith.constant 1.000000e+00 : f32
    %39 = vector.broadcast %cst_27 : f32 to vector<128x896xf32>
    %40 = arith.addf %39, %38 : vector<128x896xf32>
    %41 = arith.divf %39, %40 : vector<128x896xf32>
    %c0_28 = arith.constant 0 : index
    %c0_29 = arith.constant 0 : index
    %42 = vector.load %arg11[%c0_28, %c0_29] : memref<128x896xf32, #tpu.memory_space<vmem>>, vector<128x896xf32>
    tpu.vector_store %arg11[%c0_28, %c0_29], %41 {strides = array<i32>} : memref<128x896xf32, #tpu.memory_space<vmem>>, vector<128x896xf32>,
    return
  }
  func.func @transform_0(%arg0: i32) -> (i32, i32) {
    %c0_i32 = arith.constant 0 : i32
    %c0_i32_0 = arith.constant 0 : i32
    return %arg0, %c0_i32 : i32, i32
  }
  func.func @transform_1(%arg0: i32) -> (i32, i32) {
    %c0_i32 = arith.constant 0 : i32
    %c0_i32_0 = arith.constant 0 : i32
    return %arg0, %c0_i32 : i32, i32
  }
  func.func @transform_2(%arg0: i32) -> (i32, i32) {
    %c0_i32 = arith.constant 0 : i32
    %c0_i32_0 = arith.constant 0 : i32
    %c0_i32_1 = arith.constant 0 : i32
    return %c0_i32, %c0_i32_0 : i32, i32
  }
  func.func @transform_3(%arg0: i32) -> (i32, i32) {
    %c0_i32 = arith.constant 0 : i32
    %c0_i32_0 = arith.constant 0 : i32
    %c0_i32_1 = arith.constant 0 : i32
    return %c0_i32, %c0_i32_0 : i32, i32
  }
  func.func @transform_4(%arg0: i32) -> (i32, i32) {
    %c0_i32 = arith.constant 0 : i32
    %c0_i32_0 = arith.constant 0 : i32
    %c0_i32_1 = arith.constant 0 : i32
    return %c0_i32, %c0_i32_0 : i32, i32
  }
  func.func @transform_5(%arg0: i32) -> (i32, i32) {
    %c0_i32 = arith.constant 0 : i32
    %c0_i32_0 = arith.constant 0 : i32
    %c0_i32_1 = arith.constant 0 : i32
    return %c0_i32, %c0_i32_0 : i32, i32
  }
  func.func @transform_6(%arg0: i32) -> (i32, i32) {
    %c0_i32 = arith.constant 0 : i32
    %c0_i32_0 = arith.constant 0 : i32
    %c0_i32_1 = arith.constant 0 : i32
    return %c0_i32, %c0_i32_0 : i32, i32
  }
  func.func @transform_7(%arg0: i32) -> (i32, i32) {
    %c0_i32 = arith.constant 0 : i32
    %c0_i32_0 = arith.constant 0 : i32
    %c0_i32_1 = arith.constant 0 : i32
    return %c0_i32, %c0_i32_0 : i32, i32
  }
  func.func @transform_8(%arg0: i32) -> (i32, i32) {
    %c0_i32 = arith.constant 0 : i32
    %c0_i32_0 = arith.constant 0 : i32
    %c0_i32_1 = arith.constant 0 : i32
    return %c0_i32, %c0_i32_0 : i32, i32
  }
  func.func @transform_9(%arg0: i32) -> (i32, i32) {
    %c0_i32 = arith.constant 0 : i32
    %c0_i32_0 = arith.constant 0 : i32
    %c0_i32_1 = arith.constant 0 : i32
    return %c0_i32, %c0_i32_0 : i32, i32
  }
  func.func @transform_10(%arg0: i32) -> (i32, i32) {
    %c0_i32 = arith.constant 0 : i32
    %c0_i32_0 = arith.constant 0 : i32
    return %arg0, %c0_i32 : i32, i32
  }
  func.func @transform_11(%arg0: i32) -> (i32, i32) {
    %c0_i32 = arith.constant 0 : i32
    %c0_i32_0 = arith.constant 0 : i32
    return %arg0, %c0_i32 : i32, i32
  }
}

</mosaic_0001>

<llo_original>
// kernel: tpu_custom_call.1
$region0: #{tpu_custom_call.1}
  #allocation0 [shape = 'u32[]', space=smem, size = 0x4, offset = 0x4, fixed_abs, tag = 'smem constant byte address 0x4 - core index']
  #allocation1 [shape = 'u32[144,128]{1,0:T(1,128)}', space=vmem, size = 0x12000, scoped, tag = 'internal scratch']
  %s0 = inlined_call_operand.hbm [shape: bf16[512,896], index: 0, kind: input, shape index: {}]
  %s1 = inlined_call_operand.hbm [shape: f32[512,128], index: 1, kind: input, shape index: {}]
  %s2 = inlined_call_operand.hbm [shape: bf16[896,512], index: 2, kind: input, shape index: {}]
  %s3 = inlined_call_operand.hbm [shape: f32[1,512], index: 3, kind: input, shape index: {}]
  %s4 = inlined_call_operand.hbm [shape: bf16[512,256], index: 4, kind: input, shape index: {}]
  %s5 = inlined_call_operand.hbm [shape: f32[1,256], index: 5, kind: input, shape index: {}]
  %s6 = inlined_call_operand.hbm [shape: bf16[128,512], index: 6, kind: input, shape index: {}]
  %s7 = inlined_call_operand.hbm [shape: f32[1,512], index: 7, kind: input, shape index: {}]
  %s8 = inlined_call_operand.hbm [shape: bf16[512,896], index: 8, kind: input, shape index: {}]
  %s9 = inlined_call_operand.hbm [shape: f32[1,896], index: 9, kind: input, shape index: {}]
  %s10 = inlined_call_operand.hbm [shape: f32[512,896], index: 10, kind: output, shape index: {0}]
  %s11 = inlined_call_operand.hbm [shape: f32[512,256], index: 11, kind: output, shape index: {1}]
  %12 = xla_tuple %s10, %s11
  %s13 = sld [smem:[#allocation0]]
  $region121: #{tpu_custom_call.1} parent=0
    _
  %s15 = ssub.s32 1, %s13
  %s16 = scalar_select 0, %s15, %s13
  $region1: #{tpu_custom_call.1} parent=0
    #allocation2 [shape = 'u8[458752]{0}', space=vmem, size = 0x70000, scoped, tag = 'input window, operand 0']
    #allocation3 [shape = 's32[2]{0}', space=sflag, size = 0x8, scoped, tag = 'scoped memory for tpu_custom_call.1']
    #allocation4 [shape = 's32[2]{0}', space=sflag, size = 0x8, scoped, tag = 'scoped memory for tpu_custom_call.1']
    #allocation5 [shape = 'u8[131072]{0}', space=vmem, size = 0x20000, scoped, tag = 'input window, operand 1']
    #allocation6 [shape = 's32[2]{0}', space=sflag, size = 0x8, scoped, tag = 'scoped memory for tpu_custom_call.1']
    #allocation7 [shape = 'u8[917504]{0}', space=vmem, size = 0xe0000, scoped, tag = 'input window, operand 2, single buffered']
    #allocation8 [shape = 'u8[2048]{0}', space=vmem, size = 0x800, scoped, tag = 'input window, operand 3, single buffered']
    #allocation9 [shape = 's32[1]{0}', space=sflag, size = 0x4, scoped, tag = 'scoped memory for tpu_custom_call.1']
    #allocation10 [shape = 'u8[262144]{0}', space=vmem, size = 0x40000, scoped, tag = 'input window, operand 4, single buffered']
    #allocation11 [shape = 'u8[1024]{0}', space=vmem, size = 0x400, scoped, tag = 'input window, operand 5, single buffered']
    #allocation12 [shape = 's32[1]{0}', space=sflag, size = 0x4, scoped, tag = 'scoped memory for tpu_custom_call.1']
    #allocation13 [shape = 'u8[131072]{0}', space=vmem, size = 0x20000, scoped, tag = 'input window, operand 6, single buffered']
    #allocation14 [shape = 'u8[2048]{0}', space=vmem, size = 0x800, scoped, tag = 'input window, operand 7, single buffered']
    #allocation15 [shape = 's32[1]{0}', space=sflag, size = 0x4, scoped, tag = 'scoped memory for tpu_custom_call.1']
    #allocation16 [shape = 'u8[917504]{0}', space=vmem, size = 0xe0000, scoped, tag = 'input window, operand 8, single buffered']
    #allocation17 [shape = 'u8[3584]{0}', space=vmem, size = 0x1000, scoped, tag = 'input window, operand 9, single buffered']
    #allocation18 [shape = 's32[1]{0}', space=sflag, size = 0x4, scoped, tag = 'scoped memory for tpu_custom_call.1']
    #allocation19 [shape = 'u8[917504]{0}', space=vmem, size = 0xe0000, scoped, tag = 'output window, operand 0']
    #allocation20 [shape = 'u8[262144]{0}', space=vmem, size = 0x40000, scoped, tag = 'output window, operand 1']
    #allocation21 [shape = 's32[2]{0}', space=sflag, size = 0x8, scoped, tag = 'scoped memory for tpu_custom_call.1']
    %17 = vsyncpa [#allocation3], 0
    %s18 = scalar_lea.sflag [#allocation3], 1
    %19 = vsyncpa %s18, 0
    %20 = vsyncpa [#allocation6], 0
    %s21 = scalar_lea.sflag [#allocation6], 1
    %22 = vsyncpa %s21, 0
    %23 = vsyncpa [#allocation9], 0
    %24 = vsyncpa [#allocation12], 0
    %25 = vsyncpa [#allocation15], 0
    %26 = vsyncpa [#allocation18], 0
    %27 = vsyncpa [#allocation4], 0
    %s28 = scalar_lea.sflag [#allocation4], 1
    %29 = vsyncpa %s28, 0
    %30 = vsyncpa [#allocation21], 0
    %s31 = scalar_lea.sflag [#allocation21], 1
    %32 = vsyncpa %s31, 0
    loop: start=0, step=1, limit=6
    $region2: #{tpu_custom_call.1} parent=1 // loop_pre_header
      _
    $region3: #{tpu_custom_call.1} parent=1 // loop_header
      %s34 = sphi 0, %s38
      %p35 = scmp.ge.s32.totalorder %s34, 6
      %s44 = sphi 0, %s46
      %s47 = sphi 0, %s44
      %s48 = sphi 0, %s47
      %s64 = sphi 0, %s48
      %s70 = sphi 0, %s72
      %s73 = sphi 0, %s70
      %s74 = sphi 0, %s73
      %s90 = sphi 0, %s74
      %s94 = sphi 0, %s94
      %s96 = sphi 0, %s94
      %s97 = sphi 0, %s96
      %s111 = sphi 0, %s97
      %s115 = sphi 0, %s115
      %s117 = sphi 0, %s115
      %s118 = sphi 0, %s117
      %s132 = sphi 0, %s118
      %s136 = sphi 0, %s136
      %s138 = sphi 0, %s136
      %s139 = sphi 0, %s138
      %s153 = sphi 0, %s139
      %s157 = sphi 0, %s157
      %s159 = sphi 0, %s157
      %s160 = sphi 0, %s159
      %s174 = sphi 0, %s160
      %s178 = sphi 0, %s178
      %s180 = sphi 0, %s178
      %s181 = sphi 0, %s180
      %s195 = sphi 0, %s181
      %s199 = sphi 0, %s199
      %s201 = sphi 0, %s199
      %s202 = sphi 0, %s201
      %s216 = sphi 0, %s202
      %s220 = sphi 0, %s220
      %s222 = sphi 0, %s220
      %s223 = sphi 0, %s222
      %s237 = sphi 0, %s223
      %s241 = sphi 0, %s241
      %s243 = sphi 0, %s241
      %s244 = sphi 0, %s243
      %s258 = sphi 0, %s244
      %s264 = sphi 0, %s266
      %s267 = sphi 0, %s264
      %s268 = sphi 0, %s267
      %s284 = sphi 0, %s268
      %s290 = sphi 0, %s292
      %s293 = sphi 0, %s290
      %s294 = sphi 0, %s293
      %s310 = sphi 0, %s294
    $region4: #{tpu_custom_call.1} parent=1 // loop_header_branch
      %37 = sbr.rel (%p35) target = $region8
    $region5: #{tpu_custom_call.1} parent=1 // loop_body
      %s39 = ssub.s32 %s34, 1
      %s40 = ssub.s32 %s34, 2
      %s41 = sadd.s32 %s34, 1
      %s42 = ssub.s32 %s34, %s41
      %p43 = scmp.eq.s32.totalorder %s42, 0
      %s45 = sadd.s32 %s44, 1
      %s46 = scalar_select %p43, %s44, %s45
      %p49 = pneg %p43
      %p50 = scmp.eq.s32.totalorder %s34, 3
      %p51 = por %p49, %p50
      %p52 = scmp.ne.s32.totalorder %s44, %s47
      %p53 = scmp.eq.s32.totalorder %s34, 0
      %p54 = por %p52, %p53
      %p55 = scmp.ne.s32.totalorder %s44, %s47
      %p56 = scmp.eq.s32.totalorder %s39, 3
      %p57 = por %p55, %p56
      %p58 = scmp.ne.s32.totalorder %s47, %s48
      %p59 = scmp.eq.s32.totalorder %s39, 0
      %p60 = por %p58, %p59
      %p61 = scmp.ne.s32.totalorder %s47, %s48
      %p62 = scmp.eq.s32.totalorder %s40, 3
      %p63 = por %p61, %p62
      %p65 = scmp.ne.s32.totalorder %s48, %s64
      %p66 = scmp.eq.s32.totalorder %s40, 0
      %p67 = por %p65, %p66
      %s68 = ssub.s32 %s34, %s41
      %p69 = scmp.eq.s32.totalorder %s68, 0
      %s71 = sadd.s32 %s70, 1
      %s72 = scalar_select %p69, %s70, %s71
      %p75 = pneg %p69
      %p76 = scmp.eq.s32.totalorder %s34, 3
      %p77 = por %p75, %p76
      %p78 = scmp.ne.s32.totalorder %s70, %s73
      %p79 = scmp.eq.s32.totalorder %s34, 0
      %p80 = por %p78, %p79
      %p81 = scmp.ne.s32.totalorder %s70, %s73
      %p82 = scmp.eq.s32.totalorder %s39, 3
      %p83 = por %p81, %p82
      %p84 = scmp.ne.s32.totalorder %s73, %s74
      %p85 = scmp.eq.s32.totalorder %s39, 0
      %p86 = por %p84, %p85
      %p87 = scmp.ne.s32.totalorder %s73, %s74
      %p88 = scmp.eq.s32.totalorder %s40, 3
      %p89 = por %p87, %p88
      %p91 = scmp.ne.s32.totalorder %s74, %s90
      %p92 = scmp.eq.s32.totalorder %s40, 0
      %p93 = por %p91, %p92
      %s95 = sadd.s32 %s94, 1
      %p98 = scmp.eq.s32.totalorder %s34, 3
      %p99 = scmp.ne.s32.totalorder %s94, %s96
      %p100 = scmp.eq.s32.totalorder %s34, 0
      %p101 = por %p99, %p100
      %p102 = scmp.ne.s32.totalorder %s94, %s96
      %p103 = scmp.eq.s32.totalorder %s39, 3
      %p104 = por %p102, %p103
      %p105 = scmp.ne.s32.totalorder %s96, %s97
      %p106 = scmp.eq.s32.totalorder %s39, 0
      %p107 = por %p105, %p106
      %p108 = scmp.ne.s32.totalorder %s96, %s97
      %p109 = scmp.eq.s32.totalorder %s40, 3
      %p110 = por %p108, %p109
      %p112 = scmp.ne.s32.totalorder %s97, %s111
      %p113 = scmp.eq.s32.totalorder %s40, 0
      %p114 = por %p112, %p113
      %s116 = sadd.s32 %s115, 1
      %p119 = scmp.eq.s32.totalorder %s34, 3
      %p120 = scmp.ne.s32.totalorder %s115, %s117
      %p121 = scmp.eq.s32.totalorder %s34, 0
      %p122 = por %p120, %p121
      %p123 = scmp.ne.s32.totalorder %s115, %s117
      %p124 = scmp.eq.s32.totalorder %s39, 3
      %p125 = por %p123, %p124
      %p126 = scmp.ne.s32.totalorder %s117, %s118
      %p127 = scmp.eq.s32.totalorder %s39, 0
      %p128 = por %p126, %p127
      %p129 = scmp.ne.s32.totalorder %s117, %s118
      %p130 = scmp.eq.s32.totalorder %s40, 3
      %p131 = por %p129, %p130
      %p133 = scmp.ne.s32.totalorder %s118, %s132
      %p134 = scmp.eq.s32.totalorder %s40, 0
      %p135 = por %p133, %p134
      %s137 = sadd.s32 %s136, 1
      %p140 = scmp.eq.s32.totalorder %s34, 3
      %p141 = scmp.ne.s32.totalorder %s136, %s138
      %p142 = scmp.eq.s32.totalorder %s34, 0
      %p143 = por %p141, %p142
      %p144 = scmp.ne.s32.totalorder %s136, %s138
      %p145 = scmp.eq.s32.totalorder %s39, 3
      %p146 = por %p144, %p145
      %p147 = scmp.ne.s32.totalorder %s138, %s139
      %p148 = scmp.eq.s32.totalorder %s39, 0
      %p149 = por %p147, %p148
      %p150 = scmp.ne.s32.totalorder %s138, %s139
      %p151 = scmp.eq.s32.totalorder %s40, 3
      %p152 = por %p150, %p151
      %p154 = scmp.ne.s32.totalorder %s139, %s153
      %p155 = scmp.eq.s32.totalorder %s40, 0
      %p156 = por %p154, %p155
      %s158 = sadd.s32 %s157, 1
      %p161 = scmp.eq.s32.totalorder %s34, 3
      %p162 = scmp.ne.s32.totalorder %s157, %s159
      %p163 = scmp.eq.s32.totalorder %s34, 0
      %p164 = por %p162, %p163
      %p165 = scmp.ne.s32.totalorder %s157, %s159
      %p166 = scmp.eq.s32.totalorder %s39, 3
      %p167 = por %p165, %p166
      %p168 = scmp.ne.s32.totalorder %s159, %s160
      %p169 = scmp.eq.s32.totalorder %s39, 0
      %p170 = por %p168, %p169
      %p171 = scmp.ne.s32.totalorder %s159, %s160
      %p172 = scmp.eq.s32.totalorder %s40, 3
      %p173 = por %p171, %p172
      %p175 = scmp.ne.s32.totalorder %s160, %s174
      %p176 = scmp.eq.s32.totalorder %s40, 0
      %p177 = por %p175, %p176
      %s179 = sadd.s32 %s178, 1
      %p182 = scmp.eq.s32.totalorder %s34, 3
      %p183 = scmp.ne.s32.totalorder %s178, %s180
      %p184 = scmp.eq.s32.totalorder %s34, 0
      %p185 = por %p183, %p184
      %p186 = scmp.ne.s32.totalorder %s178, %s180
      %p187 = scmp.eq.s32.totalorder %s39, 3
      %p188 = por %p186, %p187
      %p189 = scmp.ne.s32.totalorder %s180, %s181
      %p190 = scmp.eq.s32.totalorder %s39, 0
      %p191 = por %p189, %p190
      %p192 = scmp.ne.s32.totalorder %s180, %s181
      %p193 = scmp.eq.s32.totalorder %s40, 3
      %p194 = por %p192, %p193
      %p196 = scmp.ne.s32.totalorder %s181, %s195
      %p197 = scmp.eq.s32.totalorder %s40, 0
      %p198 = por %p196, %p197
      %s200 = sadd.s32 %s199, 1
      %p203 = scmp.eq.s32.totalorder %s34, 3
      %p204 = scmp.ne.s32.totalorder %s199, %s201
      %p205 = scmp.eq.s32.totalorder %s34, 0
      %p206 = por %p204, %p205
      %p207 = scmp.ne.s32.totalorder %s199, %s201
      %p208 = scmp.eq.s32.totalorder %s39, 3
      %p209 = por %p207, %p208
      %p210 = scmp.ne.s32.totalorder %s201, %s202
      %p211 = scmp.eq.s32.totalorder %s39, 0
      %p212 = por %p210, %p211
      %p213 = scmp.ne.s32.totalorder %s201, %s202
      %p214 = scmp.eq.s32.totalorder %s40, 3
      %p215 = por %p213, %p214
      %p217 = scmp.ne.s32.totalorder %s202, %s216
      %p218 = scmp.eq.s32.totalorder %s40, 0
      %p219 = por %p217, %p218
      %s221 = sadd.s32 %s220, 1
      %p224 = scmp.eq.s32.totalorder %s34, 3
      %p225 = scmp.ne.s32.totalorder %s220, %s222
      %p226 = scmp.eq.s32.totalorder %s34, 0
      %p227 = por %p225, %p226
      %p228 = scmp.ne.s32.totalorder %s220, %s222
      %p229 = scmp.eq.s32.totalorder %s39, 3
      %p230 = por %p228, %p229
      %p231 = scmp.ne.s32.totalorder %s222, %s223
      %p232 = scmp.eq.s32.totalorder %s39, 0
      %p233 = por %p231, %p232
      %p234 = scmp.ne.s32.totalorder %s222, %s223
      %p235 = scmp.eq.s32.totalorder %s40, 3
      %p236 = por %p234, %p235
      %p238 = scmp.ne.s32.totalorder %s223, %s237
      %p239 = scmp.eq.s32.totalorder %s40, 0
      %p240 = por %p238, %p239
      %s242 = sadd.s32 %s241, 1
      %p245 = scmp.eq.s32.totalorder %s34, 3
      %p246 = scmp.ne.s32.totalorder %s241, %s243
      %p247 = scmp.eq.s32.totalorder %s34, 0
      %p248 = por %p246, %p247
      %p249 = scmp.ne.s32.totalorder %s241, %s243
      %p250 = scmp.eq.s32.totalorder %s39, 3
      %p251 = por %p249, %p250
      %p252 = scmp.ne.s32.totalorder %s243, %s244
      %p253 = scmp.eq.s32.totalorder %s39, 0
      %p254 = por %p252, %p253
      %p255 = scmp.ne.s32.totalorder %s243, %s244
      %p256 = scmp.eq.s32.totalorder %s40, 3
      %p257 = por %p255, %p256
      %p259 = scmp.ne.s32.totalorder %s244, %s258
      %p260 = scmp.eq.s32.totalorder %s40, 0
      %p261 = por %p259, %p260
      %s262 = ssub.s32 %s34, %s41
      %p263 = scmp.eq.s32.totalorder %s262, 0
      %s265 = sadd.s32 %s264, 1
      %s266 = scalar_select %p263, %s264, %s265
      %p269 = pneg %p263
      %p270 = scmp.eq.s32.totalorder %s34, 3
      %p271 = por %p269, %p270
      %p272 = scmp.ne.s32.totalorder %s264, %s267
      %p273 = scmp.eq.s32.totalorder %s34, 0
      %p274 = por %p272, %p273
      %p275 = scmp.ne.s32.totalorder %s264, %s267
      %p276 = scmp.eq.s32.totalorder %s39, 3
      %p277 = por %p275, %p276
      %p278 = scmp.ne.s32.totalorder %s267, %s268
      %p279 = scmp.eq.s32.totalorder %s39, 0
      %p280 = por %p278, %p279
      %p281 = scmp.ne.s32.totalorder %s267, %s268
      %p282 = scmp.eq.s32.totalorder %s40, 3
      %p283 = por %p281, %p282
      %p285 = scmp.ne.s32.totalorder %s268, %s284
      %p286 = scmp.eq.s32.totalorder %s40, 0
      %p287 = por %p285, %p286
      %s288 = ssub.s32 %s34, %s41
      %p289 = scmp.eq.s32.totalorder %s288, 0
      %s291 = sadd.s32 %s290, 1
      %s292 = scalar_select %p289, %s290, %s291
      %p295 = pneg %p289
      %p296 = scmp.eq.s32.totalorder %s34, 3
      %p297 = por %p295, %p296
      %p298 = scmp.ne.s32.totalorder %s290, %s293
      %p299 = scmp.eq.s32.totalorder %s34, 0
      %p300 = por %p298, %p299
      %p301 = scmp.ne.s32.totalorder %s290, %s293
      %p302 = scmp.eq.s32.totalorder %s39, 3
      %p303 = por %p301, %p302
      %p304 = scmp.ne.s32.totalorder %s293, %s294
      %p305 = scmp.eq.s32.totalorder %s39, 0
      %p306 = por %p304, %p305
      %p307 = scmp.ne.s32.totalorder %s293, %s294
      %p308 = scmp.eq.s32.totalorder %s40, 3
      %p309 = por %p307, %p308
      %p311 = scmp.ne.s32.totalorder %s294, %s310
      %p312 = scmp.eq.s32.totalorder %s40, 0
      %p313 = por %p311, %p312
      %p314 = scmp.le.s32.totalorder 1, %s34
      %p315 = scmp.lt.s32.totalorder %s34, 5
      %p316 = pnand %p314, %p315
      %p317 = pneg %p316
      // Predicated region
      $region9: #{tpu_custom_call.1} parent=5 // pred_check
        _
      $region10: #{tpu_custom_call.1} parent=5 // pred_check_branch
        %319 = sbr.rel (%p316) target = $region12
      $region11: #{tpu_custom_call.1} parent=5 // pred_region
        %s320 = ssub.s32 %s34, 1
        // Predicated region
        $region13: #{tpu_custom_call.1} parent=11 // pred_check
          %p321 = pneg %p107
        $region14: #{tpu_custom_call.1} parent=11 // pred_check_branch
          %323 = sbr.rel (%p321) target = $region16
        $region15: #{tpu_custom_call.1} parent=11 // pred_region
          %s325 = ssub.s32 28672, 28672
          %326 = vsyncadd [#allocation6], %s325
          %s327 = sshll.u32 [#allocation7], 4
          %s328 = int_to_ptr.vmem [resolvable:$true] %s327
          %333 = dma.hbm_to_vmem [thread:$0]  %s2, 28672, %s328, [#allocation6], 256, 256, 16
        $region16: #{tpu_custom_call.1} parent=11 // pred_fallthru
          _
        // Predicated region
        $region17: #{tpu_custom_call.1} parent=11 // pred_check
          %p334 = pneg %p128
        $region18: #{tpu_custom_call.1} parent=11 // pred_check_branch
          %336 = sbr.rel (%p334) target = $region20
        $region19: #{tpu_custom_call.1} parent=11 // pred_region
          %s338 = ssub.s32 64, 64
          %339 = vsyncadd [#allocation9], %s338
          %s341 = sshll.u32 [#allocation8], 4
          %s342 = int_to_ptr.vmem [resolvable:$true] %s341
          %344 = dma.hbm_to_vmem [thread:$0]  %s3, 64, %s342, [#allocation9]
        $region20: #{tpu_custom_call.1} parent=11 // pred_fallthru
          _
        // Predicated region
        $region21: #{tpu_custom_call.1} parent=11 // pred_check
          %p345 = pneg %p149
        $region22: #{tpu_custom_call.1} parent=11 // pred_check_branch
          %347 = sbr.rel (%p345) target = $region24
        $region23: #{tpu_custom_call.1} parent=11 // pred_region
          %s349 = ssub.s32 8192, 8192
          %350 = vsyncadd [#allocation9], %s349
          %s351 = sshll.u32 [#allocation10], 4
          %s352 = int_to_ptr.vmem [resolvable:$true] %s351
          %357 = dma.hbm_to_vmem [thread:$0]  %s4, 8192, %s352, [#allocation9], 128, 128, 8
        $region24: #{tpu_custom_call.1} parent=11 // pred_fallthru
          _
        // Predicated region
        $region25: #{tpu_custom_call.1} parent=11 // pred_check
          %p358 = pneg %p170
        $region26: #{tpu_custom_call.1} parent=11 // pred_check_branch
          %360 = sbr.rel (%p358) target = $region28
        $region27: #{tpu_custom_call.1} parent=11 // pred_region
          %s362 = ssub.s32 32, 32
          %363 = vsyncadd [#allocation12], %s362
          %s365 = sshll.u32 [#allocation11], 4
          %s366 = int_to_ptr.vmem [resolvable:$true] %s365
          %368 = dma.hbm_to_vmem [thread:$0]  %s5, 32, %s366, [#allocation12]
        $region28: #{tpu_custom_call.1} parent=11 // pred_fallthru
          _
        // Predicated region
        $region29: #{tpu_custom_call.1} parent=11 // pred_check
          %p369 = pneg %p191
        $region30: #{tpu_custom_call.1} parent=11 // pred_check_branch
          %371 = sbr.rel (%p369) target = $region32
        $region31: #{tpu_custom_call.1} parent=11 // pred_region
          %s373 = ssub.s32 4096, 4096
          %374 = vsyncadd [#allocation12], %s373
          %s375 = sshll.u32 [#allocation13], 4
          %s376 = int_to_ptr.vmem [resolvable:$true] %s375
          %381 = dma.hbm_to_vmem [thread:$0]  %s6, 4096, %s376, [#allocation12], 256, 256, 16
        $region32: #{tpu_custom_call.1} parent=11 // pred_fallthru
          _
        // Predicated region
        $region33: #{tpu_custom_call.1} parent=11 // pred_check
          %p382 = pneg %p212
        $region34: #{tpu_custom_call.1} parent=11 // pred_check_branch
          %384 = sbr.rel (%p382) target = $region36
        $region35: #{tpu_custom_call.1} parent=11 // pred_region
          %s386 = ssub.s32 64, 64
          %387 = vsyncadd [#allocation15], %s386
          %s389 = sshll.u32 [#allocation14], 4
          %s390 = int_to_ptr.vmem [resolvable:$true] %s389
          %392 = dma.hbm_to_vmem [thread:$0]  %s7, 64, %s390, [#allocation15]
        $region36: #{tpu_custom_call.1} parent=11 // pred_fallthru
          _
        // Predicated region
        $region37: #{tpu_custom_call.1} parent=11 // pred_check
          %p393 = pneg %p233
        $region38: #{tpu_custom_call.1} parent=11 // pred_check_branch
          %395 = sbr.rel (%p393) target = $region40
        $region39: #{tpu_custom_call.1} parent=11 // pred_region
          %s397 = ssub.s32 28672, 28672
          %398 = vsyncadd [#allocation15], %s397
          %s399 = sshll.u32 [#allocation16], 4
          %s400 = int_to_ptr.vmem [resolvable:$true] %s399
          %405 = dma.hbm_to_vmem [thread:$0]  %s8, 28672, %s400, [#allocation15], 448, 448, 28
        $region40: #{tpu_custom_call.1} parent=11 // pred_fallthru
          _
        // Predicated region
        $region41: #{tpu_custom_call.1} parent=11 // pred_check
          %p406 = pneg %p254
        $region42: #{tpu_custom_call.1} parent=11 // pred_check_branch
          %408 = sbr.rel (%p406) target = $region44
        $region43: #{tpu_custom_call.1} parent=11 // pred_region
          %s410 = ssub.s32 112, 112
          %411 = vsyncadd [#allocation18], %s410
          %s413 = sshll.u32 [#allocation17], 4
          %s414 = int_to_ptr.vmem [resolvable:$true] %s413
          %416 = dma.hbm_to_vmem [thread:$0]  %s9, 112, %s414, [#allocation18]
        $region44: #{tpu_custom_call.1} parent=11 // pred_fallthru
          _
      $region12: #{tpu_custom_call.1} parent=5 // pred_fallthru
        _
      %p417 = scmp.lt.s32.totalorder %s34, 4
      // Predicated region
      $region45: #{tpu_custom_call.1} parent=5 // pred_check
        %p418 = pneg %p417
      $region46: #{tpu_custom_call.1} parent=5 // pred_check_branch
        %420 = sbr.rel (%p418) target = $region48
      $region47: #{tpu_custom_call.1} parent=5 // pred_region
        // Predicated region
        $region49: #{tpu_custom_call.1} parent=47 // pred_check
          %p421 = pneg %p54
        $region50: #{tpu_custom_call.1} parent=47 // pred_check_branch
          %423 = sbr.rel (%p421) target = $region52
        $region51: #{tpu_custom_call.1} parent=47 // pred_region
          %s424 = sand.u32 %s44, 1
          %s425 = scalar_lea.sflag [#allocation3], %s424
          %s426 = sand.u32 %s44, 1
          %s427 = smul.addr %s426, 448
          %s428 = scalar_lea.vmem [#allocation2], %s427
          %s429 = smul.u32 16, %s34
          %s431 = ssub.s32 7168, 7168
          %432 = vsyncadd %s425, %s431
          %s433 = smul.addr %s429, 7
          %s434 = smul.addr %s433, 64
          %s435 = scalar_lea.hbm %s0, %s434
          %s436 = sshll.u32 %s428, 4
          %s437 = int_to_ptr.vmem [resolvable:$true] %s436
          %442 = dma.hbm_to_vmem [thread:$0]  %s435, 7168, %s437, %s425, 448, 448, 28
        $region52: #{tpu_custom_call.1} parent=47 // pred_fallthru
          _
        // Predicated region
        $region53: #{tpu_custom_call.1} parent=47 // pred_check
          %p443 = pneg %p80
        $region54: #{tpu_custom_call.1} parent=47 // pred_check_branch
          %445 = sbr.rel (%p443) target = $region56
        $region55: #{tpu_custom_call.1} parent=47 // pred_region
          %s446 = sand.u32 %s34, 1
          %s447 = scalar_lea.sflag [#allocation6], %s446
          %s448 = sand.u32 %s70, 1
          %s449 = smul.addr %s448, 128
          %s450 = scalar_lea.vmem [#allocation5], %s449
          %s451 = smul.u32 16, %s34
          %s453 = ssub.s32 2048, 2048
          %454 = vsyncadd %s447, %s453
          %s455 = smul.addr %s451, 128
          %s456 = scalar_lea.hbm %s1, %s455
          %s457 = sshll.u32 %s450, 4
          %s458 = int_to_ptr.vmem [resolvable:$true] %s457
          %463 = dma.hbm_to_vmem [thread:$0]  %s456, 2048, %s458, %s447, 128, 128, 8
        $region56: #{tpu_custom_call.1} parent=47 // pred_fallthru
          _
      $region48: #{tpu_custom_call.1} parent=5 // pred_fallthru
        _
      %p464 = scmp.le.s32.totalorder 1, %s34
      %p465 = scmp.lt.s32.totalorder %s34, 5
      %p466 = pnand %p464, %p465
      %p467 = pneg %p466
      // Predicated region
      $region57: #{tpu_custom_call.1} parent=5 // pred_check
        _
      $region58: #{tpu_custom_call.1} parent=5 // pred_check_branch
        %469 = sbr.rel (%p466) target = $region60
      $region59: #{tpu_custom_call.1} parent=5 // pred_region
        %s470 = ssub.s32 %s34, 1
        %s471 = sand.u32 %s47, 1
        %s472 = scalar_lea.sflag [#allocation3], %s471
        %s473 = sand.u32 %s47, 1
        %s474 = smul.addr %s473, 448
        %s475 = scalar_lea.vmem [#allocation2], %s474
        // Predicated region
        $region61: #{tpu_custom_call.1} parent=59 // pred_check
          %p476 = pneg %p60
        $region62: #{tpu_custom_call.1} parent=59 // pred_check_branch
          %478 = sbr.rel (%p476) target = $region64
        $region63: #{tpu_custom_call.1} parent=59 // pred_region
          %479 = dma.done %s472, 7168
        $region64: #{tpu_custom_call.1} parent=59 // pred_fallthru
          _
        %s480 = sand.u32 %s39, 1
        %s481 = scalar_lea.sflag [#allocation6], %s480
        %s482 = sand.u32 %s73, 1
        %s483 = smul.addr %s482, 128
        %s484 = scalar_lea.vmem [#allocation5], %s483
        // Predicated region
        $region65: #{tpu_custom_call.1} parent=59 // pred_check
          %p485 = pneg %p86
        $region66: #{tpu_custom_call.1} parent=59 // pred_check_branch
          %487 = sbr.rel (%p485) target = $region68
        $region67: #{tpu_custom_call.1} parent=59 // pred_region
          %488 = dma.done %s481, 2048
        $region68: #{tpu_custom_call.1} parent=59 // pred_fallthru
          _
        // Predicated region
        $region69: #{tpu_custom_call.1} parent=59 // pred_check
          %p489 = pneg %p107
        $region70: #{tpu_custom_call.1} parent=59 // pred_check_branch
          %491 = sbr.rel (%p489) target = $region72
        $region71: #{tpu_custom_call.1} parent=59 // pred_region
          %492 = dma.done [#allocation6], 28672
        $region72: #{tpu_custom_call.1} parent=59 // pred_fallthru
          _
        // Predicated region
        $region73: #{tpu_custom_call.1} parent=59 // pred_check
          %p493 = pneg %p128
        $region74: #{tpu_custom_call.1} parent=59 // pred_check_branch
          %495 = sbr.rel (%p493) target = $region76
        $region75: #{tpu_custom_call.1} parent=59 // pred_region
          %496 = dma.done [#allocation9], 64
        $region76: #{tpu_custom_call.1} parent=59 // pred_fallthru
          _
        // Predicated region
        $region77: #{tpu_custom_call.1} parent=59 // pred_check
          %p497 = pneg %p149
        $region78: #{tpu_custom_call.1} parent=59 // pred_check_branch
          %499 = sbr.rel (%p497) target = $region80
        $region79: #{tpu_custom_call.1} parent=59 // pred_region
          %500 = dma.done [#allocation9], 8192
        $region80: #{tpu_custom_call.1} parent=59 // pred_fallthru
          _
        // Predicated region
        $region81: #{tpu_custom_call.1} parent=59 // pred_check
          %p501 = pneg %p170
        $region82: #{tpu_custom_call.1} parent=59 // pred_check_branch
          %503 = sbr.rel (%p501) target = $region84
        $region83: #{tpu_custom_call.1} parent=59 // pred_region
          %504 = dma.done [#allocation12], 32
        $region84: #{tpu_custom_call.1} parent=59 // pred_fallthru
          _
        // Predicated region
        $region85: #{tpu_custom_call.1} parent=59 // pred_check
          %p505 = pneg %p191
        $region86: #{tpu_custom_call.1} parent=59 // pred_check_branch
          %507 = sbr.rel (%p505) target = $region88
        $region87: #{tpu_custom_call.1} parent=59 // pred_region
          %508 = dma.done [#allocation12], 4096
        $region88: #{tpu_custom_call.1} parent=59 // pred_fallthru
          _
        // Predicated region
        $region89: #{tpu_custom_call.1} parent=59 // pred_check
          %p509 = pneg %p212
        $region90: #{tpu_custom_call.1} parent=59 // pred_check_branch
          %511 = sbr.rel (%p509) target = $region92
        $region91: #{tpu_custom_call.1} parent=59 // pred_region
          %512 = dma.done [#allocation15], 64
        $region92: #{tpu_custom_call.1} parent=59 // pred_fallthru
          _
        // Predicated region
        $region93: #{tpu_custom_call.1} parent=59 // pred_check
          %p513 = pneg %p233
        $region94: #{tpu_custom_call.1} parent=59 // pred_check_branch
          %515 = sbr.rel (%p513) target = $region96
        $region95: #{tpu_custom_call.1} parent=59 // pred_region
          %516 = dma.done [#allocation15], 28672
        $region96: #{tpu_custom_call.1} parent=59 // pred_fallthru
          _
        // Predicated region
        $region97: #{tpu_custom_call.1} parent=59 // pred_check
          %p517 = pneg %p254
        $region98: #{tpu_custom_call.1} parent=59 // pred_check_branch
          %519 = sbr.rel (%p517) target = $region100
        $region99: #{tpu_custom_call.1} parent=59 // pred_region
          %520 = dma.done [#allocation18], 112
        $region100: #{tpu_custom_call.1} parent=59 // pred_fallthru
          _
        %s521 = sand.u32 %s47, 1
        %s522 = scalar_lea.sflag [#allocation3], %s521
        %s523 = sand.u32 %s47, 1
        %s524 = smul.addr %s523, 448
        %s525 = scalar_lea.vmem [#allocation2], %s524
        %p526 = pneg %p60
        %p527 = pneg %p57
        %s528 = sand.u32 %s39, 1
        %s529 = scalar_lea.sflag [#allocation6], %s528
        %s530 = sand.u32 %s73, 1
        %s531 = smul.addr %s530, 128
        %s532 = scalar_lea.vmem [#allocation5], %s531
        %p533 = pneg %p86
        %p534 = pneg %p83
        %p535 = pneg %p107
        %p536 = pneg %p104
        %p537 = pneg %p128
        %p538 = pneg %p125
        %p539 = pneg %p149
        %p540 = pneg %p146
        %p541 = pneg %p170
        %p542 = pneg %p167
        %p543 = pneg %p191
        %p544 = pneg %p188
        %p545 = pneg %p212
        %p546 = pneg %p209
        %p547 = pneg %p233
        %p548 = pneg %p230
        %p549 = pneg %p254
        %p550 = pneg %p251
        %p551 = pneg %p280
        %p552 = pneg %p277
        %s553 = sand.u32 %s267, 1
        %s554 = scalar_lea.sflag [#allocation4], %s553
        %s555 = sand.u32 %s267, 1
        %s556 = smul.addr %s555, 896
        %s557 = scalar_lea.vmem [#allocation19], %s556
        %p558 = pneg %p306
        %p559 = pneg %p303
        %s560 = sand.u32 %s293, 1
        %s561 = scalar_lea.sflag [#allocation21], %s560
        %s562 = sand.u32 %s293, 1
        %s563 = smul.addr %s562, 256
        %s564 = scalar_lea.vmem [#allocation20], %s563
        %s565 = smul.u32 16, %s39
        %s566 = smul.u32 16, %s39
        %s567 = smul.u32 16, %s39
        %s568 = smul.u32 16, %s39
        %v570 = vld [vmem:[%s475] sm:$0xff]
        %v571 = vld [vmem:[%s475 + $0x8] sm:$0xff]
        %v572 = vld [vmem:[%s475 + $0x10] sm:$0xff]
        %v573 = vld [vmem:[%s475 + $0x18] sm:$0xf]
        %v574 = vld [vmem:[%s475 + $0x1c] sm:$0xff]
        %v575 = vld [vmem:[%s475 + $0x24] sm:$0xff]
        %v576 = vld [vmem:[%s475 + $0x2c] sm:$0xff]
        %v577 = vld [vmem:[%s475 + $0x34] sm:$0xf]
        %v578 = vld [vmem:[%s475 + $0x38] sm:$0xff]
        %v579 = vld [vmem:[%s475 + $0x40] sm:$0xff]
        %v580 = vld [vmem:[%s475 + $0x48] sm:$0xff]
        %v581 = vld [vmem:[%s475 + $0x50] sm:$0xf]
        %v582 = vld [vmem:[%s475 + $0x54] sm:$0xff]
        %v583 = vld [vmem:[%s475 + $0x5c] sm:$0xff]
        %v584 = vld [vmem:[%s475 + $0x64] sm:$0xff]
        %v585 = vld [vmem:[%s475 + $0x6c] sm:$0xf]
        %v586 = vld [vmem:[%s475 + $0x70] sm:$0xff]
        %v587 = vld [vmem:[%s475 + $0x78] sm:$0xff]
        %v588 = vld [vmem:[%s475 + $0x80] sm:$0xff]
        %v589 = vld [vmem:[%s475 + $0x88] sm:$0xf]
        %v590 = vld [vmem:[%s475 + $0x8c] sm:$0xff]
        %v591 = vld [vmem:[%s475 + $0x94] sm:$0xff]
        %v592 = vld [vmem:[%s475 + $0x9c] sm:$0xff]
        %v593 = vld [vmem:[%s475 + $0xa4] sm:$0xf]
        %v594 = vld [vmem:[%s475 + $0xa8] sm:$0xff]
        %v595 = vld [vmem:[%s475 + $0xb0] sm:$0xff]
        %v596 = vld [vmem:[%s475 + $0xb8] sm:$0xff]
        %v597 = vld [vmem:[%s475 + $0xc0] sm:$0xf]
        %v598 = vld [vmem:[%s475 + $0xc4] sm:$0xff]
        %v599 = vld [vmem:[%s475 + $0xcc] sm:$0xff]
        %v600 = vld [vmem:[%s475 + $0xd4] sm:$0xff]
        %v601 = vld [vmem:[%s475 + $0xdc] sm:$0xf]
        %v602 = vld [vmem:[%s475 + $0xe0] sm:$0xff]
        %v603 = vld [vmem:[%s475 + $0xe8] sm:$0xff]
        %v604 = vld [vmem:[%s475 + $0xf0] sm:$0xff]
        %v605 = vld [vmem:[%s475 + $0xf8] sm:$0xf]
        %v606 = vld [vmem:[%s475 + $0xfc] sm:$0xff]
        %v607 = vld [vmem:[%s475 + $0x104] sm:$0xff]
        %v608 = vld [vmem:[%s475 + $0x10c] sm:$0xff]
        %v609 = vld [vmem:[%s475 + $0x114] sm:$0xf]
        %v610 = vld [vmem:[%s475 + $0x118] sm:$0xff]
        %v611 = vld [vmem:[%s475 + $0x120] sm:$0xff]
        %v612 = vld [vmem:[%s475 + $0x128] sm:$0xff]
        %v613 = vld [vmem:[%s475 + $0x130] sm:$0xf]
        %v614 = vld [vmem:[%s475 + $0x134] sm:$0xff]
        %v615 = vld [vmem:[%s475 + $0x13c] sm:$0xff]
        %v616 = vld [vmem:[%s475 + $0x144] sm:$0xff]
        %v617 = vld [vmem:[%s475 + $0x14c] sm:$0xf]
        %v618 = vld [vmem:[%s475 + $0x150] sm:$0xff]
        %v619 = vld [vmem:[%s475 + $0x158] sm:$0xff]
        %v620 = vld [vmem:[%s475 + $0x160] sm:$0xff]
        %v621 = vld [vmem:[%s475 + $0x168] sm:$0xf]
        %v622 = vld [vmem:[%s475 + $0x16c] sm:$0xff]
        %v623 = vld [vmem:[%s475 + $0x174] sm:$0xff]
        %v624 = vld [vmem:[%s475 + $0x17c] sm:$0xff]
        %v625 = vld [vmem:[%s475 + $0x184] sm:$0xf]
        %v626 = vld [vmem:[%s475 + $0x188] sm:$0xff]
        %v627 = vld [vmem:[%s475 + $0x190] sm:$0xff]
        %v628 = vld [vmem:[%s475 + $0x198] sm:$0xff]
        %v629 = vld [vmem:[%s475 + $0x1a0] sm:$0xf]
        %v630 = vld [vmem:[%s475 + $0x1a4] sm:$0xff]
        %v631 = vld [vmem:[%s475 + $0x1ac] sm:$0xff]
        %v632 = vld [vmem:[%s475 + $0x1b4] sm:$0xff]
        %v633 = vld [vmem:[%s475 + $0x1bc] sm:$0xf]
        %v634 = vld [vmem:[#allocation7] sm:$0xff]
        %v635 = vld [vmem:[#allocation7 + $0x8] sm:$0xff]
        %v636 = vld [vmem:[#allocation7 + $0x10] sm:$0xff]
        %v637 = vld [vmem:[#allocation7 + $0x18] sm:$0xff]
        %v638 = vld [vmem:[#allocation7 + $0x20] sm:$0xff]
        %v639 = vld [vmem:[#allocation7 + $0x28] sm:$0xff]
        %v640 = vld [vmem:[#allocation7 + $0x30] sm:$0xff]
        %v641 = vld [vmem:[#allocation7 + $0x38] sm:$0xff]
        %v642 = vld [vmem:[#allocation7 + $0x40] sm:$0xff]
        %v643 = vld [vmem:[#allocation7 + $0x48] sm:$0xff]
        %v644 = vld [vmem:[#allocation7 + $0x50] sm:$0xff]
        %v645 = vld [vmem:[#allocation7 + $0x58] sm:$0xff]
        %v646 = vld [vmem:[#allocation7 + $0x60] sm:$0xff]
        %v647 = vld [vmem:[#allocation7 + $0x68] sm:$0xff]
        %v648 = vld [vmem:[#allocation7 + $0x70] sm:$0xff]
        %v649 = vld [vmem:[#allocation7 + $0x78] sm:$0xff]
        %v650 = vld [vmem:[#allocation7 + $0x80] sm:$0xff]
        %v651 = vld [vmem:[#allocation7 + $0x88] sm:$0xff]
        %v652 = vld [vmem:[#allocation7 + $0x90] sm:$0xff]
        %v653 = vld [vmem:[#allocation7 + $0x98] sm:$0xff]
        %v654 = vld [vmem:[#allocation7 + $0xa0] sm:$0xff]
        %v655 = vld [vmem:[#allocation7 + $0xa8] sm:$0xff]
        %v656 = vld [vmem:[#allocation7 + $0xb0] sm:$0xff]
        %v657 = vld [vmem:[#allocation7 + $0xb8] sm:$0xff]
        %v658 = vld [vmem:[#allocation7 + $0xc0] sm:$0xff]
        %v659 = vld [vmem:[#allocation7 + $0xc8] sm:$0xff]
        %v660 = vld [vmem:[#allocation7 + $0xd0] sm:$0xff]
        %v661 = vld [vmem:[#allocation7 + $0xd8] sm:$0xff]
        %v662 = vld [vmem:[#allocation7 + $0xe0] sm:$0xff]
        %v663 = vld [vmem:[#allocation7 + $0xe8] sm:$0xff]
        %v664 = vld [vmem:[#allocation7 + $0xf0] sm:$0xff]
        %v665 = vld [vmem:[#allocation7 + $0xf8] sm:$0xff]
        %v666 = vld [vmem:[#allocation7 + $0x100] sm:$0xff]
        %v667 = vld [vmem:[#allocation7 + $0x108] sm:$0xff]
        %v668 = vld [vmem:[#allocation7 + $0x110] sm:$0xff]
        %v669 = vld [vmem:[#allocation7 + $0x118] sm:$0xff]
        %v670 = vld [vmem:[#allocation7 + $0x120] sm:$0xff]
        %v671 = vld [vmem:[#allocation7 + $0x128] sm:$0xff]
        %v672 = vld [vmem:[#allocation7 + $0x130] sm:$0xff]
        %v673 = vld [vmem:[#allocation7 + $0x138] sm:$0xff]
        %v674 = vld [vmem:[#allocation7 + $0x140] sm:$0xff]
        %v675 = vld [vmem:[#allocation7 + $0x148] sm:$0xff]
        %v676 = vld [vmem:[#allocation7 + $0x150] sm:$0xff]
        %v677 = vld [vmem:[#allocation7 + $0x158] sm:$0xff]
        %v678 = vld [vmem:[#allocation7 + $0x160] sm:$0xff]
        %v679 = vld [vmem:[#allocation7 + $0x168] sm:$0xff]
        %v680 = vld [vmem:[#allocation7 + $0x170] sm:$0xff]
        %v681 = vld [vmem:[#allocation7 + $0x178] sm:$0xff]
        %v682 = vld [vmem:[#allocation7 + $0x180] sm:$0xff]
        %v683 = vld [vmem:[#allocation7 + $0x188] sm:$0xff]
        %v684 = vld [vmem:[#allocation7 + $0x190] sm:$0xff]
        %v685 = vld [vmem:[#allocation7 + $0x198] sm:$0xff]
        %v686 = vld [vmem:[#allocation7 + $0x1a0] sm:$0xff]
        %v687 = vld [vmem:[#allocation7 + $0x1a8] sm:$0xff]
        %v688 = vld [vmem:[#allocation7 + $0x1b0] sm:$0xff]
        %v689 = vld [vmem:[#allocation7 + $0x1b8] sm:$0xff]
        %v690 = vld [vmem:[#allocation7 + $0x1c0] sm:$0xff]
        %v691 = vld [vmem:[#allocation7 + $0x1c8] sm:$0xff]
        %v692 = vld [vmem:[#allocation7 + $0x1d0] sm:$0xff]
        %v693 = vld [vmem:[#allocation7 + $0x1d8] sm:$0xff]
        %v694 = vld [vmem:[#allocation7 + $0x1e0] sm:$0xff]
        %v695 = vld [vmem:[#allocation7 + $0x1e8] sm:$0xff]
        %v696 = vld [vmem:[#allocation7 + $0x1f0] sm:$0xff]
        %v697 = vld [vmem:[#allocation7 + $0x1f8] sm:$0xff]
        %v698 = vld [vmem:[#allocation7 + $0x200] sm:$0xff]
        %v699 = vld [vmem:[#allocation7 + $0x208] sm:$0xff]
        %v700 = vld [vmem:[#allocation7 + $0x210] sm:$0xff]
        %v701 = vld [vmem:[#allocation7 + $0x218] sm:$0xff]
        %v702 = vld [vmem:[#allocation7 + $0x220] sm:$0xff]
        %v703 = vld [vmem:[#allocation7 + $0x228] sm:$0xff]
        %v704 = vld [vmem:[#allocation7 + $0x230] sm:$0xff]
        %v705 = vld [vmem:[#allocation7 + $0x238] sm:$0xff]
        %v706 = vld [vmem:[#allocation7 + $0x240] sm:$0xff]
        %v707 = vld [vmem:[#allocation7 + $0x248] sm:$0xff]
        %v708 = vld [vmem:[#allocation7 + $0x250] sm:$0xff]
        %v709 = vld [vmem:[#allocation7 + $0x258] sm:$0xff]
        %v710 = vld [vmem:[#allocation7 + $0x260] sm:$0xff]
        %v711 = vld [vmem:[#allocation7 + $0x268] sm:$0xff]
        %v712 = vld [vmem:[#allocation7 + $0x270] sm:$0xff]
        %v713 = vld [vmem:[#allocation7 + $0x278] sm:$0xff]
        %v714 = vld [vmem:[#allocation7 + $0x280] sm:$0xff]
        %v715 = vld [vmem:[#allocation7 + $0x288] sm:$0xff]
        %v716 = vld [vmem:[#allocation7 + $0x290] sm:$0xff]
        %v717 = vld [vmem:[#allocation7 + $0x298] sm:$0xff]
        %v718 = vld [vmem:[#allocation7 + $0x2a0] sm:$0xff]
        %v719 = vld [vmem:[#allocation7 + $0x2a8] sm:$0xff]
        %v720 = vld [vmem:[#allocation7 + $0x2b0] sm:$0xff]
        %v721 = vld [vmem:[#allocation7 + $0x2b8] sm:$0xff]
        %v722 = vld [vmem:[#allocation7 + $0x2c0] sm:$0xff]
        %v723 = vld [vmem:[#allocation7 + $0x2c8] sm:$0xff]
        %v724 = vld [vmem:[#allocation7 + $0x2d0] sm:$0xff]
        %v725 = vld [vmem:[#allocation7 + $0x2d8] sm:$0xff]
        %v726 = vld [vmem:[#allocation7 + $0x2e0] sm:$0xff]
        %v727 = vld [vmem:[#allocation7 + $0x2e8] sm:$0xff]
        %v728 = vld [vmem:[#allocation7 + $0x2f0] sm:$0xff]
        %v729 = vld [vmem:[#allocation7 + $0x2f8] sm:$0xff]
        %v730 = vld [vmem:[#allocation7 + $0x300] sm:$0xff]
        %v731 = vld [vmem:[#allocation7 + $0x308] sm:$0xff]
        %v732 = vld [vmem:[#allocation7 + $0x310] sm:$0xff]
        %v733 = vld [vmem:[#allocation7 + $0x318] sm:$0xff]
        %v734 = vld [vmem:[#allocation7 + $0x320] sm:$0xff]
        %v735 = vld [vmem:[#allocation7 + $0x328] sm:$0xff]
        %v736 = vld [vmem:[#allocation7 + $0x330] sm:$0xff]
        %v737 = vld [vmem:[#allocation7 + $0x338] sm:$0xff]
        %v738 = vld [vmem:[#allocation7 + $0x340] sm:$0xff]
        %v739 = vld [vmem:[#allocation7 + $0x348] sm:$0xff]
        %v740 = vld [vmem:[#allocation7 + $0x350] sm:$0xff]
        %v741 = vld [vmem:[#allocation7 + $0x358] sm:$0xff]
        %v742 = vld [vmem:[#allocation7 + $0x360] sm:$0xff]
        %v743 = vld [vmem:[#allocation7 + $0x368] sm:$0xff]
        %v744 = vld [vmem:[#allocation7 + $0x370] sm:$0xff]
        %v745 = vld [vmem:[#allocation7 + $0x378] sm:$0xff]
        %v746 = vld [vmem:[#allocation7 + $0x380] sm:$0xff]
        %v747 = vld [vmem:[#allocation7 + $0x388] sm:$0xff]
        %v748 = vld [vmem:[#allocation7 + $0x390] sm:$0xff]
        %v749 = vld [vmem:[#allocation7 + $0x398] sm:$0xff]
        %v750 = vld [vmem:[#allocation7 + $0x3a0] sm:$0xff]
        %v751 = vld [vmem:[#allocation7 + $0x3a8] sm:$0xff]
        %v752 = vld [vmem:[#allocation7 + $0x3b0] sm:$0xff]
        %v753 = vld [vmem:[#allocation7 + $0x3b8] sm:$0xff]
        %v754 = vld [vmem:[#allocation7 + $0x3c0] sm:$0xff]
        %v755 = vld [vmem:[#allocation7 + $0x3c8] sm:$0xff]
        %v756 = vld [vmem:[#allocation7 + $0x3d0] sm:$0xff]
        %v757 = vld [vmem:[#allocation7 + $0x3d8] sm:$0xff]
        %v758 = vld [vmem:[#allocation7 + $0x3e0] sm:$0xff]
        %v759 = vld [vmem:[#allocation7 + $0x3e8] sm:$0xff]
        %v760 = vld [vmem:[#allocation7 + $0x3f0] sm:$0xff]
        %v761 = vld [vmem:[#allocation7 + $0x3f8] sm:$0xff]
        %v762 = vld [vmem:[#allocation7 + $0x400] sm:$0xff]
        %v763 = vld [vmem:[#allocation7 + $0x408] sm:$0xff]
        %v764 = vld [vmem:[#allocation7 + $0x410] sm:$0xff]
        %v765 = vld [vmem:[#allocation7 + $0x418] sm:$0xff]
        %v766 = vld [vmem:[#allocation7 + $0x420] sm:$0xff]
        %v767 = vld [vmem:[#allocation7 + $0x428] sm:$0xff]
        %v768 = vld [vmem:[#allocation7 + $0x430] sm:$0xff]
        %v769 = vld [vmem:[#allocation7 + $0x438] sm:$0xff]
        %v770 = vld [vmem:[#allocation7 + $0x440] sm:$0xff]
        %v771 = vld [vmem:[#allocation7 + $0x448] sm:$0xff]
        %v772 = vld [vmem:[#allocation7 + $0x450] sm:$0xff]
        %v773 = vld [vmem:[#allocation7 + $0x458] sm:$0xff]
        %v774 = vld [vmem:[#allocation7 + $0x460] sm:$0xff]
        %v775 = vld [vmem:[#allocation7 + $0x468] sm:$0xff]
        %v776 = vld [vmem:[#allocation7 + $0x470] sm:$0xff]
        %v777 = vld [vmem:[#allocation7 + $0x478] sm:$0xff]
        %v778 = vld [vmem:[#allocation7 + $0x480] sm:$0xff]
        %v779 = vld [vmem:[#allocation7 + $0x488] sm:$0xff]
        %v780 = vld [vmem:[#allocation7 + $0x490] sm:$0xff]
        %v781 = vld [vmem:[#allocation7 + $0x498] sm:$0xff]
        %v782 = vld [vmem:[#allocation7 + $0x4a0] sm:$0xff]
        %v783 = vld [vmem:[#allocation7 + $0x4a8] sm:$0xff]
        %v784 = vld [vmem:[#allocation7 + $0x4b0] sm:$0xff]
        %v785 = vld [vmem:[#allocation7 + $0x4b8] sm:$0xff]
        %v786 = vld [vmem:[#allocation7 + $0x4c0] sm:$0xff]
        %v787 = vld [vmem:[#allocation7 + $0x4c8] sm:$0xff]
        %v788 = vld [vmem:[#allocation7 + $0x4d0] sm:$0xff]
        %v789 = vld [vmem:[#allocation7 + $0x4d8] sm:$0xff]
        %v790 = vld [vmem:[#allocation7 + $0x4e0] sm:$0xff]
        %v791 = vld [vmem:[#allocation7 + $0x4e8] sm:$0xff]
        %v792 = vld [vmem:[#allocation7 + $0x4f0] sm:$0xff]
        %v793 = vld [vmem:[#allocation7 + $0x4f8] sm:$0xff]
        %v794 = vld [vmem:[#allocation7 + $0x500] sm:$0xff]
        %v795 = vld [vmem:[#allocation7 + $0x508] sm:$0xff]
        %v796 = vld [vmem:[#allocation7 + $0x510] sm:$0xff]
        %v797 = vld [vmem:[#allocation7 + $0x518] sm:$0xff]
        %v798 = vld [vmem:[#allocation7 + $0x520] sm:$0xff]
        %v799 = vld [vmem:[#allocation7 + $0x528] sm:$0xff]
        %v800 = vld [vmem:[#allocation7 + $0x530] sm:$0xff]
        %v801 = vld [vmem:[#allocation7 + $0x538] sm:$0xff]
        %v802 = vld [vmem:[#allocation7 + $0x540] sm:$0xff]
        %v803 = vld [vmem:[#allocation7 + $0x548] sm:$0xff]
        %v804 = vld [vmem:[#allocation7 + $0x550] sm:$0xff]
        %v805 = vld [vmem:[#allocation7 + $0x558] sm:$0xff]
        %v806 = vld [vmem:[#allocation7 + $0x560] sm:$0xff]
        %v807 = vld [vmem:[#allocation7 + $0x568] sm:$0xff]
        %v808 = vld [vmem:[#allocation7 + $0x570] sm:$0xff]
        %v809 = vld [vmem:[#allocation7 + $0x578] sm:$0xff]
        %v810 = vld [vmem:[#allocation7 + $0x580] sm:$0xff]
        %v811 = vld [vmem:[#allocation7 + $0x588] sm:$0xff]
        %v812 = vld [vmem:[#allocation7 + $0x590] sm:$0xff]
        %v813 = vld [vmem:[#allocation7 + $0x598] sm:$0xff]
        %v814 = vld [vmem:[#allocation7 + $0x5a0] sm:$0xff]
        %v815 = vld [vmem:[#allocation7 + $0x5a8] sm:$0xff]
        %v816 = vld [vmem:[#allocation7 + $0x5b0] sm:$0xff]
        %v817 = vld [vmem:[#allocation7 + $0x5b8] sm:$0xff]
        %v818 = vld [vmem:[#allocation7 + $0x5c0] sm:$0xff]
        %v819 = vld [vmem:[#allocation7 + $0x5c8] sm:$0xff]
        %v820 = vld [vmem:[#allocation7 + $0x5d0] sm:$0xff]
        %v821 = vld [vmem:[#allocation7 + $0x5d8] sm:$0xff]
        %v822 = vld [vmem:[#allocation7 + $0x5e0] sm:$0xff]
        %v823 = vld [vmem:[#allocation7 + $0x5e8] sm:$0xff]
        %v824 = vld [vmem:[#allocation7 + $0x5f0] sm:$0xff]
        %v825 = vld [vmem:[#allocation7 + $0x5f8] sm:$0xff]
        %v826 = vld [vmem:[#allocation7 + $0x600] sm:$0xff]
        %v827 = vld [vmem:[#allocation7 + $0x608] sm:$0xff]
        %v828 = vld [vmem:[#allocation7 + $0x610] sm:$0xff]
        %v829 = vld [vmem:[#allocation7 + $0x618] sm:$0xff]
        %v830 = vld [vmem:[#allocation7 + $0x620] sm:$0xff]
        %v831 = vld [vmem:[#allocation7 + $0x628] sm:$0xff]
        %v832 = vld [vmem:[#allocation7 + $0x630] sm:$0xff]
        %v833 = vld [vmem:[#allocation7 + $0x638] sm:$0xff]
        %v834 = vld [vmem:[#allocation7 + $0x640] sm:$0xff]
        %v835 = vld [vmem:[#allocation7 + $0x648] sm:$0xff]
        %v836 = vld [vmem:[#allocation7 + $0x650] sm:$0xff]
        %v837 = vld [vmem:[#allocation7 + $0x658] sm:$0xff]
        %v838 = vld [vmem:[#allocation7 + $0x660] sm:$0xff]
        %v839 = vld [vmem:[#allocation7 + $0x668] sm:$0xff]
        %v840 = vld [vmem:[#allocation7 + $0x670] sm:$0xff]
        %v841 = vld [vmem:[#allocation7 + $0x678] sm:$0xff]
        %v842 = vld [vmem:[#allocation7 + $0x680] sm:$0xff]
        %v843 = vld [vmem:[#allocation7 + $0x688] sm:$0xff]
        %v844 = vld [vmem:[#allocation7 + $0x690] sm:$0xff]
        %v845 = vld [vmem:[#allocation7 + $0x698] sm:$0xff]
        %v846 = vld [vmem:[#allocation7 + $0x6a0] sm:$0xff]
        %v847 = vld [vmem:[#allocation7 + $0x6a8] sm:$0xff]
        %v848 = vld [vmem:[#allocation7 + $0x6b0] sm:$0xff]
        %v849 = vld [vmem:[#allocation7 + $0x6b8] sm:$0xff]
        %v850 = vld [vmem:[#allocation7 + $0x6c0] sm:$0xff]
        %v851 = vld [vmem:[#allocation7 + $0x6c8] sm:$0xff]
        %v852 = vld [vmem:[#allocation7 + $0x6d0] sm:$0xff]
        %v853 = vld [vmem:[#allocation7 + $0x6d8] sm:$0xff]
        %v854 = vld [vmem:[#allocation7 + $0x6e0] sm:$0xff]
        %v855 = vld [vmem:[#allocation7 + $0x6e8] sm:$0xff]
        %v856 = vld [vmem:[#allocation7 + $0x6f0] sm:$0xff]
        %v857 = vld [vmem:[#allocation7 + $0x6f8] sm:$0xff]
        %v858 = vld [vmem:[#allocation8] sm:$0xf]
        %v860 = vlaneseq
        %v861 = vshrl.u32 %v860, 7
        %v862 = vsub.s32 0, %v861
        %v863 = vrot.slane %v858, %v862
        %v864 = vlaneseq
        %v865 = vshrl.u32 %v864, 7
        %v866 = vsub.s32 1, %v865
        %v867 = vrot.slane %v858, %v866
        %v868 = vlaneseq
        %v869 = vshrl.u32 %v868, 7
        %v870 = vsub.s32 2, %v869
        %v871 = vrot.slane %v858, %v870
        %v872 = vlaneseq
        %v873 = vshrl.u32 %v872, 7
        %v874 = vsub.s32 3, %v873
        %v875 = vrot.slane %v858, %v874
        %v944 = vunpack.c.l.b16 %v570
        %v945 = vunpack.c.h.b16 %v570
        %v946 = vunpack.c.l.b16 %v571
        %v947 = vunpack.c.h.b16 %v571
        %v948 = vunpack.c.l.b16 %v572
        %v949 = vunpack.c.h.b16 %v572
        %v950 = vunpack.c.l.b16 %v573
        %v951 = vunpack.c.l.b16 %v574
        %v952 = vunpack.c.h.b16 %v574
        %v953 = vunpack.c.l.b16 %v575
        %v954 = vunpack.c.h.b16 %v575
        %v955 = vunpack.c.l.b16 %v576
        %v956 = vunpack.c.h.b16 %v576
        %v957 = vunpack.c.l.b16 %v577
        %v958 = vunpack.c.l.b16 %v578
        %v959 = vunpack.c.h.b16 %v578
        %v960 = vunpack.c.l.b16 %v579
        %v961 = vunpack.c.h.b16 %v579
        %v962 = vunpack.c.l.b16 %v580
        %v963 = vunpack.c.h.b16 %v580
        %v964 = vunpack.c.l.b16 %v581
        %v965 = vunpack.c.l.b16 %v582
        %v966 = vunpack.c.h.b16 %v582
        %v967 = vunpack.c.l.b16 %v583
        %v968 = vunpack.c.h.b16 %v583
        %v969 = vunpack.c.l.b16 %v584
        %v970 = vunpack.c.h.b16 %v584
        %v971 = vunpack.c.l.b16 %v585
        %v972 = vunpack.c.l.b16 %v586
        %v973 = vunpack.c.h.b16 %v586
        %v974 = vunpack.c.l.b16 %v587
        %v975 = vunpack.c.h.b16 %v587
        %v976 = vunpack.c.l.b16 %v588
        %v977 = vunpack.c.h.b16 %v588
        %v978 = vunpack.c.l.b16 %v589
        %v979 = vunpack.c.l.b16 %v590
        %v980 = vunpack.c.h.b16 %v590
        %v981 = vunpack.c.l.b16 %v591
        %v982 = vunpack.c.h.b16 %v591
        %v983 = vunpack.c.l.b16 %v592
        %v984 = vunpack.c.h.b16 %v592
        %v985 = vunpack.c.l.b16 %v593
        %v986 = vunpack.c.l.b16 %v594
        %v987 = vunpack.c.h.b16 %v594
        %v988 = vunpack.c.l.b16 %v595
        %v989 = vunpack.c.h.b16 %v595
        %v990 = vunpack.c.l.b16 %v596
        %v991 = vunpack.c.h.b16 %v596
        %v992 = vunpack.c.l.b16 %v597
        %v993 = vunpack.c.l.b16 %v598
        %v994 = vunpack.c.h.b16 %v598
        %v995 = vunpack.c.l.b16 %v599
        %v996 = vunpack.c.h.b16 %v599
        %v997 = vunpack.c.l.b16 %v600
        %v998 = vunpack.c.h.b16 %v600
        %v999 = vunpack.c.l.b16 %v601
        %v1000 = vunpack.c.l.b16 %v602
        %v1001 = vunpack.c.h.b16 %v602
        %v1002 = vunpack.c.l.b16 %v603
        %v1003 = vunpack.c.h.b16 %v603
        %v1004 = vunpack.c.l.b16 %v604
        %v1005 = vunpack.c.h.b16 %v604
        %v1006 = vunpack.c.l.b16 %v605
        %v1007 = vunpack.c.l.b16 %v606
        %v1008 = vunpack.c.h.b16 %v606
        %v1009 = vunpack.c.l.b16 %v607
        %v1010 = vunpack.c.h.b16 %v607
        %v1011 = vunpack.c.l.b16 %v608
        %v1012 = vunpack.c.h.b16 %v608
        %v1013 = vunpack.c.l.b16 %v609
        %v1014 = vunpack.c.l.b16 %v610
        %v1015 = vunpack.c.h.b16 %v610
        %v1016 = vunpack.c.l.b16 %v611
        %v1017 = vunpack.c.h.b16 %v611
        %v1018 = vunpack.c.l.b16 %v612
        %v1019 = vunpack.c.h.b16 %v612
        %v1020 = vunpack.c.l.b16 %v613
        %v1021 = vunpack.c.l.b16 %v614
        %v1022 = vunpack.c.h.b16 %v614
        %v1023 = vunpack.c.l.b16 %v615
        %v1024 = vunpack.c.h.b16 %v615
        %v1025 = vunpack.c.l.b16 %v616
        %v1026 = vunpack.c.h.b16 %v616
        %v1027 = vunpack.c.l.b16 %v617
        %v1028 = vunpack.c.l.b16 %v618
        %v1029 = vunpack.c.h.b16 %v618
        %v1030 = vunpack.c.l.b16 %v619
        %v1031 = vunpack.c.h.b16 %v619
        %v1032 = vunpack.c.l.b16 %v620
        %v1033 = vunpack.c.h.b16 %v620
        %v1034 = vunpack.c.l.b16 %v621
        %v1035 = vunpack.c.l.b16 %v622
        %v1036 = vunpack.c.h.b16 %v622
        %v1037 = vunpack.c.l.b16 %v623
        %v1038 = vunpack.c.h.b16 %v623
        %v1039 = vunpack.c.l.b16 %v624
        %v1040 = vunpack.c.h.b16 %v624
        %v1041 = vunpack.c.l.b16 %v625
        %v1042 = vunpack.c.l.b16 %v626
        %v1043 = vunpack.c.h.b16 %v626
        %v1044 = vunpack.c.l.b16 %v627
        %v1045 = vunpack.c.h.b16 %v627
        %v1046 = vunpack.c.l.b16 %v628
        %v1047 = vunpack.c.h.b16 %v628
        %v1048 = vunpack.c.l.b16 %v629
        %v1049 = vunpack.c.l.b16 %v630
        %v1050 = vunpack.c.h.b16 %v630
        %v1051 = vunpack.c.l.b16 %v631
        %v1052 = vunpack.c.h.b16 %v631
        %v1053 = vunpack.c.l.b16 %v632
        %v1054 = vunpack.c.h.b16 %v632
        %v1055 = vunpack.c.l.b16 %v633
        %v1056 = vpack.c.b16 %v951, %v944
        %v1057 = vpack.c.b16 %v952, %v945
        %v1058 = vpack.c.b16 %v953, %v946
        %v1059 = vpack.c.b16 %v954, %v947
        %v1060 = vpack.c.b16 %v955, %v948
        %v1061 = vpack.c.b16 %v956, %v949
        %v1062 = vpack.c.b16 %v957, %v950
        %v1063 = vpack.c.b16 %v965, %v958
        %v1064 = vpack.c.b16 %v966, %v959
        %v1065 = vpack.c.b16 %v967, %v960
        %v1066 = vpack.c.b16 %v968, %v961
        %v1067 = vpack.c.b16 %v969, %v962
        %v1068 = vpack.c.b16 %v970, %v963
        %v1069 = vpack.c.b16 %v971, %v964
        %v1070 = vpack.c.b16 %v979, %v972
        %v1071 = vpack.c.b16 %v980, %v973
        %v1072 = vpack.c.b16 %v981, %v974
        %v1073 = vpack.c.b16 %v982, %v975
        %v1074 = vpack.c.b16 %v983, %v976
        %v1075 = vpack.c.b16 %v984, %v977
        %v1076 = vpack.c.b16 %v985, %v978
        %v1077 = vpack.c.b16 %v993, %v986
        %v1078 = vpack.c.b16 %v994, %v987
        %v1079 = vpack.c.b16 %v995, %v988
        %v1080 = vpack.c.b16 %v996, %v989
        %v1081 = vpack.c.b16 %v997, %v990
        %v1082 = vpack.c.b16 %v998, %v991
        %v1083 = vpack.c.b16 %v999, %v992
        %v1084 = vpack.c.b16 %v1007, %v1000
        %v1085 = vpack.c.b16 %v1008, %v1001
        %v1086 = vpack.c.b16 %v1009, %v1002
        %v1087 = vpack.c.b16 %v1010, %v1003
        %v1088 = vpack.c.b16 %v1011, %v1004
        %v1089 = vpack.c.b16 %v1012, %v1005
        %v1090 = vpack.c.b16 %v1013, %v1006
        %v1091 = vpack.c.b16 %v1021, %v1014
        %v1092 = vpack.c.b16 %v1022, %v1015
        %v1093 = vpack.c.b16 %v1023, %v1016
        %v1094 = vpack.c.b16 %v1024, %v1017
        %v1095 = vpack.c.b16 %v1025, %v1018
        %v1096 = vpack.c.b16 %v1026, %v1019
        %v1097 = vpack.c.b16 %v1027, %v1020
        %v1098 = vpack.c.b16 %v1035, %v1028
        %v1099 = vpack.c.b16 %v1036, %v1029
        %v1100 = vpack.c.b16 %v1037, %v1030
        %v1101 = vpack.c.b16 %v1038, %v1031
        %v1102 = vpack.c.b16 %v1039, %v1032
        %v1103 = vpack.c.b16 %v1040, %v1033
        %v1104 = vpack.c.b16 %v1041, %v1034
        %v1105 = vpack.c.b16 %v1049, %v1042
        %v1106 = vpack.c.b16 %v1050, %v1043
        %v1107 = vpack.c.b16 %v1051, %v1044
        %v1108 = vpack.c.b16 %v1052, %v1045
        %v1109 = vpack.c.b16 %v1053, %v1046
        %v1110 = vpack.c.b16 %v1054, %v1047
        %v1111 = vpack.c.b16 %v1055, %v1048
        %v1392 = vunpack.c.l.b16 %v634
        %v1393 = vunpack.c.h.b16 %v634
        %v1394 = vunpack.c.l.b16 %v635
        %v1395 = vunpack.c.h.b16 %v635
        %v1396 = vunpack.c.l.b16 %v636
        %v1397 = vunpack.c.h.b16 %v636
        %v1398 = vunpack.c.l.b16 %v637
        %v1399 = vunpack.c.h.b16 %v637
        %v1400 = vunpack.c.l.b16 %v638
        %v1401 = vunpack.c.h.b16 %v638
        %v1402 = vunpack.c.l.b16 %v639
        %v1403 = vunpack.c.h.b16 %v639
        %v1404 = vunpack.c.l.b16 %v640
        %v1405 = vunpack.c.h.b16 %v640
        %v1406 = vunpack.c.l.b16 %v641
        %v1407 = vunpack.c.h.b16 %v641
        %v1408 = vunpack.c.l.b16 %v642
        %v1409 = vunpack.c.h.b16 %v642
        %v1410 = vunpack.c.l.b16 %v643
        %v1411 = vunpack.c.h.b16 %v643
        %v1412 = vunpack.c.l.b16 %v644
        %v1413 = vunpack.c.h.b16 %v644
        %v1414 = vunpack.c.l.b16 %v645
        %v1415 = vunpack.c.h.b16 %v645
        %v1416 = vunpack.c.l.b16 %v646
        %v1417 = vunpack.c.h.b16 %v646
        %v1418 = vunpack.c.l.b16 %v647
        %v1419 = vunpack.c.h.b16 %v647
        %v1420 = vunpack.c.l.b16 %v648
        %v1421 = vunpack.c.h.b16 %v648
        %v1422 = vunpack.c.l.b16 %v649
        %v1423 = vunpack.c.h.b16 %v649
        %v1424 = vunpack.c.l.b16 %v650
        %v1425 = vunpack.c.h.b16 %v650
        %v1426 = vunpack.c.l.b16 %v651
        %v1427 = vunpack.c.h.b16 %v651
        %v1428 = vunpack.c.l.b16 %v652
        %v1429 = vunpack.c.h.b16 %v652
        %v1430 = vunpack.c.l.b16 %v653
        %v1431 = vunpack.c.h.b16 %v653
        %v1432 = vunpack.c.l.b16 %v654
        %v1433 = vunpack.c.h.b16 %v654
        %v1434 = vunpack.c.l.b16 %v655
        %v1435 = vunpack.c.h.b16 %v655
        %v1436 = vunpack.c.l.b16 %v656
        %v1437 = vunpack.c.h.b16 %v656
        %v1438 = vunpack.c.l.b16 %v657
        %v1439 = vunpack.c.h.b16 %v657
        %v1440 = vunpack.c.l.b16 %v658
        %v1441 = vunpack.c.h.b16 %v658
        %v1442 = vunpack.c.l.b16 %v659
        %v1443 = vunpack.c.h.b16 %v659
        %v1444 = vunpack.c.l.b16 %v660
        %v1445 = vunpack.c.h.b16 %v660
        %v1446 = vunpack.c.l.b16 %v661
        %v1447 = vunpack.c.h.b16 %v661
        %v1448 = vunpack.c.l.b16 %v662
        %v1449 = vunpack.c.h.b16 %v662
        %v1450 = vunpack.c.l.b16 %v663
        %v1451 = vunpack.c.h.b16 %v663
        %v1452 = vunpack.c.l.b16 %v664
        %v1453 = vunpack.c.h.b16 %v664
        %v1454 = vunpack.c.l.b16 %v665
        %v1455 = vunpack.c.h.b16 %v665
        %v1456 = vunpack.c.l.b16 %v666
        %v1457 = vunpack.c.h.b16 %v666
        %v1458 = vunpack.c.l.b16 %v667
        %v1459 = vunpack.c.h.b16 %v667
        %v1460 = vunpack.c.l.b16 %v668
        %v1461 = vunpack.c.h.b16 %v668
        %v1462 = vunpack.c.l.b16 %v669
        %v1463 = vunpack.c.h.b16 %v669
        %v1464 = vunpack.c.l.b16 %v670
        %v1465 = vunpack.c.h.b16 %v670
        %v1466 = vunpack.c.l.b16 %v671
        %v1467 = vunpack.c.h.b16 %v671
        %v1468 = vunpack.c.l.b16 %v672
        %v1469 = vunpack.c.h.b16 %v672
        %v1470 = vunpack.c.l.b16 %v673
        %v1471 = vunpack.c.h.b16 %v673
        %v1472 = vunpack.c.l.b16 %v674
        %v1473 = vunpack.c.h.b16 %v674
        %v1474 = vunpack.c.l.b16 %v675
        %v1475 = vunpack.c.h.b16 %v675
        %v1476 = vunpack.c.l.b16 %v676
        %v1477 = vunpack.c.h.b16 %v676
        %v1478 = vunpack.c.l.b16 %v677
        %v1479 = vunpack.c.h.b16 %v677
        %v1480 = vunpack.c.l.b16 %v678
        %v1481 = vunpack.c.h.b16 %v678
        %v1482 = vunpack.c.l.b16 %v679
        %v1483 = vunpack.c.h.b16 %v679
        %v1484 = vunpack.c.l.b16 %v680
        %v1485 = vunpack.c.h.b16 %v680
        %v1486 = vunpack.c.l.b16 %v681
        %v1487 = vunpack.c.h.b16 %v681
        %v1488 = vunpack.c.l.b16 %v682
        %v1489 = vunpack.c.h.b16 %v682
        %v1490 = vunpack.c.l.b16 %v683
        %v1491 = vunpack.c.h.b16 %v683
        %v1492 = vunpack.c.l.b16 %v684
        %v1493 = vunpack.c.h.b16 %v684
        %v1494 = vunpack.c.l.b16 %v685
        %v1495 = vunpack.c.h.b16 %v685
        %v1496 = vunpack.c.l.b16 %v686
        %v1497 = vunpack.c.h.b16 %v686
        %v1498 = vunpack.c.l.b16 %v687
        %v1499 = vunpack.c.h.b16 %v687
        %v1500 = vunpack.c.l.b16 %v688
        %v1501 = vunpack.c.h.b16 %v688
        %v1502 = vunpack.c.l.b16 %v689
        %v1503 = vunpack.c.h.b16 %v689
        %v1504 = vunpack.c.l.b16 %v690
        %v1505 = vunpack.c.h.b16 %v690
        %v1506 = vunpack.c.l.b16 %v691
        %v1507 = vunpack.c.h.b16 %v691
        %v1508 = vunpack.c.l.b16 %v692
        %v1509 = vunpack.c.h.b16 %v692
        %v1510 = vunpack.c.l.b16 %v693
        %v1511 = vunpack.c.h.b16 %v693
        %v1512 = vunpack.c.l.b16 %v694
        %v1513 = vunpack.c.h.b16 %v694
        %v1514 = vunpack.c.l.b16 %v695
        %v1515 = vunpack.c.h.b16 %v695
        %v1516 = vunpack.c.l.b16 %v696
        %v1517 = vunpack.c.h.b16 %v696
        %v1518 = vunpack.c.l.b16 %v697
        %v1519 = vunpack.c.h.b16 %v697
        %v1520 = vunpack.c.l.b16 %v698
        %v1521 = vunpack.c.h.b16 %v698
        %v1522 = vunpack.c.l.b16 %v699
        %v1523 = vunpack.c.h.b16 %v699
        %v1524 = vunpack.c.l.b16 %v700
        %v1525 = vunpack.c.h.b16 %v700
        %v1526 = vunpack.c.l.b16 %v701
        %v1527 = vunpack.c.h.b16 %v701
        %v1528 = vunpack.c.l.b16 %v702
        %v1529 = vunpack.c.h.b16 %v702
        %v1530 = vunpack.c.l.b16 %v703
        %v1531 = vunpack.c.h.b16 %v703
        %v1532 = vunpack.c.l.b16 %v704
        %v1533 = vunpack.c.h.b16 %v704
        %v1534 = vunpack.c.l.b16 %v705
        %v1535 = vunpack.c.h.b16 %v705
        %v1536 = vunpack.c.l.b16 %v706
        %v1537 = vunpack.c.h.b16 %v706
        %v1538 = vunpack.c.l.b16 %v707
        %v1539 = vunpack.c.h.b16 %v707
        %v1540 = vunpack.c.l.b16 %v708
        %v1541 = vunpack.c.h.b16 %v708
        %v1542 = vunpack.c.l.b16 %v709
        %v1543 = vunpack.c.h.b16 %v709
        %v1544 = vunpack.c.l.b16 %v710
        %v1545 = vunpack.c.h.b16 %v710
        %v1546 = vunpack.c.l.b16 %v711
        %v1547 = vunpack.c.h.b16 %v711
        %v1548 = vunpack.c.l.b16 %v712
        %v1549 = vunpack.c.h.b16 %v712
        %v1550 = vunpack.c.l.b16 %v713
        %v1551 = vunpack.c.h.b16 %v713
        %v1552 = vunpack.c.l.b16 %v714
        %v1553 = vunpack.c.h.b16 %v714
        %v1554 = vunpack.c.l.b16 %v715
        %v1555 = vunpack.c.h.b16 %v715
        %v1556 = vunpack.c.l.b16 %v716
        %v1557 = vunpack.c.h.b16 %v716
        %v1558 = vunpack.c.l.b16 %v717
        %v1559 = vunpack.c.h.b16 %v717
        %v1560 = vunpack.c.l.b16 %v718
        %v1561 = vunpack.c.h.b16 %v718
        %v1562 = vunpack.c.l.b16 %v719
        %v1563 = vunpack.c.h.b16 %v719
        %v1564 = vunpack.c.l.b16 %v720
        %v1565 = vunpack.c.h.b16 %v720
        %v1566 = vunpack.c.l.b16 %v721
        %v1567 = vunpack.c.h.b16 %v721
        %v1568 = vunpack.c.l.b16 %v722
        %v1569 = vunpack.c.h.b16 %v722
        %v1570 = vunpack.c.l.b16 %v723
        %v1571 = vunpack.c.h.b16 %v723
        %v1572 = vunpack.c.l.b16 %v724
        %v1573 = vunpack.c.h.b16 %v724
        %v1574 = vunpack.c.l.b16 %v725
        %v1575 = vunpack.c.h.b16 %v725
        %v1576 = vunpack.c.l.b16 %v726
        %v1577 = vunpack.c.h.b16 %v726
        %v1578 = vunpack.c.l.b16 %v727
        %v1579 = vunpack.c.h.b16 %v727
        %v1580 = vunpack.c.l.b16 %v728
        %v1581 = vunpack.c.h.b16 %v728
        %v1582 = vunpack.c.l.b16 %v729
        %v1583 = vunpack.c.h.b16 %v729
        %v1584 = vunpack.c.l.b16 %v730
        %v1585 = vunpack.c.h.b16 %v730
        %v1586 = vunpack.c.l.b16 %v731
        %v1587 = vunpack.c.h.b16 %v731
        %v1588 = vunpack.c.l.b16 %v732
        %v1589 = vunpack.c.h.b16 %v732
        %v1590 = vunpack.c.l.b16 %v733
        %v1591 = vunpack.c.h.b16 %v733
        %v1592 = vunpack.c.l.b16 %v734
        %v1593 = vunpack.c.h.b16 %v734
        %v1594 = vunpack.c.l.b16 %v735
        %v1595 = vunpack.c.h.b16 %v735
        %v1596 = vunpack.c.l.b16 %v736
        %v1597 = vunpack.c.h.b16 %v736
        %v1598 = vunpack.c.l.b16 %v737
        %v1599 = vunpack.c.h.b16 %v737
        %v1600 = vunpack.c.l.b16 %v738
        %v1601 = vunpack.c.h.b16 %v738
        %v1602 = vunpack.c.l.b16 %v739
        %v1603 = vunpack.c.h.b16 %v739
        %v1604 = vunpack.c.l.b16 %v740
        %v1605 = vunpack.c.h.b16 %v740
        %v1606 = vunpack.c.l.b16 %v741
        %v1607 = vunpack.c.h.b16 %v741
        %v1608 = vunpack.c.l.b16 %v742
        %v1609 = vunpack.c.h.b16 %v742
        %v1610 = vunpack.c.l.b16 %v743
        %v1611 = vunpack.c.h.b16 %v743
        %v1612 = vunpack.c.l.b16 %v744
        %v1613 = vunpack.c.h.b16 %v744
        %v1614 = vunpack.c.l.b16 %v745
        %v1615 = vunpack.c.h.b16 %v745
        %v1616 = vunpack.c.l.b16 %v746
        %v1617 = vunpack.c.h.b16 %v746
        %v1618 = vunpack.c.l.b16 %v747
        %v1619 = vunpack.c.h.b16 %v747
        %v1620 = vunpack.c.l.b16 %v748
        %v1621 = vunpack.c.h.b16 %v748
        %v1622 = vunpack.c.l.b16 %v749
        %v1623 = vunpack.c.h.b16 %v749
        %v1624 = vunpack.c.l.b16 %v750
        %v1625 = vunpack.c.h.b16 %v750
        %v1626 = vunpack.c.l.b16 %v751
        %v1627 = vunpack.c.h.b16 %v751
        %v1628 = vunpack.c.l.b16 %v752
        %v1629 = vunpack.c.h.b16 %v752
        %v1630 = vunpack.c.l.b16 %v753
        %v1631 = vunpack.c.h.b16 %v753
        %v1632 = vunpack.c.l.b16 %v754
        %v1633 = vunpack.c.h.b16 %v754
        %v1634 = vunpack.c.l.b16 %v755
        %v1635 = vunpack.c.h.b16 %v755
        %v1636 = vunpack.c.l.b16 %v756
        %v1637 = vunpack.c.h.b16 %v756
        %v1638 = vunpack.c.l.b16 %v757
        %v1639 = vunpack.c.h.b16 %v757
        %v1640 = vunpack.c.l.b16 %v758
        %v1641 = vunpack.c.h.b16 %v758
        %v1642 = vunpack.c.l.b16 %v759
        %v1643 = vunpack.c.h.b16 %v759
        %v1644 = vunpack.c.l.b16 %v760
        %v1645 = vunpack.c.h.b16 %v760
        %v1646 = vunpack.c.l.b16 %v761
        %v1647 = vunpack.c.h.b16 %v761
        %v1648 = vunpack.c.l.b16 %v762
        %v1649 = vunpack.c.h.b16 %v762
        %v1650 = vunpack.c.l.b16 %v763
        %v1651 = vunpack.c.h.b16 %v763
        %v1652 = vunpack.c.l.b16 %v764
        %v1653 = vunpack.c.h.b16 %v764
        %v1654 = vunpack.c.l.b16 %v765
        %v1655 = vunpack.c.h.b16 %v765
        %v1656 = vunpack.c.l.b16 %v766
        %v1657 = vunpack.c.h.b16 %v766
        %v1658 = vunpack.c.l.b16 %v767
        %v1659 = vunpack.c.h.b16 %v767
        %v1660 = vunpack.c.l.b16 %v768
        %v1661 = vunpack.c.h.b16 %v768
        %v1662 = vunpack.c.l.b16 %v769
        %v1663 = vunpack.c.h.b16 %v769
        %v1664 = vunpack.c.l.b16 %v770
        %v1665 = vunpack.c.h.b16 %v770
        %v1666 = vunpack.c.l.b16 %v771
        %v1667 = vunpack.c.h.b16 %v771
        %v1668 = vunpack.c.l.b16 %v772
        %v1669 = vunpack.c.h.b16 %v772
        %v1670 = vunpack.c.l.b16 %v773
        %v1671 = vunpack.c.h.b16 %v773
        %v1672 = vunpack.c.l.b16 %v774
        %v1673 = vunpack.c.h.b16 %v774
        %v1674 = vunpack.c.l.b16 %v775
        %v1675 = vunpack.c.h.b16 %v775
        %v1676 = vunpack.c.l.b16 %v776
        %v1677 = vunpack.c.h.b16 %v776
        %v1678 = vunpack.c.l.b16 %v777
        %v1679 = vunpack.c.h.b16 %v777
        %v1680 = vunpack.c.l.b16 %v778
        %v1681 = vunpack.c.h.b16 %v778
        %v1682 = vunpack.c.l.b16 %v779
        %v1683 = vunpack.c.h.b16 %v779
        %v1684 = vunpack.c.l.b16 %v780
        %v1685 = vunpack.c.h.b16 %v780
        %v1686 = vunpack.c.l.b16 %v781
        %v1687 = vunpack.c.h.b16 %v781
        %v1688 = vunpack.c.l.b16 %v782
        %v1689 = vunpack.c.h.b16 %v782
        %v1690 = vunpack.c.l.b16 %v783
        %v1691 = vunpack.c.h.b16 %v783
        %v1692 = vunpack.c.l.b16 %v784
        %v1693 = vunpack.c.h.b16 %v784
        %v1694 = vunpack.c.l.b16 %v785
        %v1695 = vunpack.c.h.b16 %v785
        %v1696 = vunpack.c.l.b16 %v786
        %v1697 = vunpack.c.h.b16 %v786
        %v1698 = vunpack.c.l.b16 %v787
        %v1699 = vunpack.c.h.b16 %v787
        %v1700 = vunpack.c.l.b16 %v788
        %v1701 = vunpack.c.h.b16 %v788
        %v1702 = vunpack.c.l.b16 %v789
        %v1703 = vunpack.c.h.b16 %v789
        %v1704 = vunpack.c.l.b16 %v790
        %v1705 = vunpack.c.h.b16 %v790
        %v1706 = vunpack.c.l.b16 %v791
        %v1707 = vunpack.c.h.b16 %v791
        %v1708 = vunpack.c.l.b16 %v792
        %v1709 = vunpack.c.h.b16 %v792
        %v1710 = vunpack.c.l.b16 %v793
        %v1711 = vunpack.c.h.b16 %v793
        %v1712 = vunpack.c.l.b16 %v794
        %v1713 = vunpack.c.h.b16 %v794
        %v1714 = vunpack.c.l.b16 %v795
        %v1715 = vunpack.c.h.b16 %v795
        %v1716 = vunpack.c.l.b16 %v796
        %v1717 = vunpack.c.h.b16 %v796
        %v1718 = vunpack.c.l.b16 %v797
        %v1719 = vunpack.c.h.b16 %v797
        %v1720 = vunpack.c.l.b16 %v798
        %v1721 = vunpack.c.h.b16 %v798
        %v1722 = vunpack.c.l.b16 %v799
        %v1723 = vunpack.c.h.b16 %v799
        %v1724 = vunpack.c.l.b16 %v800
        %v1725 = vunpack.c.h.b16 %v800
        %v1726 = vunpack.c.l.b16 %v801
        %v1727 = vunpack.c.h.b16 %v801
        %v1728 = vunpack.c.l.b16 %v802
        %v1729 = vunpack.c.h.b16 %v802
        %v1730 = vunpack.c.l.b16 %v803
        %v1731 = vunpack.c.h.b16 %v803
        %v1732 = vunpack.c.l.b16 %v804
        %v1733 = vunpack.c.h.b16 %v804
        %v1734 = vunpack.c.l.b16 %v805
        %v1735 = vunpack.c.h.b16 %v805
        %v1736 = vunpack.c.l.b16 %v806
        %v1737 = vunpack.c.h.b16 %v806
        %v1738 = vunpack.c.l.b16 %v807
        %v1739 = vunpack.c.h.b16 %v807
        %v1740 = vunpack.c.l.b16 %v808
        %v1741 = vunpack.c.h.b16 %v808
        %v1742 = vunpack.c.l.b16 %v809
        %v1743 = vunpack.c.h.b16 %v809
        %v1744 = vunpack.c.l.b16 %v810
        %v1745 = vunpack.c.h.b16 %v810
        %v1746 = vunpack.c.l.b16 %v811
        %v1747 = vunpack.c.h.b16 %v811
        %v1748 = vunpack.c.l.b16 %v812
        %v1749 = vunpack.c.h.b16 %v812
        %v1750 = vunpack.c.l.b16 %v813
        %v1751 = vunpack.c.h.b16 %v813
        %v1752 = vunpack.c.l.b16 %v814
        %v1753 = vunpack.c.h.b16 %v814
        %v1754 = vunpack.c.l.b16 %v815
        %v1755 = vunpack.c.h.b16 %v815
        %v1756 = vunpack.c.l.b16 %v816
        %v1757 = vunpack.c.h.b16 %v816
        %v1758 = vunpack.c.l.b16 %v817
        %v1759 = vunpack.c.h.b16 %v817
        %v1760 = vunpack.c.l.b16 %v818
        %v1761 = vunpack.c.h.b16 %v818
        %v1762 = vunpack.c.l.b16 %v819
        %v1763 = vunpack.c.h.b16 %v819
        %v1764 = vunpack.c.l.b16 %v820
        %v1765 = vunpack.c.h.b16 %v820
        %v1766 = vunpack.c.l.b16 %v821
        %v1767 = vunpack.c.h.b16 %v821
        %v1768 = vunpack.c.l.b16 %v822
        %v1769 = vunpack.c.h.b16 %v822
        %v1770 = vunpack.c.l.b16 %v823
        %v1771 = vunpack.c.h.b16 %v823
        %v1772 = vunpack.c.l.b16 %v824
        %v1773 = vunpack.c.h.b16 %v824
        %v1774 = vunpack.c.l.b16 %v825
        %v1775 = vunpack.c.h.b16 %v825
        %v1776 = vunpack.c.l.b16 %v826
        %v1777 = vunpack.c.h.b16 %v826
        %v1778 = vunpack.c.l.b16 %v827
        %v1779 = vunpack.c.h.b16 %v827
        %v1780 = vunpack.c.l.b16 %v828
        %v1781 = vunpack.c.h.b16 %v828
        %v1782 = vunpack.c.l.b16 %v829
        %v1783 = vunpack.c.h.b16 %v829
        %v1784 = vunpack.c.l.b16 %v830
        %v1785 = vunpack.c.h.b16 %v830
        %v1786 = vunpack.c.l.b16 %v831
        %v1787 = vunpack.c.h.b16 %v831
        %v1788 = vunpack.c.l.b16 %v832
        %v1789 = vunpack.c.h.b16 %v832
        %v1790 = vunpack.c.l.b16 %v833
        %v1791 = vunpack.c.h.b16 %v833
        %v1792 = vunpack.c.l.b16 %v834
        %v1793 = vunpack.c.h.b16 %v834
        %v1794 = vunpack.c.l.b16 %v835
        %v1795 = vunpack.c.h.b16 %v835
        %v1796 = vunpack.c.l.b16 %v836
        %v1797 = vunpack.c.h.b16 %v836
        %v1798 = vunpack.c.l.b16 %v837
        %v1799 = vunpack.c.h.b16 %v837
        %v1800 = vunpack.c.l.b16 %v838
        %v1801 = vunpack.c.h.b16 %v838
        %v1802 = vunpack.c.l.b16 %v839
        %v1803 = vunpack.c.h.b16 %v839
        %v1804 = vunpack.c.l.b16 %v840
        %v1805 = vunpack.c.h.b16 %v840
        %v1806 = vunpack.c.l.b16 %v841
        %v1807 = vunpack.c.h.b16 %v841
        %v1808 = vunpack.c.l.b16 %v842
        %v1809 = vunpack.c.h.b16 %v842
        %v1810 = vunpack.c.l.b16 %v843
        %v1811 = vunpack.c.h.b16 %v843
        %v1812 = vunpack.c.l.b16 %v844
        %v1813 = vunpack.c.h.b16 %v844
        %v1814 = vunpack.c.l.b16 %v845
        %v1815 = vunpack.c.h.b16 %v845
        %v1816 = vunpack.c.l.b16 %v846
        %v1817 = vunpack.c.h.b16 %v846
        %v1818 = vunpack.c.l.b16 %v847
        %v1819 = vunpack.c.h.b16 %v847
        %v1820 = vunpack.c.l.b16 %v848
        %v1821 = vunpack.c.h.b16 %v848
        %v1822 = vunpack.c.l.b16 %v849
        %v1823 = vunpack.c.h.b16 %v849
        %v1824 = vunpack.c.l.b16 %v850
        %v1825 = vunpack.c.h.b16 %v850
        %v1826 = vunpack.c.l.b16 %v851
        %v1827 = vunpack.c.h.b16 %v851
        %v1828 = vunpack.c.l.b16 %v852
        %v1829 = vunpack.c.h.b16 %v852
        %v1830 = vunpack.c.l.b16 %v853
        %v1831 = vunpack.c.h.b16 %v853
        %v1832 = vunpack.c.l.b16 %v854
        %v1833 = vunpack.c.h.b16 %v854
        %v1834 = vunpack.c.l.b16 %v855
        %v1835 = vunpack.c.h.b16 %v855
        %v1836 = vunpack.c.l.b16 %v856
        %v1837 = vunpack.c.h.b16 %v856
        %v1838 = vunpack.c.l.b16 %v857
        %v1839 = vunpack.c.h.b16 %v857
        %v1840 = vpack.c.b16 %v1396, %v1392
        %v1841 = vpack.c.b16 %v1397, %v1393
        %v1842 = vpack.c.b16 %v1398, %v1394
        %v1843 = vpack.c.b16 %v1399, %v1395
        %v1844 = vpack.c.b16 %v1404, %v1400
        %v1845 = vpack.c.b16 %v1405, %v1401
        %v1846 = vpack.c.b16 %v1406, %v1402
        %v1847 = vpack.c.b16 %v1407, %v1403
        %v1848 = vpack.c.b16 %v1412, %v1408
        %v1849 = vpack.c.b16 %v1413, %v1409
        %v1850 = vpack.c.b16 %v1414, %v1410
        %v1851 = vpack.c.b16 %v1415, %v1411
        %v1852 = vpack.c.b16 %v1420, %v1416
        %v1853 = vpack.c.b16 %v1421, %v1417
        %v1854 = vpack.c.b16 %v1422, %v1418
        %v1855 = vpack.c.b16 %v1423, %v1419
        %v1856 = vpack.c.b16 %v1428, %v1424
        %v1857 = vpack.c.b16 %v1429, %v1425
        %v1858 = vpack.c.b16 %v1430, %v1426
        %v1859 = vpack.c.b16 %v1431, %v1427
        %v1860 = vpack.c.b16 %v1436, %v1432
        %v1861 = vpack.c.b16 %v1437, %v1433
        %v1862 = vpack.c.b16 %v1438, %v1434
        %v1863 = vpack.c.b16 %v1439, %v1435
        %v1864 = vpack.c.b16 %v1444, %v1440
        %v1865 = vpack.c.b16 %v1445, %v1441
        %v1866 = vpack.c.b16 %v1446, %v1442
        %v1867 = vpack.c.b16 %v1447, %v1443
        %v1868 = vpack.c.b16 %v1452, %v1448
        %v1869 = vpack.c.b16 %v1453, %v1449
        %v1870 = vpack.c.b16 %v1454, %v1450
        %v1871 = vpack.c.b16 %v1455, %v1451
        %v1872 = vpack.c.b16 %v1460, %v1456
        %v1873 = vpack.c.b16 %v1461, %v1457
        %v1874 = vpack.c.b16 %v1462, %v1458
        %v1875 = vpack.c.b16 %v1463, %v1459
        %v1876 = vpack.c.b16 %v1468, %v1464
        %v1877 = vpack.c.b16 %v1469, %v1465
        %v1878 = vpack.c.b16 %v1470, %v1466
        %v1879 = vpack.c.b16 %v1471, %v1467
        %v1880 = vpack.c.b16 %v1476, %v1472
        %v1881 = vpack.c.b16 %v1477, %v1473
        %v1882 = vpack.c.b16 %v1478, %v1474
        %v1883 = vpack.c.b16 %v1479, %v1475
        %v1884 = vpack.c.b16 %v1484, %v1480
        %v1885 = vpack.c.b16 %v1485, %v1481
        %v1886 = vpack.c.b16 %v1486, %v1482
        %v1887 = vpack.c.b16 %v1487, %v1483
        %v1888 = vpack.c.b16 %v1492, %v1488
        %v1889 = vpack.c.b16 %v1493, %v1489
        %v1890 = vpack.c.b16 %v1494, %v1490
        %v1891 = vpack.c.b16 %v1495, %v1491
        %v1892 = vpack.c.b16 %v1500, %v1496
        %v1893 = vpack.c.b16 %v1501, %v1497
        %v1894 = vpack.c.b16 %v1502, %v1498
        %v1895 = vpack.c.b16 %v1503, %v1499
        %v1896 = vpack.c.b16 %v1508, %v1504
        %v1897 = vpack.c.b16 %v1509, %v1505
        %v1898 = vpack.c.b16 %v1510, %v1506
        %v1899 = vpack.c.b16 %v1511, %v1507
        %v1900 = vpack.c.b16 %v1516, %v1512
        %v1901 = vpack.c.b16 %v1517, %v1513
        %v1902 = vpack.c.b16 %v1518, %v1514
        %v1903 = vpack.c.b16 %v1519, %v1515
        %v1904 = vpack.c.b16 %v1524, %v1520
        %v1905 = vpack.c.b16 %v1525, %v1521
        %v1906 = vpack.c.b16 %v1526, %v1522
        %v1907 = vpack.c.b16 %v1527, %v1523
        %v1908 = vpack.c.b16 %v1532, %v1528
        %v1909 = vpack.c.b16 %v1533, %v1529
        %v1910 = vpack.c.b16 %v1534, %v1530
        %v1911 = vpack.c.b16 %v1535, %v1531
        %v1912 = vpack.c.b16 %v1540, %v1536
        %v1913 = vpack.c.b16 %v1541, %v1537
        %v1914 = vpack.c.b16 %v1542, %v1538
        %v1915 = vpack.c.b16 %v1543, %v1539
        %v1916 = vpack.c.b16 %v1548, %v1544
        %v1917 = vpack.c.b16 %v1549, %v1545
        %v1918 = vpack.c.b16 %v1550, %v1546
        %v1919 = vpack.c.b16 %v1551, %v1547
        %v1920 = vpack.c.b16 %v1556, %v1552
        %v1921 = vpack.c.b16 %v1557, %v1553
        %v1922 = vpack.c.b16 %v1558, %v1554
        %v1923 = vpack.c.b16 %v1559, %v1555
        %v1924 = vpack.c.b16 %v1564, %v1560
        %v1925 = vpack.c.b16 %v1565, %v1561
        %v1926 = vpack.c.b16 %v1566, %v1562
        %v1927 = vpack.c.b16 %v1567, %v1563
        %v1928 = vpack.c.b16 %v1572, %v1568
        %v1929 = vpack.c.b16 %v1573, %v1569
        %v1930 = vpack.c.b16 %v1574, %v1570
        %v1931 = vpack.c.b16 %v1575, %v1571
        %v1932 = vpack.c.b16 %v1580, %v1576
        %v1933 = vpack.c.b16 %v1581, %v1577
        %v1934 = vpack.c.b16 %v1582, %v1578
        %v1935 = vpack.c.b16 %v1583, %v1579
        %v1936 = vpack.c.b16 %v1588, %v1584
        %v1937 = vpack.c.b16 %v1589, %v1585
        %v1938 = vpack.c.b16 %v1590, %v1586
        %v1939 = vpack.c.b16 %v1591, %v1587
        %v1940 = vpack.c.b16 %v1596, %v1592
        %v1941 = vpack.c.b16 %v1597, %v1593
        %v1942 = vpack.c.b16 %v1598, %v1594
        %v1943 = vpack.c.b16 %v1599, %v1595
        %v1944 = vpack.c.b16 %v1604, %v1600
        %v1945 = vpack.c.b16 %v1605, %v1601
        %v1946 = vpack.c.b16 %v1606, %v1602
        %v1947 = vpack.c.b16 %v1607, %v1603
        %v1948 = vpack.c.b16 %v1612, %v1608
        %v1949 = vpack.c.b16 %v1613, %v1609
        %v1950 = vpack.c.b16 %v1614, %v1610
        %v1951 = vpack.c.b16 %v1615, %v1611
        %v1952 = vpack.c.b16 %v1620, %v1616
        %v1953 = vpack.c.b16 %v1621, %v1617
        %v1954 = vpack.c.b16 %v1622, %v1618
        %v1955 = vpack.c.b16 %v1623, %v1619
        %v1956 = vpack.c.b16 %v1628, %v1624
        %v1957 = vpack.c.b16 %v1629, %v1625
        %v1958 = vpack.c.b16 %v1630, %v1626
        %v1959 = vpack.c.b16 %v1631, %v1627
        %v1960 = vpack.c.b16 %v1636, %v1632
        %v1961 = vpack.c.b16 %v1637, %v1633
        %v1962 = vpack.c.b16 %v1638, %v1634
        %v1963 = vpack.c.b16 %v1639, %v1635
        %v1964 = vpack.c.b16 %v1644, %v1640
        %v1965 = vpack.c.b16 %v1645, %v1641
        %v1966 = vpack.c.b16 %v1646, %v1642
        %v1967 = vpack.c.b16 %v1647, %v1643
        %v1968 = vpack.c.b16 %v1652, %v1648
        %v1969 = vpack.c.b16 %v1653, %v1649
        %v1970 = vpack.c.b16 %v1654, %v1650
        %v1971 = vpack.c.b16 %v1655, %v1651
        %v1972 = vpack.c.b16 %v1660, %v1656
        %v1973 = vpack.c.b16 %v1661, %v1657
        %v1974 = vpack.c.b16 %v1662, %v1658
        %v1975 = vpack.c.b16 %v1663, %v1659
        %v1976 = vpack.c.b16 %v1668, %v1664
        %v1977 = vpack.c.b16 %v1669, %v1665
        %v1978 = vpack.c.b16 %v1670, %v1666
        %v1979 = vpack.c.b16 %v1671, %v1667
        %v1980 = vpack.c.b16 %v1676, %v1672
        %v1981 = vpack.c.b16 %v1677, %v1673
        %v1982 = vpack.c.b16 %v1678, %v1674
        %v1983 = vpack.c.b16 %v1679, %v1675
        %v1984 = vpack.c.b16 %v1684, %v1680
        %v1985 = vpack.c.b16 %v1685, %v1681
        %v1986 = vpack.c.b16 %v1686, %v1682
        %v1987 = vpack.c.b16 %v1687, %v1683
        %v1988 = vpack.c.b16 %v1692, %v1688
        %v1989 = vpack.c.b16 %v1693, %v1689
        %v1990 = vpack.c.b16 %v1694, %v1690
        %v1991 = vpack.c.b16 %v1695, %v1691
        %v1992 = vpack.c.b16 %v1700, %v1696
        %v1993 = vpack.c.b16 %v1701, %v1697
        %v1994 = vpack.c.b16 %v1702, %v1698
        %v1995 = vpack.c.b16 %v1703, %v1699
        %v1996 = vpack.c.b16 %v1708, %v1704
        %v1997 = vpack.c.b16 %v1709, %v1705
        %v1998 = vpack.c.b16 %v1710, %v1706
        %v1999 = vpack.c.b16 %v1711, %v1707
        %v2000 = vpack.c.b16 %v1716, %v1712
        %v2001 = vpack.c.b16 %v1717, %v1713
        %v2002 = vpack.c.b16 %v1718, %v1714
        %v2003 = vpack.c.b16 %v1719, %v1715
        %v2004 = vpack.c.b16 %v1724, %v1720
        %v2005 = vpack.c.b16 %v1725, %v1721
        %v2006 = vpack.c.b16 %v1726, %v1722
        %v2007 = vpack.c.b16 %v1727, %v1723
        %v2008 = vpack.c.b16 %v1732, %v1728
        %v2009 = vpack.c.b16 %v1733, %v1729
        %v2010 = vpack.c.b16 %v1734, %v1730
        %v2011 = vpack.c.b16 %v1735, %v1731
        %v2012 = vpack.c.b16 %v1740, %v1736
        %v2013 = vpack.c.b16 %v1741, %v1737
        %v2014 = vpack.c.b16 %v1742, %v1738
        %v2015 = vpack.c.b16 %v1743, %v1739
        %v2016 = vpack.c.b16 %v1748, %v1744
        %v2017 = vpack.c.b16 %v1749, %v1745
        %v2018 = vpack.c.b16 %v1750, %v1746
        %v2019 = vpack.c.b16 %v1751, %v1747
        %v2020 = vpack.c.b16 %v1756, %v1752
        %v2021 = vpack.c.b16 %v1757, %v1753
        %v2022 = vpack.c.b16 %v1758, %v1754
        %v2023 = vpack.c.b16 %v1759, %v1755
        %v2024 = vpack.c.b16 %v1764, %v1760
        %v2025 = vpack.c.b16 %v1765, %v1761
        %v2026 = vpack.c.b16 %v1766, %v1762
        %v2027 = vpack.c.b16 %v1767, %v1763
        %v2028 = vpack.c.b16 %v1772, %v1768
        %v2029 = vpack.c.b16 %v1773, %v1769
        %v2030 = vpack.c.b16 %v1774, %v1770
        %v2031 = vpack.c.b16 %v1775, %v1771
        %v2032 = vpack.c.b16 %v1780, %v1776
        %v2033 = vpack.c.b16 %v1781, %v1777
        %v2034 = vpack.c.b16 %v1782, %v1778
        %v2035 = vpack.c.b16 %v1783, %v1779
        %v2036 = vpack.c.b16 %v1788, %v1784
        %v2037 = vpack.c.b16 %v1789, %v1785
        %v2038 = vpack.c.b16 %v1790, %v1786
        %v2039 = vpack.c.b16 %v1791, %v1787
        %v2040 = vpack.c.b16 %v1796, %v1792
        %v2041 = vpack.c.b16 %v1797, %v1793
        %v2042 = vpack.c.b16 %v1798, %v1794
        %v2043 = vpack.c.b16 %v1799, %v1795
        %v2044 = vpack.c.b16 %v1804, %v1800
        %v2045 = vpack.c.b16 %v1805, %v1801
        %v2046 = vpack.c.b16 %v1806, %v1802
        %v2047 = vpack.c.b16 %v1807, %v1803
        %v2048 = vpack.c.b16 %v1812, %v1808
        %v2049 = vpack.c.b16 %v1813, %v1809
        %v2050 = vpack.c.b16 %v1814, %v1810
        %v2051 = vpack.c.b16 %v1815, %v1811
        %v2052 = vpack.c.b16 %v1820, %v1816
        %v2053 = vpack.c.b16 %v1821, %v1817
        %v2054 = vpack.c.b16 %v1822, %v1818
        %v2055 = vpack.c.b16 %v1823, %v1819
        %v2056 = vpack.c.b16 %v1828, %v1824
        %v2057 = vpack.c.b16 %v1829, %v1825
        %v2058 = vpack.c.b16 %v1830, %v1826
        %v2059 = vpack.c.b16 %v1831, %v1827
        %v2060 = vpack.c.b16 %v1836, %v1832
        %v2061 = vpack.c.b16 %v1837, %v1833
        %v2062 = vpack.c.b16 %v1838, %v1834
        %v2063 = vpack.c.b16 %v1839, %v1835
        %2288 = vmatprep.subr.bf16.mxu0 %v1841
        %2289 = vmatpush1.bf16.msra.mxu0 %v1840
        %2290 = vmatprep.subr.bf16.mxu0 %v1845
        %2291 = vmatpush1.bf16.msra.mxu0 %v1844
        %2292 = vmatprep.subr.bf16.mxu0 %v1849
        %2293 = vmatpush1.bf16.msra.mxu0 %v1848
        %2294 = vmatprep.subr.bf16.mxu0 %v1853
        %2295 = vmatpush1.bf16.msra.mxu0 %v1852
        %2296 = vmatprep.subr.bf16.mxu0 %v1857
        %2297 = vmatpush1.bf16.msra.mxu0 %v1856
        %2298 = vmatprep.subr.bf16.mxu0 %v1861
        %2299 = vmatpush1.bf16.msra.mxu0 %v1860
        %2300 = vmatprep.subr.bf16.mxu0 %v1865
        %2301 = vmatpush1.bf16.msra.mxu0 %v1864
        %2302 = vmatprep.subr.bf16.mxu0 %v1869
        %2303 = vmatpush1.bf16.msra.mxu0 %v1868
        %2304 = vmatprep.subr.bf16.mxu0 %v1873
        %2305 = vmatpush1.bf16.msra.mxu0 %v1872
        %2306 = vmatprep.subr.bf16.mxu0 %v1877
        %2307 = vmatpush1.bf16.msra.mxu0 %v1876
        %2308 = vmatprep.subr.bf16.mxu0 %v1881
        %2309 = vmatpush1.bf16.msra.mxu0 %v1880
        %2310 = vmatprep.subr.bf16.mxu0 %v1885
        %2311 = vmatpush1.bf16.msra.mxu0 %v1884
        %2312 = vmatprep.subr.bf16.mxu0 %v1889
        %2313 = vmatpush1.bf16.msra.mxu0 %v1888
        %2314 = vmatprep.subr.bf16.mxu0 %v1893
        %2315 = vmatpush1.bf16.msra.mxu0 %v1892
        %2316 = vmatprep.subr.bf16.mxu0 %v1897
        %2317 = vmatpush1.bf16.msra.mxu0 %v1896
        %2318 = vmatprep.subr.bf16.mxu0 %v1901
        %2319 = vmatpush1.bf16.msra.mxu0 %v1900
        %2320 = vmatprep.mubr.bf16.mxu0 %v1057
        %2321 = vmatmul.mubr.bf16.gmra.mrb[0].mxu0 %v1056
        %v2322 = vpop.f32.mrb[0].mxu0
        %v2323 = vadd.f32 %v863, %v2322
        %v2324 = vpop.f32.mrb[0].mxu0
        %v2325 = vadd.f32 %v867, %v2324
        %v2326 = vpop.f32.mrb[0].mxu0
        %v2327 = vadd.f32 %v863, %v2326
        %v2328 = vpop.f32.mrb[0].mxu0
        %v2329 = vadd.f32 %v867, %v2328
        %2330 = vmatprep.mubr.bf16.mxu0 %v1064
        %2331 = vmatmul.mubr.bf16.gmra.mrb[0].mxu0 %v1063
        %v2332 = vpop.f32.mrb[0].mxu0
        %v2333 = vadd.f32 %v863, %v2332
        %v2334 = vpop.f32.mrb[0].mxu0
        %v2335 = vadd.f32 %v867, %v2334
        %v2336 = vpop.f32.mrb[0].mxu0
        %v2337 = vadd.f32 %v863, %v2336
        %v2338 = vpop.f32.mrb[0].mxu0
        %v2339 = vadd.f32 %v867, %v2338
        %2340 = vmatprep.mubr.bf16.mxu0 %v1071
        %2341 = vmatmul.mubr.bf16.gmra.mrb[0].mxu0 %v1070
        %v2342 = vpop.f32.mrb[0].mxu0
        %v2343 = vadd.f32 %v863, %v2342
        %v2344 = vpop.f32.mrb[0].mxu0
        %v2345 = vadd.f32 %v867, %v2344
        %v2346 = vpop.f32.mrb[0].mxu0
        %v2347 = vadd.f32 %v863, %v2346
        %v2348 = vpop.f32.mrb[0].mxu0
        %v2349 = vadd.f32 %v867, %v2348
        %2350 = vmatprep.mubr.bf16.mxu0 %v1078
        %2351 = vmatmul.mubr.bf16.gmra.mrb[0].mxu0 %v1077
        %v2352 = vpop.f32.mrb[0].mxu0
        %v2353 = vadd.f32 %v863, %v2352
        %v2354 = vpop.f32.mrb[0].mxu0
        %v2355 = vadd.f32 %v867, %v2354
        %v2356 = vpop.f32.mrb[0].mxu0
        %v2357 = vadd.f32 %v863, %v2356
        %v2358 = vpop.f32.mrb[0].mxu0
        %v2359 = vadd.f32 %v867, %v2358
        %2360 = vmatprep.mubr.bf16.mxu0 %v1085
        %2361 = vmatmul.mubr.bf16.gmra.mrb[0].mxu0 %v1084
        %v2362 = vpop.f32.mrb[0].mxu0
        %v2363 = vadd.f32 %v863, %v2362
        %v2364 = vpop.f32.mrb[0].mxu0
        %v2365 = vadd.f32 %v867, %v2364
        %v2366 = vpop.f32.mrb[0].mxu0
        %v2367 = vadd.f32 %v863, %v2366
        %v2368 = vpop.f32.mrb[0].mxu0
        %v2369 = vadd.f32 %v867, %v2368
        %2370 = vmatprep.mubr.bf16.mxu0 %v1092
        %2371 = vmatmul.mubr.bf16.gmra.mrb[0].mxu0 %v1091
        %v2372 = vpop.f32.mrb[0].mxu0
        %v2373 = vadd.f32 %v863, %v2372
        %v2374 = vpop.f32.mrb[0].mxu0
        %v2375 = vadd.f32 %v867, %v2374
        %v2376 = vpop.f32.mrb[0].mxu0
        %v2377 = vadd.f32 %v863, %v2376
        %v2378 = vpop.f32.mrb[0].mxu0
        %v2379 = vadd.f32 %v867, %v2378
        %2380 = vmatprep.mubr.bf16.mxu0 %v1099
        %2381 = vmatmul.mubr.bf16.gmra.mrb[0].mxu0 %v1098
        %v2382 = vpop.f32.mrb[0].mxu0
        %v2383 = vadd.f32 %v863, %v2382
        %v2384 = vpop.f32.mrb[0].mxu0
        %v2385 = vadd.f32 %v867, %v2384
        %v2386 = vpop.f32.mrb[0].mxu0
        %v2387 = vadd.f32 %v863, %v2386
        %v2388 = vpop.f32.mrb[0].mxu0
        %v2389 = vadd.f32 %v867, %v2388
        %2390 = vmatprep.mubr.bf16.mxu0 %v1106
        %2391 = vmatmul.mubr.bf16.gmra.mrb[0].mxu0 %v1105
        %v2392 = vpop.f32.mrb[0].mxu0
        %v2393 = vadd.f32 %v863, %v2392
        %v2394 = vpop.f32.mrb[0].mxu0
        %v2395 = vadd.f32 %v867, %v2394
        %v2396 = vpop.f32.mrb[0].mxu0
        %v2397 = vadd.f32 %v863, %v2396
        %v2398 = vpop.f32.mrb[0].mxu0
        %v2399 = vadd.f32 %v867, %v2398
        %2400 = vdwg.mxu0
        %2401 = vmatprep.subr.bf16.mxu0 %v1905
        %2402 = vmatpush1.bf16.msra.mxu0 %v1904
        %2403 = vmatprep.subr.bf16.mxu0 %v1909
        %2404 = vmatpush1.bf16.msra.mxu0 %v1908
        %2405 = vmatprep.subr.bf16.mxu0 %v1913
        %2406 = vmatpush1.bf16.msra.mxu0 %v1912
        %2407 = vmatprep.subr.bf16.mxu0 %v1917
        %2408 = vmatpush1.bf16.msra.mxu0 %v1916
        %2409 = vmatprep.subr.bf16.mxu0 %v1921
        %2410 = vmatpush1.bf16.msra.mxu0 %v1920
        %2411 = vmatprep.subr.bf16.mxu0 %v1925
        %2412 = vmatpush1.bf16.msra.mxu0 %v1924
        %2413 = vmatprep.subr.bf16.mxu0 %v1929
        %2414 = vmatpush1.bf16.msra.mxu0 %v1928
        %2415 = vmatprep.subr.bf16.mxu0 %v1933
        %2416 = vmatpush1.bf16.msra.mxu0 %v1932
        %2417 = vmatprep.subr.bf16.mxu0 %v1937
        %2418 = vmatpush1.bf16.msra.mxu0 %v1936
        %2419 = vmatprep.subr.bf16.mxu0 %v1941
        %2420 = vmatpush1.bf16.msra.mxu0 %v1940
        %2421 = vmatprep.subr.bf16.mxu0 %v1945
        %2422 = vmatpush1.bf16.msra.mxu0 %v1944
        %2423 = vmatprep.subr.bf16.mxu0 %v1949
        %2424 = vmatpush1.bf16.msra.mxu0 %v1948
        %2425 = vmatprep.subr.bf16.mxu0 %v1953
        %2426 = vmatpush1.bf16.msra.mxu0 %v1952
        %2427 = vmatprep.subr.bf16.mxu0 %v1957
        %2428 = vmatpush1.bf16.msra.mxu0 %v1956
        %2429 = vmatprep.subr.bf16.mxu0 %v1961
        %2430 = vmatpush1.bf16.msra.mxu0 %v1960
        %2431 = vmatprep.subr.bf16.mxu0 %v1965
        %2432 = vmatpush1.bf16.msra.mxu0 %v1964
        %2433 = vmatprep.mubr.bf16.mxu0 %v1059
        %2434 = vmatmul.mubr.bf16.gmra.mrb[0].mxu0 %v1058
        %v2435 = vpop.f32.mrb[0].mxu0
        %v2436 = vadd.f32 %v2323, %v2435
        %v2437 = vpop.f32.mrb[0].mxu0
        %v2438 = vadd.f32 %v2325, %v2437
        %v2439 = vpop.f32.mrb[0].mxu0
        %v2440 = vadd.f32 %v2327, %v2439
        %v2441 = vpop.f32.mrb[0].mxu0
        %v2442 = vadd.f32 %v2329, %v2441
        %2443 = vmatprep.mubr.bf16.mxu0 %v1066
        %2444 = vmatmul.mubr.bf16.gmra.mrb[0].mxu0 %v1065
        %v2445 = vpop.f32.mrb[0].mxu0
        %v2446 = vadd.f32 %v2333, %v2445
        %v2447 = vpop.f32.mrb[0].mxu0
        %v2448 = vadd.f32 %v2335, %v2447
        %v2449 = vpop.f32.mrb[0].mxu0
        %v2450 = vadd.f32 %v2337, %v2449
        %v2451 = vpop.f32.mrb[0].mxu0
        %v2452 = vadd.f32 %v2339, %v2451
        %2453 = vmatprep.mubr.bf16.mxu0 %v1073
        %2454 = vmatmul.mubr.bf16.gmra.mrb[0].mxu0 %v1072
        %v2455 = vpop.f32.mrb[0].mxu0
        %v2456 = vadd.f32 %v2343, %v2455
        %v2457 = vpop.f32.mrb[0].mxu0
        %v2458 = vadd.f32 %v2345, %v2457
        %v2459 = vpop.f32.mrb[0].mxu0
        %v2460 = vadd.f32 %v2347, %v2459
        %v2461 = vpop.f32.mrb[0].mxu0
        %v2462 = vadd.f32 %v2349, %v2461
        %2463 = vmatprep.mubr.bf16.mxu0 %v1080
        %2464 = vmatmul.mubr.bf16.gmra.mrb[0].mxu0 %v1079
        %v2465 = vpop.f32.mrb[0].mxu0
        %v2466 = vadd.f32 %v2353, %v2465
        %v2467 = vpop.f32.mrb[0].mxu0
        %v2468 = vadd.f32 %v2355, %v2467
        %v2469 = vpop.f32.mrb[0].mxu0
        %v2470 = vadd.f32 %v2357, %v2469
        %v2471 = vpop.f32.mrb[0].mxu0
        %v2472 = vadd.f32 %v2359, %v2471
        %2473 = vmatprep.mubr.bf16.mxu0 %v1087
        %2474 = vmatmul.mubr.bf16.gmra.mrb[0].mxu0 %v1086
        %v2475 = vpop.f32.mrb[0].mxu0
        %v2476 = vadd.f32 %v2363, %v2475
        %v2477 = vpop.f32.mrb[0].mxu0
        %v2478 = vadd.f32 %v2365, %v2477
        %v2479 = vpop.f32.mrb[0].mxu0
        %v2480 = vadd.f32 %v2367, %v2479
        %v2481 = vpop.f32.mrb[0].mxu0
        %v2482 = vadd.f32 %v2369, %v2481
        %2483 = vmatprep.mubr.bf16.mxu0 %v1094
        %2484 = vmatmul.mubr.bf16.gmra.mrb[0].mxu0 %v1093
        %v2485 = vpop.f32.mrb[0].mxu0
        %v2486 = vadd.f32 %v2373, %v2485
        %v2487 = vpop.f32.mrb[0].mxu0
        %v2488 = vadd.f32 %v2375, %v2487
        %v2489 = vpop.f32.mrb[0].mxu0
        %v2490 = vadd.f32 %v2377, %v2489
        %v2491 = vpop.f32.mrb[0].mxu0
        %v2492 = vadd.f32 %v2379, %v2491
        %2493 = vmatprep.mubr.bf16.mxu0 %v1101
        %2494 = vmatmul.mubr.bf16.gmra.mrb[0].mxu0 %v1100
        %v2495 = vpop.f32.mrb[0].mxu0
        %v2496 = vadd.f32 %v2383, %v2495
        %v2497 = vpop.f32.mrb[0].mxu0
        %v2498 = vadd.f32 %v2385, %v2497
        %v2499 = vpop.f32.mrb[0].mxu0
        %v2500 = vadd.f32 %v2387, %v2499
        %v2501 = vpop.f32.mrb[0].mxu0
        %v2502 = vadd.f32 %v2389, %v2501
        %2503 = vmatprep.mubr.bf16.mxu0 %v1108
        %2504 = vmatmul.mubr.bf16.gmra.mrb[0].mxu0 %v1107
        %v2505 = vpop.f32.mrb[0].mxu0
        %v2506 = vadd.f32 %v2393, %v2505
        %v2507 = vpop.f32.mrb[0].mxu0
        %v2508 = vadd.f32 %v2395, %v2507
        %v2509 = vpop.f32.mrb[0].mxu0
        %v2510 = vadd.f32 %v2397, %v2509
        %v2511 = vpop.f32.mrb[0].mxu0
        %v2512 = vadd.f32 %v2399, %v2511
        %2513 = vdwg.mxu0
        %2514 = vmatprep.subr.bf16.mxu0 %v1969
        %2515 = vmatpush1.bf16.msra.mxu0 %v1968
        %2516 = vmatprep.subr.bf16.mxu0 %v1973
        %2517 = vmatpush1.bf16.msra.mxu0 %v1972
        %2518 = vmatprep.subr.bf16.mxu0 %v1977
        %2519 = vmatpush1.bf16.msra.mxu0 %v1976
        %2520 = vmatprep.subr.bf16.mxu0 %v1981
        %2521 = vmatpush1.bf16.msra.mxu0 %v1980
        %2522 = vmatprep.subr.bf16.mxu0 %v1985
        %2523 = vmatpush1.bf16.msra.mxu0 %v1984
        %2524 = vmatprep.subr.bf16.mxu0 %v1989
        %2525 = vmatpush1.bf16.msra.mxu0 %v1988
        %2526 = vmatprep.subr.bf16.mxu0 %v1993
        %2527 = vmatpush1.bf16.msra.mxu0 %v1992
        %2528 = vmatprep.subr.bf16.mxu0 %v1997
        %2529 = vmatpush1.bf16.msra.mxu0 %v1996
        %2530 = vmatprep.subr.bf16.mxu0 %v2001
        %2531 = vmatpush1.bf16.msra.mxu0 %v2000
        %2532 = vmatprep.subr.bf16.mxu0 %v2005
        %2533 = vmatpush1.bf16.msra.mxu0 %v2004
        %2534 = vmatprep.subr.bf16.mxu0 %v2009
        %2535 = vmatpush1.bf16.msra.mxu0 %v2008
        %2536 = vmatprep.subr.bf16.mxu0 %v2013
        %2537 = vmatpush1.bf16.msra.mxu0 %v2012
        %2538 = vmatprep.subr.bf16.mxu0 %v2017
        %2539 = vmatpush1.bf16.msra.mxu0 %v2016
        %2540 = vmatprep.subr.bf16.mxu0 %v2021
        %2541 = vmatpush1.bf16.msra.mxu0 %v2020
        %2542 = vmatprep.subr.bf16.mxu0 %v2025
        %2543 = vmatpush1.bf16.msra.mxu0 %v2024
        %2544 = vmatprep.subr.bf16.mxu0 %v2029
        %2545 = vmatpush1.bf16.msra.mxu0 %v2028
        %2546 = vmatprep.mubr.bf16.mxu0 %v1061
        %2547 = vmatmul.mubr.bf16.gmra.mrb[0].mxu0 %v1060
        %v2548 = vpop.f32.mrb[0].mxu0
        %v2549 = vadd.f32 %v2436, %v2548
        %v2550 = vpop.f32.mrb[0].mxu0
        %v2551 = vadd.f32 %v2438, %v2550
        %v2552 = vpop.f32.mrb[0].mxu0
        %v2553 = vadd.f32 %v2440, %v2552
        %v2554 = vpop.f32.mrb[0].mxu0
        %v2555 = vadd.f32 %v2442, %v2554
        %2556 = vmatprep.mubr.bf16.mxu0 %v1068
        %2557 = vmatmul.mubr.bf16.gmra.mrb[0].mxu0 %v1067
        %v2558 = vpop.f32.mrb[0].mxu0
        %v2559 = vadd.f32 %v2446, %v2558
        %v2560 = vpop.f32.mrb[0].mxu0
        %v2561 = vadd.f32 %v2448, %v2560
        %v2562 = vpop.f32.mrb[0].mxu0
        %v2563 = vadd.f32 %v2450, %v2562
        %v2564 = vpop.f32.mrb[0].mxu0
        %v2565 = vadd.f32 %v2452, %v2564
        %2566 = vmatprep.mubr.bf16.mxu0 %v1075
        %2567 = vmatmul.mubr.bf16.gmra.mrb[0].mxu0 %v1074
        %v2568 = vpop.f32.mrb[0].mxu0
        %v2569 = vadd.f32 %v2456, %v2568
        %v2570 = vpop.f32.mrb[0].mxu0
        %v2571 = vadd.f32 %v2458, %v2570
        %v2572 = vpop.f32.mrb[0].mxu0
        %v2573 = vadd.f32 %v2460, %v2572
        %v2574 = vpop.f32.mrb[0].mxu0
        %v2575 = vadd.f32 %v2462, %v2574
        %2576 = vmatprep.mubr.bf16.mxu0 %v1082
        %2577 = vmatmul.mubr.bf16.gmra.mrb[0].mxu0 %v1081
        %v2578 = vpop.f32.mrb[0].mxu0
        %v2579 = vadd.f32 %v2466, %v2578
        %v2580 = vpop.f32.mrb[0].mxu0
        %v2581 = vadd.f32 %v2468, %v2580
        %v2582 = vpop.f32.mrb[0].mxu0
        %v2583 = vadd.f32 %v2470, %v2582
        %v2584 = vpop.f32.mrb[0].mxu0
        %v2585 = vadd.f32 %v2472, %v2584
        %2586 = vmatprep.mubr.bf16.mxu0 %v1089
        %2587 = vmatmul.mubr.bf16.gmra.mrb[0].mxu0 %v1088
        %v2588 = vpop.f32.mrb[0].mxu0
        %v2589 = vadd.f32 %v2476, %v2588
        %v2590 = vpop.f32.mrb[0].mxu0
        %v2591 = vadd.f32 %v2478, %v2590
        %v2592 = vpop.f32.mrb[0].mxu0
        %v2593 = vadd.f32 %v2480, %v2592
        %v2594 = vpop.f32.mrb[0].mxu0
        %v2595 = vadd.f32 %v2482, %v2594
        %2596 = vmatprep.mubr.bf16.mxu0 %v1096
        %2597 = vmatmul.mubr.bf16.gmra.mrb[0].mxu0 %v1095
        %v2598 = vpop.f32.mrb[0].mxu0
        %v2599 = vadd.f32 %v2486, %v2598
        %v2600 = vpop.f32.mrb[0].mxu0
        %v2601 = vadd.f32 %v2488, %v2600
        %v2602 = vpop.f32.mrb[0].mxu0
        %v2603 = vadd.f32 %v2490, %v2602
        %v2604 = vpop.f32.mrb[0].mxu0
        %v2605 = vadd.f32 %v2492, %v2604
        %2606 = vmatprep.mubr.bf16.mxu0 %v1103
        %2607 = vmatmul.mubr.bf16.gmra.mrb[0].mxu0 %v1102
        %v2608 = vpop.f32.mrb[0].mxu0
        %v2609 = vadd.f32 %v2496, %v2608
        %v2610 = vpop.f32.mrb[0].mxu0
        %v2611 = vadd.f32 %v2498, %v2610
        %v2612 = vpop.f32.mrb[0].mxu0
        %v2613 = vadd.f32 %v2500, %v2612
        %v2614 = vpop.f32.mrb[0].mxu0
        %v2615 = vadd.f32 %v2502, %v2614
        %2616 = vmatprep.mubr.bf16.mxu0 %v1110
        %2617 = vmatmul.mubr.bf16.gmra.mrb[0].mxu0 %v1109
        %v2618 = vpop.f32.mrb[0].mxu0
        %v2619 = vadd.f32 %v2506, %v2618
        %v2620 = vpop.f32.mrb[0].mxu0
        %v2621 = vadd.f32 %v2508, %v2620
        %v2622 = vpop.f32.mrb[0].mxu0
        %v2623 = vadd.f32 %v2510, %v2622
        %v2624 = vpop.f32.mrb[0].mxu0
        %v2625 = vadd.f32 %v2512, %v2624
        %2626 = vdwg.mxu0
        %2627 = vmatprep.subr.bf16.mxu0 %v2033
        %2628 = vmatpush1.bf16.msra.mxu0 %v2032
        %2629 = vmatprep.subr.bf16.mxu0 %v2037
        %2630 = vmatpush1.bf16.msra.mxu0 %v2036
        %2631 = vmatprep.subr.bf16.mxu0 %v2041
        %2632 = vmatpush1.bf16.msra.mxu0 %v2040
        %2633 = vmatprep.subr.bf16.mxu0 %v2045
        %2634 = vmatpush1.bf16.msra.mxu0 %v2044
        %2635 = vmatprep.subr.bf16.mxu0 %v2049
        %2636 = vmatpush1.bf16.msra.mxu0 %v2048
        %2637 = vmatprep.subr.bf16.mxu0 %v2053
        %2638 = vmatpush1.bf16.msra.mxu0 %v2052
        %2639 = vmatprep.subr.bf16.mxu0 %v2057
        %2640 = vmatpush1.bf16.msra.mxu0 %v2056
        %2641 = vmatprep.subr.bf16.mxu0 %v2061
        %2642 = vmatpush1.bf16.msra.mxu0 %v2060
        %2643 = vmatprep.subr.bf16.mxu0 0
        %2644 = vmatpush1.bf16.msra.mxu0 0
        %2645 = vmatprep.subr.bf16.mxu0 0
        %2646 = vmatpush1.bf16.msra.mxu0 0
        %2647 = vmatprep.subr.bf16.mxu0 0
        %2648 = vmatpush1.bf16.msra.mxu0 0
        %2649 = vmatprep.subr.bf16.mxu0 0
        %2650 = vmatpush1.bf16.msra.mxu0 0
        %2651 = vmatprep.subr.bf16.mxu0 0
        %2652 = vmatpush1.bf16.msra.mxu0 0
        %2653 = vmatprep.subr.bf16.mxu0 0
        %2654 = vmatpush1.bf16.msra.mxu0 0
        %2655 = vmatprep.subr.bf16.mxu0 0
        %2656 = vmatpush1.bf16.msra.mxu0 0
        %2657 = vmatprep.subr.bf16.mxu0 0
        %2658 = vmatpush1.bf16.msra.mxu0 0
        %2659 = vmatprep.mubr.bf16.mxu0 0
        %2660 = vmatmul.mubr.bf16.gmra.mrb[0].mxu0 %v1062
        %v2661 = vpop.f32.mrb[0].mxu0
        %v2662 = vadd.f32 %v2549, %v2661
        %v2663 = vpop.f32.mrb[0].mxu0
        %v2664 = vadd.f32 %v2551, %v2663
        %v2665 = vpop.f32.mrb[0].mxu0
        %v2666 = vadd.f32 %v2553, %v2665
        %v2667 = vpop.f32.mrb[0].mxu0
        %v2668 = vadd.f32 %v2555, %v2667
        %2669 = vmatprep.mubr.bf16.mxu0 0
        %2670 = vmatmul.mubr.bf16.gmra.mrb[0].mxu0 %v1069
        %v2671 = vpop.f32.mrb[0].mxu0
        %v2672 = vadd.f32 %v2559, %v2671
        %v2673 = vpop.f32.mrb[0].mxu0
        %v2674 = vadd.f32 %v2561, %v2673
        %v2675 = vpop.f32.mrb[0].mxu0
        %v2676 = vadd.f32 %v2563, %v2675
        %v2677 = vpop.f32.mrb[0].mxu0
        %v2678 = vadd.f32 %v2565, %v2677
        %2679 = vmatprep.mubr.bf16.mxu0 0
        %2680 = vmatmul.mubr.bf16.gmra.mrb[0].mxu0 %v1076
        %v2681 = vpop.f32.mrb[0].mxu0
        %v2682 = vadd.f32 %v2569, %v2681
        %v2683 = vpop.f32.mrb[0].mxu0
        %v2684 = vadd.f32 %v2571, %v2683
        %v2685 = vpop.f32.mrb[0].mxu0
        %v2686 = vadd.f32 %v2573, %v2685
        %v2687 = vpop.f32.mrb[0].mxu0
        %v2688 = vadd.f32 %v2575, %v2687
        %2689 = vmatprep.mubr.bf16.mxu0 0
        %2690 = vmatmul.mubr.bf16.gmra.mrb[0].mxu0 %v1083
        %v2691 = vpop.f32.mrb[0].mxu0
        %v2692 = vadd.f32 %v2579, %v2691
        %v2693 = vpop.f32.mrb[0].mxu0
        %v2694 = vadd.f32 %v2581, %v2693
        %v2695 = vpop.f32.mrb[0].mxu0
        %v2696 = vadd.f32 %v2583, %v2695
        %v2697 = vpop.f32.mrb[0].mxu0
        %v2698 = vadd.f32 %v2585, %v2697
        %2699 = vmatprep.mubr.bf16.mxu0 0
        %2700 = vmatmul.mubr.bf16.gmra.mrb[0].mxu0 %v1090
        %v2701 = vpop.f32.mrb[0].mxu0
        %v2702 = vadd.f32 %v2589, %v2701
        %v2703 = vpop.f32.mrb[0].mxu0
        %v2704 = vadd.f32 %v2591, %v2703
        %v2705 = vpop.f32.mrb[0].mxu0
        %v2706 = vadd.f32 %v2593, %v2705
        %v2707 = vpop.f32.mrb[0].mxu0
        %v2708 = vadd.f32 %v2595, %v2707
        %2709 = vmatprep.mubr.bf16.mxu0 0
        %2710 = vmatmul.mubr.bf16.gmra.mrb[0].mxu0 %v1097
        %v2711 = vpop.f32.mrb[0].mxu0
        %v2712 = vadd.f32 %v2599, %v2711
        %v2713 = vpop.f32.mrb[0].mxu0
        %v2714 = vadd.f32 %v2601, %v2713
        %v2715 = vpop.f32.mrb[0].mxu0
        %v2716 = vadd.f32 %v2603, %v2715
        %v2717 = vpop.f32.mrb[0].mxu0
        %v2718 = vadd.f32 %v2605, %v2717
        %2719 = vmatprep.mubr.bf16.mxu0 0
        %2720 = vmatmul.mubr.bf16.gmra.mrb[0].mxu0 %v1104
        %v2721 = vpop.f32.mrb[0].mxu0
        %v2722 = vadd.f32 %v2609, %v2721
        %v2723 = vpop.f32.mrb[0].mxu0
        %v2724 = vadd.f32 %v2611, %v2723
        %v2725 = vpop.f32.mrb[0].mxu0
        %v2726 = vadd.f32 %v2613, %v2725
        %v2727 = vpop.f32.mrb[0].mxu0
        %v2728 = vadd.f32 %v2615, %v2727
        %2729 = vmatprep.mubr.bf16.mxu0 0
        %2730 = vmatmul.mubr.bf16.gmra.mrb[0].mxu0 %v1111
        %v2731 = vpop.f32.mrb[0].mxu0
        %v2732 = vadd.f32 %v2619, %v2731
        %v2733 = vpop.f32.mrb[0].mxu0
        %v2734 = vadd.f32 %v2621, %v2733
        %v2735 = vpop.f32.mrb[0].mxu0
        %v2736 = vadd.f32 %v2623, %v2735
        %v2737 = vpop.f32.mrb[0].mxu0
        %v2738 = vadd.f32 %v2625, %v2737
        %2739 = vdwg.mxu0
        %2740 = vmatprep.subr.bf16.mxu0 %v1843
        %2741 = vmatpush1.bf16.msra.mxu0 %v1842
        %2742 = vmatprep.subr.bf16.mxu0 %v1847
        %2743 = vmatpush1.bf16.msra.mxu0 %v1846
        %2744 = vmatprep.subr.bf16.mxu0 %v1851
        %2745 = vmatpush1.bf16.msra.mxu0 %v1850
        %2746 = vmatprep.subr.bf16.mxu0 %v1855
        %2747 = vmatpush1.bf16.msra.mxu0 %v1854
        %2748 = vmatprep.subr.bf16.mxu0 %v1859
        %2749 = vmatpush1.bf16.msra.mxu0 %v1858
        %2750 = vmatprep.subr.bf16.mxu0 %v1863
        %2751 = vmatpush1.bf16.msra.mxu0 %v1862
        %2752 = vmatprep.subr.bf16.mxu0 %v1867
        %2753 = vmatpush1.bf16.msra.mxu0 %v1866
        %2754 = vmatprep.subr.bf16.mxu0 %v1871
        %2755 = vmatpush1.bf16.msra.mxu0 %v1870
        %2756 = vmatprep.subr.bf16.mxu0 %v1875
        %2757 = vmatpush1.bf16.msra.mxu0 %v1874
        %2758 = vmatprep.subr.bf16.mxu0 %v1879
        %2759 = vmatpush1.bf16.msra.mxu0 %v1878
        %2760 = vmatprep.subr.bf16.mxu0 %v1883
        %2761 = vmatpush1.bf16.msra.mxu0 %v1882
        %2762 = vmatprep.subr.bf16.mxu0 %v1887
        %2763 = vmatpush1.bf16.msra.mxu0 %v1886
        %2764 = vmatprep.subr.bf16.mxu0 %v1891
        %2765 = vmatpush1.bf16.msra.mxu0 %v1890
        %2766 = vmatprep.subr.bf16.mxu0 %v1895
        %2767 = vmatpush1.bf16.msra.mxu0 %v1894
        %2768 = vmatprep.subr.bf16.mxu0 %v1899
        %2769 = vmatpush1.bf16.msra.mxu0 %v1898
        %2770 = vmatprep.subr.bf16.mxu0 %v1903
        %2771 = vmatpush1.bf16.msra.mxu0 %v1902
        %2772 = vmatprep.mubr.bf16.mxu0 %v1057
        %2773 = vmatmul.mubr.bf16.gmra.mrb[0].mxu0 %v1056
        %v2774 = vpop.f32.mrb[0].mxu0
        %v2775 = vadd.f32 %v871, %v2774
        %v2776 = vpop.f32.mrb[0].mxu0
        %v2777 = vadd.f32 %v875, %v2776
        %v2778 = vpop.f32.mrb[0].mxu0
        %v2779 = vadd.f32 %v871, %v2778
        %v2780 = vpop.f32.mrb[0].mxu0
        %v2781 = vadd.f32 %v875, %v2780
        %2782 = vmatprep.mubr.bf16.mxu0 %v1064
        %2783 = vmatmul.mubr.bf16.gmra.mrb[0].mxu0 %v1063
        %v2784 = vpop.f32.mrb[0].mxu0
        %v2785 = vadd.f32 %v871, %v2784
        %v2786 = vpop.f32.mrb[0].mxu0
        %v2787 = vadd.f32 %v875, %v2786
        %v2788 = vpop.f32.mrb[0].mxu0
        %v2789 = vadd.f32 %v871, %v2788
        %v2790 = vpop.f32.mrb[0].mxu0
        %v2791 = vadd.f32 %v875, %v2790
        %2792 = vmatprep.mubr.bf16.mxu0 %v1071
        %2793 = vmatmul.mubr.bf16.gmra.mrb[0].mxu0 %v1070
        %v2794 = vpop.f32.mrb[0].mxu0
        %v2795 = vadd.f32 %v871, %v2794
        %v2796 = vpop.f32.mrb[0].mxu0
        %v2797 = vadd.f32 %v875, %v2796
        %v2798 = vpop.f32.mrb[0].mxu0
        %v2799 = vadd.f32 %v871, %v2798
        %v2800 = vpop.f32.mrb[0].mxu0
        %v2801 = vadd.f32 %v875, %v2800
        %2802 = vmatprep.mubr.bf16.mxu0 %v1078
        %2803 = vmatmul.mubr.bf16.gmra.mrb[0].mxu0 %v1077
        %v2804 = vpop.f32.mrb[0].mxu0
        %v2805 = vadd.f32 %v871, %v2804
        %v2806 = vpop.f32.mrb[0].mxu0
        %v2807 = vadd.f32 %v875, %v2806
        %v2808 = vpop.f32.mrb[0].mxu0
        %v2809 = vadd.f32 %v871, %v2808
        %v2810 = vpop.f32.mrb[0].mxu0
        %v2811 = vadd.f32 %v875, %v2810
        %2812 = vmatprep.mubr.bf16.mxu0 %v1085
        %2813 = vmatmul.mubr.bf16.gmra.mrb[0].mxu0 %v1084
        %v2814 = vpop.f32.mrb[0].mxu0
        %v2815 = vadd.f32 %v871, %v2814
        %v2816 = vpop.f32.mrb[0].mxu0
        %v2817 = vadd.f32 %v875, %v2816
        %v2818 = vpop.f32.mrb[0].mxu0
        %v2819 = vadd.f32 %v871, %v2818
        %v2820 = vpop.f32.mrb[0].mxu0
        %v2821 = vadd.f32 %v875, %v2820
        %2822 = vmatprep.mubr.bf16.mxu0 %v1092
        %2823 = vmatmul.mubr.bf16.gmra.mrb[0].mxu0 %v1091
        %v2824 = vpop.f32.mrb[0].mxu0
        %v2825 = vadd.f32 %v871, %v2824
        %v2826 = vpop.f32.mrb[0].mxu0
        %v2827 = vadd.f32 %v875, %v2826
        %v2828 = vpop.f32.mrb[0].mxu0
        %v2829 = vadd.f32 %v871, %v2828
        %v2830 = vpop.f32.mrb[0].mxu0
        %v2831 = vadd.f32 %v875, %v2830
        %2832 = vmatprep.mubr.bf16.mxu0 %v1099
        %2833 = vmatmul.mubr.bf16.gmra.mrb[0].mxu0 %v1098
        %v2834 = vpop.f32.mrb[0].mxu0
        %v2835 = vadd.f32 %v871, %v2834
        %v2836 = vpop.f32.mrb[0].mxu0
        %v2837 = vadd.f32 %v875, %v2836
        %v2838 = vpop.f32.mrb[0].mxu0
        %v2839 = vadd.f32 %v871, %v2838
        %v2840 = vpop.f32.mrb[0].mxu0
        %v2841 = vadd.f32 %v875, %v2840
        %2842 = vmatprep.mubr.bf16.mxu0 %v1106
        %2843 = vmatmul.mubr.bf16.gmra.mrb[0].mxu0 %v1105
        %v2844 = vpop.f32.mrb[0].mxu0
        %v2845 = vadd.f32 %v871, %v2844
        %v2846 = vpop.f32.mrb[0].mxu0
        %v2847 = vadd.f32 %v875, %v2846
        %v2848 = vpop.f32.mrb[0].mxu0
        %v2849 = vadd.f32 %v871, %v2848
        %v2850 = vpop.f32.mrb[0].mxu0
        %v2851 = vadd.f32 %v875, %v2850
        %2852 = vdwg.mxu0
        %2853 = vmatprep.subr.bf16.mxu0 %v1907
        %2854 = vmatpush1.bf16.msra.mxu0 %v1906
        %2855 = vmatprep.subr.bf16.mxu0 %v1911
        %2856 = vmatpush1.bf16.msra.mxu0 %v1910
        %2857 = vmatprep.subr.bf16.mxu0 %v1915
        %2858 = vmatpush1.bf16.msra.mxu0 %v1914
        %2859 = vmatprep.subr.bf16.mxu0 %v1919
        %2860 = vmatpush1.bf16.msra.mxu0 %v1918
        %2861 = vmatprep.subr.bf16.mxu0 %v1923
        %2862 = vmatpush1.bf16.msra.mxu0 %v1922
        %2863 = vmatprep.subr.bf16.mxu0 %v1927
        %2864 = vmatpush1.bf16.msra.mxu0 %v1926
        %2865 = vmatprep.subr.bf16.mxu0 %v1931
        %2866 = vmatpush1.bf16.msra.mxu0 %v1930
        %2867 = vmatprep.subr.bf16.mxu0 %v1935
        %2868 = vmatpush1.bf16.msra.mxu0 %v1934
        %2869 = vmatprep.subr.bf16.mxu0 %v1939
        %2870 = vmatpush1.bf16.msra.mxu0 %v1938
        %2871 = vmatprep.subr.bf16.mxu0 %v1943
        %2872 = vmatpush1.bf16.msra.mxu0 %v1942
        %2873 = vmatprep.subr.bf16.mxu0 %v1947
        %2874 = vmatpush1.bf16.msra.mxu0 %v1946
        %2875 = vmatprep.subr.bf16.mxu0 %v1951
        %2876 = vmatpush1.bf16.msra.mxu0 %v1950
        %2877 = vmatprep.subr.bf16.mxu0 %v1955
        %2878 = vmatpush1.bf16.msra.mxu0 %v1954
        %2879 = vmatprep.subr.bf16.mxu0 %v1959
        %2880 = vmatpush1.bf16.msra.mxu0 %v1958
        %2881 = vmatprep.subr.bf16.mxu0 %v1963
        %2882 = vmatpush1.bf16.msra.mxu0 %v1962
        %2883 = vmatprep.subr.bf16.mxu0 %v1967
        %2884 = vmatpush1.bf16.msra.mxu0 %v1966
        %2885 = vmatprep.mubr.bf16.mxu0 %v1059
        %2886 = vmatmul.mubr.bf16.gmra.mrb[0].mxu0 %v1058
        %v2887 = vpop.f32.mrb[0].mxu0
        %v2888 = vadd.f32 %v2775, %v2887
        %v2889 = vpop.f32.mrb[0].mxu0
        %v2890 = vadd.f32 %v2777, %v2889
        %v2891 = vpop.f32.mrb[0].mxu0
        %v2892 = vadd.f32 %v2779, %v2891
        %v2893 = vpop.f32.mrb[0].mxu0
        %v2894 = vadd.f32 %v2781, %v2893
        %2895 = vmatprep.mubr.bf16.mxu0 %v1066
        %2896 = vmatmul.mubr.bf16.gmra.mrb[0].mxu0 %v1065
        %v2897 = vpop.f32.mrb[0].mxu0
        %v2898 = vadd.f32 %v2785, %v2897
        %v2899 = vpop.f32.mrb[0].mxu0
        %v2900 = vadd.f32 %v2787, %v2899
        %v2901 = vpop.f32.mrb[0].mxu0
        %v2902 = vadd.f32 %v2789, %v2901
        %v2903 = vpop.f32.mrb[0].mxu0
        %v2904 = vadd.f32 %v2791, %v2903
        %2905 = vmatprep.mubr.bf16.mxu0 %v1073
        %2906 = vmatmul.mubr.bf16.gmra.mrb[0].mxu0 %v1072
        %v2907 = vpop.f32.mrb[0].mxu0
        %v2908 = vadd.f32 %v2795, %v2907
        %v2909 = vpop.f32.mrb[0].mxu0
        %v2910 = vadd.f32 %v2797, %v2909
        %v2911 = vpop.f32.mrb[0].mxu0
        %v2912 = vadd.f32 %v2799, %v2911
        %v2913 = vpop.f32.mrb[0].mxu0
        %v2914 = vadd.f32 %v2801, %v2913
        %2915 = vmatprep.mubr.bf16.mxu0 %v1080
        %2916 = vmatmul.mubr.bf16.gmra.mrb[0].mxu0 %v1079
        %v2917 = vpop.f32.mrb[0].mxu0
        %v2918 = vadd.f32 %v2805, %v2917
        %v2919 = vpop.f32.mrb[0].mxu0
        %v2920 = vadd.f32 %v2807, %v2919
        %v2921 = vpop.f32.mrb[0].mxu0
        %v2922 = vadd.f32 %v2809, %v2921
        %v2923 = vpop.f32.mrb[0].mxu0
        %v2924 = vadd.f32 %v2811, %v2923
        %2925 = vmatprep.mubr.bf16.mxu0 %v1087
        %2926 = vmatmul.mubr.bf16.gmra.mrb[0].mxu0 %v1086
        %v2927 = vpop.f32.mrb[0].mxu0
        %v2928 = vadd.f32 %v2815, %v2927
        %v2929 = vpop.f32.mrb[0].mxu0
        %v2930 = vadd.f32 %v2817, %v2929
        %v2931 = vpop.f32.mrb[0].mxu0
        %v2932 = vadd.f32 %v2819, %v2931
        %v2933 = vpop.f32.mrb[0].mxu0
        %v2934 = vadd.f32 %v2821, %v2933
        %2935 = vmatprep.mubr.bf16.mxu0 %v1094
        %2936 = vmatmul.mubr.bf16.gmra.mrb[0].mxu0 %v1093
        %v2937 = vpop.f32.mrb[0].mxu0
        %v2938 = vadd.f32 %v2825, %v2937
        %v2939 = vpop.f32.mrb[0].mxu0
        %v2940 = vadd.f32 %v2827, %v2939
        %v2941 = vpop.f32.mrb[0].mxu0
        %v2942 = vadd.f32 %v2829, %v2941
        %v2943 = vpop.f32.mrb[0].mxu0
        %v2944 = vadd.f32 %v2831, %v2943
        %2945 = vmatprep.mubr.bf16.mxu0 %v1101
        %2946 = vmatmul.mubr.bf16.gmra.mrb[0].mxu0 %v1100
        %v2947 = vpop.f32.mrb[0].mxu0
        %v2948 = vadd.f32 %v2835, %v2947
        %v2949 = vpop.f32.mrb[0].mxu0
        %v2950 = vadd.f32 %v2837, %v2949
        %v2951 = vpop.f32.mrb[0].mxu0
        %v2952 = vadd.f32 %v2839, %v2951
        %v2953 = vpop.f32.mrb[0].mxu0
        %v2954 = vadd.f32 %v2841, %v2953
        %2955 = vmatprep.mubr.bf16.mxu0 %v1108
        %2956 = vmatmul.mubr.bf16.gmra.mrb[0].mxu0 %v1107
        %v2957 = vpop.f32.mrb[0].mxu0
        %v2958 = vadd.f32 %v2845, %v2957
        %v2959 = vpop.f32.mrb[0].mxu0
        %v2960 = vadd.f32 %v2847, %v2959
        %v2961 = vpop.f32.mrb[0].mxu0
        %v2962 = vadd.f32 %v2849, %v2961
        %v2963 = vpop.f32.mrb[0].mxu0
        %v2964 = vadd.f32 %v2851, %v2963
        %2965 = vdwg.mxu0
        %2966 = vmatprep.subr.bf16.mxu0 %v1971
        %2967 = vmatpush1.bf16.msra.mxu0 %v1970
        %2968 = vmatprep.subr.bf16.mxu0 %v1975
        %2969 = vmatpush1.bf16.msra.mxu0 %v1974
        %2970 = vmatprep.subr.bf16.mxu0 %v1979
        %2971 = vmatpush1.bf16.msra.mxu0 %v1978
        %2972 = vmatprep.subr.bf16.mxu0 %v1983
        %2973 = vmatpush1.bf16.msra.mxu0 %v1982
        %2974 = vmatprep.subr.bf16.mxu0 %v1987
        %2975 = vmatpush1.bf16.msra.mxu0 %v1986
        %2976 = vmatprep.subr.bf16.mxu0 %v1991
        %2977 = vmatpush1.bf16.msra.mxu0 %v1990
        %2978 = vmatprep.subr.bf16.mxu0 %v1995
        %2979 = vmatpush1.bf16.msra.mxu0 %v1994
        %2980 = vmatprep.subr.bf16.mxu0 %v1999
        %2981 = vmatpush1.bf16.msra.mxu0 %v1998
        %2982 = vmatprep.subr.bf16.mxu0 %v2003
        %2983 = vmatpush1.bf16.msra.mxu0 %v2002
        %2984 = vmatprep.subr.bf16.mxu0 %v2007
        %2985 = vmatpush1.bf16.msra.mxu0 %v2006
        %2986 = vmatprep.subr.bf16.mxu0 %v2011
        %2987 = vmatpush1.bf16.msra.mxu0 %v2010
        %2988 = vmatprep.subr.bf16.mxu0 %v2015
        %2989 = vmatpush1.bf16.msra.mxu0 %v2014
        %2990 = vmatprep.subr.bf16.mxu0 %v2019
        %2991 = vmatpush1.bf16.msra.mxu0 %v2018
        %2992 = vmatprep.subr.bf16.mxu0 %v2023
        %2993 = vmatpush1.bf16.msra.mxu0 %v2022
        %2994 = vmatprep.subr.bf16.mxu0 %v2027
        %2995 = vmatpush1.bf16.msra.mxu0 %v2026
        %2996 = vmatprep.subr.bf16.mxu0 %v2031
        %2997 = vmatpush1.bf16.msra.mxu0 %v2030
        %2998 = vmatprep.mubr.bf16.mxu0 %v1061
        %2999 = vmatmul.mubr.bf16.gmra.mrb[0].mxu0 %v1060
        %v3000 = vpop.f32.mrb[0].mxu0
        %v3001 = vadd.f32 %v2888, %v3000
        %v3002 = vpop.f32.mrb[0].mxu0
        %v3003 = vadd.f32 %v2890, %v3002
        %v3004 = vpop.f32.mrb[0].mxu0
        %v3005 = vadd.f32 %v2892, %v3004
        %v3006 = vpop.f32.mrb[0].mxu0
        %v3007 = vadd.f32 %v2894, %v3006
        %3008 = vmatprep.mubr.bf16.mxu0 %v1068
        %3009 = vmatmul.mubr.bf16.gmra.mrb[0].mxu0 %v1067
        %v3010 = vpop.f32.mrb[0].mxu0
        %v3011 = vadd.f32 %v2898, %v3010
        %v3012 = vpop.f32.mrb[0].mxu0
        %v3013 = vadd.f32 %v2900, %v3012
        %v3014 = vpop.f32.mrb[0].mxu0
        %v3015 = vadd.f32 %v2902, %v3014
        %v3016 = vpop.f32.mrb[0].mxu0
        %v3017 = vadd.f32 %v2904, %v3016
        %3018 = vmatprep.mubr.bf16.mxu0 %v1075
        %3019 = vmatmul.mubr.bf16.gmra.mrb[0].mxu0 %v1074
        %v3020 = vpop.f32.mrb[0].mxu0
        %v3021 = vadd.f32 %v2908, %v3020
        %v3022 = vpop.f32.mrb[0].mxu0
        %v3023 = vadd.f32 %v2910, %v3022
        %v3024 = vpop.f32.mrb[0].mxu0
        %v3025 = vadd.f32 %v2912, %v3024
        %v3026 = vpop.f32.mrb[0].mxu0
        %v3027 = vadd.f32 %v2914, %v3026
        %3028 = vmatprep.mubr.bf16.mxu0 %v1082
        %3029 = vmatmul.mubr.bf16.gmra.mrb[0].mxu0 %v1081
        %v3030 = vpop.f32.mrb[0].mxu0
        %v3031 = vadd.f32 %v2918, %v3030
        %v3032 = vpop.f32.mrb[0].mxu0
        %v3033 = vadd.f32 %v2920, %v3032
        %v3034 = vpop.f32.mrb[0].mxu0
        %v3035 = vadd.f32 %v2922, %v3034
        %v3036 = vpop.f32.mrb[0].mxu0
        %v3037 = vadd.f32 %v2924, %v3036
        %3038 = vmatprep.mubr.bf16.mxu0 %v1089
        %3039 = vmatmul.mubr.bf16.gmra.mrb[0].mxu0 %v1088
        %v3040 = vpop.f32.mrb[0].mxu0
        %v3041 = vadd.f32 %v2928, %v3040
        %v3042 = vpop.f32.mrb[0].mxu0
        %v3043 = vadd.f32 %v2930, %v3042
        %v3044 = vpop.f32.mrb[0].mxu0
        %v3045 = vadd.f32 %v2932, %v3044
        %v3046 = vpop.f32.mrb[0].mxu0
        %v3047 = vadd.f32 %v2934, %v3046
        %3048 = vmatprep.mubr.bf16.mxu0 %v1096
        %3049 = vmatmul.mubr.bf16.gmra.mrb[0].mxu0 %v1095
        %v3050 = vpop.f32.mrb[0].mxu0
        %v3051 = vadd.f32 %v2938, %v3050
        %v3052 = vpop.f32.mrb[0].mxu0
        %v3053 = vadd.f32 %v2940, %v3052
        %v3054 = vpop.f32.mrb[0].mxu0
        %v3055 = vadd.f32 %v2942, %v3054
        %v3056 = vpop.f32.mrb[0].mxu0
        %v3057 = vadd.f32 %v2944, %v3056
        %3058 = vmatprep.mubr.bf16.mxu0 %v1103
        %3059 = vmatmul.mubr.bf16.gmra.mrb[0].mxu0 %v1102
        %v3060 = vpop.f32.mrb[0].mxu0
        %v3061 = vadd.f32 %v2948, %v3060
        %v3062 = vpop.f32.mrb[0].mxu0
        %v3063 = vadd.f32 %v2950, %v3062
        %v3064 = vpop.f32.mrb[0].mxu0
        %v3065 = vadd.f32 %v2952, %v3064
        %v3066 = vpop.f32.mrb[0].mxu0
        %v3067 = vadd.f32 %v2954, %v3066
        %3068 = vmatprep.mubr.bf16.mxu0 %v1110
        %3069 = vmatmul.mubr.bf16.gmra.mrb[0].mxu0 %v1109
        %v3070 = vpop.f32.mrb[0].mxu0
        %v3071 = vadd.f32 %v2958, %v3070
        %v3072 = vpop.f32.mrb[0].mxu0
        %v3073 = vadd.f32 %v2960, %v3072
        %v3074 = vpop.f32.mrb[0].mxu0
        %v3075 = vadd.f32 %v2962, %v3074
        %v3076 = vpop.f32.mrb[0].mxu0
        %v3077 = vadd.f32 %v2964, %v3076
        %3078 = vdwg.mxu0
        %3079 = vmatprep.subr.bf16.mxu0 %v2035
        %3080 = vmatpush1.bf16.msra.mxu0 %v2034
        %3081 = vmatprep.subr.bf16.mxu0 %v2039
        %3082 = vmatpush1.bf16.msra.mxu0 %v2038
        %3083 = vmatprep.subr.bf16.mxu0 %v2043
        %3084 = vmatpush1.bf16.msra.mxu0 %v2042
        %3085 = vmatprep.subr.bf16.mxu0 %v2047
        %3086 = vmatpush1.bf16.msra.mxu0 %v2046
        %3087 = vmatprep.subr.bf16.mxu0 %v2051
        %3088 = vmatpush1.bf16.msra.mxu0 %v2050
        %3089 = vmatprep.subr.bf16.mxu0 %v2055
        %3090 = vmatpush1.bf16.msra.mxu0 %v2054
        %3091 = vmatprep.subr.bf16.mxu0 %v2059
        %3092 = vmatpush1.bf16.msra.mxu0 %v2058
        %3093 = vmatprep.subr.bf16.mxu0 %v2063
        %3094 = vmatpush1.bf16.msra.mxu0 %v2062
        %3095 = vmatprep.subr.bf16.mxu0 0
        %3096 = vmatpush1.bf16.msra.mxu0 0
        %3097 = vmatprep.subr.bf16.mxu0 0
        %3098 = vmatpush1.bf16.msra.mxu0 0
        %3099 = vmatprep.subr.bf16.mxu0 0
        %3100 = vmatpush1.bf16.msra.mxu0 0
        %3101 = vmatprep.subr.bf16.mxu0 0
        %3102 = vmatpush1.bf16.msra.mxu0 0
        %3103 = vmatprep.subr.bf16.mxu0 0
        %3104 = vmatpush1.bf16.msra.mxu0 0
        %3105 = vmatprep.subr.bf16.mxu0 0
        %3106 = vmatpush1.bf16.msra.mxu0 0
        %3107 = vmatprep.subr.bf16.mxu0 0
        %3108 = vmatpush1.bf16.msra.mxu0 0
        %3109 = vmatprep.subr.bf16.mxu0 0
        %3110 = vmatpush1.bf16.msra.mxu0 0
        %3111 = vmatprep.mubr.bf16.mxu0 0
        %3112 = vmatmul.mubr.bf16.gmra.mrb[0].mxu0 %v1062
        %v3113 = vpop.f32.mrb[0].mxu0
        %v3114 = vadd.f32 %v3001, %v3113
        %v3115 = vpop.f32.mrb[0].mxu0
        %v3116 = vadd.f32 %v3003, %v3115
        %v3117 = vpop.f32.mrb[0].mxu0
        %v3118 = vadd.f32 %v3005, %v3117
        %v3119 = vpop.f32.mrb[0].mxu0
        %v3120 = vadd.f32 %v3007, %v3119
        %3121 = vmatprep.mubr.bf16.mxu0 0
        %3122 = vmatmul.mubr.bf16.gmra.mrb[0].mxu0 %v1069
        %v3123 = vpop.f32.mrb[0].mxu0
        %v3124 = vadd.f32 %v3011, %v3123
        %v3125 = vpop.f32.mrb[0].mxu0
        %v3126 = vadd.f32 %v3013, %v3125
        %v3127 = vpop.f32.mrb[0].mxu0
        %v3128 = vadd.f32 %v3015, %v3127
        %v3129 = vpop.f32.mrb[0].mxu0
        %v3130 = vadd.f32 %v3017, %v3129
        %3131 = vmatprep.mubr.bf16.mxu0 0
        %3132 = vmatmul.mubr.bf16.gmra.mrb[0].mxu0 %v1076
        %v3133 = vpop.f32.mrb[0].mxu0
        %v3134 = vadd.f32 %v3021, %v3133
        %v3135 = vpop.f32.mrb[0].mxu0
        %v3136 = vadd.f32 %v3023, %v3135
        %v3137 = vpop.f32.mrb[0].mxu0
        %v3138 = vadd.f32 %v3025, %v3137
        %v3139 = vpop.f32.mrb[0].mxu0
        %v3140 = vadd.f32 %v3027, %v3139
        %3141 = vmatprep.mubr.bf16.mxu0 0
        %3142 = vmatmul.mubr.bf16.gmra.mrb[0].mxu0 %v1083
        %v3143 = vpop.f32.mrb[0].mxu0
        %v3144 = vadd.f32 %v3031, %v3143
        %v3145 = vpop.f32.mrb[0].mxu0
        %v3146 = vadd.f32 %v3033, %v3145
        %v3147 = vpop.f32.mrb[0].mxu0
        %v3148 = vadd.f32 %v3035, %v3147
        %v3149 = vpop.f32.mrb[0].mxu0
        %v3150 = vadd.f32 %v3037, %v3149
        %3151 = vmatprep.mubr.bf16.mxu0 0
        %3152 = vmatmul.mubr.bf16.gmra.mrb[0].mxu0 %v1090
        %v3153 = vpop.f32.mrb[0].mxu0
        %v3154 = vadd.f32 %v3041, %v3153
        %v3155 = vpop.f32.mrb[0].mxu0
        %v3156 = vadd.f32 %v3043, %v3155
        %v3157 = vpop.f32.mrb[0].mxu0
        %v3158 = vadd.f32 %v3045, %v3157
        %v3159 = vpop.f32.mrb[0].mxu0
        %v3160 = vadd.f32 %v3047, %v3159
        %3161 = vmatprep.mubr.bf16.mxu0 0
        %3162 = vmatmul.mubr.bf16.gmra.mrb[0].mxu0 %v1097
        %v3163 = vpop.f32.mrb[0].mxu0
        %v3164 = vadd.f32 %v3051, %v3163
        %v3165 = vpop.f32.mrb[0].mxu0
        %v3166 = vadd.f32 %v3053, %v3165
        %v3167 = vpop.f32.mrb[0].mxu0
        %v3168 = vadd.f32 %v3055, %v3167
        %v3169 = vpop.f32.mrb[0].mxu0
        %v3170 = vadd.f32 %v3057, %v3169
        %3171 = vmatprep.mubr.bf16.mxu0 0
        %3172 = vmatmul.mubr.bf16.gmra.mrb[0].mxu0 %v1104
        %v3173 = vpop.f32.mrb[0].mxu0
        %v3174 = vadd.f32 %v3061, %v3173
        %v3175 = vpop.f32.mrb[0].mxu0
        %v3176 = vadd.f32 %v3063, %v3175
        %v3177 = vpop.f32.mrb[0].mxu0
        %v3178 = vadd.f32 %v3065, %v3177
        %v3179 = vpop.f32.mrb[0].mxu0
        %v3180 = vadd.f32 %v3067, %v3179
        %3181 = vmatprep.mubr.bf16.mxu0 0
        %3182 = vmatmul.mubr.bf16.gmra.mrb[0].mxu0 %v1111
        %v3183 = vpop.f32.mrb[0].mxu0
        %v3184 = vadd.f32 %v3071, %v3183
        %v3185 = vpop.f32.mrb[0].mxu0
        %v3186 = vadd.f32 %v3073, %v3185
        %v3187 = vpop.f32.mrb[0].mxu0
        %v3188 = vadd.f32 %v3075, %v3187
        %v3189 = vpop.f32.mrb[0].mxu0
        %v3190 = vadd.f32 %v3077, %v3189
        %3191 = vdwg.mxu0
        %v3192 = vmax.f32 %v2662, 0.0
        %v3193 = vmax.f32 %v2664, 0.0
        %v3194 = vmax.f32 %v3114, 0.0
        %v3195 = vmax.f32 %v3116, 0.0
        %v3196 = vmax.f32 %v2666, 0.0
        %v3197 = vmax.f32 %v2668, 0.0
        %v3198 = vmax.f32 %v3118, 0.0
        %v3199 = vmax.f32 %v3120, 0.0
        %v3200 = vmax.f32 %v2672, 0.0
        %v3201 = vmax.f32 %v2674, 0.0
        %v3202 = vmax.f32 %v3124, 0.0
        %v3203 = vmax.f32 %v3126, 0.0
        %v3204 = vmax.f32 %v2676, 0.0
        %v3205 = vmax.f32 %v2678, 0.0
        %v3206 = vmax.f32 %v3128, 0.0
        %v3207 = vmax.f32 %v3130, 0.0
        %v3208 = vmax.f32 %v2682, 0.0
        %v3209 = vmax.f32 %v2684, 0.0
        %v3210 = vmax.f32 %v3134, 0.0
        %v3211 = vmax.f32 %v3136, 0.0
        %v3212 = vmax.f32 %v2686, 0.0
        %v3213 = vmax.f32 %v2688, 0.0
        %v3214 = vmax.f32 %v3138, 0.0
        %v3215 = vmax.f32 %v3140, 0.0
        %v3216 = vmax.f32 %v2692, 0.0
        %v3217 = vmax.f32 %v2694, 0.0
        %v3218 = vmax.f32 %v3144, 0.0
        %v3219 = vmax.f32 %v3146, 0.0
        %v3220 = vmax.f32 %v2696, 0.0
        %v3221 = vmax.f32 %v2698, 0.0
        %v3222 = vmax.f32 %v3148, 0.0
        %v3223 = vmax.f32 %v3150, 0.0
        %v3224 = vmax.f32 %v2702, 0.0
        %v3225 = vmax.f32 %v2704, 0.0
        %v3226 = vmax.f32 %v3154, 0.0
        %v3227 = vmax.f32 %v3156, 0.0
        %v3228 = vmax.f32 %v2706, 0.0
        %v3229 = vmax.f32 %v2708, 0.0
        %v3230 = vmax.f32 %v3158, 0.0
        %v3231 = vmax.f32 %v3160, 0.0
        %v3232 = vmax.f32 %v2712, 0.0
        %v3233 = vmax.f32 %v2714, 0.0
        %v3234 = vmax.f32 %v3164, 0.0
        %v3235 = vmax.f32 %v3166, 0.0
        %v3236 = vmax.f32 %v2716, 0.0
        %v3237 = vmax.f32 %v2718, 0.0
        %v3238 = vmax.f32 %v3168, 0.0
        %v3239 = vmax.f32 %v3170, 0.0
        %v3240 = vmax.f32 %v2722, 0.0
        %v3241 = vmax.f32 %v2724, 0.0
        %v3242 = vmax.f32 %v3174, 0.0
        %v3243 = vmax.f32 %v3176, 0.0
        %v3244 = vmax.f32 %v2726, 0.0
        %v3245 = vmax.f32 %v2728, 0.0
        %v3246 = vmax.f32 %v3178, 0.0
        %v3247 = vmax.f32 %v3180, 0.0
        %v3248 = vmax.f32 %v2732, 0.0
        %v3249 = vmax.f32 %v2734, 0.0
        %v3250 = vmax.f32 %v3184, 0.0
        %v3251 = vmax.f32 %v3186, 0.0
        %v3252 = vmax.f32 %v2736, 0.0
        %v3253 = vmax.f32 %v2738, 0.0
        %v3254 = vmax.f32 %v3188, 0.0
        %v3255 = vmax.f32 %v3190, 0.0
        %v3256 = vpack.c.bf16 %v3196, %v3192
        %v3257 = vpack.c.bf16 %v3197, %v3193
        %v3258 = vpack.c.bf16 %v3198, %v3194
        %v3259 = vpack.c.bf16 %v3199, %v3195
        %v3260 = vpack.c.bf16 %v3204, %v3200
        %v3261 = vpack.c.bf16 %v3205, %v3201
        %v3262 = vpack.c.bf16 %v3206, %v3202
        %v3263 = vpack.c.bf16 %v3207, %v3203
        %v3264 = vpack.c.bf16 %v3212, %v3208
        %v3265 = vpack.c.bf16 %v3213, %v3209
        %v3266 = vpack.c.bf16 %v3214, %v3210
        %v3267 = vpack.c.bf16 %v3215, %v3211
        %v3268 = vpack.c.bf16 %v3220, %v3216
        %v3269 = vpack.c.bf16 %v3221, %v3217
        %v3270 = vpack.c.bf16 %v3222, %v3218
        %v3271 = vpack.c.bf16 %v3223, %v3219
        %v3272 = vpack.c.bf16 %v3228, %v3224
        %v3273 = vpack.c.bf16 %v3229, %v3225
        %v3274 = vpack.c.bf16 %v3230, %v3226
        %v3275 = vpack.c.bf16 %v3231, %v3227
        %v3276 = vpack.c.bf16 %v3236, %v3232
        %v3277 = vpack.c.bf16 %v3237, %v3233
        %v3278 = vpack.c.bf16 %v3238, %v3234
        %v3279 = vpack.c.bf16 %v3239, %v3235
        %v3280 = vpack.c.bf16 %v3244, %v3240
        %v3281 = vpack.c.bf16 %v3245, %v3241
        %v3282 = vpack.c.bf16 %v3246, %v3242
        %v3283 = vpack.c.bf16 %v3247, %v3243
        %v3284 = vpack.c.bf16 %v3252, %v3248
        %v3285 = vpack.c.bf16 %v3253, %v3249
        %v3286 = vpack.c.bf16 %v3254, %v3250
        %v3287 = vpack.c.bf16 %v3255, %v3251
        %v3288 = vld [vmem:[#allocation10] sm:$0xff]
        %v3289 = vld [vmem:[#allocation10 + $0x8] sm:$0xff]
        %v3290 = vld [vmem:[#allocation10 + $0x10] sm:$0xff]
        %v3291 = vld [vmem:[#allocation10 + $0x18] sm:$0xff]
        %v3292 = vld [vmem:[#allocation10 + $0x20] sm:$0xff]
        %v3293 = vld [vmem:[#allocation10 + $0x28] sm:$0xff]
        %v3294 = vld [vmem:[#allocation10 + $0x30] sm:$0xff]
        %v3295 = vld [vmem:[#allocation10 + $0x38] sm:$0xff]
        %v3296 = vld [vmem:[#allocation10 + $0x40] sm:$0xff]
        %v3297 = vld [vmem:[#allocation10 + $0x48] sm:$0xff]
        %v3298 = vld [vmem:[#allocation10 + $0x50] sm:$0xff]
        %v3299 = vld [vmem:[#allocation10 + $0x58] sm:$0xff]
        %v3300 = vld [vmem:[#allocation10 + $0x60] sm:$0xff]
        %v3301 = vld [vmem:[#allocation10 + $0x68] sm:$0xff]
        %v3302 = vld [vmem:[#allocation10 + $0x70] sm:$0xff]
        %v3303 = vld [vmem:[#allocation10 + $0x78] sm:$0xff]
        %v3304 = vld [vmem:[#allocation10 + $0x80] sm:$0xff]
        %v3305 = vld [vmem:[#allocation10 + $0x88] sm:$0xff]
        %v3306 = vld [vmem:[#allocation10 + $0x90] sm:$0xff]
        %v3307 = vld [vmem:[#allocation10 + $0x98] sm:$0xff]
        %v3308 = vld [vmem:[#allocation10 + $0xa0] sm:$0xff]
        %v3309 = vld [vmem:[#allocation10 + $0xa8] sm:$0xff]
        %v3310 = vld [vmem:[#allocation10 + $0xb0] sm:$0xff]
        %v3311 = vld [vmem:[#allocation10 + $0xb8] sm:$0xff]
        %v3312 = vld [vmem:[#allocation10 + $0xc0] sm:$0xff]
        %v3313 = vld [vmem:[#allocation10 + $0xc8] sm:$0xff]
        %v3314 = vld [vmem:[#allocation10 + $0xd0] sm:$0xff]
        %v3315 = vld [vmem:[#allocation10 + $0xd8] sm:$0xff]
        %v3316 = vld [vmem:[#allocation10 + $0xe0] sm:$0xff]
        %v3317 = vld [vmem:[#allocation10 + $0xe8] sm:$0xff]
        %v3318 = vld [vmem:[#allocation10 + $0xf0] sm:$0xff]
        %v3319 = vld [vmem:[#allocation10 + $0xf8] sm:$0xff]
        %v3320 = vld [vmem:[#allocation10 + $0x100] sm:$0xff]
        %v3321 = vld [vmem:[#allocation10 + $0x108] sm:$0xff]
        %v3322 = vld [vmem:[#allocation10 + $0x110] sm:$0xff]
        %v3323 = vld [vmem:[#allocation10 + $0x118] sm:$0xff]
        %v3324 = vld [vmem:[#allocation10 + $0x120] sm:$0xff]
        %v3325 = vld [vmem:[#allocation10 + $0x128] sm:$0xff]
        %v3326 = vld [vmem:[#allocation10 + $0x130] sm:$0xff]
        %v3327 = vld [vmem:[#allocation10 + $0x138] sm:$0xff]
        %v3328 = vld [vmem:[#allocation10 + $0x140] sm:$0xff]
        %v3329 = vld [vmem:[#allocation10 + $0x148] sm:$0xff]
        %v3330 = vld [vmem:[#allocation10 + $0x150] sm:$0xff]
        %v3331 = vld [vmem:[#allocation10 + $0x158] sm:$0xff]
        %v3332 = vld [vmem:[#allocation10 + $0x160] sm:$0xff]
        %v3333 = vld [vmem:[#allocation10 + $0x168] sm:$0xff]
        %v3334 = vld [vmem:[#allocation10 + $0x170] sm:$0xff]
        %v3335 = vld [vmem:[#allocation10 + $0x178] sm:$0xff]
        %v3336 = vld [vmem:[#allocation10 + $0x180] sm:$0xff]
        %v3337 = vld [vmem:[#allocation10 + $0x188] sm:$0xff]
        %v3338 = vld [vmem:[#allocation10 + $0x190] sm:$0xff]
        %v3339 = vld [vmem:[#allocation10 + $0x198] sm:$0xff]
        %v3340 = vld [vmem:[#allocation10 + $0x1a0] sm:$0xff]
        %v3341 = vld [vmem:[#allocation10 + $0x1a8] sm:$0xff]
        %v3342 = vld [vmem:[#allocation10 + $0x1b0] sm:$0xff]
        %v3343 = vld [vmem:[#allocation10 + $0x1b8] sm:$0xff]
        %v3344 = vld [vmem:[#allocation10 + $0x1c0] sm:$0xff]
        %v3345 = vld [vmem:[#allocation10 + $0x1c8] sm:$0xff]
        %v3346 = vld [vmem:[#allocation10 + $0x1d0] sm:$0xff]
        %v3347 = vld [vmem:[#allocation10 + $0x1d8] sm:$0xff]
        %v3348 = vld [vmem:[#allocation10 + $0x1e0] sm:$0xff]
        %v3349 = vld [vmem:[#allocation10 + $0x1e8] sm:$0xff]
        %v3350 = vld [vmem:[#allocation10 + $0x1f0] sm:$0xff]
        %v3351 = vld [vmem:[#allocation10 + $0x1f8] sm:$0xff]
        %v3352 = vld [vmem:[#allocation11] sm:$0x3]
        %v3354 = vlaneseq
        %v3355 = vshrl.u32 %v3354, 7
        %v3356 = vsub.s32 0, %v3355
        %v3357 = vrot.slane %v3352, %v3356
        %v3358 = vlaneseq
        %v3359 = vshrl.u32 %v3358, 7
        %v3360 = vsub.s32 1, %v3359
        %v3361 = vrot.slane %v3352, %v3360
        %v3428 = vunpack.c.l.b16 %v3288
        %v3429 = vunpack.c.h.b16 %v3288
        %v3430 = vunpack.c.l.b16 %v3289
        %v3431 = vunpack.c.h.b16 %v3289
        %v3432 = vunpack.c.l.b16 %v3290
        %v3433 = vunpack.c.h.b16 %v3290
        %v3434 = vunpack.c.l.b16 %v3291
        %v3435 = vunpack.c.h.b16 %v3291
        %v3436 = vunpack.c.l.b16 %v3292
        %v3437 = vunpack.c.h.b16 %v3292
        %v3438 = vunpack.c.l.b16 %v3293
        %v3439 = vunpack.c.h.b16 %v3293
        %v3440 = vunpack.c.l.b16 %v3294
        %v3441 = vunpack.c.h.b16 %v3294
        %v3442 = vunpack.c.l.b16 %v3295
        %v3443 = vunpack.c.h.b16 %v3295
        %v3444 = vunpack.c.l.b16 %v3296
        %v3445 = vunpack.c.h.b16 %v3296
        %v3446 = vunpack.c.l.b16 %v3297
        %v3447 = vunpack.c.h.b16 %v3297
        %v3448 = vunpack.c.l.b16 %v3298
        %v3449 = vunpack.c.h.b16 %v3298
        %v3450 = vunpack.c.l.b16 %v3299
        %v3451 = vunpack.c.h.b16 %v3299
        %v3452 = vunpack.c.l.b16 %v3300
        %v3453 = vunpack.c.h.b16 %v3300
        %v3454 = vunpack.c.l.b16 %v3301
        %v3455 = vunpack.c.h.b16 %v3301
        %v3456 = vunpack.c.l.b16 %v3302
        %v3457 = vunpack.c.h.b16 %v3302
        %v3458 = vunpack.c.l.b16 %v3303
        %v3459 = vunpack.c.h.b16 %v3303
        %v3460 = vunpack.c.l.b16 %v3304
        %v3461 = vunpack.c.h.b16 %v3304
        %v3462 = vunpack.c.l.b16 %v3305
        %v3463 = vunpack.c.h.b16 %v3305
        %v3464 = vunpack.c.l.b16 %v3306
        %v3465 = vunpack.c.h.b16 %v3306
        %v3466 = vunpack.c.l.b16 %v3307
        %v3467 = vunpack.c.h.b16 %v3307
        %v3468 = vunpack.c.l.b16 %v3308
        %v3469 = vunpack.c.h.b16 %v3308
        %v3470 = vunpack.c.l.b16 %v3309
        %v3471 = vunpack.c.h.b16 %v3309
        %v3472 = vunpack.c.l.b16 %v3310
        %v3473 = vunpack.c.h.b16 %v3310
        %v3474 = vunpack.c.l.b16 %v3311
        %v3475 = vunpack.c.h.b16 %v3311
        %v3476 = vunpack.c.l.b16 %v3312
        %v3477 = vunpack.c.h.b16 %v3312
        %v3478 = vunpack.c.l.b16 %v3313
        %v3479 = vunpack.c.h.b16 %v3313
        %v3480 = vunpack.c.l.b16 %v3314
        %v3481 = vunpack.c.h.b16 %v3314
        %v3482 = vunpack.c.l.b16 %v3315
        %v3483 = vunpack.c.h.b16 %v3315
        %v3484 = vunpack.c.l.b16 %v3316
        %v3485 = vunpack.c.h.b16 %v3316
        %v3486 = vunpack.c.l.b16 %v3317
        %v3487 = vunpack.c.h.b16 %v3317
        %v3488 = vunpack.c.l.b16 %v3318
        %v3489 = vunpack.c.h.b16 %v3318
        %v3490 = vunpack.c.l.b16 %v3319
        %v3491 = vunpack.c.h.b16 %v3319
        %v3492 = vunpack.c.l.b16 %v3320
        %v3493 = vunpack.c.h.b16 %v3320
        %v3494 = vunpack.c.l.b16 %v3321
        %v3495 = vunpack.c.h.b16 %v3321
        %v3496 = vunpack.c.l.b16 %v3322
        %v3497 = vunpack.c.h.b16 %v3322
        %v3498 = vunpack.c.l.b16 %v3323
        %v3499 = vunpack.c.h.b16 %v3323
        %v3500 = vunpack.c.l.b16 %v3324
        %v3501 = vunpack.c.h.b16 %v3324
        %v3502 = vunpack.c.l.b16 %v3325
        %v3503 = vunpack.c.h.b16 %v3325
        %v3504 = vunpack.c.l.b16 %v3326
        %v3505 = vunpack.c.h.b16 %v3326
        %v3506 = vunpack.c.l.b16 %v3327
        %v3507 = vunpack.c.h.b16 %v3327
        %v3508 = vunpack.c.l.b16 %v3328
        %v3509 = vunpack.c.h.b16 %v3328
        %v3510 = vunpack.c.l.b16 %v3329
        %v3511 = vunpack.c.h.b16 %v3329
        %v3512 = vunpack.c.l.b16 %v3330
        %v3513 = vunpack.c.h.b16 %v3330
        %v3514 = vunpack.c.l.b16 %v3331
        %v3515 = vunpack.c.h.b16 %v3331
        %v3516 = vunpack.c.l.b16 %v3332
        %v3517 = vunpack.c.h.b16 %v3332
        %v3518 = vunpack.c.l.b16 %v3333
        %v3519 = vunpack.c.h.b16 %v3333
        %v3520 = vunpack.c.l.b16 %v3334
        %v3521 = vunpack.c.h.b16 %v3334
        %v3522 = vunpack.c.l.b16 %v3335
        %v3523 = vunpack.c.h.b16 %v3335
        %v3524 = vunpack.c.l.b16 %v3336
        %v3525 = vunpack.c.h.b16 %v3336
        %v3526 = vunpack.c.l.b16 %v3337
        %v3527 = vunpack.c.h.b16 %v3337
        %v3528 = vunpack.c.l.b16 %v3338
        %v3529 = vunpack.c.h.b16 %v3338
        %v3530 = vunpack.c.l.b16 %v3339
        %v3531 = vunpack.c.h.b16 %v3339
        %v3532 = vunpack.c.l.b16 %v3340
        %v3533 = vunpack.c.h.b16 %v3340
        %v3534 = vunpack.c.l.b16 %v3341
        %v3535 = vunpack.c.h.b16 %v3341
        %v3536 = vunpack.c.l.b16 %v3342
        %v3537 = vunpack.c.h.b16 %v3342
        %v3538 = vunpack.c.l.b16 %v3343
        %v3539 = vunpack.c.h.b16 %v3343
        %v3540 = vunpack.c.l.b16 %v3344
        %v3541 = vunpack.c.h.b16 %v3344
        %v3542 = vunpack.c.l.b16 %v3345
        %v3543 = vunpack.c.h.b16 %v3345
        %v3544 = vunpack.c.l.b16 %v3346
        %v3545 = vunpack.c.h.b16 %v3346
        %v3546 = vunpack.c.l.b16 %v3347
        %v3547 = vunpack.c.h.b16 %v3347
        %v3548 = vunpack.c.l.b16 %v3348
        %v3549 = vunpack.c.h.b16 %v3348
        %v3550 = vunpack.c.l.b16 %v3349
        %v3551 = vunpack.c.h.b16 %v3349
        %v3552 = vunpack.c.l.b16 %v3350
        %v3553 = vunpack.c.h.b16 %v3350
        %v3554 = vunpack.c.l.b16 %v3351
        %v3555 = vunpack.c.h.b16 %v3351
        %v3556 = vpack.c.b16 %v3430, %v3428
        %v3557 = vpack.c.b16 %v3431, %v3429
        %v3558 = vpack.c.b16 %v3434, %v3432
        %v3559 = vpack.c.b16 %v3435, %v3433
        %v3560 = vpack.c.b16 %v3438, %v3436
        %v3561 = vpack.c.b16 %v3439, %v3437
        %v3562 = vpack.c.b16 %v3442, %v3440
        %v3563 = vpack.c.b16 %v3443, %v3441
        %v3564 = vpack.c.b16 %v3446, %v3444
        %v3565 = vpack.c.b16 %v3447, %v3445
        %v3566 = vpack.c.b16 %v3450, %v3448
        %v3567 = vpack.c.b16 %v3451, %v3449
        %v3568 = vpack.c.b16 %v3454, %v3452
        %v3569 = vpack.c.b16 %v3455, %v3453
        %v3570 = vpack.c.b16 %v3458, %v3456
        %v3571 = vpack.c.b16 %v3459, %v3457
        %v3572 = vpack.c.b16 %v3462, %v3460
        %v3573 = vpack.c.b16 %v3463, %v3461
        %v3574 = vpack.c.b16 %v3466, %v3464
        %v3575 = vpack.c.b16 %v3467, %v3465
        %v3576 = vpack.c.b16 %v3470, %v3468
        %v3577 = vpack.c.b16 %v3471, %v3469
        %v3578 = vpack.c.b16 %v3474, %v3472
        %v3579 = vpack.c.b16 %v3475, %v3473
        %v3580 = vpack.c.b16 %v3478, %v3476
        %v3581 = vpack.c.b16 %v3479, %v3477
        %v3582 = vpack.c.b16 %v3482, %v3480
        %v3583 = vpack.c.b16 %v3483, %v3481
        %v3584 = vpack.c.b16 %v3486, %v3484
        %v3585 = vpack.c.b16 %v3487, %v3485
        %v3586 = vpack.c.b16 %v3490, %v3488
        %v3587 = vpack.c.b16 %v3491, %v3489
        %v3588 = vpack.c.b16 %v3494, %v3492
        %v3589 = vpack.c.b16 %v3495, %v3493
        %v3590 = vpack.c.b16 %v3498, %v3496
        %v3591 = vpack.c.b16 %v3499, %v3497
        %v3592 = vpack.c.b16 %v3502, %v3500
        %v3593 = vpack.c.b16 %v3503, %v3501
        %v3594 = vpack.c.b16 %v3506, %v3504
        %v3595 = vpack.c.b16 %v3507, %v3505
        %v3596 = vpack.c.b16 %v3510, %v3508
        %v3597 = vpack.c.b16 %v3511, %v3509
        %v3598 = vpack.c.b16 %v3514, %v3512
        %v3599 = vpack.c.b16 %v3515, %v3513
        %v3600 = vpack.c.b16 %v3518, %v3516
        %v3601 = vpack.c.b16 %v3519, %v3517
        %v3602 = vpack.c.b16 %v3522, %v3520
        %v3603 = vpack.c.b16 %v3523, %v3521
        %v3604 = vpack.c.b16 %v3526, %v3524
        %v3605 = vpack.c.b16 %v3527, %v3525
        %v3606 = vpack.c.b16 %v3530, %v3528
        %v3607 = vpack.c.b16 %v3531, %v3529
        %v3608 = vpack.c.b16 %v3534, %v3532
        %v3609 = vpack.c.b16 %v3535, %v3533
        %v3610 = vpack.c.b16 %v3538, %v3536
        %v3611 = vpack.c.b16 %v3539, %v3537
        %v3612 = vpack.c.b16 %v3542, %v3540
        %v3613 = vpack.c.b16 %v3543, %v3541
        %v3614 = vpack.c.b16 %v3546, %v3544
        %v3615 = vpack.c.b16 %v3547, %v3545
        %v3616 = vpack.c.b16 %v3550, %v3548
        %v3617 = vpack.c.b16 %v3551, %v3549
        %v3618 = vpack.c.b16 %v3554, %v3552
        %v3619 = vpack.c.b16 %v3555, %v3553
        %3684 = vmatprep.subr.bf16.mxu0 %v3557
        %3685 = vmatpush1.bf16.msra.mxu0 %v3556
        %3686 = vmatprep.subr.bf16.mxu0 %v3559
        %3687 = vmatpush1.bf16.msra.mxu0 %v3558
        %3688 = vmatprep.subr.bf16.mxu0 %v3561
        %3689 = vmatpush1.bf16.msra.mxu0 %v3560
        %3690 = vmatprep.subr.bf16.mxu0 %v3563
        %3691 = vmatpush1.bf16.msra.mxu0 %v3562
        %3692 = vmatprep.subr.bf16.mxu0 %v3565
        %3693 = vmatpush1.bf16.msra.mxu0 %v3564
        %3694 = vmatprep.subr.bf16.mxu0 %v3567
        %3695 = vmatpush1.bf16.msra.mxu0 %v3566
        %3696 = vmatprep.subr.bf16.mxu0 %v3569
        %3697 = vmatpush1.bf16.msra.mxu0 %v3568
        %3698 = vmatprep.subr.bf16.mxu0 %v3571
        %3699 = vmatpush1.bf16.msra.mxu0 %v3570
        %3700 = vmatprep.subr.bf16.mxu0 %v3573
        %3701 = vmatpush1.bf16.msra.mxu0 %v3572
        %3702 = vmatprep.subr.bf16.mxu0 %v3575
        %3703 = vmatpush1.bf16.msra.mxu0 %v3574
        %3704 = vmatprep.subr.bf16.mxu0 %v3577
        %3705 = vmatpush1.bf16.msra.mxu0 %v3576
        %3706 = vmatprep.subr.bf16.mxu0 %v3579
        %3707 = vmatpush1.bf16.msra.mxu0 %v3578
        %3708 = vmatprep.subr.bf16.mxu0 %v3581
        %3709 = vmatpush1.bf16.msra.mxu0 %v3580
        %3710 = vmatprep.subr.bf16.mxu0 %v3583
        %3711 = vmatpush1.bf16.msra.mxu0 %v3582
        %3712 = vmatprep.subr.bf16.mxu0 %v3585
        %3713 = vmatpush1.bf16.msra.mxu0 %v3584
        %3714 = vmatprep.subr.bf16.mxu0 %v3587
        %3715 = vmatpush1.bf16.msra.mxu0 %v3586
        %3716 = vmatprep.mubr.bf16.mxu0 %v3257
        %3717 = vmatmul.mubr.bf16.gmra.mrb[0].mxu0 %v3256
        %v3718 = vpop.f32.mrb[0].mxu0
        %v3719 = vadd.f32 %v3357, %v3718
        %v3720 = vpop.f32.mrb[0].mxu0
        %v3721 = vadd.f32 %v3361, %v3720
        %v3722 = vpop.f32.mrb[0].mxu0
        %v3723 = vadd.f32 %v3357, %v3722
        %v3724 = vpop.f32.mrb[0].mxu0
        %v3725 = vadd.f32 %v3361, %v3724
        %3726 = vmatprep.mubr.bf16.mxu0 %v3261
        %3727 = vmatmul.mubr.bf16.gmra.mrb[0].mxu0 %v3260
        %v3728 = vpop.f32.mrb[0].mxu0
        %v3729 = vadd.f32 %v3357, %v3728
        %v3730 = vpop.f32.mrb[0].mxu0
        %v3731 = vadd.f32 %v3361, %v3730
        %v3732 = vpop.f32.mrb[0].mxu0
        %v3733 = vadd.f32 %v3357, %v3732
        %v3734 = vpop.f32.mrb[0].mxu0
        %v3735 = vadd.f32 %v3361, %v3734
        %3736 = vmatprep.mubr.bf16.mxu0 %v3265
        %3737 = vmatmul.mubr.bf16.gmra.mrb[0].mxu0 %v3264
        %v3738 = vpop.f32.mrb[0].mxu0
        %v3739 = vadd.f32 %v3357, %v3738
        %v3740 = vpop.f32.mrb[0].mxu0
        %v3741 = vadd.f32 %v3361, %v3740
        %v3742 = vpop.f32.mrb[0].mxu0
        %v3743 = vadd.f32 %v3357, %v3742
        %v3744 = vpop.f32.mrb[0].mxu0
        %v3745 = vadd.f32 %v3361, %v3744
        %3746 = vmatprep.mubr.bf16.mxu0 %v3269
        %3747 = vmatmul.mubr.bf16.gmra.mrb[0].mxu0 %v3268
        %v3748 = vpop.f32.mrb[0].mxu0
        %v3749 = vadd.f32 %v3357, %v3748
        %v3750 = vpop.f32.mrb[0].mxu0
        %v3751 = vadd.f32 %v3361, %v3750
        %v3752 = vpop.f32.mrb[0].mxu0
        %v3753 = vadd.f32 %v3357, %v3752
        %v3754 = vpop.f32.mrb[0].mxu0
        %v3755 = vadd.f32 %v3361, %v3754
        %3756 = vmatprep.mubr.bf16.mxu0 %v3273
        %3757 = vmatmul.mubr.bf16.gmra.mrb[0].mxu0 %v3272
        %v3758 = vpop.f32.mrb[0].mxu0
        %v3759 = vadd.f32 %v3357, %v3758
        %v3760 = vpop.f32.mrb[0].mxu0
        %v3761 = vadd.f32 %v3361, %v3760
        %v3762 = vpop.f32.mrb[0].mxu0
        %v3763 = vadd.f32 %v3357, %v3762
        %v3764 = vpop.f32.mrb[0].mxu0
        %v3765 = vadd.f32 %v3361, %v3764
        %3766 = vmatprep.mubr.bf16.mxu0 %v3277
        %3767 = vmatmul.mubr.bf16.gmra.mrb[0].mxu0 %v3276
        %v3768 = vpop.f32.mrb[0].mxu0
        %v3769 = vadd.f32 %v3357, %v3768
        %v3770 = vpop.f32.mrb[0].mxu0
        %v3771 = vadd.f32 %v3361, %v3770
        %v3772 = vpop.f32.mrb[0].mxu0
        %v3773 = vadd.f32 %v3357, %v3772
        %v3774 = vpop.f32.mrb[0].mxu0
        %v3775 = vadd.f32 %v3361, %v3774
        %3776 = vmatprep.mubr.bf16.mxu0 %v3281
        %3777 = vmatmul.mubr.bf16.gmra.mrb[0].mxu0 %v3280
        %v3778 = vpop.f32.mrb[0].mxu0
        %v3779 = vadd.f32 %v3357, %v3778
        %v3780 = vpop.f32.mrb[0].mxu0
        %v3781 = vadd.f32 %v3361, %v3780
        %v3782 = vpop.f32.mrb[0].mxu0
        %v3783 = vadd.f32 %v3357, %v3782
        %v3784 = vpop.f32.mrb[0].mxu0
        %v3785 = vadd.f32 %v3361, %v3784
        %3786 = vmatprep.mubr.bf16.mxu0 %v3285
        %3787 = vmatmul.mubr.bf16.gmra.mrb[0].mxu0 %v3284
        %v3788 = vpop.f32.mrb[0].mxu0
        %v3789 = vadd.f32 %v3357, %v3788
        %v3790 = vpop.f32.mrb[0].mxu0
        %v3791 = vadd.f32 %v3361, %v3790
        %v3792 = vpop.f32.mrb[0].mxu0
        %v3793 = vadd.f32 %v3357, %v3792
        %v3794 = vpop.f32.mrb[0].mxu0
        %v3795 = vadd.f32 %v3361, %v3794
        %3796 = vdwg.mxu0
        %3797 = vmatprep.subr.bf16.mxu0 %v3589
        %3798 = vmatpush1.bf16.msra.mxu0 %v3588
        %3799 = vmatprep.subr.bf16.mxu0 %v3591
        %3800 = vmatpush1.bf16.msra.mxu0 %v3590
        %3801 = vmatprep.subr.bf16.mxu0 %v3593
        %3802 = vmatpush1.bf16.msra.mxu0 %v3592
        %3803 = vmatprep.subr.bf16.mxu0 %v3595
        %3804 = vmatpush1.bf16.msra.mxu0 %v3594
        %3805 = vmatprep.subr.bf16.mxu0 %v3597
        %3806 = vmatpush1.bf16.msra.mxu0 %v3596
        %3807 = vmatprep.subr.bf16.mxu0 %v3599
        %3808 = vmatpush1.bf16.msra.mxu0 %v3598
        %3809 = vmatprep.subr.bf16.mxu0 %v3601
        %3810 = vmatpush1.bf16.msra.mxu0 %v3600
        %3811 = vmatprep.subr.bf16.mxu0 %v3603
        %3812 = vmatpush1.bf16.msra.mxu0 %v3602
        %3813 = vmatprep.subr.bf16.mxu0 %v3605
        %3814 = vmatpush1.bf16.msra.mxu0 %v3604
        %3815 = vmatprep.subr.bf16.mxu0 %v3607
        %3816 = vmatpush1.bf16.msra.mxu0 %v3606
        %3817 = vmatprep.subr.bf16.mxu0 %v3609
        %3818 = vmatpush1.bf16.msra.mxu0 %v3608
        %3819 = vmatprep.subr.bf16.mxu0 %v3611
        %3820 = vmatpush1.bf16.msra.mxu0 %v3610
        %3821 = vmatprep.subr.bf16.mxu0 %v3613
        %3822 = vmatpush1.bf16.msra.mxu0 %v3612
        %3823 = vmatprep.subr.bf16.mxu0 %v3615
        %3824 = vmatpush1.bf16.msra.mxu0 %v3614
        %3825 = vmatprep.subr.bf16.mxu0 %v3617
        %3826 = vmatpush1.bf16.msra.mxu0 %v3616
        %3827 = vmatprep.subr.bf16.mxu0 %v3619
        %3828 = vmatpush1.bf16.msra.mxu0 %v3618
        %3829 = vmatprep.mubr.bf16.mxu0 %v3259
        %3830 = vmatmul.mubr.bf16.gmra.mrb[0].mxu0 %v3258
        %v3831 = vpop.f32.mrb[0].mxu0
        %v3832 = vadd.f32 %v3719, %v3831
        %v3833 = vpop.f32.mrb[0].mxu0
        %v3834 = vadd.f32 %v3721, %v3833
        %v3835 = vpop.f32.mrb[0].mxu0
        %v3836 = vadd.f32 %v3723, %v3835
        %v3837 = vpop.f32.mrb[0].mxu0
        %v3838 = vadd.f32 %v3725, %v3837
        %3839 = vmatprep.mubr.bf16.mxu0 %v3263
        %3840 = vmatmul.mubr.bf16.gmra.mrb[0].mxu0 %v3262
        %v3841 = vpop.f32.mrb[0].mxu0
        %v3842 = vadd.f32 %v3729, %v3841
        %v3843 = vpop.f32.mrb[0].mxu0
        %v3844 = vadd.f32 %v3731, %v3843
        %v3845 = vpop.f32.mrb[0].mxu0
        %v3846 = vadd.f32 %v3733, %v3845
        %v3847 = vpop.f32.mrb[0].mxu0
        %v3848 = vadd.f32 %v3735, %v3847
        %3849 = vmatprep.mubr.bf16.mxu0 %v3267
        %3850 = vmatmul.mubr.bf16.gmra.mrb[0].mxu0 %v3266
        %v3851 = vpop.f32.mrb[0].mxu0
        %v3852 = vadd.f32 %v3739, %v3851
        %v3853 = vpop.f32.mrb[0].mxu0
        %v3854 = vadd.f32 %v3741, %v3853
        %v3855 = vpop.f32.mrb[0].mxu0
        %v3856 = vadd.f32 %v3743, %v3855
        %v3857 = vpop.f32.mrb[0].mxu0
        %v3858 = vadd.f32 %v3745, %v3857
        %3859 = vmatprep.mubr.bf16.mxu0 %v3271
        %3860 = vmatmul.mubr.bf16.gmra.mrb[0].mxu0 %v3270
        %v3861 = vpop.f32.mrb[0].mxu0
        %v3862 = vadd.f32 %v3749, %v3861
        %v3863 = vpop.f32.mrb[0].mxu0
        %v3864 = vadd.f32 %v3751, %v3863
        %v3865 = vpop.f32.mrb[0].mxu0
        %v3866 = vadd.f32 %v3753, %v3865
        %v3867 = vpop.f32.mrb[0].mxu0
        %v3868 = vadd.f32 %v3755, %v3867
        %3869 = vmatprep.mubr.bf16.mxu0 %v3275
        %3870 = vmatmul.mubr.bf16.gmra.mrb[0].mxu0 %v3274
        %v3871 = vpop.f32.mrb[0].mxu0
        %v3872 = vadd.f32 %v3759, %v3871
        %v3873 = vpop.f32.mrb[0].mxu0
        %v3874 = vadd.f32 %v3761, %v3873
        %v3875 = vpop.f32.mrb[0].mxu0
        %v3876 = vadd.f32 %v3763, %v3875
        %v3877 = vpop.f32.mrb[0].mxu0
        %v3878 = vadd.f32 %v3765, %v3877
        %3879 = vmatprep.mubr.bf16.mxu0 %v3279
        %3880 = vmatmul.mubr.bf16.gmra.mrb[0].mxu0 %v3278
        %v3881 = vpop.f32.mrb[0].mxu0
        %v3882 = vadd.f32 %v3769, %v3881
        %v3883 = vpop.f32.mrb[0].mxu0
        %v3884 = vadd.f32 %v3771, %v3883
        %v3885 = vpop.f32.mrb[0].mxu0
        %v3886 = vadd.f32 %v3773, %v3885
        %v3887 = vpop.f32.mrb[0].mxu0
        %v3888 = vadd.f32 %v3775, %v3887
        %3889 = vmatprep.mubr.bf16.mxu0 %v3283
        %3890 = vmatmul.mubr.bf16.gmra.mrb[0].mxu0 %v3282
        %v3891 = vpop.f32.mrb[0].mxu0
        %v3892 = vadd.f32 %v3779, %v3891
        %v3893 = vpop.f32.mrb[0].mxu0
        %v3894 = vadd.f32 %v3781, %v3893
        %v3895 = vpop.f32.mrb[0].mxu0
        %v3896 = vadd.f32 %v3783, %v3895
        %v3897 = vpop.f32.mrb[0].mxu0
        %v3898 = vadd.f32 %v3785, %v3897
        %3899 = vmatprep.mubr.bf16.mxu0 %v3287
        %3900 = vmatmul.mubr.bf16.gmra.mrb[0].mxu0 %v3286
        %v3901 = vpop.f32.mrb[0].mxu0
        %v3902 = vadd.f32 %v3789, %v3901
        %v3903 = vpop.f32.mrb[0].mxu0
        %v3904 = vadd.f32 %v3791, %v3903
        %v3905 = vpop.f32.mrb[0].mxu0
        %v3906 = vadd.f32 %v3793, %v3905
        %v3907 = vpop.f32.mrb[0].mxu0
        %v3908 = vadd.f32 %v3795, %v3907
        %3909 = vdwg.mxu0
        %3910 = vst [vmem:[%s564] sm:$0xff] %v3832
        %3911 = vst [vmem:[%s564 + $0x8] sm:$0xff] %v3834
        %3912 = vst [vmem:[%s564 + $0x10] sm:$0xff] %v3836
        %3913 = vst [vmem:[%s564 + $0x18] sm:$0xff] %v3838
        %3914 = vst [vmem:[%s564 + $0x20] sm:$0xff] %v3842
        %3915 = vst [vmem:[%s564 + $0x28] sm:$0xff] %v3844
        %3916 = vst [vmem:[%s564 + $0x30] sm:$0xff] %v3846
        %3917 = vst [vmem:[%s564 + $0x38] sm:$0xff] %v3848
        %3918 = vst [vmem:[%s564 + $0x40] sm:$0xff] %v3852
        %3919 = vst [vmem:[%s564 + $0x48] sm:$0xff] %v3854
        %3920 = vst [vmem:[%s564 + $0x50] sm:$0xff] %v3856
        %3921 = vst [vmem:[%s564 + $0x58] sm:$0xff] %v3858
        %3922 = vst [vmem:[%s564 + $0x60] sm:$0xff] %v3862
        %3923 = vst [vmem:[%s564 + $0x68] sm:$0xff] %v3864
        %3924 = vst [vmem:[%s564 + $0x70] sm:$0xff] %v3866
        %3925 = vst [vmem:[%s564 + $0x78] sm:$0xff] %v3868
        %3926 = vst [vmem:[%s564 + $0x80] sm:$0xff] %v3872
        %3927 = vst [vmem:[%s564 + $0x88] sm:$0xff] %v3874
        %3928 = vst [vmem:[%s564 + $0x90] sm:$0xff] %v3876
        %3929 = vst [vmem:[%s564 + $0x98] sm:$0xff] %v3878
        %3930 = vst [vmem:[%s564 + $0xa0] sm:$0xff] %v3882
        %3931 = vst [vmem:[%s564 + $0xa8] sm:$0xff] %v3884
        %3932 = vst [vmem:[%s564 + $0xb0] sm:$0xff] %v3886
        %3933 = vst [vmem:[%s564 + $0xb8] sm:$0xff] %v3888
        %3934 = vst [vmem:[%s564 + $0xc0] sm:$0xff] %v3892
        %3935 = vst [vmem:[%s564 + $0xc8] sm:$0xff] %v3894
        %3936 = vst [vmem:[%s564 + $0xd0] sm:$0xff] %v3896
        %3937 = vst [vmem:[%s564 + $0xd8] sm:$0xff] %v3898
        %3938 = vst [vmem:[%s564 + $0xe0] sm:$0xff] %v3902
        %3939 = vst [vmem:[%s564 + $0xe8] sm:$0xff] %v3904
        %3940 = vst [vmem:[%s564 + $0xf0] sm:$0xff] %v3906
        %3941 = vst [vmem:[%s564 + $0xf8] sm:$0xff] %v3908
        %v3942 = vld [vmem:[%s484] sm:$0xff]
        %v3943 = vld [vmem:[%s484 + $0x8] sm:$0xff]
        %v3944 = vld [vmem:[%s484 + $0x10] sm:$0xff]
        %v3945 = vld [vmem:[%s484 + $0x18] sm:$0xff]
        %v3946 = vld [vmem:[%s484 + $0x20] sm:$0xff]
        %v3947 = vld [vmem:[%s484 + $0x28] sm:$0xff]
        %v3948 = vld [vmem:[%s484 + $0x30] sm:$0xff]
        %v3949 = vld [vmem:[%s484 + $0x38] sm:$0xff]
        %v3950 = vld [vmem:[%s484 + $0x40] sm:$0xff]
        %v3951 = vld [vmem:[%s484 + $0x48] sm:$0xff]
        %v3952 = vld [vmem:[%s484 + $0x50] sm:$0xff]
        %v3953 = vld [vmem:[%s484 + $0x58] sm:$0xff]
        %v3954 = vld [vmem:[%s484 + $0x60] sm:$0xff]
        %v3955 = vld [vmem:[%s484 + $0x68] sm:$0xff]
        %v3956 = vld [vmem:[%s484 + $0x70] sm:$0xff]
        %v3957 = vld [vmem:[%s484 + $0x78] sm:$0xff]
        %v3958 = vmul.f32 %v3834, 0.5
        %v3959 = vmul.f32 %v3838, 0.5
        %v3960 = vmul.f32 %v3844, 0.5
        %v3961 = vmul.f32 %v3848, 0.5
        %v3962 = vmul.f32 %v3854, 0.5
        %v3963 = vmul.f32 %v3858, 0.5
        %v3964 = vmul.f32 %v3864, 0.5
        %v3965 = vmul.f32 %v3868, 0.5
        %v3966 = vmul.f32 %v3874, 0.5
        %v3967 = vmul.f32 %v3878, 0.5
        %v3968 = vmul.f32 %v3884, 0.5
        %v3969 = vmul.f32 %v3888, 0.5
        %v3970 = vmul.f32 %v3894, 0.5
        %v3971 = vmul.f32 %v3898, 0.5
        %v3972 = vmul.f32 %v3904, 0.5
        %v3973 = vmul.f32 %v3908, 0.5
        %v3974 = vmul.f32 %v3958, 1.442695
        %v3975 = vpow.pop %v3974
        %v3976 = vmul.f32 %v3959, 1.442695
        %v3977 = vpow.pop %v3976
        %v3978 = vmul.f32 %v3960, 1.442695
        %v3979 = vpow.pop %v3978
        %v3980 = vmul.f32 %v3961, 1.442695
        %v3981 = vpow.pop %v3980
        %v3982 = vmul.f32 %v3962, 1.442695
        %v3983 = vpow.pop %v3982
        %v3984 = vmul.f32 %v3963, 1.442695
        %v3985 = vpow.pop %v3984
        %v3986 = vmul.f32 %v3964, 1.442695
        %v3987 = vpow.pop %v3986
        %v3988 = vmul.f32 %v3965, 1.442695
        %v3989 = vpow.pop %v3988
        %v3990 = vmul.f32 %v3966, 1.442695
        %v3991 = vpow.pop %v3990
        %v3992 = vmul.f32 %v3967, 1.442695
        %v3993 = vpow.pop %v3992
        %v3994 = vmul.f32 %v3968, 1.442695
        %v3995 = vpow.pop %v3994
        %v3996 = vmul.f32 %v3969, 1.442695
        %v3997 = vpow.pop %v3996
        %v3998 = vmul.f32 %v3970, 1.442695
        %v3999 = vpow.pop %v3998
        %v4000 = vmul.f32 %v3971, 1.442695
        %v4001 = vpow.pop %v4000
        %v4002 = vmul.f32 %v3972, 1.442695
        %v4003 = vpow.pop %v4002
        %v4004 = vmul.f32 %v3973, 1.442695
        %v4005 = vpow.pop %v4004
        %v4006 = vmul.f32 %v3942, %v3975
        %v4007 = vmul.f32 %v3943, %v3977
        %v4008 = vmul.f32 %v3944, %v3979
        %v4009 = vmul.f32 %v3945, %v3981
        %v4010 = vmul.f32 %v3946, %v3983
        %v4011 = vmul.f32 %v3947, %v3985
        %v4012 = vmul.f32 %v3948, %v3987
        %v4013 = vmul.f32 %v3949, %v3989
        %v4014 = vmul.f32 %v3950, %v3991
        %v4015 = vmul.f32 %v3951, %v3993
        %v4016 = vmul.f32 %v3952, %v3995
        %v4017 = vmul.f32 %v3953, %v3997
        %v4018 = vmul.f32 %v3954, %v3999
        %v4019 = vmul.f32 %v3955, %v4001
        %v4020 = vmul.f32 %v3956, %v4003
        %v4021 = vmul.f32 %v3957, %v4005
        %v4022 = vadd.f32 %v3832, %v4006
        %v4023 = vadd.f32 %v3836, %v4007
        %v4024 = vadd.f32 %v3842, %v4008
        %v4025 = vadd.f32 %v3846, %v4009
        %v4026 = vadd.f32 %v3852, %v4010
        %v4027 = vadd.f32 %v3856, %v4011
        %v4028 = vadd.f32 %v3862, %v4012
        %v4029 = vadd.f32 %v3866, %v4013
        %v4030 = vadd.f32 %v3872, %v4014
        %v4031 = vadd.f32 %v3876, %v4015
        %v4032 = vadd.f32 %v3882, %v4016
        %v4033 = vadd.f32 %v3886, %v4017
        %v4034 = vadd.f32 %v3892, %v4018
        %v4035 = vadd.f32 %v3896, %v4019
        %v4036 = vadd.f32 %v3902, %v4020
        %v4037 = vadd.f32 %v3906, %v4021
        %v4038 = vpack.c.bf16 %v4023, %v4022
        %v4039 = vpack.c.bf16 %v4025, %v4024
        %v4040 = vpack.c.bf16 %v4027, %v4026
        %v4041 = vpack.c.bf16 %v4029, %v4028
        %v4042 = vpack.c.bf16 %v4031, %v4030
        %v4043 = vpack.c.bf16 %v4033, %v4032
        %v4044 = vpack.c.bf16 %v4035, %v4034
        %v4045 = vpack.c.bf16 %v4037, %v4036
        %v4046 = vld [vmem:[#allocation13] sm:$0xff]
        %v4047 = vld [vmem:[#allocation13 + $0x8] sm:$0xff]
        %v4048 = vld [vmem:[#allocation13 + $0x10] sm:$0xff]
        %v4049 = vld [vmem:[#allocation13 + $0x18] sm:$0xff]
        %v4050 = vld [vmem:[#allocation13 + $0x20] sm:$0xff]
        %v4051 = vld [vmem:[#allocation13 + $0x28] sm:$0xff]
        %v4052 = vld [vmem:[#allocation13 + $0x30] sm:$0xff]
        %v4053 = vld [vmem:[#allocation13 + $0x38] sm:$0xff]
        %v4054 = vld [vmem:[#allocation13 + $0x40] sm:$0xff]
        %v4055 = vld [vmem:[#allocation13 + $0x48] sm:$0xff]
        %v4056 = vld [vmem:[#allocation13 + $0x50] sm:$0xff]
        %v4057 = vld [vmem:[#allocation13 + $0x58] sm:$0xff]
        %v4058 = vld [vmem:[#allocation13 + $0x60] sm:$0xff]
        %v4059 = vld [vmem:[#allocation13 + $0x68] sm:$0xff]
        %v4060 = vld [vmem:[#allocation13 + $0x70] sm:$0xff]
        %v4061 = vld [vmem:[#allocation13 + $0x78] sm:$0xff]
        %v4062 = vld [vmem:[#allocation13 + $0x80] sm:$0xff]
        %v4063 = vld [vmem:[#allocation13 + $0x88] sm:$0xff]
        %v4064 = vld [vmem:[#allocation13 + $0x90] sm:$0xff]
        %v4065 = vld [vmem:[#allocation13 + $0x98] sm:$0xff]
        %v4066 = vld [vmem:[#allocation13 + $0xa0] sm:$0xff]
        %v4067 = vld [vmem:[#allocation13 + $0xa8] sm:$0xff]
        %v4068 = vld [vmem:[#allocation13 + $0xb0] sm:$0xff]
        %v4069 = vld [vmem:[#allocation13 + $0xb8] sm:$0xff]
        %v4070 = vld [vmem:[#allocation13 + $0xc0] sm:$0xff]
        %v4071 = vld [vmem:[#allocation13 + $0xc8] sm:$0xff]
        %v4072 = vld [vmem:[#allocation13 + $0xd0] sm:$0xff]
        %v4073 = vld [vmem:[#allocation13 + $0xd8] sm:$0xff]
        %v4074 = vld [vmem:[#allocation13 + $0xe0] sm:$0xff]
        %v4075 = vld [vmem:[#allocation13 + $0xe8] sm:$0xff]
        %v4076 = vld [vmem:[#allocation13 + $0xf0] sm:$0xff]
        %v4077 = vld [vmem:[#allocation13 + $0xf8] sm:$0xff]
        %v4078 = vld [vmem:[#allocation14] sm:$0xf]
        %v4080 = vlaneseq
        %v4081 = vshrl.u32 %v4080, 7
        %v4082 = vsub.s32 0, %v4081
        %v4083 = vrot.slane %v4078, %v4082
        %v4084 = vlaneseq
        %v4085 = vshrl.u32 %v4084, 7
        %v4086 = vsub.s32 1, %v4085
        %v4087 = vrot.slane %v4078, %v4086
        %v4088 = vlaneseq
        %v4089 = vshrl.u32 %v4088, 7
        %v4090 = vsub.s32 2, %v4089
        %v4091 = vrot.slane %v4078, %v4090
        %v4092 = vlaneseq
        %v4093 = vshrl.u32 %v4092, 7
        %v4094 = vsub.s32 3, %v4093
        %v4095 = vrot.slane %v4078, %v4094
        %v4132 = vunpack.c.l.b16 %v4046
        %v4133 = vunpack.c.h.b16 %v4046
        %v4134 = vunpack.c.l.b16 %v4047
        %v4135 = vunpack.c.h.b16 %v4047
        %v4136 = vunpack.c.l.b16 %v4048
        %v4137 = vunpack.c.h.b16 %v4048
        %v4138 = vunpack.c.l.b16 %v4049
        %v4139 = vunpack.c.h.b16 %v4049
        %v4140 = vunpack.c.l.b16 %v4050
        %v4141 = vunpack.c.h.b16 %v4050
        %v4142 = vunpack.c.l.b16 %v4051
        %v4143 = vunpack.c.h.b16 %v4051
        %v4144 = vunpack.c.l.b16 %v4052
        %v4145 = vunpack.c.h.b16 %v4052
        %v4146 = vunpack.c.l.b16 %v4053
        %v4147 = vunpack.c.h.b16 %v4053
        %v4148 = vunpack.c.l.b16 %v4054
        %v4149 = vunpack.c.h.b16 %v4054
        %v4150 = vunpack.c.l.b16 %v4055
        %v4151 = vunpack.c.h.b16 %v4055
        %v4152 = vunpack.c.l.b16 %v4056
        %v4153 = vunpack.c.h.b16 %v4056
        %v4154 = vunpack.c.l.b16 %v4057
        %v4155 = vunpack.c.h.b16 %v4057
        %v4156 = vunpack.c.l.b16 %v4058
        %v4157 = vunpack.c.h.b16 %v4058
        %v4158 = vunpack.c.l.b16 %v4059
        %v4159 = vunpack.c.h.b16 %v4059
        %v4160 = vunpack.c.l.b16 %v4060
        %v4161 = vunpack.c.h.b16 %v4060
        %v4162 = vunpack.c.l.b16 %v4061
        %v4163 = vunpack.c.h.b16 %v4061
        %v4164 = vunpack.c.l.b16 %v4062
        %v4165 = vunpack.c.h.b16 %v4062
        %v4166 = vunpack.c.l.b16 %v4063
        %v4167 = vunpack.c.h.b16 %v4063
        %v4168 = vunpack.c.l.b16 %v4064
        %v4169 = vunpack.c.h.b16 %v4064
        %v4170 = vunpack.c.l.b16 %v4065
        %v4171 = vunpack.c.h.b16 %v4065
        %v4172 = vunpack.c.l.b16 %v4066
        %v4173 = vunpack.c.h.b16 %v4066
        %v4174 = vunpack.c.l.b16 %v4067
        %v4175 = vunpack.c.h.b16 %v4067
        %v4176 = vunpack.c.l.b16 %v4068
        %v4177 = vunpack.c.h.b16 %v4068
        %v4178 = vunpack.c.l.b16 %v4069
        %v4179 = vunpack.c.h.b16 %v4069
        %v4180 = vunpack.c.l.b16 %v4070
        %v4181 = vunpack.c.h.b16 %v4070
        %v4182 = vunpack.c.l.b16 %v4071
        %v4183 = vunpack.c.h.b16 %v4071
        %v4184 = vunpack.c.l.b16 %v4072
        %v4185 = vunpack.c.h.b16 %v4072
        %v4186 = vunpack.c.l.b16 %v4073
        %v4187 = vunpack.c.h.b16 %v4073
        %v4188 = vunpack.c.l.b16 %v4074
        %v4189 = vunpack.c.h.b16 %v4074
        %v4190 = vunpack.c.l.b16 %v4075
        %v4191 = vunpack.c.h.b16 %v4075
        %v4192 = vunpack.c.l.b16 %v4076
        %v4193 = vunpack.c.h.b16 %v4076
        %v4194 = vunpack.c.l.b16 %v4077
        %v4195 = vunpack.c.h.b16 %v4077
        %v4196 = vpack.c.b16 %v4136, %v4132
        %v4197 = vpack.c.b16 %v4137, %v4133
        %v4198 = vpack.c.b16 %v4138, %v4134
        %v4199 = vpack.c.b16 %v4139, %v4135
        %v4200 = vpack.c.b16 %v4144, %v4140
        %v4201 = vpack.c.b16 %v4145, %v4141
        %v4202 = vpack.c.b16 %v4146, %v4142
        %v4203 = vpack.c.b16 %v4147, %v4143
        %v4204 = vpack.c.b16 %v4152, %v4148
        %v4205 = vpack.c.b16 %v4153, %v4149
        %v4206 = vpack.c.b16 %v4154, %v4150
        %v4207 = vpack.c.b16 %v4155, %v4151
        %v4208 = vpack.c.b16 %v4160, %v4156
        %v4209 = vpack.c.b16 %v4161, %v4157
        %v4210 = vpack.c.b16 %v4162, %v4158
        %v4211 = vpack.c.b16 %v4163, %v4159
        %v4212 = vpack.c.b16 %v4168, %v4164
        %v4213 = vpack.c.b16 %v4169, %v4165
        %v4214 = vpack.c.b16 %v4170, %v4166
        %v4215 = vpack.c.b16 %v4171, %v4167
        %v4216 = vpack.c.b16 %v4176, %v4172
        %v4217 = vpack.c.b16 %v4177, %v4173
        %v4218 = vpack.c.b16 %v4178, %v4174
        %v4219 = vpack.c.b16 %v4179, %v4175
        %v4220 = vpack.c.b16 %v4184, %v4180
        %v4221 = vpack.c.b16 %v4185, %v4181
        %v4222 = vpack.c.b16 %v4186, %v4182
        %v4223 = vpack.c.b16 %v4187, %v4183
        %v4224 = vpack.c.b16 %v4192, %v4188
        %v4225 = vpack.c.b16 %v4193, %v4189
        %v4226 = vpack.c.b16 %v4194, %v4190
        %v4227 = vpack.c.b16 %v4195, %v4191
        %4260 = vmatprep.subr.bf16.mxu0 %v4197
        %4261 = vmatpush1.bf16.msra.mxu0 %v4196
        %4262 = vmatprep.subr.bf16.mxu0 %v4201
        %4263 = vmatpush1.bf16.msra.mxu0 %v4200
        %4264 = vmatprep.subr.bf16.mxu0 %v4205
        %4265 = vmatpush1.bf16.msra.mxu0 %v4204
        %4266 = vmatprep.subr.bf16.mxu0 %v4209
        %4267 = vmatpush1.bf16.msra.mxu0 %v4208
        %4268 = vmatprep.subr.bf16.mxu0 %v4213
        %4269 = vmatpush1.bf16.msra.mxu0 %v4212
        %4270 = vmatprep.subr.bf16.mxu0 %v4217
        %4271 = vmatpush1.bf16.msra.mxu0 %v4216
        %4272 = vmatprep.subr.bf16.mxu0 %v4221
        %4273 = vmatpush1.bf16.msra.mxu0 %v4220
        %4274 = vmatprep.subr.bf16.mxu0 %v4225
        %4275 = vmatpush1.bf16.msra.mxu0 %v4224
        %4276 = vmatprep.subr.bf16.mxu0 0
        %4277 = vmatpush1.bf16.msra.mxu0 0
        %4278 = vmatprep.subr.bf16.mxu0 0
        %4279 = vmatpush1.bf16.msra.mxu0 0
        %4280 = vmatprep.subr.bf16.mxu0 0
        %4281 = vmatpush1.bf16.msra.mxu0 0
        %4282 = vmatprep.subr.bf16.mxu0 0
        %4283 = vmatpush1.bf16.msra.mxu0 0
        %4284 = vmatprep.subr.bf16.mxu0 0
        %4285 = vmatpush1.bf16.msra.mxu0 0
        %4286 = vmatprep.subr.bf16.mxu0 0
        %4287 = vmatpush1.bf16.msra.mxu0 0
        %4288 = vmatprep.subr.bf16.mxu0 0
        %4289 = vmatpush1.bf16.msra.mxu0 0
        %4290 = vmatprep.subr.bf16.mxu0 0
        %4291 = vmatpush1.bf16.msra.mxu0 0
        %4292 = vmatprep.mubr.bf16.mxu0 0
        %4293 = vmatmul.mubr.bf16.gmra.mrb[0].mxu0 %v4038
        %v4294 = vpop.f32.mrb[0].mxu0
        %v4295 = vadd.f32 %v4083, %v4294
        %v4296 = vpop.f32.mrb[0].mxu0
        %v4297 = vadd.f32 %v4087, %v4296
        %v4298 = vpop.f32.mrb[0].mxu0
        %v4299 = vadd.f32 %v4083, %v4298
        %v4300 = vpop.f32.mrb[0].mxu0
        %v4301 = vadd.f32 %v4087, %v4300
        %4302 = vmatprep.mubr.bf16.mxu0 0
        %4303 = vmatmul.mubr.bf16.gmra.mrb[0].mxu0 %v4039
        %v4304 = vpop.f32.mrb[0].mxu0
        %v4305 = vadd.f32 %v4083, %v4304
        %v4306 = vpop.f32.mrb[0].mxu0
        %v4307 = vadd.f32 %v4087, %v4306
        %v4308 = vpop.f32.mrb[0].mxu0
        %v4309 = vadd.f32 %v4083, %v4308
        %v4310 = vpop.f32.mrb[0].mxu0
        %v4311 = vadd.f32 %v4087, %v4310
        %4312 = vmatprep.mubr.bf16.mxu0 0
        %4313 = vmatmul.mubr.bf16.gmra.mrb[0].mxu0 %v4040
        %v4314 = vpop.f32.mrb[0].mxu0
        %v4315 = vadd.f32 %v4083, %v4314
        %v4316 = vpop.f32.mrb[0].mxu0
        %v4317 = vadd.f32 %v4087, %v4316
        %v4318 = vpop.f32.mrb[0].mxu0
        %v4319 = vadd.f32 %v4083, %v4318
        %v4320 = vpop.f32.mrb[0].mxu0
        %v4321 = vadd.f32 %v4087, %v4320
        %4322 = vmatprep.mubr.bf16.mxu0 0
        %4323 = vmatmul.mubr.bf16.gmra.mrb[0].mxu0 %v4041
        %v4324 = vpop.f32.mrb[0].mxu0
        %v4325 = vadd.f32 %v4083, %v4324
        %v4326 = vpop.f32.mrb[0].mxu0
        %v4327 = vadd.f32 %v4087, %v4326
        %v4328 = vpop.f32.mrb[0].mxu0
        %v4329 = vadd.f32 %v4083, %v4328
        %v4330 = vpop.f32.mrb[0].mxu0
        %v4331 = vadd.f32 %v4087, %v4330
        %4332 = vmatprep.mubr.bf16.mxu0 0
        %4333 = vmatmul.mubr.bf16.gmra.mrb[0].mxu0 %v4042
        %v4334 = vpop.f32.mrb[0].mxu0
        %v4335 = vadd.f32 %v4083, %v4334
        %v4336 = vpop.f32.mrb[0].mxu0
        %v4337 = vadd.f32 %v4087, %v4336
        %v4338 = vpop.f32.mrb[0].mxu0
        %v4339 = vadd.f32 %v4083, %v4338
        %v4340 = vpop.f32.mrb[0].mxu0
        %v4341 = vadd.f32 %v4087, %v4340
        %4342 = vmatprep.mubr.bf16.mxu0 0
        %4343 = vmatmul.mubr.bf16.gmra.mrb[0].mxu0 %v4043
        %v4344 = vpop.f32.mrb[0].mxu0
        %v4345 = vadd.f32 %v4083, %v4344
        %v4346 = vpop.f32.mrb[0].mxu0
        %v4347 = vadd.f32 %v4087, %v4346
        %v4348 = vpop.f32.mrb[0].mxu0
        %v4349 = vadd.f32 %v4083, %v4348
        %v4350 = vpop.f32.mrb[0].mxu0
        %v4351 = vadd.f32 %v4087, %v4350
        %4352 = vmatprep.mubr.bf16.mxu0 0
        %4353 = vmatmul.mubr.bf16.gmra.mrb[0].mxu0 %v4044
        %v4354 = vpop.f32.mrb[0].mxu0
        %v4355 = vadd.f32 %v4083, %v4354
        %v4356 = vpop.f32.mrb[0].mxu0
        %v4357 = vadd.f32 %v4087, %v4356
        %v4358 = vpop.f32.mrb[0].mxu0
        %v4359 = vadd.f32 %v4083, %v4358
        %v4360 = vpop.f32.mrb[0].mxu0
        %v4361 = vadd.f32 %v4087, %v4360
        %4362 = vmatprep.mubr.bf16.mxu0 0
        %4363 = vmatmul.mubr.bf16.gmra.mrb[0].mxu0 %v4045
        %v4364 = vpop.f32.mrb[0].mxu0
        %v4365 = vadd.f32 %v4083, %v4364
        %v4366 = vpop.f32.mrb[0].mxu0
        %v4367 = vadd.f32 %v4087, %v4366
        %v4368 = vpop.f32.mrb[0].mxu0
        %v4369 = vadd.f32 %v4083, %v4368
        %v4370 = vpop.f32.mrb[0].mxu0
        %v4371 = vadd.f32 %v4087, %v4370
        %4372 = vdwg.mxu0
        %4373 = vmatprep.subr.bf16.mxu0 %v4199
        %4374 = vmatpush1.bf16.msra.mxu0 %v4198
        %4375 = vmatprep.subr.bf16.mxu0 %v4203
        %4376 = vmatpush1.bf16.msra.mxu0 %v4202
        %4377 = vmatprep.subr.bf16.mxu0 %v4207
        %4378 = vmatpush1.bf16.msra.mxu0 %v4206
        %4379 = vmatprep.subr.bf16.mxu0 %v4211
        %4380 = vmatpush1.bf16.msra.mxu0 %v4210
        %4381 = vmatprep.subr.bf16.mxu0 %v4215
        %4382 = vmatpush1.bf16.msra.mxu0 %v4214
        %4383 = vmatprep.subr.bf16.mxu0 %v4219
        %4384 = vmatpush1.bf16.msra.mxu0 %v4218
        %4385 = vmatprep.subr.bf16.mxu0 %v4223
        %4386 = vmatpush1.bf16.msra.mxu0 %v4222
        %4387 = vmatprep.subr.bf16.mxu0 %v4227
        %4388 = vmatpush1.bf16.msra.mxu0 %v4226
        %4389 = vmatprep.subr.bf16.mxu0 0
        %4390 = vmatpush1.bf16.msra.mxu0 0
        %4391 = vmatprep.subr.bf16.mxu0 0
        %4392 = vmatpush1.bf16.msra.mxu0 0
        %4393 = vmatprep.subr.bf16.mxu0 0
        %4394 = vmatpush1.bf16.msra.mxu0 0
        %4395 = vmatprep.subr.bf16.mxu0 0
        %4396 = vmatpush1.bf16.msra.mxu0 0
        %4397 = vmatprep.subr.bf16.mxu0 0
        %4398 = vmatpush1.bf16.msra.mxu0 0
        %4399 = vmatprep.subr.bf16.mxu0 0
        %4400 = vmatpush1.bf16.msra.mxu0 0
        %4401 = vmatprep.subr.bf16.mxu0 0
        %4402 = vmatpush1.bf16.msra.mxu0 0
        %4403 = vmatprep.subr.bf16.mxu0 0
        %4404 = vmatpush1.bf16.msra.mxu0 0
        %4405 = vmatprep.mubr.bf16.mxu0 0
        %4406 = vmatmul.mubr.bf16.gmra.mrb[0].mxu0 %v4038
        %v4407 = vpop.f32.mrb[0].mxu0
        %v4408 = vadd.f32 %v4091, %v4407
        %v4409 = vpop.f32.mrb[0].mxu0
        %v4410 = vadd.f32 %v4095, %v4409
        %v4411 = vpop.f32.mrb[0].mxu0
        %v4412 = vadd.f32 %v4091, %v4411
        %v4413 = vpop.f32.mrb[0].mxu0
        %v4414 = vadd.f32 %v4095, %v4413
        %4415 = vmatprep.mubr.bf16.mxu0 0
        %4416 = vmatmul.mubr.bf16.gmra.mrb[0].mxu0 %v4039
        %v4417 = vpop.f32.mrb[0].mxu0
        %v4418 = vadd.f32 %v4091, %v4417
        %v4419 = vpop.f32.mrb[0].mxu0
        %v4420 = vadd.f32 %v4095, %v4419
        %v4421 = vpop.f32.mrb[0].mxu0
        %v4422 = vadd.f32 %v4091, %v4421
        %v4423 = vpop.f32.mrb[0].mxu0
        %v4424 = vadd.f32 %v4095, %v4423
        %4425 = vmatprep.mubr.bf16.mxu0 0
        %4426 = vmatmul.mubr.bf16.gmra.mrb[0].mxu0 %v4040
        %v4427 = vpop.f32.mrb[0].mxu0
        %v4428 = vadd.f32 %v4091, %v4427
        %v4429 = vpop.f32.mrb[0].mxu0
        %v4430 = vadd.f32 %v4095, %v4429
        %v4431 = vpop.f32.mrb[0].mxu0
        %v4432 = vadd.f32 %v4091, %v4431
        %v4433 = vpop.f32.mrb[0].mxu0
        %v4434 = vadd.f32 %v4095, %v4433
        %4435 = vmatprep.mubr.bf16.mxu0 0
        %4436 = vmatmul.mubr.bf16.gmra.mrb[0].mxu0 %v4041
        %v4437 = vpop.f32.mrb[0].mxu0
        %v4438 = vadd.f32 %v4091, %v4437
        %v4439 = vpop.f32.mrb[0].mxu0
        %v4440 = vadd.f32 %v4095, %v4439
        %v4441 = vpop.f32.mrb[0].mxu0
        %v4442 = vadd.f32 %v4091, %v4441
        %v4443 = vpop.f32.mrb[0].mxu0
        %v4444 = vadd.f32 %v4095, %v4443
        %4445 = vmatprep.mubr.bf16.mxu0 0
        %4446 = vmatmul.mubr.bf16.gmra.mrb[0].mxu0 %v4042
        %v4447 = vpop.f32.mrb[0].mxu0
        %v4448 = vadd.f32 %v4091, %v4447
        %v4449 = vpop.f32.mrb[0].mxu0
        %v4450 = vadd.f32 %v4095, %v4449
        %v4451 = vpop.f32.mrb[0].mxu0
        %v4452 = vadd.f32 %v4091, %v4451
        %v4453 = vpop.f32.mrb[0].mxu0
        %v4454 = vadd.f32 %v4095, %v4453
        %4455 = vmatprep.mubr.bf16.mxu0 0
        %4456 = vmatmul.mubr.bf16.gmra.mrb[0].mxu0 %v4043
        %v4457 = vpop.f32.mrb[0].mxu0
        %v4458 = vadd.f32 %v4091, %v4457
        %v4459 = vpop.f32.mrb[0].mxu0
        %v4460 = vadd.f32 %v4095, %v4459
        %v4461 = vpop.f32.mrb[0].mxu0
        %v4462 = vadd.f32 %v4091, %v4461
        %v4463 = vpop.f32.mrb[0].mxu0
        %v4464 = vadd.f32 %v4095, %v4463
        %4465 = vmatprep.mubr.bf16.mxu0 0
        %4466 = vmatmul.mubr.bf16.gmra.mrb[0].mxu0 %v4044
        %v4467 = vpop.f32.mrb[0].mxu0
        %v4468 = vadd.f32 %v4091, %v4467
        %v4469 = vpop.f32.mrb[0].mxu0
        %v4470 = vadd.f32 %v4095, %v4469
        %v4471 = vpop.f32.mrb[0].mxu0
        %v4472 = vadd.f32 %v4091, %v4471
        %v4473 = vpop.f32.mrb[0].mxu0
        %v4474 = vadd.f32 %v4095, %v4473
        %4475 = vmatprep.mubr.bf16.mxu0 0
        %4476 = vmatmul.mubr.bf16.gmra.mrb[0].mxu0 %v4045
        %v4477 = vpop.f32.mrb[0].mxu0
        %v4478 = vadd.f32 %v4091, %v4477
        %v4479 = vpop.f32.mrb[0].mxu0
        %v4480 = vadd.f32 %v4095, %v4479
        %v4481 = vpop.f32.mrb[0].mxu0
        %v4482 = vadd.f32 %v4091, %v4481
        %v4483 = vpop.f32.mrb[0].mxu0
        %v4484 = vadd.f32 %v4095, %v4483
        %4485 = vdwg.mxu0
        %v4486 = vmax.f32 %v4295, 0.0
        %v4487 = vmax.f32 %v4297, 0.0
        %v4488 = vmax.f32 %v4408, 0.0
        %v4489 = vmax.f32 %v4410, 0.0
        %v4490 = vmax.f32 %v4299, 0.0
        %v4491 = vmax.f32 %v4301, 0.0
        %v4492 = vmax.f32 %v4412, 0.0
        %v4493 = vmax.f32 %v4414, 0.0
        %v4494 = vmax.f32 %v4305, 0.0
        %v4495 = vmax.f32 %v4307, 0.0
        %v4496 = vmax.f32 %v4418, 0.0
        %v4497 = vmax.f32 %v4420, 0.0
        %v4498 = vmax.f32 %v4309, 0.0
        %v4499 = vmax.f32 %v4311, 0.0
        %v4500 = vmax.f32 %v4422, 0.0
        %v4501 = vmax.f32 %v4424, 0.0
        %v4502 = vmax.f32 %v4315, 0.0
        %v4503 = vmax.f32 %v4317, 0.0
        %v4504 = vmax.f32 %v4428, 0.0
        %v4505 = vmax.f32 %v4430, 0.0
        %v4506 = vmax.f32 %v4319, 0.0
        %v4507 = vmax.f32 %v4321, 0.0
        %v4508 = vmax.f32 %v4432, 0.0
        %v4509 = vmax.f32 %v4434, 0.0
        %v4510 = vmax.f32 %v4325, 0.0
        %v4511 = vmax.f32 %v4327, 0.0
        %v4512 = vmax.f32 %v4438, 0.0
        %v4513 = vmax.f32 %v4440, 0.0
        %v4514 = vmax.f32 %v4329, 0.0
        %v4515 = vmax.f32 %v4331, 0.0
        %v4516 = vmax.f32 %v4442, 0.0
        %v4517 = vmax.f32 %v4444, 0.0
        %v4518 = vmax.f32 %v4335, 0.0
        %v4519 = vmax.f32 %v4337, 0.0
        %v4520 = vmax.f32 %v4448, 0.0
        %v4521 = vmax.f32 %v4450, 0.0
        %v4522 = vmax.f32 %v4339, 0.0
        %v4523 = vmax.f32 %v4341, 0.0
        %v4524 = vmax.f32 %v4452, 0.0
        %v4525 = vmax.f32 %v4454, 0.0
        %v4526 = vmax.f32 %v4345, 0.0
        %v4527 = vmax.f32 %v4347, 0.0
        %v4528 = vmax.f32 %v4458, 0.0
        %v4529 = vmax.f32 %v4460, 0.0
        %v4530 = vmax.f32 %v4349, 0.0
        %v4531 = vmax.f32 %v4351, 0.0
        %v4532 = vmax.f32 %v4462, 0.0
        %v4533 = vmax.f32 %v4464, 0.0
        %v4534 = vmax.f32 %v4355, 0.0
        %v4535 = vmax.f32 %v4357, 0.0
        %v4536 = vmax.f32 %v4468, 0.0
        %v4537 = vmax.f32 %v4470, 0.0
        %v4538 = vmax.f32 %v4359, 0.0
        %v4539 = vmax.f32 %v4361, 0.0
        %v4540 = vmax.f32 %v4472, 0.0
        %v4541 = vmax.f32 %v4474, 0.0
        %v4542 = vmax.f32 %v4365, 0.0
        %v4543 = vmax.f32 %v4367, 0.0
        %v4544 = vmax.f32 %v4478, 0.0
        %v4545 = vmax.f32 %v4480, 0.0
        %v4546 = vmax.f32 %v4369, 0.0
        %v4547 = vmax.f32 %v4371, 0.0
        %v4548 = vmax.f32 %v4482, 0.0
        %v4549 = vmax.f32 %v4484, 0.0
        %v4550 = vpack.c.bf16 %v4490, %v4486
        %v4551 = vpack.c.bf16 %v4491, %v4487
        %v4552 = vpack.c.bf16 %v4492, %v4488
        %v4553 = vpack.c.bf16 %v4493, %v4489
        %v4554 = vpack.c.bf16 %v4498, %v4494
        %v4555 = vpack.c.bf16 %v4499, %v4495
        %v4556 = vpack.c.bf16 %v4500, %v4496
        %v4557 = vpack.c.bf16 %v4501, %v4497
        %v4558 = vpack.c.bf16 %v4506, %v4502
        %v4559 = vpack.c.bf16 %v4507, %v4503
        %v4560 = vpack.c.bf16 %v4508, %v4504
        %v4561 = vpack.c.bf16 %v4509, %v4505
        %v4562 = vpack.c.bf16 %v4514, %v4510
        %v4563 = vpack.c.bf16 %v4515, %v4511
        %v4564 = vpack.c.bf16 %v4516, %v4512
        %v4565 = vpack.c.bf16 %v4517, %v4513
        %v4566 = vpack.c.bf16 %v4522, %v4518
        %v4567 = vpack.c.bf16 %v4523, %v4519
        %v4568 = vpack.c.bf16 %v4524, %v4520
        %v4569 = vpack.c.bf16 %v4525, %v4521
        %v4570 = vpack.c.bf16 %v4530, %v4526
        %v4571 = vpack.c.bf16 %v4531, %v4527
        %v4572 = vpack.c.bf16 %v4532, %v4528
        %v4573 = vpack.c.bf16 %v4533, %v4529
        %v4574 = vpack.c.bf16 %v4538, %v4534
        %v4575 = vpack.c.bf16 %v4539, %v4535
        %v4576 = vpack.c.bf16 %v4540, %v4536
        %v4577 = vpack.c.bf16 %v4541, %v4537
        %v4578 = vpack.c.bf16 %v4546, %v4542
        %v4579 = vpack.c.bf16 %v4547, %v4543
        %v4580 = vpack.c.bf16 %v4548, %v4544
        %v4581 = vpack.c.bf16 %v4549, %v4545
        %v4582 = vld [vmem:[#allocation16] sm:$0xff]
        %v4583 = vld [vmem:[#allocation16 + $0x8] sm:$0xff]
        %v4584 = vld [vmem:[#allocation16 + $0x10] sm:$0xff]
        %v4585 = vld [vmem:[#allocation16 + $0x18] sm:$0xf]
        %v4586 = vld [vmem:[#allocation16 + $0x1c] sm:$0xff]
        %v4587 = vld [vmem:[#allocation16 + $0x24] sm:$0xff]
        %v4588 = vld [vmem:[#allocation16 + $0x2c] sm:$0xff]
        %v4589 = vld [vmem:[#allocation16 + $0x34] sm:$0xf]
        %v4590 = vld [vmem:[#allocation16 + $0x38] sm:$0xff]
        %v4591 = vld [vmem:[#allocation16 + $0x40] sm:$0xff]
        %v4592 = vld [vmem:[#allocation16 + $0x48] sm:$0xff]
        %v4593 = vld [vmem:[#allocation16 + $0x50] sm:$0xf]
        %v4594 = vld [vmem:[#allocation16 + $0x54] sm:$0xff]
        %v4595 = vld [vmem:[#allocation16 + $0x5c] sm:$0xff]
        %v4596 = vld [vmem:[#allocation16 + $0x64] sm:$0xff]
        %v4597 = vld [vmem:[#allocation16 + $0x6c] sm:$0xf]
        %v4598 = vld [vmem:[#allocation16 + $0x70] sm:$0xff]
        %v4599 = vld [vmem:[#allocation16 + $0x78] sm:$0xff]
        %v4600 = vld [vmem:[#allocation16 + $0x80] sm:$0xff]
        %v4601 = vld [vmem:[#allocation16 + $0x88] sm:$0xf]
        %v4602 = vld [vmem:[#allocation16 + $0x8c] sm:$0xff]
        %v4603 = vld [vmem:[#allocation16 + $0x94] sm:$0xff]
        %v4604 = vld [vmem:[#allocation16 + $0x9c] sm:$0xff]
        %v4605 = vld [vmem:[#allocation16 + $0xa4] sm:$0xf]
        %v4606 = vld [vmem:[#allocation16 + $0xa8] sm:$0xff]
        %v4607 = vld [vmem:[#allocation16 + $0xb0] sm:$0xff]
        %v4608 = vld [vmem:[#allocation16 + $0xb8] sm:$0xff]
        %v4609 = vld [vmem:[#allocation16 + $0xc0] sm:$0xf]
        %v4610 = vld [vmem:[#allocation16 + $0xc4] sm:$0xff]
        %v4611 = vld [vmem:[#allocation16 + $0xcc] sm:$0xff]
        %v4612 = vld [vmem:[#allocation16 + $0xd4] sm:$0xff]
        %v4613 = vld [vmem:[#allocation16 + $0xdc] sm:$0xf]
        %v4614 = vld [vmem:[#allocation16 + $0xe0] sm:$0xff]
        %v4615 = vld [vmem:[#allocation16 + $0xe8] sm:$0xff]
        %v4616 = vld [vmem:[#allocation16 + $0xf0] sm:$0xff]
        %v4617 = vld [vmem:[#allocation16 + $0xf8] sm:$0xf]
        %v4618 = vld [vmem:[#allocation16 + $0xfc] sm:$0xff]
        %v4619 = vld [vmem:[#allocation16 + $0x104] sm:$0xff]
        %v4620 = vld [vmem:[#allocation16 + $0x10c] sm:$0xff]
        %v4621 = vld [vmem:[#allocation16 + $0x114] sm:$0xf]
        %v4622 = vld [vmem:[#allocation16 + $0x118] sm:$0xff]
        %v4623 = vld [vmem:[#allocation16 + $0x120] sm:$0xff]
        %v4624 = vld [vmem:[#allocation16 + $0x128] sm:$0xff]
        %v4625 = vld [vmem:[#allocation16 + $0x130] sm:$0xf]
        %v4626 = vld [vmem:[#allocation16 + $0x134] sm:$0xff]
        %v4627 = vld [vmem:[#allocation16 + $0x13c] sm:$0xff]
        %v4628 = vld [vmem:[#allocation16 + $0x144] sm:$0xff]
        %v4629 = vld [vmem:[#allocation16 + $0x14c] sm:$0xf]
        %v4630 = vld [vmem:[#allocation16 + $0x150] sm:$0xff]
        %v4631 = vld [vmem:[#allocation16 + $0x158] sm:$0xff]
        %v4632 = vld [vmem:[#allocation16 + $0x160] sm:$0xff]
        %v4633 = vld [vmem:[#allocation16 + $0x168] sm:$0xf]
        %v4634 = vld [vmem:[#allocation16 + $0x16c] sm:$0xff]
        %v4635 = vld [vmem:[#allocation16 + $0x174] sm:$0xff]
        %v4636 = vld [vmem:[#allocation16 + $0x17c] sm:$0xff]
        %v4637 = vld [vmem:[#allocation16 + $0x184] sm:$0xf]
        %v4638 = vld [vmem:[#allocation16 + $0x188] sm:$0xff]
        %v4639 = vld [vmem:[#allocation16 + $0x190] sm:$0xff]
        %v4640 = vld [vmem:[#allocation16 + $0x198] sm:$0xff]
        %v4641 = vld [vmem:[#allocation16 + $0x1a0] sm:$0xf]
        %v4642 = vld [vmem:[#allocation16 + $0x1a4] sm:$0xff]
        %v4643 = vld [vmem:[#allocation16 + $0x1ac] sm:$0xff]
        %v4644 = vld [vmem:[#allocation16 + $0x1b4] sm:$0xff]
        %v4645 = vld [vmem:[#allocation16 + $0x1bc] sm:$0xf]
        %v4646 = vld [vmem:[#allocation16 + $0x1c0] sm:$0xff]
        %v4647 = vld [vmem:[#allocation16 + $0x1c8] sm:$0xff]
        %v4648 = vld [vmem:[#allocation16 + $0x1d0] sm:$0xff]
        %v4649 = vld [vmem:[#allocation16 + $0x1d8] sm:$0xf]
        %v4650 = vld [vmem:[#allocation16 + $0x1dc] sm:$0xff]
        %v4651 = vld [vmem:[#allocation16 + $0x1e4] sm:$0xff]
        %v4652 = vld [vmem:[#allocation16 + $0x1ec] sm:$0xff]
        %v4653 = vld [vmem:[#allocation16 + $0x1f4] sm:$0xf]
        %v4654 = vld [vmem:[#allocation16 + $0x1f8] sm:$0xff]
        %v4655 = vld [vmem:[#allocation16 + $0x200] sm:$0xff]
        %v4656 = vld [vmem:[#allocation16 + $0x208] sm:$0xff]
        %v4657 = vld [vmem:[#allocation16 + $0x210] sm:$0xf]
        %v4658 = vld [vmem:[#allocation16 + $0x214] sm:$0xff]
        %v4659 = vld [vmem:[#allocation16 + $0x21c] sm:$0xff]
        %v4660 = vld [vmem:[#allocation16 + $0x224] sm:$0xff]
        %v4661 = vld [vmem:[#allocation16 + $0x22c] sm:$0xf]
        %v4662 = vld [vmem:[#allocation16 + $0x230] sm:$0xff]
        %v4663 = vld [vmem:[#allocation16 + $0x238] sm:$0xff]
        %v4664 = vld [vmem:[#allocation16 + $0x240] sm:$0xff]
        %v4665 = vld [vmem:[#allocation16 + $0x248] sm:$0xf]
        %v4666 = vld [vmem:[#allocation16 + $0x24c] sm:$0xff]
        %v4667 = vld [vmem:[#allocation16 + $0x254] sm:$0xff]
        %v4668 = vld [vmem:[#allocation16 + $0x25c] sm:$0xff]
        %v4669 = vld [vmem:[#allocation16 + $0x264] sm:$0xf]
        %v4670 = vld [vmem:[#allocation16 + $0x268] sm:$0xff]
        %v4671 = vld [vmem:[#allocation16 + $0x270] sm:$0xff]
        %v4672 = vld [vmem:[#allocation16 + $0x278] sm:$0xff]
        %v4673 = vld [vmem:[#allocation16 + $0x280] sm:$0xf]
        %v4674 = vld [vmem:[#allocation16 + $0x284] sm:$0xff]
        %v4675 = vld [vmem:[#allocation16 + $0x28c] sm:$0xff]
        %v4676 = vld [vmem:[#allocation16 + $0x294] sm:$0xff]
        %v4677 = vld [vmem:[#allocation16 + $0x29c] sm:$0xf]
        %v4678 = vld [vmem:[#allocation16 + $0x2a0] sm:$0xff]
        %v4679 = vld [vmem:[#allocation16 + $0x2a8] sm:$0xff]
        %v4680 = vld [vmem:[#allocation16 + $0x2b0] sm:$0xff]
        %v4681 = vld [vmem:[#allocation16 + $0x2b8] sm:$0xf]
        %v4682 = vld [vmem:[#allocation16 + $0x2bc] sm:$0xff]
        %v4683 = vld [vmem:[#allocation16 + $0x2c4] sm:$0xff]
        %v4684 = vld [vmem:[#allocation16 + $0x2cc] sm:$0xff]
        %v4685 = vld [vmem:[#allocation16 + $0x2d4] sm:$0xf]
        %v4686 = vld [vmem:[#allocation16 + $0x2d8] sm:$0xff]
        %v4687 = vld [vmem:[#allocation16 + $0x2e0] sm:$0xff]
        %v4688 = vld [vmem:[#allocation16 + $0x2e8] sm:$0xff]
        %v4689 = vld [vmem:[#allocation16 + $0x2f0] sm:$0xf]
        %v4690 = vld [vmem:[#allocation16 + $0x2f4] sm:$0xff]
        %v4691 = vld [vmem:[#allocation16 + $0x2fc] sm:$0xff]
        %v4692 = vld [vmem:[#allocation16 + $0x304] sm:$0xff]
        %v4693 = vld [vmem:[#allocation16 + $0x30c] sm:$0xf]
        %v4694 = vld [vmem:[#allocation16 + $0x310] sm:$0xff]
        %v4695 = vld [vmem:[#allocation16 + $0x318] sm:$0xff]
        %v4696 = vld [vmem:[#allocation16 + $0x320] sm:$0xff]
        %v4697 = vld [vmem:[#allocation16 + $0x328] sm:$0xf]
        %v4698 = vld [vmem:[#allocation16 + $0x32c] sm:$0xff]
        %v4699 = vld [vmem:[#allocation16 + $0x334] sm:$0xff]
        %v4700 = vld [vmem:[#allocation16 + $0x33c] sm:$0xff]
        %v4701 = vld [vmem:[#allocation16 + $0x344] sm:$0xf]
        %v4702 = vld [vmem:[#allocation16 + $0x348] sm:$0xff]
        %v4703 = vld [vmem:[#allocation16 + $0x350] sm:$0xff]
        %v4704 = vld [vmem:[#allocation16 + $0x358] sm:$0xff]
        %v4705 = vld [vmem:[#allocation16 + $0x360] sm:$0xf]
        %v4706 = vld [vmem:[#allocation16 + $0x364] sm:$0xff]
        %v4707 = vld [vmem:[#allocation16 + $0x36c] sm:$0xff]
        %v4708 = vld [vmem:[#allocation16 + $0x374] sm:$0xff]
        %v4709 = vld [vmem:[#allocation16 + $0x37c] sm:$0xf]
        %v4710 = vld [vmem:[#allocation16 + $0x380] sm:$0xff]
        %v4711 = vld [vmem:[#allocation16 + $0x388] sm:$0xff]
        %v4712 = vld [vmem:[#allocation16 + $0x390] sm:$0xff]
        %v4713 = vld [vmem:[#allocation16 + $0x398] sm:$0xf]
        %v4714 = vld [vmem:[#allocation16 + $0x39c] sm:$0xff]
        %v4715 = vld [vmem:[#allocation16 + $0x3a4] sm:$0xff]
        %v4716 = vld [vmem:[#allocation16 + $0x3ac] sm:$0xff]
        %v4717 = vld [vmem:[#allocation16 + $0x3b4] sm:$0xf]
        %v4718 = vld [vmem:[#allocation16 + $0x3b8] sm:$0xff]
        %v4719 = vld [vmem:[#allocation16 + $0x3c0] sm:$0xff]
        %v4720 = vld [vmem:[#allocation16 + $0x3c8] sm:$0xff]
        %v4721 = vld [vmem:[#allocation16 + $0x3d0] sm:$0xf]
        %v4722 = vld [vmem:[#allocation16 + $0x3d4] sm:$0xff]
        %v4723 = vld [vmem:[#allocation16 + $0x3dc] sm:$0xff]
        %v4724 = vld [vmem:[#allocation16 + $0x3e4] sm:$0xff]
        %v4725 = vld [vmem:[#allocation16 + $0x3ec] sm:$0xf]
        %v4726 = vld [vmem:[#allocation16 + $0x3f0] sm:$0xff]
        %v4727 = vld [vmem:[#allocation16 + $0x3f8] sm:$0xff]
        %v4728 = vld [vmem:[#allocation16 + $0x400] sm:$0xff]
        %v4729 = vld [vmem:[#allocation16 + $0x408] sm:$0xf]
        %v4730 = vld [vmem:[#allocation16 + $0x40c] sm:$0xff]
        %v4731 = vld [vmem:[#allocation16 + $0x414] sm:$0xff]
        %v4732 = vld [vmem:[#allocation16 + $0x41c] sm:$0xff]
        %v4733 = vld [vmem:[#allocation16 + $0x424] sm:$0xf]
        %v4734 = vld [vmem:[#allocation16 + $0x428] sm:$0xff]
        %v4735 = vld [vmem:[#allocation16 + $0x430] sm:$0xff]
        %v4736 = vld [vmem:[#allocation16 + $0x438] sm:$0xff]
        %v4737 = vld [vmem:[#allocation16 + $0x440] sm:$0xf]
        %v4738 = vld [vmem:[#allocation16 + $0x444] sm:$0xff]
        %v4739 = vld [vmem:[#allocation16 + $0x44c] sm:$0xff]
        %v4740 = vld [vmem:[#allocation16 + $0x454] sm:$0xff]
        %v4741 = vld [vmem:[#allocation16 + $0x45c] sm:$0xf]
        %v4742 = vld [vmem:[#allocation16 + $0x460] sm:$0xff]
        %v4743 = vld [vmem:[#allocation16 + $0x468] sm:$0xff]
        %v4744 = vld [vmem:[#allocation16 + $0x470] sm:$0xff]
        %v4745 = vld [vmem:[#allocation16 + $0x478] sm:$0xf]
        %v4746 = vld [vmem:[#allocation16 + $0x47c] sm:$0xff]
        %v4747 = vld [vmem:[#allocation16 + $0x484] sm:$0xff]
        %v4748 = vld [vmem:[#allocation16 + $0x48c] sm:$0xff]
        %v4749 = vld [vmem:[#allocation16 + $0x494] sm:$0xf]
        %v4750 = vld [vmem:[#allocation16 + $0x498] sm:$0xff]
        %v4751 = vld [vmem:[#allocation16 + $0x4a0] sm:$0xff]
        %v4752 = vld [vmem:[#allocation16 + $0x4a8] sm:$0xff]
        %v4753 = vld [vmem:[#allocation16 + $0x4b0] sm:$0xf]
        %v4754 = vld [vmem:[#allocation16 + $0x4b4] sm:$0xff]
        %v4755 = vld [vmem:[#allocation16 + $0x4bc] sm:$0xff]
        %v4756 = vld [vmem:[#allocation16 + $0x4c4] sm:$0xff]
        %v4757 = vld [vmem:[#allocation16 + $0x4cc] sm:$0xf]
        %v4758 = vld [vmem:[#allocation16 + $0x4d0] sm:$0xff]
        %v4759 = vld [vmem:[#allocation16 + $0x4d8] sm:$0xff]
        %v4760 = vld [vmem:[#allocation16 + $0x4e0] sm:$0xff]
        %v4761 = vld [vmem:[#allocation16 + $0x4e8] sm:$0xf]
        %v4762 = vld [vmem:[#allocation16 + $0x4ec] sm:$0xff]
        %v4763 = vld [vmem:[#allocation16 + $0x4f4] sm:$0xff]
        %v4764 = vld [vmem:[#allocation16 + $0x4fc] sm:$0xff]
        %v4765 = vld [vmem:[#allocation16 + $0x504] sm:$0xf]
        %v4766 = vld [vmem:[#allocation16 + $0x508] sm:$0xff]
        %v4767 = vld [vmem:[#allocation16 + $0x510] sm:$0xff]
        %v4768 = vld [vmem:[#allocation16 + $0x518] sm:$0xff]
        %v4769 = vld [vmem:[#allocation16 + $0x520] sm:$0xf]
        %v4770 = vld [vmem:[#allocation16 + $0x524] sm:$0xff]
        %v4771 = vld [vmem:[#allocation16 + $0x52c] sm:$0xff]
        %v4772 = vld [vmem:[#allocation16 + $0x534] sm:$0xff]
        %v4773 = vld [vmem:[#allocation16 + $0x53c] sm:$0xf]
        %v4774 = vld [vmem:[#allocation16 + $0x540] sm:$0xff]
        %v4775 = vld [vmem:[#allocation16 + $0x548] sm:$0xff]
        %v4776 = vld [vmem:[#allocation16 + $0x550] sm:$0xff]
        %v4777 = vld [vmem:[#allocation16 + $0x558] sm:$0xf]
        %v4778 = vld [vmem:[#allocation16 + $0x55c] sm:$0xff]
        %v4779 = vld [vmem:[#allocation16 + $0x564] sm:$0xff]
        %v4780 = vld [vmem:[#allocation16 + $0x56c] sm:$0xff]
        %v4781 = vld [vmem:[#allocation16 + $0x574] sm:$0xf]
        %v4782 = vld [vmem:[#allocation16 + $0x578] sm:$0xff]
        %v4783 = vld [vmem:[#allocation16 + $0x580] sm:$0xff]
        %v4784 = vld [vmem:[#allocation16 + $0x588] sm:$0xff]
        %v4785 = vld [vmem:[#allocation16 + $0x590] sm:$0xf]
        %v4786 = vld [vmem:[#allocation16 + $0x594] sm:$0xff]
        %v4787 = vld [vmem:[#allocation16 + $0x59c] sm:$0xff]
        %v4788 = vld [vmem:[#allocation16 + $0x5a4] sm:$0xff]
        %v4789 = vld [vmem:[#allocation16 + $0x5ac] sm:$0xf]
        %v4790 = vld [vmem:[#allocation16 + $0x5b0] sm:$0xff]
        %v4791 = vld [vmem:[#allocation16 + $0x5b8] sm:$0xff]
        %v4792 = vld [vmem:[#allocation16 + $0x5c0] sm:$0xff]
        %v4793 = vld [vmem:[#allocation16 + $0x5c8] sm:$0xf]
        %v4794 = vld [vmem:[#allocation16 + $0x5cc] sm:$0xff]
        %v4795 = vld [vmem:[#allocation16 + $0x5d4] sm:$0xff]
        %v4796 = vld [vmem:[#allocation16 + $0x5dc] sm:$0xff]
        %v4797 = vld [vmem:[#allocation16 + $0x5e4] sm:$0xf]
        %v4798 = vld [vmem:[#allocation16 + $0x5e8] sm:$0xff]
        %v4799 = vld [vmem:[#allocation16 + $0x5f0] sm:$0xff]
        %v4800 = vld [vmem:[#allocation16 + $0x5f8] sm:$0xff]
        %v4801 = vld [vmem:[#allocation16 + $0x600] sm:$0xf]
        %v4802 = vld [vmem:[#allocation16 + $0x604] sm:$0xff]
        %v4803 = vld [vmem:[#allocation16 + $0x60c] sm:$0xff]
        %v4804 = vld [vmem:[#allocation16 + $0x614] sm:$0xff]
        %v4805 = vld [vmem:[#allocation16 + $0x61c] sm:$0xf]
        %v4806 = vld [vmem:[#allocation16 + $0x620] sm:$0xff]
        %v4807 = vld [vmem:[#allocation16 + $0x628] sm:$0xff]
        %v4808 = vld [vmem:[#allocation16 + $0x630] sm:$0xff]
        %v4809 = vld [vmem:[#allocation16 + $0x638] sm:$0xf]
        %v4810 = vld [vmem:[#allocation16 + $0x63c] sm:$0xff]
        %v4811 = vld [vmem:[#allocation16 + $0x644] sm:$0xff]
        %v4812 = vld [vmem:[#allocation16 + $0x64c] sm:$0xff]
        %v4813 = vld [vmem:[#allocation16 + $0x654] sm:$0xf]
        %v4814 = vld [vmem:[#allocation16 + $0x658] sm:$0xff]
        %v4815 = vld [vmem:[#allocation16 + $0x660] sm:$0xff]
        %v4816 = vld [vmem:[#allocation16 + $0x668] sm:$0xff]
        %v4817 = vld [vmem:[#allocation16 + $0x670] sm:$0xf]
        %v4818 = vld [vmem:[#allocation16 + $0x674] sm:$0xff]
        %v4819 = vld [vmem:[#allocation16 + $0x67c] sm:$0xff]
        %v4820 = vld [vmem:[#allocation16 + $0x684] sm:$0xff]
        %v4821 = vld [vmem:[#allocation16 + $0x68c] sm:$0xf]
        %v4822 = vld [vmem:[#allocation16 + $0x690] sm:$0xff]
        %v4823 = vld [vmem:[#allocation16 + $0x698] sm:$0xff]
        %v4824 = vld [vmem:[#allocation16 + $0x6a0] sm:$0xff]
        %v4825 = vld [vmem:[#allocation16 + $0x6a8] sm:$0xf]
        %v4826 = vld [vmem:[#allocation16 + $0x6ac] sm:$0xff]
        %v4827 = vld [vmem:[#allocation16 + $0x6b4] sm:$0xff]
        %v4828 = vld [vmem:[#allocation16 + $0x6bc] sm:$0xff]
        %v4829 = vld [vmem:[#allocation16 + $0x6c4] sm:$0xf]
        %v4830 = vld [vmem:[#allocation16 + $0x6c8] sm:$0xff]
        %v4831 = vld [vmem:[#allocation16 + $0x6d0] sm:$0xff]
        %v4832 = vld [vmem:[#allocation16 + $0x6d8] sm:$0xff]
        %v4833 = vld [vmem:[#allocation16 + $0x6e0] sm:$0xf]
        %v4834 = vld [vmem:[#allocation16 + $0x6e4] sm:$0xff]
        %v4835 = vld [vmem:[#allocation16 + $0x6ec] sm:$0xff]
        %v4836 = vld [vmem:[#allocation16 + $0x6f4] sm:$0xff]
        %v4837 = vld [vmem:[#allocation16 + $0x6fc] sm:$0xf]
        %v4838 = vld [vmem:[#allocation17] sm:$0xff]
        %v4840 = vlaneseq
        %v4841 = vshrl.u32 %v4840, 7
        %v4842 = vsub.s32 0, %v4841
        %v4843 = vrot.slane %v4838, %v4842
        %v4844 = vlaneseq
        %v4845 = vshrl.u32 %v4844, 7
        %v4846 = vsub.s32 1, %v4845
        %v4847 = vrot.slane %v4838, %v4846
        %v4848 = vlaneseq
        %v4849 = vshrl.u32 %v4848, 7
        %v4850 = vsub.s32 2, %v4849
        %v4851 = vrot.slane %v4838, %v4850
        %v4852 = vlaneseq
        %v4853 = vshrl.u32 %v4852, 7
        %v4854 = vsub.s32 3, %v4853
        %v4855 = vrot.slane %v4838, %v4854
        %v4856 = vlaneseq
        %v4857 = vshrl.u32 %v4856, 7
        %v4858 = vsub.s32 4, %v4857
        %v4859 = vrot.slane %v4838, %v4858
        %v4860 = vlaneseq
        %v4861 = vshrl.u32 %v4860, 7
        %v4862 = vsub.s32 5, %v4861
        %v4863 = vrot.slane %v4838, %v4862
        %v4864 = vlaneseq
        %v4865 = vshrl.u32 %v4864, 7
        %v4866 = vsub.s32 6, %v4865
        %v4867 = vrot.slane %v4838, %v4866
        %v5131 = vunpack.c.l.b16 %v4582
        %v5132 = vunpack.c.h.b16 %v4582
        %v5133 = vunpack.c.l.b16 %v4583
        %v5134 = vunpack.c.h.b16 %v4583
        %v5135 = vunpack.c.l.b16 %v4584
        %v5136 = vunpack.c.h.b16 %v4584
        %v5137 = vunpack.c.l.b16 %v4585
        %v5138 = vunpack.c.l.b16 %v4586
        %v5139 = vunpack.c.h.b16 %v4586
        %v5140 = vunpack.c.l.b16 %v4587
        %v5141 = vunpack.c.h.b16 %v4587
        %v5142 = vunpack.c.l.b16 %v4588
        %v5143 = vunpack.c.h.b16 %v4588
        %v5144 = vunpack.c.l.b16 %v4589
        %v5145 = vunpack.c.l.b16 %v4590
        %v5146 = vunpack.c.h.b16 %v4590
        %v5147 = vunpack.c.l.b16 %v4591
        %v5148 = vunpack.c.h.b16 %v4591
        %v5149 = vunpack.c.l.b16 %v4592
        %v5150 = vunpack.c.h.b16 %v4592
        %v5151 = vunpack.c.l.b16 %v4593
        %v5152 = vunpack.c.l.b16 %v4594
        %v5153 = vunpack.c.h.b16 %v4594
        %v5154 = vunpack.c.l.b16 %v4595
        %v5155 = vunpack.c.h.b16 %v4595
        %v5156 = vunpack.c.l.b16 %v4596
        %v5157 = vunpack.c.h.b16 %v4596
        %v5158 = vunpack.c.l.b16 %v4597
        %v5159 = vunpack.c.l.b16 %v4598
        %v5160 = vunpack.c.h.b16 %v4598
        %v5161 = vunpack.c.l.b16 %v4599
        %v5162 = vunpack.c.h.b16 %v4599
        %v5163 = vunpack.c.l.b16 %v4600
        %v5164 = vunpack.c.h.b16 %v4600
        %v5165 = vunpack.c.l.b16 %v4601
        %v5166 = vunpack.c.l.b16 %v4602
        %v5167 = vunpack.c.h.b16 %v4602
        %v5168 = vunpack.c.l.b16 %v4603
        %v5169 = vunpack.c.h.b16 %v4603
        %v5170 = vunpack.c.l.b16 %v4604
        %v5171 = vunpack.c.h.b16 %v4604
        %v5172 = vunpack.c.l.b16 %v4605
        %v5173 = vunpack.c.l.b16 %v4606
        %v5174 = vunpack.c.h.b16 %v4606
        %v5175 = vunpack.c.l.b16 %v4607
        %v5176 = vunpack.c.h.b16 %v4607
        %v5177 = vunpack.c.l.b16 %v4608
        %v5178 = vunpack.c.h.b16 %v4608
        %v5179 = vunpack.c.l.b16 %v4609
        %v5180 = vunpack.c.l.b16 %v4610
        %v5181 = vunpack.c.h.b16 %v4610
        %v5182 = vunpack.c.l.b16 %v4611
        %v5183 = vunpack.c.h.b16 %v4611
        %v5184 = vunpack.c.l.b16 %v4612
        %v5185 = vunpack.c.h.b16 %v4612
        %v5186 = vunpack.c.l.b16 %v4613
        %v5187 = vunpack.c.l.b16 %v4614
        %v5188 = vunpack.c.h.b16 %v4614
        %v5189 = vunpack.c.l.b16 %v4615
        %v5190 = vunpack.c.h.b16 %v4615
        %v5191 = vunpack.c.l.b16 %v4616
        %v5192 = vunpack.c.h.b16 %v4616
        %v5193 = vunpack.c.l.b16 %v4617
        %v5194 = vunpack.c.l.b16 %v4618
        %v5195 = vunpack.c.h.b16 %v4618
        %v5196 = vunpack.c.l.b16 %v4619
        %v5197 = vunpack.c.h.b16 %v4619
        %v5198 = vunpack.c.l.b16 %v4620
        %v5199 = vunpack.c.h.b16 %v4620
        %v5200 = vunpack.c.l.b16 %v4621
        %v5201 = vunpack.c.l.b16 %v4622
        %v5202 = vunpack.c.h.b16 %v4622
        %v5203 = vunpack.c.l.b16 %v4623
        %v5204 = vunpack.c.h.b16 %v4623
        %v5205 = vunpack.c.l.b16 %v4624
        %v5206 = vunpack.c.h.b16 %v4624
        %v5207 = vunpack.c.l.b16 %v4625
        %v5208 = vunpack.c.l.b16 %v4626
        %v5209 = vunpack.c.h.b16 %v4626
        %v5210 = vunpack.c.l.b16 %v4627
        %v5211 = vunpack.c.h.b16 %v4627
        %v5212 = vunpack.c.l.b16 %v4628
        %v5213 = vunpack.c.h.b16 %v4628
        %v5214 = vunpack.c.l.b16 %v4629
        %v5215 = vunpack.c.l.b16 %v4630
        %v5216 = vunpack.c.h.b16 %v4630
        %v5217 = vunpack.c.l.b16 %v4631
        %v5218 = vunpack.c.h.b16 %v4631
        %v5219 = vunpack.c.l.b16 %v4632
        %v5220 = vunpack.c.h.b16 %v4632
        %v5221 = vunpack.c.l.b16 %v4633
        %v5222 = vunpack.c.l.b16 %v4634
        %v5223 = vunpack.c.h.b16 %v4634
        %v5224 = vunpack.c.l.b16 %v4635
        %v5225 = vunpack.c.h.b16 %v4635
        %v5226 = vunpack.c.l.b16 %v4636
        %v5227 = vunpack.c.h.b16 %v4636
        %v5228 = vunpack.c.l.b16 %v4637
        %v5229 = vunpack.c.l.b16 %v4638
        %v5230 = vunpack.c.h.b16 %v4638
        %v5231 = vunpack.c.l.b16 %v4639
        %v5232 = vunpack.c.h.b16 %v4639
        %v5233 = vunpack.c.l.b16 %v4640
        %v5234 = vunpack.c.h.b16 %v4640
        %v5235 = vunpack.c.l.b16 %v4641
        %v5236 = vunpack.c.l.b16 %v4642
        %v5237 = vunpack.c.h.b16 %v4642
        %v5238 = vunpack.c.l.b16 %v4643
        %v5239 = vunpack.c.h.b16 %v4643
        %v5240 = vunpack.c.l.b16 %v4644
        %v5241 = vunpack.c.h.b16 %v4644
        %v5242 = vunpack.c.l.b16 %v4645
        %v5243 = vunpack.c.l.b16 %v4646
        %v5244 = vunpack.c.h.b16 %v4646
        %v5245 = vunpack.c.l.b16 %v4647
        %v5246 = vunpack.c.h.b16 %v4647
        %v5247 = vunpack.c.l.b16 %v4648
        %v5248 = vunpack.c.h.b16 %v4648
        %v5249 = vunpack.c.l.b16 %v4649
        %v5250 = vunpack.c.l.b16 %v4650
        %v5251 = vunpack.c.h.b16 %v4650
        %v5252 = vunpack.c.l.b16 %v4651
        %v5253 = vunpack.c.h.b16 %v4651
        %v5254 = vunpack.c.l.b16 %v4652
        %v5255 = vunpack.c.h.b16 %v4652
        %v5256 = vunpack.c.l.b16 %v4653
        %v5257 = vunpack.c.l.b16 %v4654
        %v5258 = vunpack.c.h.b16 %v4654
        %v5259 = vunpack.c.l.b16 %v4655
        %v5260 = vunpack.c.h.b16 %v4655
        %v5261 = vunpack.c.l.b16 %v4656
        %v5262 = vunpack.c.h.b16 %v4656
        %v5263 = vunpack.c.l.b16 %v4657
        %v5264 = vunpack.c.l.b16 %v4658
        %v5265 = vunpack.c.h.b16 %v4658
        %v5266 = vunpack.c.l.b16 %v4659
        %v5267 = vunpack.c.h.b16 %v4659
        %v5268 = vunpack.c.l.b16 %v4660
        %v5269 = vunpack.c.h.b16 %v4660
        %v5270 = vunpack.c.l.b16 %v4661
        %v5271 = vunpack.c.l.b16 %v4662
        %v5272 = vunpack.c.h.b16 %v4662
        %v5273 = vunpack.c.l.b16 %v4663
        %v5274 = vunpack.c.h.b16 %v4663
        %v5275 = vunpack.c.l.b16 %v4664
        %v5276 = vunpack.c.h.b16 %v4664
        %v5277 = vunpack.c.l.b16 %v4665
        %v5278 = vunpack.c.l.b16 %v4666
        %v5279 = vunpack.c.h.b16 %v4666
        %v5280 = vunpack.c.l.b16 %v4667
        %v5281 = vunpack.c.h.b16 %v4667
        %v5282 = vunpack.c.l.b16 %v4668
        %v5283 = vunpack.c.h.b16 %v4668
        %v5284 = vunpack.c.l.b16 %v4669
        %v5285 = vunpack.c.l.b16 %v4670
        %v5286 = vunpack.c.h.b16 %v4670
        %v5287 = vunpack.c.l.b16 %v4671
        %v5288 = vunpack.c.h.b16 %v4671
        %v5289 = vunpack.c.l.b16 %v4672
        %v5290 = vunpack.c.h.b16 %v4672
        %v5291 = vunpack.c.l.b16 %v4673
        %v5292 = vunpack.c.l.b16 %v4674
        %v5293 = vunpack.c.h.b16 %v4674
        %v5294 = vunpack.c.l.b16 %v4675
        %v5295 = vunpack.c.h.b16 %v4675
        %v5296 = vunpack.c.l.b16 %v4676
        %v5297 = vunpack.c.h.b16 %v4676
        %v5298 = vunpack.c.l.b16 %v4677
        %v5299 = vunpack.c.l.b16 %v4678
        %v5300 = vunpack.c.h.b16 %v4678
        %v5301 = vunpack.c.l.b16 %v4679
        %v5302 = vunpack.c.h.b16 %v4679
        %v5303 = vunpack.c.l.b16 %v4680
        %v5304 = vunpack.c.h.b16 %v4680
        %v5305 = vunpack.c.l.b16 %v4681
        %v5306 = vunpack.c.l.b16 %v4682
        %v5307 = vunpack.c.h.b16 %v4682
        %v5308 = vunpack.c.l.b16 %v4683
        %v5309 = vunpack.c.h.b16 %v4683
        %v5310 = vunpack.c.l.b16 %v4684
        %v5311 = vunpack.c.h.b16 %v4684
        %v5312 = vunpack.c.l.b16 %v4685
        %v5313 = vunpack.c.l.b16 %v4686
        %v5314 = vunpack.c.h.b16 %v4686
        %v5315 = vunpack.c.l.b16 %v4687
        %v5316 = vunpack.c.h.b16 %v4687
        %v5317 = vunpack.c.l.b16 %v4688
        %v5318 = vunpack.c.h.b16 %v4688
        %v5319 = vunpack.c.l.b16 %v4689
        %v5320 = vunpack.c.l.b16 %v4690
        %v5321 = vunpack.c.h.b16 %v4690
        %v5322 = vunpack.c.l.b16 %v4691
        %v5323 = vunpack.c.h.b16 %v4691
        %v5324 = vunpack.c.l.b16 %v4692
        %v5325 = vunpack.c.h.b16 %v4692
        %v5326 = vunpack.c.l.b16 %v4693
        %v5327 = vunpack.c.l.b16 %v4694
        %v5328 = vunpack.c.h.b16 %v4694
        %v5329 = vunpack.c.l.b16 %v4695
        %v5330 = vunpack.c.h.b16 %v4695
        %v5331 = vunpack.c.l.b16 %v4696
        %v5332 = vunpack.c.h.b16 %v4696
        %v5333 = vunpack.c.l.b16 %v4697
        %v5334 = vunpack.c.l.b16 %v4698
        %v5335 = vunpack.c.h.b16 %v4698
        %v5336 = vunpack.c.l.b16 %v4699
        %v5337 = vunpack.c.h.b16 %v4699
        %v5338 = vunpack.c.l.b16 %v4700
        %v5339 = vunpack.c.h.b16 %v4700
        %v5340 = vunpack.c.l.b16 %v4701
        %v5341 = vunpack.c.l.b16 %v4702
        %v5342 = vunpack.c.h.b16 %v4702
        %v5343 = vunpack.c.l.b16 %v4703
        %v5344 = vunpack.c.h.b16 %v4703
        %v5345 = vunpack.c.l.b16 %v4704
        %v5346 = vunpack.c.h.b16 %v4704
        %v5347 = vunpack.c.l.b16 %v4705
        %v5348 = vunpack.c.l.b16 %v4706
        %v5349 = vunpack.c.h.b16 %v4706
        %v5350 = vunpack.c.l.b16 %v4707
        %v5351 = vunpack.c.h.b16 %v4707
        %v5352 = vunpack.c.l.b16 %v4708
        %v5353 = vunpack.c.h.b16 %v4708
        %v5354 = vunpack.c.l.b16 %v4709
        %v5355 = vunpack.c.l.b16 %v4710
        %v5356 = vunpack.c.h.b16 %v4710
        %v5357 = vunpack.c.l.b16 %v4711
        %v5358 = vunpack.c.h.b16 %v4711
        %v5359 = vunpack.c.l.b16 %v4712
        %v5360 = vunpack.c.h.b16 %v4712
        %v5361 = vunpack.c.l.b16 %v4713
        %v5362 = vunpack.c.l.b16 %v4714
        %v5363 = vunpack.c.h.b16 %v4714
        %v5364 = vunpack.c.l.b16 %v4715
        %v5365 = vunpack.c.h.b16 %v4715
        %v5366 = vunpack.c.l.b16 %v4716
        %v5367 = vunpack.c.h.b16 %v4716
        %v5368 = vunpack.c.l.b16 %v4717
        %v5369 = vunpack.c.l.b16 %v4718
        %v5370 = vunpack.c.h.b16 %v4718
        %v5371 = vunpack.c.l.b16 %v4719
        %v5372 = vunpack.c.h.b16 %v4719
        %v5373 = vunpack.c.l.b16 %v4720
        %v5374 = vunpack.c.h.b16 %v4720
        %v5375 = vunpack.c.l.b16 %v4721
        %v5376 = vunpack.c.l.b16 %v4722
        %v5377 = vunpack.c.h.b16 %v4722
        %v5378 = vunpack.c.l.b16 %v4723
        %v5379 = vunpack.c.h.b16 %v4723
        %v5380 = vunpack.c.l.b16 %v4724
        %v5381 = vunpack.c.h.b16 %v4724
        %v5382 = vunpack.c.l.b16 %v4725
        %v5383 = vunpack.c.l.b16 %v4726
        %v5384 = vunpack.c.h.b16 %v4726
        %v5385 = vunpack.c.l.b16 %v4727
        %v5386 = vunpack.c.h.b16 %v4727
        %v5387 = vunpack.c.l.b16 %v4728
        %v5388 = vunpack.c.h.b16 %v4728
        %v5389 = vunpack.c.l.b16 %v4729
        %v5390 = vunpack.c.l.b16 %v4730
        %v5391 = vunpack.c.h.b16 %v4730
        %v5392 = vunpack.c.l.b16 %v4731
        %v5393 = vunpack.c.h.b16 %v4731
        %v5394 = vunpack.c.l.b16 %v4732
        %v5395 = vunpack.c.h.b16 %v4732
        %v5396 = vunpack.c.l.b16 %v4733
        %v5397 = vunpack.c.l.b16 %v4734
        %v5398 = vunpack.c.h.b16 %v4734
        %v5399 = vunpack.c.l.b16 %v4735
        %v5400 = vunpack.c.h.b16 %v4735
        %v5401 = vunpack.c.l.b16 %v4736
        %v5402 = vunpack.c.h.b16 %v4736
        %v5403 = vunpack.c.l.b16 %v4737
        %v5404 = vunpack.c.l.b16 %v4738
        %v5405 = vunpack.c.h.b16 %v4738
        %v5406 = vunpack.c.l.b16 %v4739
        %v5407 = vunpack.c.h.b16 %v4739
        %v5408 = vunpack.c.l.b16 %v4740
        %v5409 = vunpack.c.h.b16 %v4740
        %v5410 = vunpack.c.l.b16 %v4741
        %v5411 = vunpack.c.l.b16 %v4742
        %v5412 = vunpack.c.h.b16 %v4742
        %v5413 = vunpack.c.l.b16 %v4743
        %v5414 = vunpack.c.h.b16 %v4743
        %v5415 = vunpack.c.l.b16 %v4744
        %v5416 = vunpack.c.h.b16 %v4744
        %v5417 = vunpack.c.l.b16 %v4745
        %v5418 = vunpack.c.l.b16 %v4746
        %v5419 = vunpack.c.h.b16 %v4746
        %v5420 = vunpack.c.l.b16 %v4747
        %v5421 = vunpack.c.h.b16 %v4747
        %v5422 = vunpack.c.l.b16 %v4748
        %v5423 = vunpack.c.h.b16 %v4748
        %v5424 = vunpack.c.l.b16 %v4749
        %v5425 = vunpack.c.l.b16 %v4750
        %v5426 = vunpack.c.h.b16 %v4750
        %v5427 = vunpack.c.l.b16 %v4751
        %v5428 = vunpack.c.h.b16 %v4751
        %v5429 = vunpack.c.l.b16 %v4752
        %v5430 = vunpack.c.h.b16 %v4752
        %v5431 = vunpack.c.l.b16 %v4753
        %v5432 = vunpack.c.l.b16 %v4754
        %v5433 = vunpack.c.h.b16 %v4754
        %v5434 = vunpack.c.l.b16 %v4755
        %v5435 = vunpack.c.h.b16 %v4755
        %v5436 = vunpack.c.l.b16 %v4756
        %v5437 = vunpack.c.h.b16 %v4756
        %v5438 = vunpack.c.l.b16 %v4757
        %v5439 = vunpack.c.l.b16 %v4758
        %v5440 = vunpack.c.h.b16 %v4758
        %v5441 = vunpack.c.l.b16 %v4759
        %v5442 = vunpack.c.h.b16 %v4759
        %v5443 = vunpack.c.l.b16 %v4760
        %v5444 = vunpack.c.h.b16 %v4760
        %v5445 = vunpack.c.l.b16 %v4761
        %v5446 = vunpack.c.l.b16 %v4762
        %v5447 = vunpack.c.h.b16 %v4762
        %v5448 = vunpack.c.l.b16 %v4763
        %v5449 = vunpack.c.h.b16 %v4763
        %v5450 = vunpack.c.l.b16 %v4764
        %v5451 = vunpack.c.h.b16 %v4764
        %v5452 = vunpack.c.l.b16 %v4765
        %v5453 = vunpack.c.l.b16 %v4766
        %v5454 = vunpack.c.h.b16 %v4766
        %v5455 = vunpack.c.l.b16 %v4767
        %v5456 = vunpack.c.h.b16 %v4767
        %v5457 = vunpack.c.l.b16 %v4768
        %v5458 = vunpack.c.h.b16 %v4768
        %v5459 = vunpack.c.l.b16 %v4769
        %v5460 = vunpack.c.l.b16 %v4770
        %v5461 = vunpack.c.h.b16 %v4770
        %v5462 = vunpack.c.l.b16 %v4771
        %v5463 = vunpack.c.h.b16 %v4771
        %v5464 = vunpack.c.l.b16 %v4772
        %v5465 = vunpack.c.h.b16 %v4772
        %v5466 = vunpack.c.l.b16 %v4773
        %v5467 = vunpack.c.l.b16 %v4774
        %v5468 = vunpack.c.h.b16 %v4774
        %v5469 = vunpack.c.l.b16 %v4775
        %v5470 = vunpack.c.h.b16 %v4775
        %v5471 = vunpack.c.l.b16 %v4776
        %v5472 = vunpack.c.h.b16 %v4776
        %v5473 = vunpack.c.l.b16 %v4777
        %v5474 = vunpack.c.l.b16 %v4778
        %v5475 = vunpack.c.h.b16 %v4778
        %v5476 = vunpack.c.l.b16 %v4779
        %v5477 = vunpack.c.h.b16 %v4779
        %v5478 = vunpack.c.l.b16 %v4780
        %v5479 = vunpack.c.h.b16 %v4780
        %v5480 = vunpack.c.l.b16 %v4781
        %v5481 = vunpack.c.l.b16 %v4782
        %v5482 = vunpack.c.h.b16 %v4782
        %v5483 = vunpack.c.l.b16 %v4783
        %v5484 = vunpack.c.h.b16 %v4783
        %v5485 = vunpack.c.l.b16 %v4784
        %v5486 = vunpack.c.h.b16 %v4784
        %v5487 = vunpack.c.l.b16 %v4785
        %v5488 = vunpack.c.l.b16 %v4786
        %v5489 = vunpack.c.h.b16 %v4786
        %v5490 = vunpack.c.l.b16 %v4787
        %v5491 = vunpack.c.h.b16 %v4787
        %v5492 = vunpack.c.l.b16 %v4788
        %v5493 = vunpack.c.h.b16 %v4788
        %v5494 = vunpack.c.l.b16 %v4789
        %v5495 = vunpack.c.l.b16 %v4790
        %v5496 = vunpack.c.h.b16 %v4790
        %v5497 = vunpack.c.l.b16 %v4791
        %v5498 = vunpack.c.h.b16 %v4791
        %v5499 = vunpack.c.l.b16 %v4792
        %v5500 = vunpack.c.h.b16 %v4792
        %v5501 = vunpack.c.l.b16 %v4793
        %v5502 = vunpack.c.l.b16 %v4794
        %v5503 = vunpack.c.h.b16 %v4794
        %v5504 = vunpack.c.l.b16 %v4795
        %v5505 = vunpack.c.h.b16 %v4795
        %v5506 = vunpack.c.l.b16 %v4796
        %v5507 = vunpack.c.h.b16 %v4796
        %v5508 = vunpack.c.l.b16 %v4797
        %v5509 = vunpack.c.l.b16 %v4798
        %v5510 = vunpack.c.h.b16 %v4798
        %v5511 = vunpack.c.l.b16 %v4799
        %v5512 = vunpack.c.h.b16 %v4799
        %v5513 = vunpack.c.l.b16 %v4800
        %v5514 = vunpack.c.h.b16 %v4800
        %v5515 = vunpack.c.l.b16 %v4801
        %v5516 = vunpack.c.l.b16 %v4802
        %v5517 = vunpack.c.h.b16 %v4802
        %v5518 = vunpack.c.l.b16 %v4803
        %v5519 = vunpack.c.h.b16 %v4803
        %v5520 = vunpack.c.l.b16 %v4804
        %v5521 = vunpack.c.h.b16 %v4804
        %v5522 = vunpack.c.l.b16 %v4805
        %v5523 = vunpack.c.l.b16 %v4806
        %v5524 = vunpack.c.h.b16 %v4806
        %v5525 = vunpack.c.l.b16 %v4807
        %v5526 = vunpack.c.h.b16 %v4807
        %v5527 = vunpack.c.l.b16 %v4808
        %v5528 = vunpack.c.h.b16 %v4808
        %v5529 = vunpack.c.l.b16 %v4809
        %v5530 = vunpack.c.l.b16 %v4810
        %v5531 = vunpack.c.h.b16 %v4810
        %v5532 = vunpack.c.l.b16 %v4811
        %v5533 = vunpack.c.h.b16 %v4811
        %v5534 = vunpack.c.l.b16 %v4812
        %v5535 = vunpack.c.h.b16 %v4812
        %v5536 = vunpack.c.l.b16 %v4813
        %v5537 = vunpack.c.l.b16 %v4814
        %v5538 = vunpack.c.h.b16 %v4814
        %v5539 = vunpack.c.l.b16 %v4815
        %v5540 = vunpack.c.h.b16 %v4815
        %v5541 = vunpack.c.l.b16 %v4816
        %v5542 = vunpack.c.h.b16 %v4816
        %v5543 = vunpack.c.l.b16 %v4817
        %v5544 = vunpack.c.l.b16 %v4818
        %v5545 = vunpack.c.h.b16 %v4818
        %v5546 = vunpack.c.l.b16 %v4819
        %v5547 = vunpack.c.h.b16 %v4819
        %v5548 = vunpack.c.l.b16 %v4820
        %v5549 = vunpack.c.h.b16 %v4820
        %v5550 = vunpack.c.l.b16 %v4821
        %v5551 = vunpack.c.l.b16 %v4822
        %v5552 = vunpack.c.h.b16 %v4822
        %v5553 = vunpack.c.l.b16 %v4823
        %v5554 = vunpack.c.h.b16 %v4823
        %v5555 = vunpack.c.l.b16 %v4824
        %v5556 = vunpack.c.h.b16 %v4824
        %v5557 = vunpack.c.l.b16 %v4825
        %v5558 = vunpack.c.l.b16 %v4826
        %v5559 = vunpack.c.h.b16 %v4826
        %v5560 = vunpack.c.l.b16 %v4827
        %v5561 = vunpack.c.h.b16 %v4827
        %v5562 = vunpack.c.l.b16 %v4828
        %v5563 = vunpack.c.h.b16 %v4828
        %v5564 = vunpack.c.l.b16 %v4829
        %v5565 = vunpack.c.l.b16 %v4830
        %v5566 = vunpack.c.h.b16 %v4830
        %v5567 = vunpack.c.l.b16 %v4831
        %v5568 = vunpack.c.h.b16 %v4831
        %v5569 = vunpack.c.l.b16 %v4832
        %v5570 = vunpack.c.h.b16 %v4832
        %v5571 = vunpack.c.l.b16 %v4833
        %v5572 = vunpack.c.l.b16 %v4834
        %v5573 = vunpack.c.h.b16 %v4834
        %v5574 = vunpack.c.l.b16 %v4835
        %v5575 = vunpack.c.h.b16 %v4835
        %v5576 = vunpack.c.l.b16 %v4836
        %v5577 = vunpack.c.h.b16 %v4836
        %v5578 = vunpack.c.l.b16 %v4837
        %v5579 = vpack.c.b16 %v5138, %v5131
        %v5580 = vpack.c.b16 %v5139, %v5132
        %v5581 = vpack.c.b16 %v5140, %v5133
        %v5582 = vpack.c.b16 %v5141, %v5134
        %v5583 = vpack.c.b16 %v5142, %v5135
        %v5584 = vpack.c.b16 %v5143, %v5136
        %v5585 = vpack.c.b16 %v5144, %v5137
        %v5586 = vpack.c.b16 %v5152, %v5145
        %v5587 = vpack.c.b16 %v5153, %v5146
        %v5588 = vpack.c.b16 %v5154, %v5147
        %v5589 = vpack.c.b16 %v5155, %v5148
        %v5590 = vpack.c.b16 %v5156, %v5149
        %v5591 = vpack.c.b16 %v5157, %v5150
        %v5592 = vpack.c.b16 %v5158, %v5151
        %v5593 = vpack.c.b16 %v5166, %v5159
        %v5594 = vpack.c.b16 %v5167, %v5160
        %v5595 = vpack.c.b16 %v5168, %v5161
        %v5596 = vpack.c.b16 %v5169, %v5162
        %v5597 = vpack.c.b16 %v5170, %v5163
        %v5598 = vpack.c.b16 %v5171, %v5164
        %v5599 = vpack.c.b16 %v5172, %v5165
        %v5600 = vpack.c.b16 %v5180, %v5173
        %v5601 = vpack.c.b16 %v5181, %v5174
        %v5602 = vpack.c.b16 %v5182, %v5175
        %v5603 = vpack.c.b16 %v5183, %v5176
        %v5604 = vpack.c.b16 %v5184, %v5177
        %v5605 = vpack.c.b16 %v5185, %v5178
        %v5606 = vpack.c.b16 %v5186, %v5179
        %v5607 = vpack.c.b16 %v5194, %v5187
        %v5608 = vpack.c.b16 %v5195, %v5188
        %v5609 = vpack.c.b16 %v5196, %v5189
        %v5610 = vpack.c.b16 %v5197, %v5190
        %v5611 = vpack.c.b16 %v5198, %v5191
        %v5612 = vpack.c.b16 %v5199, %v5192
        %v5613 = vpack.c.b16 %v5200, %v5193
        %v5614 = vpack.c.b16 %v5208, %v5201
        %v5615 = vpack.c.b16 %v5209, %v5202
        %v5616 = vpack.c.b16 %v5210, %v5203
        %v5617 = vpack.c.b16 %v5211, %v5204
        %v5618 = vpack.c.b16 %v5212, %v5205
        %v5619 = vpack.c.b16 %v5213, %v5206
        %v5620 = vpack.c.b16 %v5214, %v5207
        %v5621 = vpack.c.b16 %v5222, %v5215
        %v5622 = vpack.c.b16 %v5223, %v5216
        %v5623 = vpack.c.b16 %v5224, %v5217
        %v5624 = vpack.c.b16 %v5225, %v5218
        %v5625 = vpack.c.b16 %v5226, %v5219
        %v5626 = vpack.c.b16 %v5227, %v5220
        %v5627 = vpack.c.b16 %v5228, %v5221
        %v5628 = vpack.c.b16 %v5236, %v5229
        %v5629 = vpack.c.b16 %v5237, %v5230
        %v5630 = vpack.c.b16 %v5238, %v5231
        %v5631 = vpack.c.b16 %v5239, %v5232
        %v5632 = vpack.c.b16 %v5240, %v5233
        %v5633 = vpack.c.b16 %v5241, %v5234
        %v5634 = vpack.c.b16 %v5242, %v5235
        %v5635 = vpack.c.b16 %v5250, %v5243
        %v5636 = vpack.c.b16 %v5251, %v5244
        %v5637 = vpack.c.b16 %v5252, %v5245
        %v5638 = vpack.c.b16 %v5253, %v5246
        %v5639 = vpack.c.b16 %v5254, %v5247
        %v5640 = vpack.c.b16 %v5255, %v5248
        %v5641 = vpack.c.b16 %v5256, %v5249
        %v5642 = vpack.c.b16 %v5264, %v5257
        %v5643 = vpack.c.b16 %v5265, %v5258
        %v5644 = vpack.c.b16 %v5266, %v5259
        %v5645 = vpack.c.b16 %v5267, %v5260
        %v5646 = vpack.c.b16 %v5268, %v5261
        %v5647 = vpack.c.b16 %v5269, %v5262
        %v5648 = vpack.c.b16 %v5270, %v5263
        %v5649 = vpack.c.b16 %v5278, %v5271
        %v5650 = vpack.c.b16 %v5279, %v5272
        %v5651 = vpack.c.b16 %v5280, %v5273
        %v5652 = vpack.c.b16 %v5281, %v5274
        %v5653 = vpack.c.b16 %v5282, %v5275
        %v5654 = vpack.c.b16 %v5283, %v5276
        %v5655 = vpack.c.b16 %v5284, %v5277
        %v5656 = vpack.c.b16 %v5292, %v5285
        %v5657 = vpack.c.b16 %v5293, %v5286
        %v5658 = vpack.c.b16 %v5294, %v5287
        %v5659 = vpack.c.b16 %v5295, %v5288
        %v5660 = vpack.c.b16 %v5296, %v5289
        %v5661 = vpack.c.b16 %v5297, %v5290
        %v5662 = vpack.c.b16 %v5298, %v5291
        %v5663 = vpack.c.b16 %v5306, %v5299
        %v5664 = vpack.c.b16 %v5307, %v5300
        %v5665 = vpack.c.b16 %v5308, %v5301
        %v5666 = vpack.c.b16 %v5309, %v5302
        %v5667 = vpack.c.b16 %v5310, %v5303
        %v5668 = vpack.c.b16 %v5311, %v5304
        %v5669 = vpack.c.b16 %v5312, %v5305
        %v5670 = vpack.c.b16 %v5320, %v5313
        %v5671 = vpack.c.b16 %v5321, %v5314
        %v5672 = vpack.c.b16 %v5322, %v5315
        %v5673 = vpack.c.b16 %v5323, %v5316
        %v5674 = vpack.c.b16 %v5324, %v5317
        %v5675 = vpack.c.b16 %v5325, %v5318
        %v5676 = vpack.c.b16 %v5326, %v5319
        %v5677 = vpack.c.b16 %v5334, %v5327
        %v5678 = vpack.c.b16 %v5335, %v5328
        %v5679 = vpack.c.b16 %v5336, %v5329
        %v5680 = vpack.c.b16 %v5337, %v5330
        %v5681 = vpack.c.b16 %v5338, %v5331
        %v5682 = vpack.c.b16 %v5339, %v5332
        %v5683 = vpack.c.b16 %v5340, %v5333
        %v5684 = vpack.c.b16 %v5348, %v5341
        %v5685 = vpack.c.b16 %v5349, %v5342
        %v5686 = vpack.c.b16 %v5350, %v5343
        %v5687 = vpack.c.b16 %v5351, %v5344
        %v5688 = vpack.c.b16 %v5352, %v5345
        %v5689 = vpack.c.b16 %v5353, %v5346
        %v5690 = vpack.c.b16 %v5354, %v5347
        %v5691 = vpack.c.b16 %v5362, %v5355
        %v5692 = vpack.c.b16 %v5363, %v5356
        %v5693 = vpack.c.b16 %v5364, %v5357
        %v5694 = vpack.c.b16 %v5365, %v5358
        %v5695 = vpack.c.b16 %v5366, %v5359
        %v5696 = vpack.c.b16 %v5367, %v5360
        %v5697 = vpack.c.b16 %v5368, %v5361
        %v5698 = vpack.c.b16 %v5376, %v5369
        %v5699 = vpack.c.b16 %v5377, %v5370
        %v5700 = vpack.c.b16 %v5378, %v5371
        %v5701 = vpack.c.b16 %v5379, %v5372
        %v5702 = vpack.c.b16 %v5380, %v5373
        %v5703 = vpack.c.b16 %v5381, %v5374
        %v5704 = vpack.c.b16 %v5382, %v5375
        %v5705 = vpack.c.b16 %v5390, %v5383
        %v5706 = vpack.c.b16 %v5391, %v5384
        %v5707 = vpack.c.b16 %v5392, %v5385
        %v5708 = vpack.c.b16 %v5393, %v5386
        %v5709 = vpack.c.b16 %v5394, %v5387
        %v5710 = vpack.c.b16 %v5395, %v5388
        %v5711 = vpack.c.b16 %v5396, %v5389
        %v5712 = vpack.c.b16 %v5404, %v5397
        %v5713 = vpack.c.b16 %v5405, %v5398
        %v5714 = vpack.c.b16 %v5406, %v5399
        %v5715 = vpack.c.b16 %v5407, %v5400
        %v5716 = vpack.c.b16 %v5408, %v5401
        %v5717 = vpack.c.b16 %v5409, %v5402
        %v5718 = vpack.c.b16 %v5410, %v5403
        %v5719 = vpack.c.b16 %v5418, %v5411
        %v5720 = vpack.c.b16 %v5419, %v5412
        %v5721 = vpack.c.b16 %v5420, %v5413
        %v5722 = vpack.c.b16 %v5421, %v5414
        %v5723 = vpack.c.b16 %v5422, %v5415
        %v5724 = vpack.c.b16 %v5423, %v5416
        %v5725 = vpack.c.b16 %v5424, %v5417
        %v5726 = vpack.c.b16 %v5432, %v5425
        %v5727 = vpack.c.b16 %v5433, %v5426
        %v5728 = vpack.c.b16 %v5434, %v5427
        %v5729 = vpack.c.b16 %v5435, %v5428
        %v5730 = vpack.c.b16 %v5436, %v5429
        %v5731 = vpack.c.b16 %v5437, %v5430
        %v5732 = vpack.c.b16 %v5438, %v5431
        %v5733 = vpack.c.b16 %v5446, %v5439
        %v5734 = vpack.c.b16 %v5447, %v5440
        %v5735 = vpack.c.b16 %v5448, %v5441
        %v5736 = vpack.c.b16 %v5449, %v5442
        %v5737 = vpack.c.b16 %v5450, %v5443
        %v5738 = vpack.c.b16 %v5451, %v5444
        %v5739 = vpack.c.b16 %v5452, %v5445
        %v5740 = vpack.c.b16 %v5460, %v5453
        %v5741 = vpack.c.b16 %v5461, %v5454
        %v5742 = vpack.c.b16 %v5462, %v5455
        %v5743 = vpack.c.b16 %v5463, %v5456
        %v5744 = vpack.c.b16 %v5464, %v5457
        %v5745 = vpack.c.b16 %v5465, %v5458
        %v5746 = vpack.c.b16 %v5466, %v5459
        %v5747 = vpack.c.b16 %v5474, %v5467
        %v5748 = vpack.c.b16 %v5475, %v5468
        %v5749 = vpack.c.b16 %v5476, %v5469
        %v5750 = vpack.c.b16 %v5477, %v5470
        %v5751 = vpack.c.b16 %v5478, %v5471
        %v5752 = vpack.c.b16 %v5479, %v5472
        %v5753 = vpack.c.b16 %v5480, %v5473
        %v5754 = vpack.c.b16 %v5488, %v5481
        %v5755 = vpack.c.b16 %v5489, %v5482
        %v5756 = vpack.c.b16 %v5490, %v5483
        %v5757 = vpack.c.b16 %v5491, %v5484
        %v5758 = vpack.c.b16 %v5492, %v5485
        %v5759 = vpack.c.b16 %v5493, %v5486
        %v5760 = vpack.c.b16 %v5494, %v5487
        %v5761 = vpack.c.b16 %v5502, %v5495
        %v5762 = vpack.c.b16 %v5503, %v5496
        %v5763 = vpack.c.b16 %v5504, %v5497
        %v5764 = vpack.c.b16 %v5505, %v5498
        %v5765 = vpack.c.b16 %v5506, %v5499
        %v5766 = vpack.c.b16 %v5507, %v5500
        %v5767 = vpack.c.b16 %v5508, %v5501
        %v5768 = vpack.c.b16 %v5516, %v5509
        %v5769 = vpack.c.b16 %v5517, %v5510
        %v5770 = vpack.c.b16 %v5518, %v5511
        %v5771 = vpack.c.b16 %v5519, %v5512
        %v5772 = vpack.c.b16 %v5520, %v5513
        %v5773 = vpack.c.b16 %v5521, %v5514
        %v5774 = vpack.c.b16 %v5522, %v5515
        %v5775 = vpack.c.b16 %v5530, %v5523
        %v5776 = vpack.c.b16 %v5531, %v5524
        %v5777 = vpack.c.b16 %v5532, %v5525
        %v5778 = vpack.c.b16 %v5533, %v5526
        %v5779 = vpack.c.b16 %v5534, %v5527
        %v5780 = vpack.c.b16 %v5535, %v5528
        %v5781 = vpack.c.b16 %v5536, %v5529
        %v5782 = vpack.c.b16 %v5544, %v5537
        %v5783 = vpack.c.b16 %v5545, %v5538
        %v5784 = vpack.c.b16 %v5546, %v5539
        %v5785 = vpack.c.b16 %v5547, %v5540
        %v5786 = vpack.c.b16 %v5548, %v5541
        %v5787 = vpack.c.b16 %v5549, %v5542
        %v5788 = vpack.c.b16 %v5550, %v5543
        %v5789 = vpack.c.b16 %v5558, %v5551
        %v5790 = vpack.c.b16 %v5559, %v5552
        %v5791 = vpack.c.b16 %v5560, %v5553
        %v5792 = vpack.c.b16 %v5561, %v5554
        %v5793 = vpack.c.b16 %v5562, %v5555
        %v5794 = vpack.c.b16 %v5563, %v5556
        %v5795 = vpack.c.b16 %v5564, %v5557
        %v5796 = vpack.c.b16 %v5572, %v5565
        %v5797 = vpack.c.b16 %v5573, %v5566
        %v5798 = vpack.c.b16 %v5574, %v5567
        %v5799 = vpack.c.b16 %v5575, %v5568
        %v5800 = vpack.c.b16 %v5576, %v5569
        %v5801 = vpack.c.b16 %v5577, %v5570
        %v5802 = vpack.c.b16 %v5578, %v5571
        %6027 = vmatprep.subr.bf16.mxu0 %v5580
        %6028 = vmatpush1.bf16.msra.mxu0 %v5579
        %6029 = vmatprep.subr.bf16.mxu0 %v5587
        %6030 = vmatpush1.bf16.msra.mxu0 %v5586
        %6031 = vmatprep.subr.bf16.mxu0 %v5594
        %6032 = vmatpush1.bf16.msra.mxu0 %v5593
        %6033 = vmatprep.subr.bf16.mxu0 %v5601
        %6034 = vmatpush1.bf16.msra.mxu0 %v5600
        %6035 = vmatprep.subr.bf16.mxu0 %v5608
        %6036 = vmatpush1.bf16.msra.mxu0 %v5607
        %6037 = vmatprep.subr.bf16.mxu0 %v5615
        %6038 = vmatpush1.bf16.msra.mxu0 %v5614
        %6039 = vmatprep.subr.bf16.mxu0 %v5622
        %6040 = vmatpush1.bf16.msra.mxu0 %v5621
        %6041 = vmatprep.subr.bf16.mxu0 %v5629
        %6042 = vmatpush1.bf16.msra.mxu0 %v5628
        %6043 = vmatprep.subr.bf16.mxu0 %v5636
        %6044 = vmatpush1.bf16.msra.mxu0 %v5635
        %6045 = vmatprep.subr.bf16.mxu0 %v5643
        %6046 = vmatpush1.bf16.msra.mxu0 %v5642
        %6047 = vmatprep.subr.bf16.mxu0 %v5650
        %6048 = vmatpush1.bf16.msra.mxu0 %v5649
        %6049 = vmatprep.subr.bf16.mxu0 %v5657
        %6050 = vmatpush1.bf16.msra.mxu0 %v5656
        %6051 = vmatprep.subr.bf16.mxu0 %v5664
        %6052 = vmatpush1.bf16.msra.mxu0 %v5663
        %6053 = vmatprep.subr.bf16.mxu0 %v5671
        %6054 = vmatpush1.bf16.msra.mxu0 %v5670
        %6055 = vmatprep.subr.bf16.mxu0 %v5678
        %6056 = vmatpush1.bf16.msra.mxu0 %v5677
        %6057 = vmatprep.subr.bf16.mxu0 %v5685
        %6058 = vmatpush1.bf16.msra.mxu0 %v5684
        %6059 = vmatprep.mubr.bf16.mxu0 %v4551
        %6060 = vmatmul.mubr.bf16.gmra.mrb[0].mxu0 %v4550
        %v6061 = vpop.f32.mrb[0].mxu0
        %v6062 = vadd.f32 %v4843, %v6061
        %v6063 = vpop.f32.mrb[0].mxu0
        %v6064 = vadd.f32 %v4847, %v6063
        %v6065 = vpop.f32.mrb[0].mxu0
        %v6066 = vadd.f32 %v4843, %v6065
        %v6067 = vpop.f32.mrb[0].mxu0
        %v6068 = vadd.f32 %v4847, %v6067
        %6069 = vmatprep.mubr.bf16.mxu0 %v4555
        %6070 = vmatmul.mubr.bf16.gmra.mrb[0].mxu0 %v4554
        %v6071 = vpop.f32.mrb[0].mxu0
        %v6072 = vadd.f32 %v4843, %v6071
        %v6073 = vpop.f32.mrb[0].mxu0
        %v6074 = vadd.f32 %v4847, %v6073
        %v6075 = vpop.f32.mrb[0].mxu0
        %v6076 = vadd.f32 %v4843, %v6075
        %v6077 = vpop.f32.mrb[0].mxu0
        %v6078 = vadd.f32 %v4847, %v6077
        %6079 = vmatprep.mubr.bf16.mxu0 %v4559
        %6080 = vmatmul.mubr.bf16.gmra.mrb[0].mxu0 %v4558
        %v6081 = vpop.f32.mrb[0].mxu0
        %v6082 = vadd.f32 %v4843, %v6081
        %v6083 = vpop.f32.mrb[0].mxu0
        %v6084 = vadd.f32 %v4847, %v6083
        %v6085 = vpop.f32.mrb[0].mxu0
        %v6086 = vadd.f32 %v4843, %v6085
        %v6087 = vpop.f32.mrb[0].mxu0
        %v6088 = vadd.f32 %v4847, %v6087
        %6089 = vmatprep.mubr.bf16.mxu0 %v4563
        %6090 = vmatmul.mubr.bf16.gmra.mrb[0].mxu0 %v4562
        %v6091 = vpop.f32.mrb[0].mxu0
        %v6092 = vadd.f32 %v4843, %v6091
        %v6093 = vpop.f32.mrb[0].mxu0
        %v6094 = vadd.f32 %v4847, %v6093
        %v6095 = vpop.f32.mrb[0].mxu0
        %v6096 = vadd.f32 %v4843, %v6095
        %v6097 = vpop.f32.mrb[0].mxu0
        %v6098 = vadd.f32 %v4847, %v6097
        %6099 = vmatprep.mubr.bf16.mxu0 %v4567
        %6100 = vmatmul.mubr.bf16.gmra.mrb[0].mxu0 %v4566
        %v6101 = vpop.f32.mrb[0].mxu0
        %v6102 = vadd.f32 %v4843, %v6101
        %v6103 = vpop.f32.mrb[0].mxu0
        %v6104 = vadd.f32 %v4847, %v6103
        %v6105 = vpop.f32.mrb[0].mxu0
        %v6106 = vadd.f32 %v4843, %v6105
        %v6107 = vpop.f32.mrb[0].mxu0
        %v6108 = vadd.f32 %v4847, %v6107
        %6109 = vmatprep.mubr.bf16.mxu0 %v4571
        %6110 = vmatmul.mubr.bf16.gmra.mrb[0].mxu0 %v4570
        %v6111 = vpop.f32.mrb[0].mxu0
        %v6112 = vadd.f32 %v4843, %v6111
        %v6113 = vpop.f32.mrb[0].mxu0
        %v6114 = vadd.f32 %v4847, %v6113
        %v6115 = vpop.f32.mrb[0].mxu0
        %v6116 = vadd.f32 %v4843, %v6115
        %v6117 = vpop.f32.mrb[0].mxu0
        %v6118 = vadd.f32 %v4847, %v6117
        %6119 = vmatprep.mubr.bf16.mxu0 %v4575
        %6120 = vmatmul.mubr.bf16.gmra.mrb[0].mxu0 %v4574
        %v6121 = vpop.f32.mrb[0].mxu0
        %v6122 = vadd.f32 %v4843, %v6121
        %v6123 = vpop.f32.mrb[0].mxu0
        %v6124 = vadd.f32 %v4847, %v6123
        %v6125 = vpop.f32.mrb[0].mxu0
        %v6126 = vadd.f32 %v4843, %v6125
        %v6127 = vpop.f32.mrb[0].mxu0
        %v6128 = vadd.f32 %v4847, %v6127
        %6129 = vmatprep.mubr.bf16.mxu0 %v4579
        %6130 = vmatmul.mubr.bf16.gmra.mrb[0].mxu0 %v4578
        %v6131 = vpop.f32.mrb[0].mxu0
        %v6132 = vadd.f32 %v4843, %v6131
        %v6133 = vpop.f32.mrb[0].mxu0
        %v6134 = vadd.f32 %v4847, %v6133
        %v6135 = vpop.f32.mrb[0].mxu0
        %v6136 = vadd.f32 %v4843, %v6135
        %v6137 = vpop.f32.mrb[0].mxu0
        %v6138 = vadd.f32 %v4847, %v6137
        %6139 = vdwg.mxu0
        %6140 = vmatprep.subr.bf16.mxu0 %v5692
        %6141 = vmatpush1.bf16.msra.mxu0 %v5691
        %6142 = vmatprep.subr.bf16.mxu0 %v5699
        %6143 = vmatpush1.bf16.msra.mxu0 %v5698
        %6144 = vmatprep.subr.bf16.mxu0 %v5706
        %6145 = vmatpush1.bf16.msra.mxu0 %v5705
        %6146 = vmatprep.subr.bf16.mxu0 %v5713
        %6147 = vmatpush1.bf16.msra.mxu0 %v5712
        %6148 = vmatprep.subr.bf16.mxu0 %v5720
        %6149 = vmatpush1.bf16.msra.mxu0 %v5719
        %6150 = vmatprep.subr.bf16.mxu0 %v5727
        %6151 = vmatpush1.bf16.msra.mxu0 %v5726
        %6152 = vmatprep.subr.bf16.mxu0 %v5734
        %6153 = vmatpush1.bf16.msra.mxu0 %v5733
        %6154 = vmatprep.subr.bf16.mxu0 %v5741
        %6155 = vmatpush1.bf16.msra.mxu0 %v5740
        %6156 = vmatprep.subr.bf16.mxu0 %v5748
        %6157 = vmatpush1.bf16.msra.mxu0 %v5747
        %6158 = vmatprep.subr.bf16.mxu0 %v5755
        %6159 = vmatpush1.bf16.msra.mxu0 %v5754
        %6160 = vmatprep.subr.bf16.mxu0 %v5762
        %6161 = vmatpush1.bf16.msra.mxu0 %v5761
        %6162 = vmatprep.subr.bf16.mxu0 %v5769
        %6163 = vmatpush1.bf16.msra.mxu0 %v5768
        %6164 = vmatprep.subr.bf16.mxu0 %v5776
        %6165 = vmatpush1.bf16.msra.mxu0 %v5775
        %6166 = vmatprep.subr.bf16.mxu0 %v5783
        %6167 = vmatpush1.bf16.msra.mxu0 %v5782
        %6168 = vmatprep.subr.bf16.mxu0 %v5790
        %6169 = vmatpush1.bf16.msra.mxu0 %v5789
        %6170 = vmatprep.subr.bf16.mxu0 %v5797
        %6171 = vmatpush1.bf16.msra.mxu0 %v5796
        %6172 = vmatprep.mubr.bf16.mxu0 %v4553
        %6173 = vmatmul.mubr.bf16.gmra.mrb[0].mxu0 %v4552
        %v6174 = vpop.f32.mrb[0].mxu0
        %v6175 = vadd.f32 %v6062, %v6174
        %v6176 = vpop.f32.mrb[0].mxu0
        %v6177 = vadd.f32 %v6064, %v6176
        %v6178 = vpop.f32.mrb[0].mxu0
        %v6179 = vadd.f32 %v6066, %v6178
        %v6180 = vpop.f32.mrb[0].mxu0
        %v6181 = vadd.f32 %v6068, %v6180
        %6182 = vmatprep.mubr.bf16.mxu0 %v4557
        %6183 = vmatmul.mubr.bf16.gmra.mrb[0].mxu0 %v4556
        %v6184 = vpop.f32.mrb[0].mxu0
        %v6185 = vadd.f32 %v6072, %v6184
        %v6186 = vpop.f32.mrb[0].mxu0
        %v6187 = vadd.f32 %v6074, %v6186
        %v6188 = vpop.f32.mrb[0].mxu0
        %v6189 = vadd.f32 %v6076, %v6188
        %v6190 = vpop.f32.mrb[0].mxu0
        %v6191 = vadd.f32 %v6078, %v6190
        %6192 = vmatprep.mubr.bf16.mxu0 %v4561
        %6193 = vmatmul.mubr.bf16.gmra.mrb[0].mxu0 %v4560
        %v6194 = vpop.f32.mrb[0].mxu0
        %v6195 = vadd.f32 %v6082, %v6194
        %v6196 = vpop.f32.mrb[0].mxu0
        %v6197 = vadd.f32 %v6084, %v6196
        %v6198 = vpop.f32.mrb[0].mxu0
        %v6199 = vadd.f32 %v6086, %v6198
        %v6200 = vpop.f32.mrb[0].mxu0
        %v6201 = vadd.f32 %v6088, %v6200
        %6202 = vmatprep.mubr.bf16.mxu0 %v4565
        %6203 = vmatmul.mubr.bf16.gmra.mrb[0].mxu0 %v4564
        %v6204 = vpop.f32.mrb[0].mxu0
        %v6205 = vadd.f32 %v6092, %v6204
        %v6206 = vpop.f32.mrb[0].mxu0
        %v6207 = vadd.f32 %v6094, %v6206
        %v6208 = vpop.f32.mrb[0].mxu0
        %v6209 = vadd.f32 %v6096, %v6208
        %v6210 = vpop.f32.mrb[0].mxu0
        %v6211 = vadd.f32 %v6098, %v6210
        %6212 = vmatprep.mubr.bf16.mxu0 %v4569
        %6213 = vmatmul.mubr.bf16.gmra.mrb[0].mxu0 %v4568
        %v6214 = vpop.f32.mrb[0].mxu0
        %v6215 = vadd.f32 %v6102, %v6214
        %v6216 = vpop.f32.mrb[0].mxu0
        %v6217 = vadd.f32 %v6104, %v6216
        %v6218 = vpop.f32.mrb[0].mxu0
        %v6219 = vadd.f32 %v6106, %v6218
        %v6220 = vpop.f32.mrb[0].mxu0
        %v6221 = vadd.f32 %v6108, %v6220
        %6222 = vmatprep.mubr.bf16.mxu0 %v4573
        %6223 = vmatmul.mubr.bf16.gmra.mrb[0].mxu0 %v4572
        %v6224 = vpop.f32.mrb[0].mxu0
        %v6225 = vadd.f32 %v6112, %v6224
        %v6226 = vpop.f32.mrb[0].mxu0
        %v6227 = vadd.f32 %v6114, %v6226
        %v6228 = vpop.f32.mrb[0].mxu0
        %v6229 = vadd.f32 %v6116, %v6228
        %v6230 = vpop.f32.mrb[0].mxu0
        %v6231 = vadd.f32 %v6118, %v6230
        %6232 = vmatprep.mubr.bf16.mxu0 %v4577
        %6233 = vmatmul.mubr.bf16.gmra.mrb[0].mxu0 %v4576
        %v6234 = vpop.f32.mrb[0].mxu0
        %v6235 = vadd.f32 %v6122, %v6234
        %v6236 = vpop.f32.mrb[0].mxu0
        %v6237 = vadd.f32 %v6124, %v6236
        %v6238 = vpop.f32.mrb[0].mxu0
        %v6239 = vadd.f32 %v6126, %v6238
        %v6240 = vpop.f32.mrb[0].mxu0
        %v6241 = vadd.f32 %v6128, %v6240
        %6242 = vmatprep.mubr.bf16.mxu0 %v4581
        %6243 = vmatmul.mubr.bf16.gmra.mrb[0].mxu0 %v4580
        %v6244 = vpop.f32.mrb[0].mxu0
        %v6245 = vadd.f32 %v6132, %v6244
        %v6246 = vpop.f32.mrb[0].mxu0
        %v6247 = vadd.f32 %v6134, %v6246
        %v6248 = vpop.f32.mrb[0].mxu0
        %v6249 = vadd.f32 %v6136, %v6248
        %v6250 = vpop.f32.mrb[0].mxu0
        %v6251 = vadd.f32 %v6138, %v6250
        %6252 = vdwg.mxu0
        %6253 = vmatprep.subr.bf16.mxu0 %v5582
        %6254 = vmatpush1.bf16.msra.mxu0 %v5581
        %6255 = vmatprep.subr.bf16.mxu0 %v5589
        %6256 = vmatpush1.bf16.msra.mxu0 %v5588
        %6257 = vmatprep.subr.bf16.mxu0 %v5596
        %6258 = vmatpush1.bf16.msra.mxu0 %v5595
        %6259 = vmatprep.subr.bf16.mxu0 %v5603
        %6260 = vmatpush1.bf16.msra.mxu0 %v5602
        %6261 = vmatprep.subr.bf16.mxu0 %v5610
        %6262 = vmatpush1.bf16.msra.mxu0 %v5609
        %6263 = vmatprep.subr.bf16.mxu0 %v5617
        %6264 = vmatpush1.bf16.msra.mxu0 %v5616
        %6265 = vmatprep.subr.bf16.mxu0 %v5624
        %6266 = vmatpush1.bf16.msra.mxu0 %v5623
        %6267 = vmatprep.subr.bf16.mxu0 %v5631
        %6268 = vmatpush1.bf16.msra.mxu0 %v5630
        %6269 = vmatprep.subr.bf16.mxu0 %v5638
        %6270 = vmatpush1.bf16.msra.mxu0 %v5637
        %6271 = vmatprep.subr.bf16.mxu0 %v5645
        %6272 = vmatpush1.bf16.msra.mxu0 %v5644
        %6273 = vmatprep.subr.bf16.mxu0 %v5652
        %6274 = vmatpush1.bf16.msra.mxu0 %v5651
        %6275 = vmatprep.subr.bf16.mxu0 %v5659
        %6276 = vmatpush1.bf16.msra.mxu0 %v5658
        %6277 = vmatprep.subr.bf16.mxu0 %v5666
        %6278 = vmatpush1.bf16.msra.mxu0 %v5665
        %6279 = vmatprep.subr.bf16.mxu0 %v5673
        %6280 = vmatpush1.bf16.msra.mxu0 %v5672
        %6281 = vmatprep.subr.bf16.mxu0 %v5680
        %6282 = vmatpush1.bf16.msra.mxu0 %v5679
        %6283 = vmatprep.subr.bf16.mxu0 %v5687
        %6284 = vmatpush1.bf16.msra.mxu0 %v5686
        %6285 = vmatprep.mubr.bf16.mxu0 %v4551
        %6286 = vmatmul.mubr.bf16.gmra.mrb[0].mxu0 %v4550
        %v6287 = vpop.f32.mrb[0].mxu0
        %v6288 = vadd.f32 %v4851, %v6287
        %v6289 = vpop.f32.mrb[0].mxu0
        %v6290 = vadd.f32 %v4855, %v6289
        %v6291 = vpop.f32.mrb[0].mxu0
        %v6292 = vadd.f32 %v4851, %v6291
        %v6293 = vpop.f32.mrb[0].mxu0
        %v6294 = vadd.f32 %v4855, %v6293
        %6295 = vmatprep.mubr.bf16.mxu0 %v4555
        %6296 = vmatmul.mubr.bf16.gmra.mrb[0].mxu0 %v4554
        %v6297 = vpop.f32.mrb[0].mxu0
        %v6298 = vadd.f32 %v4851, %v6297
        %v6299 = vpop.f32.mrb[0].mxu0
        %v6300 = vadd.f32 %v4855, %v6299
        %v6301 = vpop.f32.mrb[0].mxu0
        %v6302 = vadd.f32 %v4851, %v6301
        %v6303 = vpop.f32.mrb[0].mxu0
        %v6304 = vadd.f32 %v4855, %v6303
        %6305 = vmatprep.mubr.bf16.mxu0 %v4559
        %6306 = vmatmul.mubr.bf16.gmra.mrb[0].mxu0 %v4558
        %v6307 = vpop.f32.mrb[0].mxu0
        %v6308 = vadd.f32 %v4851, %v6307
        %v6309 = vpop.f32.mrb[0].mxu0
        %v6310 = vadd.f32 %v4855, %v6309
        %v6311 = vpop.f32.mrb[0].mxu0
        %v6312 = vadd.f32 %v4851, %v6311
        %v6313 = vpop.f32.mrb[0].mxu0
        %v6314 = vadd.f32 %v4855, %v6313
        %6315 = vmatprep.mubr.bf16.mxu0 %v4563
        %6316 = vmatmul.mubr.bf16.gmra.mrb[0].mxu0 %v4562
        %v6317 = vpop.f32.mrb[0].mxu0
        %v6318 = vadd.f32 %v4851, %v6317
        %v6319 = vpop.f32.mrb[0].mxu0
        %v6320 = vadd.f32 %v4855, %v6319
        %v6321 = vpop.f32.mrb[0].mxu0
        %v6322 = vadd.f32 %v4851, %v6321
        %v6323 = vpop.f32.mrb[0].mxu0
        %v6324 = vadd.f32 %v4855, %v6323
        %6325 = vmatprep.mubr.bf16.mxu0 %v4567
        %6326 = vmatmul.mubr.bf16.gmra.mrb[0].mxu0 %v4566
        %v6327 = vpop.f32.mrb[0].mxu0
        %v6328 = vadd.f32 %v4851, %v6327
        %v6329 = vpop.f32.mrb[0].mxu0
        %v6330 = vadd.f32 %v4855, %v6329
        %v6331 = vpop.f32.mrb[0].mxu0
        %v6332 = vadd.f32 %v4851, %v6331
        %v6333 = vpop.f32.mrb[0].mxu0
        %v6334 = vadd.f32 %v4855, %v6333
        %6335 = vmatprep.mubr.bf16.mxu0 %v4571
        %6336 = vmatmul.mubr.bf16.gmra.mrb[0].mxu0 %v4570
        %v6337 = vpop.f32.mrb[0].mxu0
        %v6338 = vadd.f32 %v4851, %v6337
        %v6339 = vpop.f32.mrb[0].mxu0
        %v6340 = vadd.f32 %v4855, %v6339
        %v6341 = vpop.f32.mrb[0].mxu0
        %v6342 = vadd.f32 %v4851, %v6341
        %v6343 = vpop.f32.mrb[0].mxu0
        %v6344 = vadd.f32 %v4855, %v6343
        %6345 = vmatprep.mubr.bf16.mxu0 %v4575
        %6346 = vmatmul.mubr.bf16.gmra.mrb[0].mxu0 %v4574
        %v6347 = vpop.f32.mrb[0].mxu0
        %v6348 = vadd.f32 %v4851, %v6347
        %v6349 = vpop.f32.mrb[0].mxu0
        %v6350 = vadd.f32 %v4855, %v6349
        %v6351 = vpop.f32.mrb[0].mxu0
        %v6352 = vadd.f32 %v4851, %v6351
        %v6353 = vpop.f32.mrb[0].mxu0
        %v6354 = vadd.f32 %v4855, %v6353
        %6355 = vmatprep.mubr.bf16.mxu0 %v4579
        %6356 = vmatmul.mubr.bf16.gmra.mrb[0].mxu0 %v4578
        %v6357 = vpop.f32.mrb[0].mxu0
        %v6358 = vadd.f32 %v4851, %v6357
        %v6359 = vpop.f32.mrb[0].mxu0
        %v6360 = vadd.f32 %v4855, %v6359
        %v6361 = vpop.f32.mrb[0].mxu0
        %v6362 = vadd.f32 %v4851, %v6361
        %v6363 = vpop.f32.mrb[0].mxu0
        %v6364 = vadd.f32 %v4855, %v6363
        %6365 = vdwg.mxu0
        %6366 = vmatprep.subr.bf16.mxu0 %v5694
        %6367 = vmatpush1.bf16.msra.mxu0 %v5693
        %6368 = vmatprep.subr.bf16.mxu0 %v5701
        %6369 = vmatpush1.bf16.msra.mxu0 %v5700
        %6370 = vmatprep.subr.bf16.mxu0 %v5708
        %6371 = vmatpush1.bf16.msra.mxu0 %v5707
        %6372 = vmatprep.subr.bf16.mxu0 %v5715
        %6373 = vmatpush1.bf16.msra.mxu0 %v5714
        %6374 = vmatprep.subr.bf16.mxu0 %v5722
        %6375 = vmatpush1.bf16.msra.mxu0 %v5721
        %6376 = vmatprep.subr.bf16.mxu0 %v5729
        %6377 = vmatpush1.bf16.msra.mxu0 %v5728
        %6378 = vmatprep.subr.bf16.mxu0 %v5736
        %6379 = vmatpush1.bf16.msra.mxu0 %v5735
        %6380 = vmatprep.subr.bf16.mxu0 %v5743
        %6381 = vmatpush1.bf16.msra.mxu0 %v5742
        %6382 = vmatprep.subr.bf16.mxu0 %v5750
        %6383 = vmatpush1.bf16.msra.mxu0 %v5749
        %6384 = vmatprep.subr.bf16.mxu0 %v5757
        %6385 = vmatpush1.bf16.msra.mxu0 %v5756
        %6386 = vmatprep.subr.bf16.mxu0 %v5764
        %6387 = vmatpush1.bf16.msra.mxu0 %v5763
        %6388 = vmatprep.subr.bf16.mxu0 %v5771
        %6389 = vmatpush1.bf16.msra.mxu0 %v5770
        %6390 = vmatprep.subr.bf16.mxu0 %v5778
        %6391 = vmatpush1.bf16.msra.mxu0 %v5777
        %6392 = vmatprep.subr.bf16.mxu0 %v5785
        %6393 = vmatpush1.bf16.msra.mxu0 %v5784
        %6394 = vmatprep.subr.bf16.mxu0 %v5792
        %6395 = vmatpush1.bf16.msra.mxu0 %v5791
        %6396 = vmatprep.subr.bf16.mxu0 %v5799
        %6397 = vmatpush1.bf16.msra.mxu0 %v5798
        %6398 = vmatprep.mubr.bf16.mxu0 %v4553
        %6399 = vmatmul.mubr.bf16.gmra.mrb[0].mxu0 %v4552
        %v6400 = vpop.f32.mrb[0].mxu0
        %v6401 = vadd.f32 %v6288, %v6400
        %v6402 = vpop.f32.mrb[0].mxu0
        %v6403 = vadd.f32 %v6290, %v6402
        %v6404 = vpop.f32.mrb[0].mxu0
        %v6405 = vadd.f32 %v6292, %v6404
        %v6406 = vpop.f32.mrb[0].mxu0
        %v6407 = vadd.f32 %v6294, %v6406
        %6408 = vmatprep.mubr.bf16.mxu0 %v4557
        %6409 = vmatmul.mubr.bf16.gmra.mrb[0].mxu0 %v4556
        %v6410 = vpop.f32.mrb[0].mxu0
        %v6411 = vadd.f32 %v6298, %v6410
        %v6412 = vpop.f32.mrb[0].mxu0
        %v6413 = vadd.f32 %v6300, %v6412
        %v6414 = vpop.f32.mrb[0].mxu0
        %v6415 = vadd.f32 %v6302, %v6414
        %v6416 = vpop.f32.mrb[0].mxu0
        %v6417 = vadd.f32 %v6304, %v6416
        %6418 = vmatprep.mubr.bf16.mxu0 %v4561
        %6419 = vmatmul.mubr.bf16.gmra.mrb[0].mxu0 %v4560
        %v6420 = vpop.f32.mrb[0].mxu0
        %v6421 = vadd.f32 %v6308, %v6420
        %v6422 = vpop.f32.mrb[0].mxu0
        %v6423 = vadd.f32 %v6310, %v6422
        %v6424 = vpop.f32.mrb[0].mxu0
        %v6425 = vadd.f32 %v6312, %v6424
        %v6426 = vpop.f32.mrb[0].mxu0
        %v6427 = vadd.f32 %v6314, %v6426
        %6428 = vmatprep.mubr.bf16.mxu0 %v4565
        %6429 = vmatmul.mubr.bf16.gmra.mrb[0].mxu0 %v4564
        %v6430 = vpop.f32.mrb[0].mxu0
        %v6431 = vadd.f32 %v6318, %v6430
        %v6432 = vpop.f32.mrb[0].mxu0
        %v6433 = vadd.f32 %v6320, %v6432
        %v6434 = vpop.f32.mrb[0].mxu0
        %v6435 = vadd.f32 %v6322, %v6434
        %v6436 = vpop.f32.mrb[0].mxu0
        %v6437 = vadd.f32 %v6324, %v6436
        %6438 = vmatprep.mubr.bf16.mxu0 %v4569
        %6439 = vmatmul.mubr.bf16.gmra.mrb[0].mxu0 %v4568
        %v6440 = vpop.f32.mrb[0].mxu0
        %v6441 = vadd.f32 %v6328, %v6440
        %v6442 = vpop.f32.mrb[0].mxu0
        %v6443 = vadd.f32 %v6330, %v6442
        %v6444 = vpop.f32.mrb[0].mxu0
        %v6445 = vadd.f32 %v6332, %v6444
        %v6446 = vpop.f32.mrb[0].mxu0
        %v6447 = vadd.f32 %v6334, %v6446
        %6448 = vmatprep.mubr.bf16.mxu0 %v4573
        %6449 = vmatmul.mubr.bf16.gmra.mrb[0].mxu0 %v4572
        %v6450 = vpop.f32.mrb[0].mxu0
        %v6451 = vadd.f32 %v6338, %v6450
        %v6452 = vpop.f32.mrb[0].mxu0
        %v6453 = vadd.f32 %v6340, %v6452
        %v6454 = vpop.f32.mrb[0].mxu0
        %v6455 = vadd.f32 %v6342, %v6454
        %v6456 = vpop.f32.mrb[0].mxu0
        %v6457 = vadd.f32 %v6344, %v6456
        %6458 = vmatprep.mubr.bf16.mxu0 %v4577
        %6459 = vmatmul.mubr.bf16.gmra.mrb[0].mxu0 %v4576
        %v6460 = vpop.f32.mrb[0].mxu0
        %v6461 = vadd.f32 %v6348, %v6460
        %v6462 = vpop.f32.mrb[0].mxu0
        %v6463 = vadd.f32 %v6350, %v6462
        %v6464 = vpop.f32.mrb[0].mxu0
        %v6465 = vadd.f32 %v6352, %v6464
        %v6466 = vpop.f32.mrb[0].mxu0
        %v6467 = vadd.f32 %v6354, %v6466
        %6468 = vmatprep.mubr.bf16.mxu0 %v4581
        %6469 = vmatmul.mubr.bf16.gmra.mrb[0].mxu0 %v4580
        %v6470 = vpop.f32.mrb[0].mxu0
        %v6471 = vadd.f32 %v6358, %v6470
        %v6472 = vpop.f32.mrb[0].mxu0
        %v6473 = vadd.f32 %v6360, %v6472
        %v6474 = vpop.f32.mrb[0].mxu0
        %v6475 = vadd.f32 %v6362, %v6474
        %v6476 = vpop.f32.mrb[0].mxu0
        %v6477 = vadd.f32 %v6364, %v6476
        %6478 = vdwg.mxu0
        %6479 = vmatprep.subr.bf16.mxu0 %v5584
        %6480 = vmatpush1.bf16.msra.mxu0 %v5583
        %6481 = vmatprep.subr.bf16.mxu0 %v5591
        %6482 = vmatpush1.bf16.msra.mxu0 %v5590
        %6483 = vmatprep.subr.bf16.mxu0 %v5598
        %6484 = vmatpush1.bf16.msra.mxu0 %v5597
        %6485 = vmatprep.subr.bf16.mxu0 %v5605
        %6486 = vmatpush1.bf16.msra.mxu0 %v5604
        %6487 = vmatprep.subr.bf16.mxu0 %v5612
        %6488 = vmatpush1.bf16.msra.mxu0 %v5611
        %6489 = vmatprep.subr.bf16.mxu0 %v5619
        %6490 = vmatpush1.bf16.msra.mxu0 %v5618
        %6491 = vmatprep.subr.bf16.mxu0 %v5626
        %6492 = vmatpush1.bf16.msra.mxu0 %v5625
        %6493 = vmatprep.subr.bf16.mxu0 %v5633
        %6494 = vmatpush1.bf16.msra.mxu0 %v5632
        %6495 = vmatprep.subr.bf16.mxu0 %v5640
        %6496 = vmatpush1.bf16.msra.mxu0 %v5639
        %6497 = vmatprep.subr.bf16.mxu0 %v5647
        %6498 = vmatpush1.bf16.msra.mxu0 %v5646
        %6499 = vmatprep.subr.bf16.mxu0 %v5654
        %6500 = vmatpush1.bf16.msra.mxu0 %v5653
        %6501 = vmatprep.subr.bf16.mxu0 %v5661
        %6502 = vmatpush1.bf16.msra.mxu0 %v5660
        %6503 = vmatprep.subr.bf16.mxu0 %v5668
        %6504 = vmatpush1.bf16.msra.mxu0 %v5667
        %6505 = vmatprep.subr.bf16.mxu0 %v5675
        %6506 = vmatpush1.bf16.msra.mxu0 %v5674
        %6507 = vmatprep.subr.bf16.mxu0 %v5682
        %6508 = vmatpush1.bf16.msra.mxu0 %v5681
        %6509 = vmatprep.subr.bf16.mxu0 %v5689
        %6510 = vmatpush1.bf16.msra.mxu0 %v5688
        %6511 = vmatprep.mubr.bf16.mxu0 %v4551
        %6512 = vmatmul.mubr.bf16.gmra.mrb[0].mxu0 %v4550
        %v6513 = vpop.f32.mrb[0].mxu0
        %v6514 = vadd.f32 %v4859, %v6513
        %v6515 = vpop.f32.mrb[0].mxu0
        %v6516 = vadd.f32 %v4863, %v6515
        %v6517 = vpop.f32.mrb[0].mxu0
        %v6518 = vadd.f32 %v4859, %v6517
        %v6519 = vpop.f32.mrb[0].mxu0
        %v6520 = vadd.f32 %v4863, %v6519
        %6521 = vmatprep.mubr.bf16.mxu0 %v4555
        %6522 = vmatmul.mubr.bf16.gmra.mrb[0].mxu0 %v4554
        %v6523 = vpop.f32.mrb[0].mxu0
        %v6524 = vadd.f32 %v4859, %v6523
        %v6525 = vpop.f32.mrb[0].mxu0
        %v6526 = vadd.f32 %v4863, %v6525
        %v6527 = vpop.f32.mrb[0].mxu0
        %v6528 = vadd.f32 %v4859, %v6527
        %v6529 = vpop.f32.mrb[0].mxu0
        %v6530 = vadd.f32 %v4863, %v6529
        %6531 = vmatprep.mubr.bf16.mxu0 %v4559
        %6532 = vmatmul.mubr.bf16.gmra.mrb[0].mxu0 %v4558
        %v6533 = vpop.f32.mrb[0].mxu0
        %v6534 = vadd.f32 %v4859, %v6533
        %v6535 = vpop.f32.mrb[0].mxu0
        %v6536 = vadd.f32 %v4863, %v6535
        %v6537 = vpop.f32.mrb[0].mxu0
        %v6538 = vadd.f32 %v4859, %v6537
        %v6539 = vpop.f32.mrb[0].mxu0
        %v6540 = vadd.f32 %v4863, %v6539
        %6541 = vmatprep.mubr.bf16.mxu0 %v4563
        %6542 = vmatmul.mubr.bf16.gmra.mrb[0].mxu0 %v4562
        %v6543 = vpop.f32.mrb[0].mxu0
        %v6544 = vadd.f32 %v4859, %v6543
        %v6545 = vpop.f32.mrb[0].mxu0
        %v6546 = vadd.f32 %v4863, %v6545
        %v6547 = vpop.f32.mrb[0].mxu0
        %v6548 = vadd.f32 %v4859, %v6547
        %v6549 = vpop.f32.mrb[0].mxu0
        %v6550 = vadd.f32 %v4863, %v6549
        %6551 = vmatprep.mubr.bf16.mxu0 %v4567
        %6552 = vmatmul.mubr.bf16.gmra.mrb[0].mxu0 %v4566
        %v6553 = vpop.f32.mrb[0].mxu0
        %v6554 = vadd.f32 %v4859, %v6553
        %v6555 = vpop.f32.mrb[0].mxu0
        %v6556 = vadd.f32 %v4863, %v6555
        %v6557 = vpop.f32.mrb[0].mxu0
        %v6558 = vadd.f32 %v4859, %v6557
        %v6559 = vpop.f32.mrb[0].mxu0
        %v6560 = vadd.f32 %v4863, %v6559
        %6561 = vmatprep.mubr.bf16.mxu0 %v4571
        %6562 = vmatmul.mubr.bf16.gmra.mrb[0].mxu0 %v4570
        %v6563 = vpop.f32.mrb[0].mxu0
        %v6564 = vadd.f32 %v4859, %v6563
        %v6565 = vpop.f32.mrb[0].mxu0
        %v6566 = vadd.f32 %v4863, %v6565
        %v6567 = vpop.f32.mrb[0].mxu0
        %v6568 = vadd.f32 %v4859, %v6567
        %v6569 = vpop.f32.mrb[0].mxu0
        %v6570 = vadd.f32 %v4863, %v6569
        %6571 = vmatprep.mubr.bf16.mxu0 %v4575
        %6572 = vmatmul.mubr.bf16.gmra.mrb[0].mxu0 %v4574
        %v6573 = vpop.f32.mrb[0].mxu0
        %v6574 = vadd.f32 %v4859, %v6573
        %v6575 = vpop.f32.mrb[0].mxu0
        %v6576 = vadd.f32 %v4863, %v6575
        %v6577 = vpop.f32.mrb[0].mxu0
        %v6578 = vadd.f32 %v4859, %v6577
        %v6579 = vpop.f32.mrb[0].mxu0
        %v6580 = vadd.f32 %v4863, %v6579
        %6581 = vmatprep.mubr.bf16.mxu0 %v4579
        %6582 = vmatmul.mubr.bf16.gmra.mrb[0].mxu0 %v4578
        %v6583 = vpop.f32.mrb[0].mxu0
        %v6584 = vadd.f32 %v4859, %v6583
        %v6585 = vpop.f32.mrb[0].mxu0
        %v6586 = vadd.f32 %v4863, %v6585
        %v6587 = vpop.f32.mrb[0].mxu0
        %v6588 = vadd.f32 %v4859, %v6587
        %v6589 = vpop.f32.mrb[0].mxu0
        %v6590 = vadd.f32 %v4863, %v6589
        %6591 = vdwg.mxu0
        %6592 = vmatprep.subr.bf16.mxu0 %v5696
        %6593 = vmatpush1.bf16.msra.mxu0 %v5695
        %6594 = vmatprep.subr.bf16.mxu0 %v5703
        %6595 = vmatpush1.bf16.msra.mxu0 %v5702
        %6596 = vmatprep.subr.bf16.mxu0 %v5710
        %6597 = vmatpush1.bf16.msra.mxu0 %v5709
        %6598 = vmatprep.subr.bf16.mxu0 %v5717
        %6599 = vmatpush1.bf16.msra.mxu0 %v5716
        %6600 = vmatprep.subr.bf16.mxu0 %v5724
        %6601 = vmatpush1.bf16.msra.mxu0 %v5723
        %6602 = vmatprep.subr.bf16.mxu0 %v5731
        %6603 = vmatpush1.bf16.msra.mxu0 %v5730
        %6604 = vmatprep.subr.bf16.mxu0 %v5738
        %6605 = vmatpush1.bf16.msra.mxu0 %v5737
        %6606 = vmatprep.subr.bf16.mxu0 %v5745
        %6607 = vmatpush1.bf16.msra.mxu0 %v5744
        %6608 = vmatprep.subr.bf16.mxu0 %v5752
        %6609 = vmatpush1.bf16.msra.mxu0 %v5751
        %6610 = vmatprep.subr.bf16.mxu0 %v5759
        %6611 = vmatpush1.bf16.msra.mxu0 %v5758
        %6612 = vmatprep.subr.bf16.mxu0 %v5766
        %6613 = vmatpush1.bf16.msra.mxu0 %v5765
        %6614 = vmatprep.subr.bf16.mxu0 %v5773
        %6615 = vmatpush1.bf16.msra.mxu0 %v5772
        %6616 = vmatprep.subr.bf16.mxu0 %v5780
        %6617 = vmatpush1.bf16.msra.mxu0 %v5779
        %6618 = vmatprep.subr.bf16.mxu0 %v5787
        %6619 = vmatpush1.bf16.msra.mxu0 %v5786
        %6620 = vmatprep.subr.bf16.mxu0 %v5794
        %6621 = vmatpush1.bf16.msra.mxu0 %v5793
        %6622 = vmatprep.subr.bf16.mxu0 %v5801
        %6623 = vmatpush1.bf16.msra.mxu0 %v5800
        %6624 = vmatprep.mubr.bf16.mxu0 %v4553
        %6625 = vmatmul.mubr.bf16.gmra.mrb[0].mxu0 %v4552
        %v6626 = vpop.f32.mrb[0].mxu0
        %v6627 = vadd.f32 %v6514, %v6626
        %v6628 = vpop.f32.mrb[0].mxu0
        %v6629 = vadd.f32 %v6516, %v6628
        %v6630 = vpop.f32.mrb[0].mxu0
        %v6631 = vadd.f32 %v6518, %v6630
        %v6632 = vpop.f32.mrb[0].mxu0
        %v6633 = vadd.f32 %v6520, %v6632
        %6634 = vmatprep.mubr.bf16.mxu0 %v4557
        %6635 = vmatmul.mubr.bf16.gmra.mrb[0].mxu0 %v4556
        %v6636 = vpop.f32.mrb[0].mxu0
        %v6637 = vadd.f32 %v6524, %v6636
        %v6638 = vpop.f32.mrb[0].mxu0
        %v6639 = vadd.f32 %v6526, %v6638
        %v6640 = vpop.f32.mrb[0].mxu0
        %v6641 = vadd.f32 %v6528, %v6640
        %v6642 = vpop.f32.mrb[0].mxu0
        %v6643 = vadd.f32 %v6530, %v6642
        %6644 = vmatprep.mubr.bf16.mxu0 %v4561
        %6645 = vmatmul.mubr.bf16.gmra.mrb[0].mxu0 %v4560
        %v6646 = vpop.f32.mrb[0].mxu0
        %v6647 = vadd.f32 %v6534, %v6646
        %v6648 = vpop.f32.mrb[0].mxu0
        %v6649 = vadd.f32 %v6536, %v6648
        %v6650 = vpop.f32.mrb[0].mxu0
        %v6651 = vadd.f32 %v6538, %v6650
        %v6652 = vpop.f32.mrb[0].mxu0
        %v6653 = vadd.f32 %v6540, %v6652
        %6654 = vmatprep.mubr.bf16.mxu0 %v4565
        %6655 = vmatmul.mubr.bf16.gmra.mrb[0].mxu0 %v4564
        %v6656 = vpop.f32.mrb[0].mxu0
        %v6657 = vadd.f32 %v6544, %v6656
        %v6658 = vpop.f32.mrb[0].mxu0
        %v6659 = vadd.f32 %v6546, %v6658
        %v6660 = vpop.f32.mrb[0].mxu0
        %v6661 = vadd.f32 %v6548, %v6660
        %v6662 = vpop.f32.mrb[0].mxu0
        %v6663 = vadd.f32 %v6550, %v6662
        %6664 = vmatprep.mubr.bf16.mxu0 %v4569
        %6665 = vmatmul.mubr.bf16.gmra.mrb[0].mxu0 %v4568
        %v6666 = vpop.f32.mrb[0].mxu0
        %v6667 = vadd.f32 %v6554, %v6666
        %v6668 = vpop.f32.mrb[0].mxu0
        %v6669 = vadd.f32 %v6556, %v6668
        %v6670 = vpop.f32.mrb[0].mxu0
        %v6671 = vadd.f32 %v6558, %v6670
        %v6672 = vpop.f32.mrb[0].mxu0
        %v6673 = vadd.f32 %v6560, %v6672
        %6674 = vmatprep.mubr.bf16.mxu0 %v4573
        %6675 = vmatmul.mubr.bf16.gmra.mrb[0].mxu0 %v4572
        %v6676 = vpop.f32.mrb[0].mxu0
        %v6677 = vadd.f32 %v6564, %v6676
        %v6678 = vpop.f32.mrb[0].mxu0
        %v6679 = vadd.f32 %v6566, %v6678
        %v6680 = vpop.f32.mrb[0].mxu0
        %v6681 = vadd.f32 %v6568, %v6680
        %v6682 = vpop.f32.mrb[0].mxu0
        %v6683 = vadd.f32 %v6570, %v6682
        %6684 = vmatprep.mubr.bf16.mxu0 %v4577
        %6685 = vmatmul.mubr.bf16.gmra.mrb[0].mxu0 %v4576
        %v6686 = vpop.f32.mrb[0].mxu0
        %v6687 = vadd.f32 %v6574, %v6686
        %v6688 = vpop.f32.mrb[0].mxu0
        %v6689 = vadd.f32 %v6576, %v6688
        %v6690 = vpop.f32.mrb[0].mxu0
        %v6691 = vadd.f32 %v6578, %v6690
        %v6692 = vpop.f32.mrb[0].mxu0
        %v6693 = vadd.f32 %v6580, %v6692
        %6694 = vmatprep.mubr.bf16.mxu0 %v4581
        %6695 = vmatmul.mubr.bf16.gmra.mrb[0].mxu0 %v4580
        %v6696 = vpop.f32.mrb[0].mxu0
        %v6697 = vadd.f32 %v6584, %v6696
        %v6698 = vpop.f32.mrb[0].mxu0
        %v6699 = vadd.f32 %v6586, %v6698
        %v6700 = vpop.f32.mrb[0].mxu0
        %v6701 = vadd.f32 %v6588, %v6700
        %v6702 = vpop.f32.mrb[0].mxu0
        %v6703 = vadd.f32 %v6590, %v6702
        %6704 = vdwg.mxu0
        %6705 = vmatprep.subr.bf16.mxu0 0
        %6706 = vmatpush1.bf16.msra.mxu0 %v5585
        %6707 = vmatprep.subr.bf16.mxu0 0
        %6708 = vmatpush1.bf16.msra.mxu0 %v5592
        %6709 = vmatprep.subr.bf16.mxu0 0
        %6710 = vmatpush1.bf16.msra.mxu0 %v5599
        %6711 = vmatprep.subr.bf16.mxu0 0
        %6712 = vmatpush1.bf16.msra.mxu0 %v5606
        %6713 = vmatprep.subr.bf16.mxu0 0
        %6714 = vmatpush1.bf16.msra.mxu0 %v5613
        %6715 = vmatprep.subr.bf16.mxu0 0
        %6716 = vmatpush1.bf16.msra.mxu0 %v5620
        %6717 = vmatprep.subr.bf16.mxu0 0
        %6718 = vmatpush1.bf16.msra.mxu0 %v5627
        %6719 = vmatprep.subr.bf16.mxu0 0
        %6720 = vmatpush1.bf16.msra.mxu0 %v5634
        %6721 = vmatprep.subr.bf16.mxu0 0
        %6722 = vmatpush1.bf16.msra.mxu0 %v5641
        %6723 = vmatprep.subr.bf16.mxu0 0
        %6724 = vmatpush1.bf16.msra.mxu0 %v5648
        %6725 = vmatprep.subr.bf16.mxu0 0
        %6726 = vmatpush1.bf16.msra.mxu0 %v5655
        %6727 = vmatprep.subr.bf16.mxu0 0
        %6728 = vmatpush1.bf16.msra.mxu0 %v5662
        %6729 = vmatprep.subr.bf16.mxu0 0
        %6730 = vmatpush1.bf16.msra.mxu0 %v5669
        %6731 = vmatprep.subr.bf16.mxu0 0
        %6732 = vmatpush1.bf16.msra.mxu0 %v5676
        %6733 = vmatprep.subr.bf16.mxu0 0
        %6734 = vmatpush1.bf16.msra.mxu0 %v5683
        %6735 = vmatprep.subr.bf16.mxu0 0
        %6736 = vmatpush1.bf16.msra.mxu0 %v5690
        %6737 = vmatprep.mubr.bf16.mxu0 %v4551
        %6738 = vmatmul.mubr.bf16.gmra.mrb[0].mxu0 %v4550
        %v6739 = vpop.f32.mrb[0].mxu0
        %v6740 = vadd.f32 %v4867, %v6739
        %v6741 = vpop.f32.mrb[0].mxu0
        %v6742 = vpop.f32.mrb[0].mxu0
        %v6743 = vadd.f32 %v4867, %v6742
        %v6744 = vpop.f32.mrb[0].mxu0
        %6745 = vmatprep.mubr.bf16.mxu0 %v4555
        %6746 = vmatmul.mubr.bf16.gmra.mrb[0].mxu0 %v4554
        %v6747 = vpop.f32.mrb[0].mxu0
        %v6748 = vadd.f32 %v4867, %v6747
        %v6749 = vpop.f32.mrb[0].mxu0
        %v6750 = vpop.f32.mrb[0].mxu0
        %v6751 = vadd.f32 %v4867, %v6750
        %v6752 = vpop.f32.mrb[0].mxu0
        %6753 = vmatprep.mubr.bf16.mxu0 %v4559
        %6754 = vmatmul.mubr.bf16.gmra.mrb[0].mxu0 %v4558
        %v6755 = vpop.f32.mrb[0].mxu0
        %v6756 = vadd.f32 %v4867, %v6755
        %v6757 = vpop.f32.mrb[0].mxu0
        %v6758 = vpop.f32.mrb[0].mxu0
        %v6759 = vadd.f32 %v4867, %v6758
        %v6760 = vpop.f32.mrb[0].mxu0
        %6761 = vmatprep.mubr.bf16.mxu0 %v4563
        %6762 = vmatmul.mubr.bf16.gmra.mrb[0].mxu0 %v4562
        %v6763 = vpop.f32.mrb[0].mxu0
        %v6764 = vadd.f32 %v4867, %v6763
        %v6765 = vpop.f32.mrb[0].mxu0
        %v6766 = vpop.f32.mrb[0].mxu0
        %v6767 = vadd.f32 %v4867, %v6766
        %v6768 = vpop.f32.mrb[0].mxu0
        %6769 = vmatprep.mubr.bf16.mxu0 %v4567
        %6770 = vmatmul.mubr.bf16.gmra.mrb[0].mxu0 %v4566
        %v6771 = vpop.f32.mrb[0].mxu0
        %v6772 = vadd.f32 %v4867, %v6771
        %v6773 = vpop.f32.mrb[0].mxu0
        %v6774 = vpop.f32.mrb[0].mxu0
        %v6775 = vadd.f32 %v4867, %v6774
        %v6776 = vpop.f32.mrb[0].mxu0
        %6777 = vmatprep.mubr.bf16.mxu0 %v4571
        %6778 = vmatmul.mubr.bf16.gmra.mrb[0].mxu0 %v4570
        %v6779 = vpop.f32.mrb[0].mxu0
        %v6780 = vadd.f32 %v4867, %v6779
        %v6781 = vpop.f32.mrb[0].mxu0
        %v6782 = vpop.f32.mrb[0].mxu0
        %v6783 = vadd.f32 %v4867, %v6782
        %v6784 = vpop.f32.mrb[0].mxu0
        %6785 = vmatprep.mubr.bf16.mxu0 %v4575
        %6786 = vmatmul.mubr.bf16.gmra.mrb[0].mxu0 %v4574
        %v6787 = vpop.f32.mrb[0].mxu0
        %v6788 = vadd.f32 %v4867, %v6787
        %v6789 = vpop.f32.mrb[0].mxu0
        %v6790 = vpop.f32.mrb[0].mxu0
        %v6791 = vadd.f32 %v4867, %v6790
        %v6792 = vpop.f32.mrb[0].mxu0
        %6793 = vmatprep.mubr.bf16.mxu0 %v4579
        %6794 = vmatmul.mubr.bf16.gmra.mrb[0].mxu0 %v4578
        %v6795 = vpop.f32.mrb[0].mxu0
        %v6796 = vadd.f32 %v4867, %v6795
        %v6797 = vpop.f32.mrb[0].mxu0
        %v6798 = vpop.f32.mrb[0].mxu0
        %v6799 = vadd.f32 %v4867, %v6798
        %v6800 = vpop.f32.mrb[0].mxu0
        %6801 = vdwg.mxu0
        %6802 = vmatprep.subr.bf16.mxu0 0
        %6803 = vmatpush1.bf16.msra.mxu0 %v5697
        %6804 = vmatprep.subr.bf16.mxu0 0
        %6805 = vmatpush1.bf16.msra.mxu0 %v5704
        %6806 = vmatprep.subr.bf16.mxu0 0
        %6807 = vmatpush1.bf16.msra.mxu0 %v5711
        %6808 = vmatprep.subr.bf16.mxu0 0
        %6809 = vmatpush1.bf16.msra.mxu0 %v5718
        %6810 = vmatprep.subr.bf16.mxu0 0
        %6811 = vmatpush1.bf16.msra.mxu0 %v5725
        %6812 = vmatprep.subr.bf16.mxu0 0
        %6813 = vmatpush1.bf16.msra.mxu0 %v5732
        %6814 = vmatprep.subr.bf16.mxu0 0
        %6815 = vmatpush1.bf16.msra.mxu0 %v5739
        %6816 = vmatprep.subr.bf16.mxu0 0
        %6817 = vmatpush1.bf16.msra.mxu0 %v5746
        %6818 = vmatprep.subr.bf16.mxu0 0
        %6819 = vmatpush1.bf16.msra.mxu0 %v5753
        %6820 = vmatprep.subr.bf16.mxu0 0
        %6821 = vmatpush1.bf16.msra.mxu0 %v5760
        %6822 = vmatprep.subr.bf16.mxu0 0
        %6823 = vmatpush1.bf16.msra.mxu0 %v5767
        %6824 = vmatprep.subr.bf16.mxu0 0
        %6825 = vmatpush1.bf16.msra.mxu0 %v5774
        %6826 = vmatprep.subr.bf16.mxu0 0
        %6827 = vmatpush1.bf16.msra.mxu0 %v5781
        %6828 = vmatprep.subr.bf16.mxu0 0
        %6829 = vmatpush1.bf16.msra.mxu0 %v5788
        %6830 = vmatprep.subr.bf16.mxu0 0
        %6831 = vmatpush1.bf16.msra.mxu0 %v5795
        %6832 = vmatprep.subr.bf16.mxu0 0
        %6833 = vmatpush1.bf16.msra.mxu0 %v5802
        %6834 = vmatprep.mubr.bf16.mxu0 %v4553
        %6835 = vmatmul.mubr.bf16.gmra.mrb[0].mxu0 %v4552
        %v6836 = vpop.f32.mrb[0].mxu0
        %v6837 = vadd.f32 %v6740, %v6836
        %v6838 = vpop.f32.mrb[0].mxu0
        %v6839 = vpop.f32.mrb[0].mxu0
        %v6840 = vadd.f32 %v6743, %v6839
        %v6841 = vpop.f32.mrb[0].mxu0
        %6842 = vmatprep.mubr.bf16.mxu0 %v4557
        %6843 = vmatmul.mubr.bf16.gmra.mrb[0].mxu0 %v4556
        %v6844 = vpop.f32.mrb[0].mxu0
        %v6845 = vadd.f32 %v6748, %v6844
        %v6846 = vpop.f32.mrb[0].mxu0
        %v6847 = vpop.f32.mrb[0].mxu0
        %v6848 = vadd.f32 %v6751, %v6847
        %v6849 = vpop.f32.mrb[0].mxu0
        %6850 = vmatprep.mubr.bf16.mxu0 %v4561
        %6851 = vmatmul.mubr.bf16.gmra.mrb[0].mxu0 %v4560
        %v6852 = vpop.f32.mrb[0].mxu0
        %v6853 = vadd.f32 %v6756, %v6852
        %v6854 = vpop.f32.mrb[0].mxu0
        %v6855 = vpop.f32.mrb[0].mxu0
        %v6856 = vadd.f32 %v6759, %v6855
        %v6857 = vpop.f32.mrb[0].mxu0
        %6858 = vmatprep.mubr.bf16.mxu0 %v4565
        %6859 = vmatmul.mubr.bf16.gmra.mrb[0].mxu0 %v4564
        %v6860 = vpop.f32.mrb[0].mxu0
        %v6861 = vadd.f32 %v6764, %v6860
        %v6862 = vpop.f32.mrb[0].mxu0
        %v6863 = vpop.f32.mrb[0].mxu0
        %v6864 = vadd.f32 %v6767, %v6863
        %v6865 = vpop.f32.mrb[0].mxu0
        %6866 = vmatprep.mubr.bf16.mxu0 %v4569
        %6867 = vmatmul.mubr.bf16.gmra.mrb[0].mxu0 %v4568
        %v6868 = vpop.f32.mrb[0].mxu0
        %v6869 = vadd.f32 %v6772, %v6868
        %v6870 = vpop.f32.mrb[0].mxu0
        %v6871 = vpop.f32.mrb[0].mxu0
        %v6872 = vadd.f32 %v6775, %v6871
        %v6873 = vpop.f32.mrb[0].mxu0
        %6874 = vmatprep.mubr.bf16.mxu0 %v4573
        %6875 = vmatmul.mubr.bf16.gmra.mrb[0].mxu0 %v4572
        %v6876 = vpop.f32.mrb[0].mxu0
        %v6877 = vadd.f32 %v6780, %v6876
        %v6878 = vpop.f32.mrb[0].mxu0
        %v6879 = vpop.f32.mrb[0].mxu0
        %v6880 = vadd.f32 %v6783, %v6879
        %v6881 = vpop.f32.mrb[0].mxu0
        %6882 = vmatprep.mubr.bf16.mxu0 %v4577
        %6883 = vmatmul.mubr.bf16.gmra.mrb[0].mxu0 %v4576
        %v6884 = vpop.f32.mrb[0].mxu0
        %v6885 = vadd.f32 %v6788, %v6884
        %v6886 = vpop.f32.mrb[0].mxu0
        %v6887 = vpop.f32.mrb[0].mxu0
        %v6888 = vadd.f32 %v6791, %v6887
        %v6889 = vpop.f32.mrb[0].mxu0
        %6890 = vmatprep.mubr.bf16.mxu0 %v4581
        %6891 = vmatmul.mubr.bf16.gmra.mrb[0].mxu0 %v4580
        %v6892 = vpop.f32.mrb[0].mxu0
        %v6893 = vadd.f32 %v6796, %v6892
        %v6894 = vpop.f32.mrb[0].mxu0
        %v6895 = vpop.f32.mrb[0].mxu0
        %v6896 = vadd.f32 %v6799, %v6895
        %v6897 = vpop.f32.mrb[0].mxu0
        %6898 = vdwg.mxu0
        %v6899 = vxor.u32 %v6175, 2147483648
        %v6900 = vxor.u32 %v6177, 2147483648
        %v6901 = vxor.u32 %v6401, 2147483648
        %v6902 = vxor.u32 %v6403, 2147483648
        %v6903 = vxor.u32 %v6627, 2147483648
        %v6904 = vxor.u32 %v6629, 2147483648
        %v6905 = vxor.u32 %v6837, 2147483648
        %v6906 = vxor.u32 %v6179, 2147483648
        %v6907 = vxor.u32 %v6181, 2147483648
        %v6908 = vxor.u32 %v6405, 2147483648
        %v6909 = vxor.u32 %v6407, 2147483648
        %v6910 = vxor.u32 %v6631, 2147483648
        %v6911 = vxor.u32 %v6633, 2147483648
        %v6912 = vxor.u32 %v6840, 2147483648
        %v6913 = vxor.u32 %v6185, 2147483648
        %v6914 = vxor.u32 %v6187, 2147483648
        %v6915 = vxor.u32 %v6411, 2147483648
        %v6916 = vxor.u32 %v6413, 2147483648
        %v6917 = vxor.u32 %v6637, 2147483648
        %v6918 = vxor.u32 %v6639, 2147483648
        %v6919 = vxor.u32 %v6845, 2147483648
        %v6920 = vxor.u32 %v6189, 2147483648
        %v6921 = vxor.u32 %v6191, 2147483648
        %v6922 = vxor.u32 %v6415, 2147483648
        %v6923 = vxor.u32 %v6417, 2147483648
        %v6924 = vxor.u32 %v6641, 2147483648
        %v6925 = vxor.u32 %v6643, 2147483648
        %v6926 = vxor.u32 %v6848, 2147483648
        %v6927 = vxor.u32 %v6195, 2147483648
        %v6928 = vxor.u32 %v6197, 2147483648
        %v6929 = vxor.u32 %v6421, 2147483648
        %v6930 = vxor.u32 %v6423, 2147483648
        %v6931 = vxor.u32 %v6647, 2147483648
        %v6932 = vxor.u32 %v6649, 2147483648
        %v6933 = vxor.u32 %v6853, 2147483648
        %v6934 = vxor.u32 %v6199, 2147483648
        %v6935 = vxor.u32 %v6201, 2147483648
        %v6936 = vxor.u32 %v6425, 2147483648
        %v6937 = vxor.u32 %v6427, 2147483648
        %v6938 = vxor.u32 %v6651, 2147483648
        %v6939 = vxor.u32 %v6653, 2147483648
        %v6940 = vxor.u32 %v6856, 2147483648
        %v6941 = vxor.u32 %v6205, 2147483648
        %v6942 = vxor.u32 %v6207, 2147483648
        %v6943 = vxor.u32 %v6431, 2147483648
        %v6944 = vxor.u32 %v6433, 2147483648
        %v6945 = vxor.u32 %v6657, 2147483648
        %v6946 = vxor.u32 %v6659, 2147483648
        %v6947 = vxor.u32 %v6861, 2147483648
        %v6948 = vxor.u32 %v6209, 2147483648
        %v6949 = vxor.u32 %v6211, 2147483648
        %v6950 = vxor.u32 %v6435, 2147483648
        %v6951 = vxor.u32 %v6437, 2147483648
        %v6952 = vxor.u32 %v6661, 2147483648
        %v6953 = vxor.u32 %v6663, 2147483648
        %v6954 = vxor.u32 %v6864, 2147483648
        %v6955 = vxor.u32 %v6215, 2147483648
        %v6956 = vxor.u32 %v6217, 2147483648
        %v6957 = vxor.u32 %v6441, 2147483648
        %v6958 = vxor.u32 %v6443, 2147483648
        %v6959 = vxor.u32 %v6667, 2147483648
        %v6960 = vxor.u32 %v6669, 2147483648
        %v6961 = vxor.u32 %v6869, 2147483648
        %v6962 = vxor.u32 %v6219, 2147483648
        %v6963 = vxor.u32 %v6221, 2147483648
        %v6964 = vxor.u32 %v6445, 2147483648
        %v6965 = vxor.u32 %v6447, 2147483648
        %v6966 = vxor.u32 %v6671, 2147483648
        %v6967 = vxor.u32 %v6673, 2147483648
        %v6968 = vxor.u32 %v6872, 2147483648
        %v6969 = vxor.u32 %v6225, 2147483648
        %v6970 = vxor.u32 %v6227, 2147483648
        %v6971 = vxor.u32 %v6451, 2147483648
        %v6972 = vxor.u32 %v6453, 2147483648
        %v6973 = vxor.u32 %v6677, 2147483648
        %v6974 = vxor.u32 %v6679, 2147483648
        %v6975 = vxor.u32 %v6877, 2147483648
        %v6976 = vxor.u32 %v6229, 2147483648
        %v6977 = vxor.u32 %v6231, 2147483648
        %v6978 = vxor.u32 %v6455, 2147483648
        %v6979 = vxor.u32 %v6457, 2147483648
        %v6980 = vxor.u32 %v6681, 2147483648
        %v6981 = vxor.u32 %v6683, 2147483648
        %v6982 = vxor.u32 %v6880, 2147483648
        %v6983 = vxor.u32 %v6235, 2147483648
        %v6984 = vxor.u32 %v6237, 2147483648
        %v6985 = vxor.u32 %v6461, 2147483648
        %v6986 = vxor.u32 %v6463, 2147483648
        %v6987 = vxor.u32 %v6687, 2147483648
        %v6988 = vxor.u32 %v6689, 2147483648
        %v6989 = vxor.u32 %v6885, 2147483648
        %v6990 = vxor.u32 %v6239, 2147483648
        %v6991 = vxor.u32 %v6241, 2147483648
        %v6992 = vxor.u32 %v6465, 2147483648
        %v6993 = vxor.u32 %v6467, 2147483648
        %v6994 = vxor.u32 %v6691, 2147483648
        %v6995 = vxor.u32 %v6693, 2147483648
        %v6996 = vxor.u32 %v6888, 2147483648
        %v6997 = vxor.u32 %v6245, 2147483648
        %v6998 = vxor.u32 %v6247, 2147483648
        %v6999 = vxor.u32 %v6471, 2147483648
        %v7000 = vxor.u32 %v6473, 2147483648
        %v7001 = vxor.u32 %v6697, 2147483648
        %v7002 = vxor.u32 %v6699, 2147483648
        %v7003 = vxor.u32 %v6893, 2147483648
        %v7004 = vxor.u32 %v6249, 2147483648
        %v7005 = vxor.u32 %v6251, 2147483648
        %v7006 = vxor.u32 %v6475, 2147483648
        %v7007 = vxor.u32 %v6477, 2147483648
        %v7008 = vxor.u32 %v6701, 2147483648
        %v7009 = vxor.u32 %v6703, 2147483648
        %v7010 = vxor.u32 %v6896, 2147483648
        %v7011 = vmul.f32 %v6899, 1.442695
        %v7012 = vpow.pop %v7011
        %v7013 = vmul.f32 %v6900, 1.442695
        %v7014 = vpow.pop %v7013
        %v7015 = vmul.f32 %v6901, 1.442695
        %v7016 = vpow.pop %v7015
        %v7017 = vmul.f32 %v6902, 1.442695
        %v7018 = vpow.pop %v7017
        %v7019 = vmul.f32 %v6903, 1.442695
        %v7020 = vpow.pop %v7019
        %v7021 = vmul.f32 %v6904, 1.442695
        %v7022 = vpow.pop %v7021
        %v7023 = vmul.f32 %v6905, 1.442695
        %v7024 = vpow.pop %v7023
        %v7025 = vmul.f32 %v6906, 1.442695
        %v7026 = vpow.pop %v7025
        %v7027 = vmul.f32 %v6907, 1.442695
        %v7028 = vpow.pop %v7027
        %v7029 = vmul.f32 %v6908, 1.442695
        %v7030 = vpow.pop %v7029
        %v7031 = vmul.f32 %v6909, 1.442695
        %v7032 = vpow.pop %v7031
        %v7033 = vmul.f32 %v6910, 1.442695
        %v7034 = vpow.pop %v7033
        %v7035 = vmul.f32 %v6911, 1.442695
        %v7036 = vpow.pop %v7035
        %v7037 = vmul.f32 %v6912, 1.442695
        %v7038 = vpow.pop %v7037
        %v7039 = vmul.f32 %v6913, 1.442695
        %v7040 = vpow.pop %v7039
        %v7041 = vmul.f32 %v6914, 1.442695
        %v7042 = vpow.pop %v7041
        %v7043 = vmul.f32 %v6915, 1.442695
        %v7044 = vpow.pop %v7043
        %v7045 = vmul.f32 %v6916, 1.442695
        %v7046 = vpow.pop %v7045
        %v7047 = vmul.f32 %v6917, 1.442695
        %v7048 = vpow.pop %v7047
        %v7049 = vmul.f32 %v6918, 1.442695
        %v7050 = vpow.pop %v7049
        %v7051 = vmul.f32 %v6919, 1.442695
        %v7052 = vpow.pop %v7051
        %v7053 = vmul.f32 %v6920, 1.442695
        %v7054 = vpow.pop %v7053
        %v7055 = vmul.f32 %v6921, 1.442695
        %v7056 = vpow.pop %v7055
        %v7057 = vmul.f32 %v6922, 1.442695
        %v7058 = vpow.pop %v7057
        %v7059 = vmul.f32 %v6923, 1.442695
        %v7060 = vpow.pop %v7059
        %v7061 = vmul.f32 %v6924, 1.442695
        %v7062 = vpow.pop %v7061
        %v7063 = vmul.f32 %v6925, 1.442695
        %v7064 = vpow.pop %v7063
        %v7065 = vmul.f32 %v6926, 1.442695
        %v7066 = vpow.pop %v7065
        %v7067 = vmul.f32 %v6927, 1.442695
        %v7068 = vpow.pop %v7067
        %v7069 = vmul.f32 %v6928, 1.442695
        %v7070 = vpow.pop %v7069
        %v7071 = vmul.f32 %v6929, 1.442695
        %v7072 = vpow.pop %v7071
        %v7073 = vmul.f32 %v6930, 1.442695
        %v7074 = vpow.pop %v7073
        %v7075 = vmul.f32 %v6931, 1.442695
        %v7076 = vpow.pop %v7075
        %v7077 = vmul.f32 %v6932, 1.442695
        %v7078 = vpow.pop %v7077
        %v7079 = vmul.f32 %v6933, 1.442695
        %v7080 = vpow.pop %v7079
        %v7081 = vmul.f32 %v6934, 1.442695
        %v7082 = vpow.pop %v7081
        %v7083 = vmul.f32 %v6935, 1.442695
        %v7084 = vpow.pop %v7083
        %v7085 = vmul.f32 %v6936, 1.442695
        %v7086 = vpow.pop %v7085
        %v7087 = vmul.f32 %v6937, 1.442695
        %v7088 = vpow.pop %v7087
        %v7089 = vmul.f32 %v6938, 1.442695
        %v7090 = vpow.pop %v7089
        %v7091 = vmul.f32 %v6939, 1.442695
        %v7092 = vpow.pop %v7091
        %v7093 = vmul.f32 %v6940, 1.442695
        %v7094 = vpow.pop %v7093
        %v7095 = vmul.f32 %v6941, 1.442695
        %v7096 = vpow.pop %v7095
        %v7097 = vmul.f32 %v6942, 1.442695
        %v7098 = vpow.pop %v7097
        %v7099 = vmul.f32 %v6943, 1.442695
        %v7100 = vpow.pop %v7099
        %v7101 = vmul.f32 %v6944, 1.442695
        %v7102 = vpow.pop %v7101
        %v7103 = vmul.f32 %v6945, 1.442695
        %v7104 = vpow.pop %v7103
        %v7105 = vmul.f32 %v6946, 1.442695
        %v7106 = vpow.pop %v7105
        %v7107 = vmul.f32 %v6947, 1.442695
        %v7108 = vpow.pop %v7107
        %v7109 = vmul.f32 %v6948, 1.442695
        %v7110 = vpow.pop %v7109
        %v7111 = vmul.f32 %v6949, 1.442695
        %v7112 = vpow.pop %v7111
        %v7113 = vmul.f32 %v6950, 1.442695
        %v7114 = vpow.pop %v7113
        %v7115 = vmul.f32 %v6951, 1.442695
        %v7116 = vpow.pop %v7115
        %v7117 = vmul.f32 %v6952, 1.442695
        %v7118 = vpow.pop %v7117
        %v7119 = vmul.f32 %v6953, 1.442695
        %v7120 = vpow.pop %v7119
        %v7121 = vmul.f32 %v6954, 1.442695
        %v7122 = vpow.pop %v7121
        %v7123 = vmul.f32 %v6955, 1.442695
        %v7124 = vpow.pop %v7123
        %v7125 = vmul.f32 %v6956, 1.442695
        %v7126 = vpow.pop %v7125
        %v7127 = vmul.f32 %v6957, 1.442695
        %v7128 = vpow.pop %v7127
        %v7129 = vmul.f32 %v6958, 1.442695
        %v7130 = vpow.pop %v7129
        %v7131 = vmul.f32 %v6959, 1.442695
        %v7132 = vpow.pop %v7131
        %v7133 = vmul.f32 %v6960, 1.442695
        %v7134 = vpow.pop %v7133
        %v7135 = vmul.f32 %v6961, 1.442695
        %v7136 = vpow.pop %v7135
        %v7137 = vmul.f32 %v6962, 1.442695
        %v7138 = vpow.pop %v7137
        %v7139 = vmul.f32 %v6963, 1.442695
        %v7140 = vpow.pop %v7139
        %v7141 = vmul.f32 %v6964, 1.442695
        %v7142 = vpow.pop %v7141
        %v7143 = vmul.f32 %v6965, 1.442695
        %v7144 = vpow.pop %v7143
        %v7145 = vmul.f32 %v6966, 1.442695
        %v7146 = vpow.pop %v7145
        %v7147 = vmul.f32 %v6967, 1.442695
        %v7148 = vpow.pop %v7147
        %v7149 = vmul.f32 %v6968, 1.442695
        %v7150 = vpow.pop %v7149
        %v7151 = vmul.f32 %v6969, 1.442695
        %v7152 = vpow.pop %v7151
        %v7153 = vmul.f32 %v6970, 1.442695
        %v7154 = vpow.pop %v7153
        %v7155 = vmul.f32 %v6971, 1.442695
        %v7156 = vpow.pop %v7155
        %v7157 = vmul.f32 %v6972, 1.442695
        %v7158 = vpow.pop %v7157
        %v7159 = vmul.f32 %v6973, 1.442695
        %v7160 = vpow.pop %v7159
        %v7161 = vmul.f32 %v6974, 1.442695
        %v7162 = vpow.pop %v7161
        %v7163 = vmul.f32 %v6975, 1.442695
        %v7164 = vpow.pop %v7163
        %v7165 = vmul.f32 %v6976, 1.442695
        %v7166 = vpow.pop %v7165
        %v7167 = vmul.f32 %v6977, 1.442695
        %v7168 = vpow.pop %v7167
        %v7169 = vmul.f32 %v6978, 1.442695
        %v7170 = vpow.pop %v7169
        %v7171 = vmul.f32 %v6979, 1.442695
        %v7172 = vpow.pop %v7171
        %v7173 = vmul.f32 %v6980, 1.442695
        %v7174 = vpow.pop %v7173
        %v7175 = vmul.f32 %v6981, 1.442695
        %v7176 = vpow.pop %v7175
        %v7177 = vmul.f32 %v6982, 1.442695
        %v7178 = vpow.pop %v7177
        %v7179 = vmul.f32 %v6983, 1.442695
        %v7180 = vpow.pop %v7179
        %v7181 = vmul.f32 %v6984, 1.442695
        %v7182 = vpow.pop %v7181
        %v7183 = vmul.f32 %v6985, 1.442695
        %v7184 = vpow.pop %v7183
        %v7185 = vmul.f32 %v6986, 1.442695
        %v7186 = vpow.pop %v7185
        %v7187 = vmul.f32 %v6987, 1.442695
        %v7188 = vpow.pop %v7187
        %v7189 = vmul.f32 %v6988, 1.442695
        %v7190 = vpow.pop %v7189
        %v7191 = vmul.f32 %v6989, 1.442695
        %v7192 = vpow.pop %v7191
        %v7193 = vmul.f32 %v6990, 1.442695
        %v7194 = vpow.pop %v7193
        %v7195 = vmul.f32 %v6991, 1.442695
        %v7196 = vpow.pop %v7195
        %v7197 = vmul.f32 %v6992, 1.442695
        %v7198 = vpow.pop %v7197
        %v7199 = vmul.f32 %v6993, 1.442695
        %v7200 = vpow.pop %v7199
        %v7201 = vmul.f32 %v6994, 1.442695
        %v7202 = vpow.pop %v7201
        %v7203 = vmul.f32 %v6995, 1.442695
        %v7204 = vpow.pop %v7203
        %v7205 = vmul.f32 %v6996, 1.442695
        %v7206 = vpow.pop %v7205
        %v7207 = vmul.f32 %v6997, 1.442695
        %v7208 = vpow.pop %v7207
        %v7209 = vmul.f32 %v6998, 1.442695
        %v7210 = vpow.pop %v7209
        %v7211 = vmul.f32 %v6999, 1.442695
        %v7212 = vpow.pop %v7211
        %v7213 = vmul.f32 %v7000, 1.442695
        %v7214 = vpow.pop %v7213
        %v7215 = vmul.f32 %v7001, 1.442695
        %v7216 = vpow.pop %v7215
        %v7217 = vmul.f32 %v7002, 1.442695
        %v7218 = vpow.pop %v7217
        %v7219 = vmul.f32 %v7003, 1.442695
        %v7220 = vpow.pop %v7219
        %v7221 = vmul.f32 %v7004, 1.442695
        %v7222 = vpow.pop %v7221
        %v7223 = vmul.f32 %v7005, 1.442695
        %v7224 = vpow.pop %v7223
        %v7225 = vmul.f32 %v7006, 1.442695
        %v7226 = vpow.pop %v7225
        %v7227 = vmul.f32 %v7007, 1.442695
        %v7228 = vpow.pop %v7227
        %v7229 = vmul.f32 %v7008, 1.442695
        %v7230 = vpow.pop %v7229
        %v7231 = vmul.f32 %v7009, 1.442695
        %v7232 = vpow.pop %v7231
        %v7233 = vmul.f32 %v7010, 1.442695
        %v7234 = vpow.pop %v7233
        %v7235 = vadd.f32 %v7012, 1.0
        %v7236 = vadd.f32 %v7014, 1.0
        %v7237 = vadd.f32 %v7016, 1.0
        %v7238 = vadd.f32 %v7018, 1.0
        %v7239 = vadd.f32 %v7020, 1.0
        %v7240 = vadd.f32 %v7022, 1.0
        %v7241 = vadd.f32 %v7024, 1.0
        %v7242 = vadd.f32 %v7026, 1.0
        %v7243 = vadd.f32 %v7028, 1.0
        %v7244 = vadd.f32 %v7030, 1.0
        %v7245 = vadd.f32 %v7032, 1.0
        %v7246 = vadd.f32 %v7034, 1.0
        %v7247 = vadd.f32 %v7036, 1.0
        %v7248 = vadd.f32 %v7038, 1.0
        %v7249 = vadd.f32 %v7040, 1.0
        %v7250 = vadd.f32 %v7042, 1.0
        %v7251 = vadd.f32 %v7044, 1.0
        %v7252 = vadd.f32 %v7046, 1.0
        %v7253 = vadd.f32 %v7048, 1.0
        %v7254 = vadd.f32 %v7050, 1.0
        %v7255 = vadd.f32 %v7052, 1.0
        %v7256 = vadd.f32 %v7054, 1.0
        %v7257 = vadd.f32 %v7056, 1.0
        %v7258 = vadd.f32 %v7058, 1.0
        %v7259 = vadd.f32 %v7060, 1.0
        %v7260 = vadd.f32 %v7062, 1.0
        %v7261 = vadd.f32 %v7064, 1.0
        %v7262 = vadd.f32 %v7066, 1.0
        %v7263 = vadd.f32 %v7068, 1.0
        %v7264 = vadd.f32 %v7070, 1.0
        %v7265 = vadd.f32 %v7072, 1.0
        %v7266 = vadd.f32 %v7074, 1.0
        %v7267 = vadd.f32 %v7076, 1.0
        %v7268 = vadd.f32 %v7078, 1.0
        %v7269 = vadd.f32 %v7080, 1.0
        %v7270 = vadd.f32 %v7082, 1.0
        %v7271 = vadd.f32 %v7084, 1.0
        %v7272 = vadd.f32 %v7086, 1.0
        %v7273 = vadd.f32 %v7088, 1.0
        %v7274 = vadd.f32 %v7090, 1.0
        %v7275 = vadd.f32 %v7092, 1.0
        %v7276 = vadd.f32 %v7094, 1.0
        %v7277 = vadd.f32 %v7096, 1.0
        %v7278 = vadd.f32 %v7098, 1.0
        %v7279 = vadd.f32 %v7100, 1.0
        %v7280 = vadd.f32 %v7102, 1.0
        %v7281 = vadd.f32 %v7104, 1.0
        %v7282 = vadd.f32 %v7106, 1.0
        %v7283 = vadd.f32 %v7108, 1.0
        %v7284 = vadd.f32 %v7110, 1.0
        %v7285 = vadd.f32 %v7112, 1.0
        %v7286 = vadd.f32 %v7114, 1.0
        %v7287 = vadd.f32 %v7116, 1.0
        %v7288 = vadd.f32 %v7118, 1.0
        %v7289 = vadd.f32 %v7120, 1.0
        %v7290 = vadd.f32 %v7122, 1.0
        %v7291 = vadd.f32 %v7124, 1.0
        %v7292 = vadd.f32 %v7126, 1.0
        %v7293 = vadd.f32 %v7128, 1.0
        %v7294 = vadd.f32 %v7130, 1.0
        %v7295 = vadd.f32 %v7132, 1.0
        %v7296 = vadd.f32 %v7134, 1.0
        %v7297 = vadd.f32 %v7136, 1.0
        %v7298 = vadd.f32 %v7138, 1.0
        %v7299 = vadd.f32 %v7140, 1.0
        %v7300 = vadd.f32 %v7142, 1.0
        %v7301 = vadd.f32 %v7144, 1.0
        %v7302 = vadd.f32 %v7146, 1.0
        %v7303 = vadd.f32 %v7148, 1.0
        %v7304 = vadd.f32 %v7150, 1.0
        %v7305 = vadd.f32 %v7152, 1.0
        %v7306 = vadd.f32 %v7154, 1.0
        %v7307 = vadd.f32 %v7156, 1.0
        %v7308 = vadd.f32 %v7158, 1.0
        %v7309 = vadd.f32 %v7160, 1.0
        %v7310 = vadd.f32 %v7162, 1.0
        %v7311 = vadd.f32 %v7164, 1.0
        %v7312 = vadd.f32 %v7166, 1.0
        %v7313 = vadd.f32 %v7168, 1.0
        %v7314 = vadd.f32 %v7170, 1.0
        %v7315 = vadd.f32 %v7172, 1.0
        %v7316 = vadd.f32 %v7174, 1.0
        %v7317 = vadd.f32 %v7176, 1.0
        %v7318 = vadd.f32 %v7178, 1.0
        %v7319 = vadd.f32 %v7180, 1.0
        %v7320 = vadd.f32 %v7182, 1.0
        %v7321 = vadd.f32 %v7184, 1.0
        %v7322 = vadd.f32 %v7186, 1.0
        %v7323 = vadd.f32 %v7188, 1.0
        %v7324 = vadd.f32 %v7190, 1.0
        %v7325 = vadd.f32 %v7192, 1.0
        %v7326 = vadd.f32 %v7194, 1.0
        %v7327 = vadd.f32 %v7196, 1.0
        %v7328 = vadd.f32 %v7198, 1.0
        %v7329 = vadd.f32 %v7200, 1.0
        %v7330 = vadd.f32 %v7202, 1.0
        %v7331 = vadd.f32 %v7204, 1.0
        %v7332 = vadd.f32 %v7206, 1.0
        %v7333 = vadd.f32 %v7208, 1.0
        %v7334 = vadd.f32 %v7210, 1.0
        %v7335 = vadd.f32 %v7212, 1.0
        %v7336 = vadd.f32 %v7214, 1.0
        %v7337 = vadd.f32 %v7216, 1.0
        %v7338 = vadd.f32 %v7218, 1.0
        %v7339 = vadd.f32 %v7220, 1.0
        %v7340 = vadd.f32 %v7222, 1.0
        %v7341 = vadd.f32 %v7224, 1.0
        %v7342 = vadd.f32 %v7226, 1.0
        %v7343 = vadd.f32 %v7228, 1.0
        %v7344 = vadd.f32 %v7230, 1.0
        %v7345 = vadd.f32 %v7232, 1.0
        %v7346 = vadd.f32 %v7234, 1.0
        %v7347 = vrcp.pop %v7235
        %v7348 = vmul.f32 1.0, %v7347
        %v7349 = vrcp.pop %v7236
        %v7350 = vmul.f32 1.0, %v7349
        %v7351 = vrcp.pop %v7237
        %v7352 = vmul.f32 1.0, %v7351
        %v7353 = vrcp.pop %v7238
        %v7354 = vmul.f32 1.0, %v7353
        %v7355 = vrcp.pop %v7239
        %v7356 = vmul.f32 1.0, %v7355
        %v7357 = vrcp.pop %v7240
        %v7358 = vmul.f32 1.0, %v7357
        %v7359 = vrcp.pop %v7241
        %v7360 = vmul.f32 1.0, %v7359
        %v7361 = vrcp.pop %v7242
        %v7362 = vmul.f32 1.0, %v7361
        %v7363 = vrcp.pop %v7243
        %v7364 = vmul.f32 1.0, %v7363
        %v7365 = vrcp.pop %v7244
        %v7366 = vmul.f32 1.0, %v7365
        %v7367 = vrcp.pop %v7245
        %v7368 = vmul.f32 1.0, %v7367
        %v7369 = vrcp.pop %v7246
        %v7370 = vmul.f32 1.0, %v7369
        %v7371 = vrcp.pop %v7247
        %v7372 = vmul.f32 1.0, %v7371
        %v7373 = vrcp.pop %v7248
        %v7374 = vmul.f32 1.0, %v7373
        %v7375 = vrcp.pop %v7249
        %v7376 = vmul.f32 1.0, %v7375
        %v7377 = vrcp.pop %v7250
        %v7378 = vmul.f32 1.0, %v7377
        %v7379 = vrcp.pop %v7251
        %v7380 = vmul.f32 1.0, %v7379
        %v7381 = vrcp.pop %v7252
        %v7382 = vmul.f32 1.0, %v7381
        %v7383 = vrcp.pop %v7253
        %v7384 = vmul.f32 1.0, %v7383
        %v7385 = vrcp.pop %v7254
        %v7386 = vmul.f32 1.0, %v7385
        %v7387 = vrcp.pop %v7255
        %v7388 = vmul.f32 1.0, %v7387
        %v7389 = vrcp.pop %v7256
        %v7390 = vmul.f32 1.0, %v7389
        %v7391 = vrcp.pop %v7257
        %v7392 = vmul.f32 1.0, %v7391
        %v7393 = vrcp.pop %v7258
        %v7394 = vmul.f32 1.0, %v7393
        %v7395 = vrcp.pop %v7259
        %v7396 = vmul.f32 1.0, %v7395
        %v7397 = vrcp.pop %v7260
        %v7398 = vmul.f32 1.0, %v7397
        %v7399 = vrcp.pop %v7261
        %v7400 = vmul.f32 1.0, %v7399
        %v7401 = vrcp.pop %v7262
        %v7402 = vmul.f32 1.0, %v7401
        %v7403 = vrcp.pop %v7263
        %v7404 = vmul.f32 1.0, %v7403
        %v7405 = vrcp.pop %v7264
        %v7406 = vmul.f32 1.0, %v7405
        %v7407 = vrcp.pop %v7265
        %v7408 = vmul.f32 1.0, %v7407
        %v7409 = vrcp.pop %v7266
        %v7410 = vmul.f32 1.0, %v7409
        %v7411 = vrcp.pop %v7267
        %v7412 = vmul.f32 1.0, %v7411
        %v7413 = vrcp.pop %v7268
        %v7414 = vmul.f32 1.0, %v7413
        %v7415 = vrcp.pop %v7269
        %v7416 = vmul.f32 1.0, %v7415
        %v7417 = vrcp.pop %v7270
        %v7418 = vmul.f32 1.0, %v7417
        %v7419 = vrcp.pop %v7271
        %v7420 = vmul.f32 1.0, %v7419
        %v7421 = vrcp.pop %v7272
        %v7422 = vmul.f32 1.0, %v7421
        %v7423 = vrcp.pop %v7273
        %v7424 = vmul.f32 1.0, %v7423
        %v7425 = vrcp.pop %v7274
        %v7426 = vmul.f32 1.0, %v7425
        %v7427 = vrcp.pop %v7275
        %v7428 = vmul.f32 1.0, %v7427
        %v7429 = vrcp.pop %v7276
        %v7430 = vmul.f32 1.0, %v7429
        %v7431 = vrcp.pop %v7277
        %v7432 = vmul.f32 1.0, %v7431
        %v7433 = vrcp.pop %v7278
        %v7434 = vmul.f32 1.0, %v7433
        %v7435 = vrcp.pop %v7279
        %v7436 = vmul.f32 1.0, %v7435
        %v7437 = vrcp.pop %v7280
        %v7438 = vmul.f32 1.0, %v7437
        %v7439 = vrcp.pop %v7281
        %v7440 = vmul.f32 1.0, %v7439
        %v7441 = vrcp.pop %v7282
        %v7442 = vmul.f32 1.0, %v7441
        %v7443 = vrcp.pop %v7283
        %v7444 = vmul.f32 1.0, %v7443
        %v7445 = vrcp.pop %v7284
        %v7446 = vmul.f32 1.0, %v7445
        %v7447 = vrcp.pop %v7285
        %v7448 = vmul.f32 1.0, %v7447
        %v7449 = vrcp.pop %v7286
        %v7450 = vmul.f32 1.0, %v7449
        %v7451 = vrcp.pop %v7287
        %v7452 = vmul.f32 1.0, %v7451
        %v7453 = vrcp.pop %v7288
        %v7454 = vmul.f32 1.0, %v7453
        %v7455 = vrcp.pop %v7289
        %v7456 = vmul.f32 1.0, %v7455
        %v7457 = vrcp.pop %v7290
        %v7458 = vmul.f32 1.0, %v7457
        %v7459 = vrcp.pop %v7291
        %v7460 = vmul.f32 1.0, %v7459
        %v7461 = vrcp.pop %v7292
        %v7462 = vmul.f32 1.0, %v7461
        %v7463 = vrcp.pop %v7293
        %v7464 = vmul.f32 1.0, %v7463
        %v7465 = vrcp.pop %v7294
        %v7466 = vmul.f32 1.0, %v7465
        %v7467 = vrcp.pop %v7295
        %v7468 = vmul.f32 1.0, %v7467
        %v7469 = vrcp.pop %v7296
        %v7470 = vmul.f32 1.0, %v7469
        %v7471 = vrcp.pop %v7297
        %v7472 = vmul.f32 1.0, %v7471
        %v7473 = vrcp.pop %v7298
        %v7474 = vmul.f32 1.0, %v7473
        %v7475 = vrcp.pop %v7299
        %v7476 = vmul.f32 1.0, %v7475
        %v7477 = vrcp.pop %v7300
        %v7478 = vmul.f32 1.0, %v7477
        %v7479 = vrcp.pop %v7301
        %v7480 = vmul.f32 1.0, %v7479
        %v7481 = vrcp.pop %v7302
        %v7482 = vmul.f32 1.0, %v7481
        %v7483 = vrcp.pop %v7303
        %v7484 = vmul.f32 1.0, %v7483
        %v7485 = vrcp.pop %v7304
        %v7486 = vmul.f32 1.0, %v7485
        %v7487 = vrcp.pop %v7305
        %v7488 = vmul.f32 1.0, %v7487
        %v7489 = vrcp.pop %v7306
        %v7490 = vmul.f32 1.0, %v7489
        %v7491 = vrcp.pop %v7307
        %v7492 = vmul.f32 1.0, %v7491
        %v7493 = vrcp.pop %v7308
        %v7494 = vmul.f32 1.0, %v7493
        %v7495 = vrcp.pop %v7309
        %v7496 = vmul.f32 1.0, %v7495
        %v7497 = vrcp.pop %v7310
        %v7498 = vmul.f32 1.0, %v7497
        %v7499 = vrcp.pop %v7311
        %v7500 = vmul.f32 1.0, %v7499
        %v7501 = vrcp.pop %v7312
        %v7502 = vmul.f32 1.0, %v7501
        %v7503 = vrcp.pop %v7313
        %v7504 = vmul.f32 1.0, %v7503
        %v7505 = vrcp.pop %v7314
        %v7506 = vmul.f32 1.0, %v7505
        %v7507 = vrcp.pop %v7315
        %v7508 = vmul.f32 1.0, %v7507
        %v7509 = vrcp.pop %v7316
        %v7510 = vmul.f32 1.0, %v7509
        %v7511 = vrcp.pop %v7317
        %v7512 = vmul.f32 1.0, %v7511
        %v7513 = vrcp.pop %v7318
        %v7514 = vmul.f32 1.0, %v7513
        %v7515 = vrcp.pop %v7319
        %v7516 = vmul.f32 1.0, %v7515
        %v7517 = vrcp.pop %v7320
        %v7518 = vmul.f32 1.0, %v7517
        %v7519 = vrcp.pop %v7321
        %v7520 = vmul.f32 1.0, %v7519
        %v7521 = vrcp.pop %v7322
        %v7522 = vmul.f32 1.0, %v7521
        %v7523 = vrcp.pop %v7323
        %v7524 = vmul.f32 1.0, %v7523
        %v7525 = vrcp.pop %v7324
        %v7526 = vmul.f32 1.0, %v7525
        %v7527 = vrcp.pop %v7325
        %v7528 = vmul.f32 1.0, %v7527
        %v7529 = vrcp.pop %v7326
        %v7530 = vmul.f32 1.0, %v7529
        %v7531 = vrcp.pop %v7327
        %v7532 = vmul.f32 1.0, %v7531
        %v7533 = vrcp.pop %v7328
        %v7534 = vmul.f32 1.0, %v7533
        %v7535 = vrcp.pop %v7329
        %v7536 = vmul.f32 1.0, %v7535
        %v7537 = vrcp.pop %v7330
        %v7538 = vmul.f32 1.0, %v7537
        %v7539 = vrcp.pop %v7331
        %v7540 = vmul.f32 1.0, %v7539
        %v7541 = vrcp.pop %v7332
        %v7542 = vmul.f32 1.0, %v7541
        %v7543 = vrcp.pop %v7333
        %v7544 = vmul.f32 1.0, %v7543
        %v7545 = vrcp.pop %v7334
        %v7546 = vmul.f32 1.0, %v7545
        %v7547 = vrcp.pop %v7335
        %v7548 = vmul.f32 1.0, %v7547
        %v7549 = vrcp.pop %v7336
        %v7550 = vmul.f32 1.0, %v7549
        %v7551 = vrcp.pop %v7337
        %v7552 = vmul.f32 1.0, %v7551
        %v7553 = vrcp.pop %v7338
        %v7554 = vmul.f32 1.0, %v7553
        %v7555 = vrcp.pop %v7339
        %v7556 = vmul.f32 1.0, %v7555
        %v7557 = vrcp.pop %v7340
        %v7558 = vmul.f32 1.0, %v7557
        %v7559 = vrcp.pop %v7341
        %v7560 = vmul.f32 1.0, %v7559
        %v7561 = vrcp.pop %v7342
        %v7562 = vmul.f32 1.0, %v7561
        %v7563 = vrcp.pop %v7343
        %v7564 = vmul.f32 1.0, %v7563
        %v7565 = vrcp.pop %v7344
        %v7566 = vmul.f32 1.0, %v7565
        %v7567 = vrcp.pop %v7345
        %v7568 = vmul.f32 1.0, %v7567
        %v7569 = vrcp.pop %v7346
        %v7570 = vmul.f32 1.0, %v7569
        %7571 = vst [vmem:[%s557] sm:$0xff] %v7348
        %7572 = vst [vmem:[%s557 + $0x8] sm:$0xff] %v7350
        %7573 = vst [vmem:[%s557 + $0x10] sm:$0xff] %v7352
        %7574 = vst [vmem:[%s557 + $0x18] sm:$0xff] %v7354
        %7575 = vst [vmem:[%s557 + $0x20] sm:$0xff] %v7356
        %7576 = vst [vmem:[%s557 + $0x28] sm:$0xff] %v7358
        %7577 = vst [vmem:[%s557 + $0x30] sm:$0xff] %v7360
        %7578 = vst [vmem:[%s557 + $0x38] sm:$0xff] %v7362
        %7579 = vst [vmem:[%s557 + $0x40] sm:$0xff] %v7364
        %7580 = vst [vmem:[%s557 + $0x48] sm:$0xff] %v7366
        %7581 = vst [vmem:[%s557 + $0x50] sm:$0xff] %v7368
        %7582 = vst [vmem:[%s557 + $0x58] sm:$0xff] %v7370
        %7583 = vst [vmem:[%s557 + $0x60] sm:$0xff] %v7372
        %7584 = vst [vmem:[%s557 + $0x68] sm:$0xff] %v7374
        %7585 = vst [vmem:[%s557 + $0x70] sm:$0xff] %v7376
        %7586 = vst [vmem:[%s557 + $0x78] sm:$0xff] %v7378
        %7587 = vst [vmem:[%s557 + $0x80] sm:$0xff] %v7380
        %7588 = vst [vmem:[%s557 + $0x88] sm:$0xff] %v7382
        %7589 = vst [vmem:[%s557 + $0x90] sm:$0xff] %v7384
        %7590 = vst [vmem:[%s557 + $0x98] sm:$0xff] %v7386
        %7591 = vst [vmem:[%s557 + $0xa0] sm:$0xff] %v7388
        %7592 = vst [vmem:[%s557 + $0xa8] sm:$0xff] %v7390
        %7593 = vst [vmem:[%s557 + $0xb0] sm:$0xff] %v7392
        %7594 = vst [vmem:[%s557 + $0xb8] sm:$0xff] %v7394
        %7595 = vst [vmem:[%s557 + $0xc0] sm:$0xff] %v7396
        %7596 = vst [vmem:[%s557 + $0xc8] sm:$0xff] %v7398
        %7597 = vst [vmem:[%s557 + $0xd0] sm:$0xff] %v7400
        %7598 = vst [vmem:[%s557 + $0xd8] sm:$0xff] %v7402
        %7599 = vst [vmem:[%s557 + $0xe0] sm:$0xff] %v7404
        %7600 = vst [vmem:[%s557 + $0xe8] sm:$0xff] %v7406
        %7601 = vst [vmem:[%s557 + $0xf0] sm:$0xff] %v7408
        %7602 = vst [vmem:[%s557 + $0xf8] sm:$0xff] %v7410
        %7603 = vst [vmem:[%s557 + $0x100] sm:$0xff] %v7412
        %7604 = vst [vmem:[%s557 + $0x108] sm:$0xff] %v7414
        %7605 = vst [vmem:[%s557 + $0x110] sm:$0xff] %v7416
        %7606 = vst [vmem:[%s557 + $0x118] sm:$0xff] %v7418
        %7607 = vst [vmem:[%s557 + $0x120] sm:$0xff] %v7420
        %7608 = vst [vmem:[%s557 + $0x128] sm:$0xff] %v7422
        %7609 = vst [vmem:[%s557 + $0x130] sm:$0xff] %v7424
        %7610 = vst [vmem:[%s557 + $0x138] sm:$0xff] %v7426
        %7611 = vst [vmem:[%s557 + $0x140] sm:$0xff] %v7428
        %7612 = vst [vmem:[%s557 + $0x148] sm:$0xff] %v7430
        %7613 = vst [vmem:[%s557 + $0x150] sm:$0xff] %v7432
        %7614 = vst [vmem:[%s557 + $0x158] sm:$0xff] %v7434
        %7615 = vst [vmem:[%s557 + $0x160] sm:$0xff] %v7436
        %7616 = vst [vmem:[%s557 + $0x168] sm:$0xff] %v7438
        %7617 = vst [vmem:[%s557 + $0x170] sm:$0xff] %v7440
        %7618 = vst [vmem:[%s557 + $0x178] sm:$0xff] %v7442
        %7619 = vst [vmem:[%s557 + $0x180] sm:$0xff] %v7444
        %7620 = vst [vmem:[%s557 + $0x188] sm:$0xff] %v7446
        %7621 = vst [vmem:[%s557 + $0x190] sm:$0xff] %v7448
        %7622 = vst [vmem:[%s557 + $0x198] sm:$0xff] %v7450
        %7623 = vst [vmem:[%s557 + $0x1a0] sm:$0xff] %v7452
        %7624 = vst [vmem:[%s557 + $0x1a8] sm:$0xff] %v7454
        %7625 = vst [vmem:[%s557 + $0x1b0] sm:$0xff] %v7456
        %7626 = vst [vmem:[%s557 + $0x1b8] sm:$0xff] %v7458
        %7627 = vst [vmem:[%s557 + $0x1c0] sm:$0xff] %v7460
        %7628 = vst [vmem:[%s557 + $0x1c8] sm:$0xff] %v7462
        %7629 = vst [vmem:[%s557 + $0x1d0] sm:$0xff] %v7464
        %7630 = vst [vmem:[%s557 + $0x1d8] sm:$0xff] %v7466
        %7631 = vst [vmem:[%s557 + $0x1e0] sm:$0xff] %v7468
        %7632 = vst [vmem:[%s557 + $0x1e8] sm:$0xff] %v7470
        %7633 = vst [vmem:[%s557 + $0x1f0] sm:$0xff] %v7472
        %7634 = vst [vmem:[%s557 + $0x1f8] sm:$0xff] %v7474
        %7635 = vst [vmem:[%s557 + $0x200] sm:$0xff] %v7476
        %7636 = vst [vmem:[%s557 + $0x208] sm:$0xff] %v7478
        %7637 = vst [vmem:[%s557 + $0x210] sm:$0xff] %v7480
        %7638 = vst [vmem:[%s557 + $0x218] sm:$0xff] %v7482
        %7639 = vst [vmem:[%s557 + $0x220] sm:$0xff] %v7484
        %7640 = vst [vmem:[%s557 + $0x228] sm:$0xff] %v7486
        %7641 = vst [vmem:[%s557 + $0x230] sm:$0xff] %v7488
        %7642 = vst [vmem:[%s557 + $0x238] sm:$0xff] %v7490
        %7643 = vst [vmem:[%s557 + $0x240] sm:$0xff] %v7492
        %7644 = vst [vmem:[%s557 + $0x248] sm:$0xff] %v7494
        %7645 = vst [vmem:[%s557 + $0x250] sm:$0xff] %v7496
        %7646 = vst [vmem:[%s557 + $0x258] sm:$0xff] %v7498
        %7647 = vst [vmem:[%s557 + $0x260] sm:$0xff] %v7500
        %7648 = vst [vmem:[%s557 + $0x268] sm:$0xff] %v7502
        %7649 = vst [vmem:[%s557 + $0x270] sm:$0xff] %v7504
        %7650 = vst [vmem:[%s557 + $0x278] sm:$0xff] %v7506
        %7651 = vst [vmem:[%s557 + $0x280] sm:$0xff] %v7508
        %7652 = vst [vmem:[%s557 + $0x288] sm:$0xff] %v7510
        %7653 = vst [vmem:[%s557 + $0x290] sm:$0xff] %v7512
        %7654 = vst [vmem:[%s557 + $0x298] sm:$0xff] %v7514
        %7655 = vst [vmem:[%s557 + $0x2a0] sm:$0xff] %v7516
        %7656 = vst [vmem:[%s557 + $0x2a8] sm:$0xff] %v7518
        %7657 = vst [vmem:[%s557 + $0x2b0] sm:$0xff] %v7520
        %7658 = vst [vmem:[%s557 + $0x2b8] sm:$0xff] %v7522
        %7659 = vst [vmem:[%s557 + $0x2c0] sm:$0xff] %v7524
        %7660 = vst [vmem:[%s557 + $0x2c8] sm:$0xff] %v7526
        %7661 = vst [vmem:[%s557 + $0x2d0] sm:$0xff] %v7528
        %7662 = vst [vmem:[%s557 + $0x2d8] sm:$0xff] %v7530
        %7663 = vst [vmem:[%s557 + $0x2e0] sm:$0xff] %v7532
        %7664 = vst [vmem:[%s557 + $0x2e8] sm:$0xff] %v7534
        %7665 = vst [vmem:[%s557 + $0x2f0] sm:$0xff] %v7536
        %7666 = vst [vmem:[%s557 + $0x2f8] sm:$0xff] %v7538
        %7667 = vst [vmem:[%s557 + $0x300] sm:$0xff] %v7540
        %7668 = vst [vmem:[%s557 + $0x308] sm:$0xff] %v7542
        %7669 = vst [vmem:[%s557 + $0x310] sm:$0xff] %v7544
        %7670 = vst [vmem:[%s557 + $0x318] sm:$0xff] %v7546
        %7671 = vst [vmem:[%s557 + $0x320] sm:$0xff] %v7548
        %7672 = vst [vmem:[%s557 + $0x328] sm:$0xff] %v7550
        %7673 = vst [vmem:[%s557 + $0x330] sm:$0xff] %v7552
        %7674 = vst [vmem:[%s557 + $0x338] sm:$0xff] %v7554
        %7675 = vst [vmem:[%s557 + $0x340] sm:$0xff] %v7556
        %7676 = vst [vmem:[%s557 + $0x348] sm:$0xff] %v7558
        %7677 = vst [vmem:[%s557 + $0x350] sm:$0xff] %v7560
        %7678 = vst [vmem:[%s557 + $0x358] sm:$0xff] %v7562
        %7679 = vst [vmem:[%s557 + $0x360] sm:$0xff] %v7564
        %7680 = vst [vmem:[%s557 + $0x368] sm:$0xff] %v7566
        %7681 = vst [vmem:[%s557 + $0x370] sm:$0xff] %v7568
        %7682 = vst [vmem:[%s557 + $0x378] sm:$0xff] %v7570
        %s7683 = sand.u32 %s267, 1
        %s7684 = scalar_lea.sflag [#allocation4], %s7683
        %s7685 = sand.u32 %s267, 1
        %s7686 = smul.addr %s7685, 896
        %s7687 = scalar_lea.vmem [#allocation19], %s7686
        %s7688 = sand.u32 %s293, 1
        %s7689 = scalar_lea.sflag [#allocation21], %s7688
        %s7690 = sand.u32 %s293, 1
        %s7691 = smul.addr %s7690, 256
        %s7692 = scalar_lea.vmem [#allocation20], %s7691
        // Predicated region
        $region101: #{tpu_custom_call.1} parent=59 // pred_check
          %p7693 = pneg %p277
        $region102: #{tpu_custom_call.1} parent=59 // pred_check_branch
          %7695 = sbr.rel (%p7693) target = $region104
        $region103: #{tpu_custom_call.1} parent=59 // pred_region
          %s7696 = smul.u32 16, %s39
          %s7698 = ssub.s32 14336, 14336
          %7699 = vsyncadd %s7684, %s7698
          %s7700 = smul.addr %s7696, 7
          %s7701 = smul.addr %s7700, 128
          %s7702 = scalar_lea.hbm %s10, %s7701
          %s7703 = sshll.u32 %s7687, 4
          %s7704 = int_to_ptr.vmem [resolvable:$true] %s7703
          %7709 = dma.vmem_to_hbm [thread:$0]  %s7704, 14336, %s7702, %s7684, 896, 896, 56
        $region104: #{tpu_custom_call.1} parent=59 // pred_fallthru
          _
        // Predicated region
        $region105: #{tpu_custom_call.1} parent=59 // pred_check
          %p7710 = pneg %p303
        $region106: #{tpu_custom_call.1} parent=59 // pred_check_branch
          %7712 = sbr.rel (%p7710) target = $region108
        $region107: #{tpu_custom_call.1} parent=59 // pred_region
          %s7713 = smul.u32 16, %s39
          %s7715 = ssub.s32 4096, 4096
          %7716 = vsyncadd %s7689, %s7715
          %s7717 = smul.addr %s7713, 2
          %s7718 = smul.addr %s7717, 128
          %s7719 = scalar_lea.hbm %s11, %s7718
          %s7720 = sshll.u32 %s7692, 4
          %s7721 = int_to_ptr.vmem [resolvable:$true] %s7720
          %7726 = dma.vmem_to_hbm [thread:$0]  %s7721, 4096, %s7719, %s7689, 256, 256, 16
        $region108: #{tpu_custom_call.1} parent=59 // pred_fallthru
          _
      $region60: #{tpu_custom_call.1} parent=5 // pred_fallthru
        _
      %p7727 = scmp.le.s32.totalorder 2, %s34
      // Predicated region
      $region109: #{tpu_custom_call.1} parent=5 // pred_check
        %p7728 = pneg %p7727
      $region110: #{tpu_custom_call.1} parent=5 // pred_check_branch
        %7730 = sbr.rel (%p7728) target = $region112
      $region111: #{tpu_custom_call.1} parent=5 // pred_region
        %s7731 = ssub.s32 %s34, 2
        // Predicated region
        $region113: #{tpu_custom_call.1} parent=111 // pred_check
          %p7732 = pneg %p283
        $region114: #{tpu_custom_call.1} parent=111 // pred_check_branch
          %7734 = sbr.rel (%p7732) target = $region116
        $region115: #{tpu_custom_call.1} parent=111 // pred_region
          %s7735 = sand.u32 %s268, 1
          %s7736 = scalar_lea.sflag [#allocation4], %s7735
          %s7737 = sand.u32 %s268, 1
          %s7738 = smul.addr %s7737, 896
          %s7739 = scalar_lea.vmem [#allocation19], %s7738
          %7740 = dma.done %s7736, 14336
        $region116: #{tpu_custom_call.1} parent=111 // pred_fallthru
          _
        // Predicated region
        $region117: #{tpu_custom_call.1} parent=111 // pred_check
          %p7741 = pneg %p309
        $region118: #{tpu_custom_call.1} parent=111 // pred_check_branch
          %7743 = sbr.rel (%p7741) target = $region120
        $region119: #{tpu_custom_call.1} parent=111 // pred_region
          %s7744 = sand.u32 %s294, 1
          %s7745 = scalar_lea.sflag [#allocation21], %s7744
          %s7746 = sand.u32 %s294, 1
          %s7747 = smul.addr %s7746, 256
          %s7748 = scalar_lea.vmem [#allocation20], %s7747
          %7749 = dma.done %s7745, 4096
        $region120: #{tpu_custom_call.1} parent=111 // pred_fallthru
          _
      $region112: #{tpu_custom_call.1} parent=5 // pred_fallthru
        _
    $region6: #{tpu_custom_call.1} parent=1 // loop_footer
      %s38 = sadd.s32 1, %s34
    $region7: #{tpu_custom_call.1} parent=1 // loop_footer_branch
      %33 = sbr.rel target = $region3
    $region8: #{tpu_custom_call.1} parent=1 // loop_exit
      _
    %7750 = vsyncpa [#allocation3], 1
    %s7751 = scalar_lea.sflag [#allocation3], 1
    %7752 = vsyncpa %s7751, 1
    %7753 = vsyncpa [#allocation6], 1
    %s7754 = scalar_lea.sflag [#allocation6], 1
    %7755 = vsyncpa %s7754, 1
    %7756 = vsyncpa [#allocation9], 1
    %7757 = vsyncpa [#allocation12], 1
    %7758 = vsyncpa [#allocation15], 1
    %7759 = vsyncpa [#allocation18], 1
    %7760 = vsyncpa [#allocation4], 1
    %s7761 = scalar_lea.sflag [#allocation4], 1
    %7762 = vsyncpa %s7761, 1
    %7763 = vsyncpa [#allocation21], 1
    %s7764 = scalar_lea.sflag [#allocation21], 1
    %7765 = vsyncpa %s7764, 1

</llo_original>
